<compile_context>
chip_gen: v6e
topology: v6e:2x2x1
jax: 0.10.0
libtpu: 0.0.40
codegen_flags: <defaults>
</compile_context>

<pallas_src>
import functools

import jax
import jax.numpy as jnp
from jax.experimental import pallas as pl
from jax.experimental.pallas import tpu as pltpu


# ----------------------------- Pallas kernel --------------------------------

def _point_mlp_fc_kernel(x_ref, w1_ref, b1_ref, w2_ref, b2_ref, w3_ref, b3_ref,
                         fw1_ref, fb1_ref, fw2_ref, fb2_ref, fw3_ref, fb3_ref,
                         out_ref, feat_sc):
    """Shared per-point MLP + global max pool + fused fc head.

    Grid = (B, N // tn).  For one batch element (grid axis 0, squeezed out of
    every block):
      x_ref : [tn, C0]   chunk of tn points (grid axis 1 walks point chunks)
      w1_ref: [C0, C1]   per-batch first-layer weight (transform pre-folded)
      feat_sc: [1, C3]   running max over point chunks (VMEM accumulator)
      out_ref: [8, Kp]   fc-head output (8 identical rows, lane-padded)
    """
    i = pl.program_id(1)

    @pl.when(i == 0)
    def _init():
        feat_sc[...] = jnp.full(feat_sc.shape, -jnp.inf, feat_sc.dtype)

    # Shared 1x1-conv MLP (BN folded into weights/biases); bf16 MXU matmuls,
    # f32 accumulation, f32 elementwise.
    x = x_ref[...].astype(jnp.bfloat16)                                 # [tn, C0]
    h = jnp.dot(x, w1_ref[...], preferred_element_type=jnp.float32) + b1_ref[...]
    h = jnp.maximum(h, 0.0)
    h = jnp.dot(h.astype(jnp.bfloat16), w2_ref[...],
                preferred_element_type=jnp.float32) + b2_ref[...]
    h = jnp.maximum(h, 0.0)
    h = jnp.dot(h.astype(jnp.bfloat16), w3_ref[...],
                preferred_element_type=jnp.float32) + b3_ref[...]       # [tn, C3]
    feat_sc[...] = jnp.maximum(feat_sc[...], jnp.max(h, axis=0, keepdims=True))

    # Epilogue: fused fc head (fc+BN+ReLU, fc+BN+ReLU, fc) on the pooled
    # feature, run once per batch element at the last point chunk.
    @pl.when(i == pl.num_programs(1) - 1)
    def _head():
        f = feat_sc[...].astype(jnp.bfloat16)                           # [1, C3]
        g = jnp.dot(f, fw1_ref[...],
                    preferred_element_type=jnp.float32) + fb1_ref[...]
        g = jnp.maximum(g, 0.0)
        g = jnp.dot(g.astype(jnp.bfloat16), fw2_ref[...],
                    preferred_element_type=jnp.float32) + fb2_ref[...]
        g = jnp.maximum(g, 0.0)
        g = jnp.dot(g.astype(jnp.bfloat16), fw3_ref[...],
                    preferred_element_type=jnp.float32) + fb3_ref[...]  # [1, Kp]
        out_ref[...] = jnp.broadcast_to(g, out_ref.shape)


# ------------------------------ Wrapper --------------------------------------

def point_mlp_fc(x, w1, b1, w2, b2, w3, b3, fw1, fb1, fw2, fb2, fw3, fb3, *,
                 tn=256):
    """x: [B, N, C0] -> fc-head output [B, Kp] (Kp lane-padded, slice outside).

    w1 may be [1, C0, C1] (shared) or [B, C0, C1] (per-batch, transform folded).
    """
    B, N, C0 = x.shape
    tn = min(tn, N)
    assert N % tn == 0 and tn % 8 == 0, (N, tn)
    C3 = w3.shape[1]
    Kp = fw3.shape[1]
    Bw = w1.shape[0]

    if Bw == B and B > 1:
        w1_map = lambda b, i: (b, 0, 0)
    else:
        w1_map = lambda b, i: (0, 0, 0)

    def const_spec(a):
        nd = a.ndim
        return pl.BlockSpec(a.shape, lambda b, i, _nd=nd: (0,) * _nd)

    out = pl.pallas_call(
        _point_mlp_fc_kernel,
        out_shape=jax.ShapeDtypeStruct((B, 8, Kp), jnp.float32),
        grid=(B, N // tn),
        in_specs=[
            pl.BlockSpec((pl.Squeezed(), tn, C0), lambda b, i: (b, i, 0)),
            pl.BlockSpec((pl.Squeezed(), w1.shape[1], w1.shape[2]), w1_map),
            const_spec(b1), const_spec(w2), const_spec(b2),
            const_spec(w3), const_spec(b3),
            const_spec(fw1), const_spec(fb1), const_spec(fw2), const_spec(fb2),
            const_spec(fw3), const_spec(fb3),
        ],
        out_specs=pl.BlockSpec((pl.Squeezed(), 8, Kp), lambda b, i: (b, 0, 0)),
        scratch_shapes=[pltpu.VMEM((1, C3), jnp.float32)],
        compiler_params=pltpu.CompilerParams(
            dimension_semantics=("parallel", "arbitrary")),
    )(x, w1, b1, w2, b2, w3, b3, fw1, fb1, fw2, fb2, fw3, fb3)
    return out[:, 0, :]                                                 # [B, Kp]


# --------------------------- Parameter building -----------------------------

def _init_linear(key, cin, cout, scale=0.05):
    kw, kb = jax.random.split(key)
    w = scale * jax.random.normal(kw, (cin, cout), jnp.float32)
    b = scale * jax.random.normal(kb, (cout,), jnp.float32)
    return w, b


def _init_bn(key, c):
    k1, k2, k3, k4 = jax.random.split(key, 4)
    gamma = 1.0 + 0.1 * jax.random.normal(k1, (c,), jnp.float32)
    beta = 0.1 * jax.random.normal(k2, (c,), jnp.float32)
    mean = 0.1 * jax.random.normal(k3, (c,), jnp.float32)
    var = jax.random.uniform(k4, (c,), jnp.float32, 0.5, 1.5)
    return gamma, beta, mean, var


def _linear_bn_folded(key, cin, cout, eps=1e-5):
    """Linear (or 1x1 conv) + eval-mode BatchNorm1d, folded exactly.

    Weight stored bf16 (MXU operand / halves DMA), bias kept f32.
    """
    kl, kb = jax.random.split(key)
    w, b = _init_linear(kl, cin, cout)
    gamma, beta, mean, var = _init_bn(kb, cout)
    s = gamma / jnp.sqrt(var + eps)
    w = w * s[None, :]
    b = (b - mean) * s + beta
    return w.astype(jnp.bfloat16), b.reshape(1, cout)


def _linear_plain_padded(key, cin, cout):
    """Final fc layer; output columns zero-padded to a multiple of 128 lanes."""
    kp = ((cout + 127) // 128) * 128
    w, b = _init_linear(key, cin, cout)
    wp = jnp.zeros((cin, kp), jnp.float32).at[:, :cout].set(w)
    bp = jnp.zeros((1, kp), jnp.float32).at[:, :cout].set(b[None, :])
    return wp.astype(jnp.bfloat16), bp


def init_params(key, num_classes):
    keys = jax.random.split(key, 12)
    # T-Net shared MLP (3 -> 64 -> 128 -> 1024), BN folded.  First-layer weight
    # carries a leading batch dim of 1 (shared across the batch).
    tw1, tb1 = _linear_bn_folded(keys[0], 3, 64)
    tw2, tb2 = _linear_bn_folded(keys[1], 64, 128)
    tw3, tb3 = _linear_bn_folded(keys[2], 128, 1024)
    tnet_conv = (tw1[None, ...], tb1, tw2, tb2, tw3, tb3)
    # T-Net fc head (1024 -> 512 -> 256 -> 9), identity folded into final bias.
    fw1, fb1 = _linear_bn_folded(keys[3], 1024, 512)
    fw2, fb2 = _linear_bn_folded(keys[4], 512, 256)
    fw3, fb3 = _linear_plain_padded(keys[5], 256, 9)
    fb3 = fb3.at[:, :9].add(jnp.eye(3, dtype=jnp.float32).reshape(1, 9))
    tnet_fc = (fw1, fb1, fw2, fb2, fw3, fb3)
    # Main shared MLP (3 -> 64 -> 128 -> 1024), BN folded.  First-layer weight
    # kept unbatched; the predicted 3x3 transform is folded into it per batch.
    mw1, mb1 = _linear_bn_folded(keys[6], 3, 64)
    mw2, mb2 = _linear_bn_folded(keys[7], 64, 128)
    mw3, mb3 = _linear_bn_folded(keys[8], 128, 1024)
    feat_conv = (mw1, mb1, mw2, mb2, mw3, mb3)
    # Classification head: fc1+bn1, fc2+bn2, fc3 (output lane-padded to 128).
    hw1, hb1 = _linear_bn_folded(keys[9], 1024, 512)
    hw2, hb2 = _linear_bn_folded(keys[10], 512, 256)
    hw3, hb3 = _linear_plain_padded(keys[11], 256, num_classes)
    head_fc = (hw1, hb1, hw2, hb2, hw3, hb3)
    return dict(tnet_conv=tnet_conv, tnet_fc=tnet_fc,
                feat_conv=feat_conv, head_fc=head_fc)


# ------------------------------ Forward pass ---------------------------------

def classification_layer_forward(x_b3n, params, *, num_classes, tn=256):
    """Input x: [B, 3, num_pts] (PyTorch layout). Returns (logits, trans)."""
    x_bnc = jnp.transpose(x_b3n, (0, 2, 1)).astype(jnp.float32)     # [B, N, 3]
    B = x_bnc.shape[0]

    # Pass 1: T-Net shared MLP + max pool + T-Net fc head (one pallas_call).
    t_out = point_mlp_fc(x_bnc, *params['tnet_conv'], *params['tnet_fc'], tn=tn)
    trans = t_out[:, :9].reshape(B, 3, 3)                           # [B, 3, 3]

    # Fold the predicted transform into the first conv weight of the main MLP:
    # (x @ T) @ W1 == x @ (T @ W1).  Tiny [B,3,3]@[3,64] -> plain JAX.
    mw1, mb1, mw2, mb2, mw3, mb3 = params['feat_conv']
    w1_fold = jnp.einsum('bij,jk->bik', trans,
                         mw1.astype(jnp.float32)).astype(jnp.bfloat16)

    # Pass 2: main shared MLP + max pool + classifier head (one pallas_call).
    # fc1+dropout(id)+bn1+relu -> fc2+dropout(id)+bn2+relu -> fc3.
    logits_p = point_mlp_fc(x_bnc, w1_fold, mb1, mw2, mb2, mw3, mb3,
                            *params['head_fc'], tn=tn)
    logits = logits_p[:, :num_classes]
    return logits, trans


# --------------------------------- Main --------------------------------------

if __name__ == "__main__":
    num_classes = 10
    B, N = 2, 512                     # small synthetic point cloud

    key = jax.random.PRNGKey(0)
    kparams, kx = jax.random.split(key)
    params = init_params(kparams, num_classes)
    x = jax.random.normal(kx, (B, 3, N), jnp.float32)

    fwd = jax.jit(functools.partial(classification_layer_forward,
                                    num_classes=num_classes))
    logits, trans = fwd(x, params)
    logits = jax.block_until_ready(logits)
    trans = jax.block_until_ready(trans)

    assert logits.shape == (B, num_classes), logits.shape
    assert trans.shape == (B, 3, 3), trans.shape
    assert bool(jnp.all(jnp.isfinite(logits)))
    assert bool(jnp.all(jnp.isfinite(trans)))
    print("KERNEL_OK")
</pallas_src>

<mosaic_0001>
module attributes {stable_mosaic.version = 11 : i64} {
  func.func @_point_mlp_fc_kernel(%arg0: i32, %arg1: i32, %arg2: memref<1x256x3xf32, #tpu.memory_space<vmem>>, %arg3: memref<1x3x64xbf16, #tpu.memory_space<vmem>>, %arg4: memref<1x64xf32, #tpu.memory_space<vmem>>, %arg5: memref<64x128xbf16, #tpu.memory_space<vmem>>, %arg6: memref<1x128xf32, #tpu.memory_space<vmem>>, %arg7: memref<128x1024xbf16, #tpu.memory_space<vmem>>, %arg8: memref<1x1024xf32, #tpu.memory_space<vmem>>, %arg9: memref<1024x512xbf16, #tpu.memory_space<vmem>>, %arg10: memref<1x512xf32, #tpu.memory_space<vmem>>, %arg11: memref<512x256xbf16, #tpu.memory_space<vmem>>, %arg12: memref<1x256xf32, #tpu.memory_space<vmem>>, %arg13: memref<256x128xbf16, #tpu.memory_space<vmem>>, %arg14: memref<1x128xf32, #tpu.memory_space<vmem>>, %arg15: memref<1x8x128xf32, #tpu.memory_space<vmem>>, %arg16: memref<1x1024xf32, #tpu.memory_space<vmem>>) attributes {dimension_semantics = [#tpu.dimension_semantics<parallel>, #tpu.dimension_semantics<arbitrary>], iteration_bounds = array<i64: 2, 2>, scalar_prefetch = 0 : i64, scratch_operands = 1 : i64, tpu.core_type = #tpu.core_type<tc>, window_params = [{transform_indices = @transform_0, window_bounds = array<i64: 1, 256, 3>}, {pipeline_mode = #tpu.pipeline_mode<synchronous>, transform_indices = @transform_1, window_bounds = array<i64: 1, 3, 64>}, {pipeline_mode = #tpu.pipeline_mode<synchronous>, transform_indices = @transform_2, window_bounds = array<i64: 1, 64>}, {pipeline_mode = #tpu.pipeline_mode<synchronous>, transform_indices = @transform_3, window_bounds = array<i64: 64, 128>}, {pipeline_mode = #tpu.pipeline_mode<synchronous>, transform_indices = @transform_4, window_bounds = array<i64: 1, 128>}, {pipeline_mode = #tpu.pipeline_mode<synchronous>, transform_indices = @transform_5, window_bounds = array<i64: 128, 1024>}, {pipeline_mode = #tpu.pipeline_mode<synchronous>, transform_indices = @transform_6, window_bounds = array<i64: 1, 1024>}, {pipeline_mode = #tpu.pipeline_mode<synchronous>, transform_indices = @transform_7, window_bounds = array<i64: 1024, 512>}, {pipeline_mode = #tpu.pipeline_mode<synchronous>, transform_indices = @transform_8, window_bounds = array<i64: 1, 512>}, {pipeline_mode = #tpu.pipeline_mode<synchronous>, transform_indices = @transform_9, window_bounds = array<i64: 512, 256>}, {pipeline_mode = #tpu.pipeline_mode<synchronous>, transform_indices = @transform_10, window_bounds = array<i64: 1, 256>}, {pipeline_mode = #tpu.pipeline_mode<synchronous>, transform_indices = @transform_11, window_bounds = array<i64: 256, 128>}, {pipeline_mode = #tpu.pipeline_mode<synchronous>, transform_indices = @transform_12, window_bounds = array<i64: 1, 128>}, {transform_indices = @transform_13, window_bounds = array<i64: 1, 8, 128>}]} {
    %c0_i32 = arith.constant 0 : i32
    %0 = arith.cmpi eq, %arg1, %c0_i32 : i32
    %1 = arith.extui %0 : i1 to i32
    %c0_i32_0 = arith.constant 0 : i32
    %2 = arith.cmpi ne, %1, %c0_i32_0 : i32
    scf.if %2 {
      %cst_26 = arith.constant 0xFF800000 : f32
      %36 = vector.broadcast %cst_26 : f32 to vector<1x1024xf32>
      %c0_27 = arith.constant 0 : index
      %c0_28 = arith.constant 0 : index
      %37 = vector.load %arg16[%c0_27, %c0_28] : memref<1x1024xf32, #tpu.memory_space<vmem>>, vector<1x1024xf32>
      tpu.vector_store %arg16[%c0_27, %c0_28], %36 {strides = array<i32>} : memref<1x1024xf32, #tpu.memory_space<vmem>>, vector<1x1024xf32>,
    } else {
    }
    %c0 = arith.constant 0 : index
    %c0_1 = arith.constant 0 : index
    %c0_2 = arith.constant 0 : index
    %3 = vector.load %arg2[%c0, %c0_1, %c0_2] : memref<1x256x3xf32, #tpu.memory_space<vmem>>, vector<1x256x3xf32>
    %4 = vector.shape_cast %3 : vector<1x256x3xf32> to vector<256x3xf32>
    %5 = arith.truncf %4 : vector<256x3xf32> to vector<256x3xbf16>
    %c0_3 = arith.constant 0 : index
    %c0_4 = arith.constant 0 : index
    %c0_5 = arith.constant 0 : index
    %6 = vector.load %arg3[%c0_3, %c0_4, %c0_5] : memref<1x3x64xbf16, #tpu.memory_space<vmem>>, vector<1x3x64xbf16>
    %7 = vector.shape_cast %6 : vector<1x3x64xbf16> to vector<3x64xbf16>
    %cst = arith.constant dense<0.000000e+00> : vector<256x64xf32>
    %8 = tpu.matmul %5, %7, %cst {dimension_numbers = #tpu.dot_dimension_numbers<[1], [0], [0], [1], [0, 0, 1, 1], [], []>} : vector<256x3xbf16>, vector<3x64xbf16>, vector<256x64xf32> -> vector<256x64xf32>
    %c0_6 = arith.constant 0 : index
    %c0_7 = arith.constant 0 : index
    %9 = vector.load %arg4[%c0_6, %c0_7] : memref<1x64xf32, #tpu.memory_space<vmem>>, vector<1x64xf32>
    %10 = vector.broadcast %9 : vector<1x64xf32> to vector<256x64xf32>
    %11 = arith.addf %8, %10 : vector<256x64xf32>
    %cst_8 = arith.constant 0.000000e+00 : f32
    %12 = vector.broadcast %cst_8 : f32 to vector<256x64xf32>
    %13 = arith.maximumf %11, %12 : vector<256x64xf32>
    %14 = arith.truncf %13 : vector<256x64xf32> to vector<256x64xbf16>
    %c0_9 = arith.constant 0 : index
    %c0_10 = arith.constant 0 : index
    %15 = vector.load %arg5[%c0_9, %c0_10] : memref<64x128xbf16, #tpu.memory_space<vmem>>, vector<64x128xbf16>
    %cst_11 = arith.constant dense<0.000000e+00> : vector<256x128xf32>
    %16 = tpu.matmul %14, %15, %cst_11 {dimension_numbers = #tpu.dot_dimension_numbers<[1], [0], [0], [1], [0, 0, 1, 1], [], []>} : vector<256x64xbf16>, vector<64x128xbf16>, vector<256x128xf32> -> vector<256x128xf32>
    %c0_12 = arith.constant 0 : index
    %c0_13 = arith.constant 0 : index
    %17 = vector.load %arg6[%c0_12, %c0_13] : memref<1x128xf32, #tpu.memory_space<vmem>>, vector<1x128xf32>
    %18 = vector.broadcast %17 : vector<1x128xf32> to vector<256x128xf32>
    %19 = arith.addf %16, %18 : vector<256x128xf32>
    %cst_14 = arith.constant 0.000000e+00 : f32
    %20 = vector.broadcast %cst_14 : f32 to vector<256x128xf32>
    %21 = arith.maximumf %19, %20 : vector<256x128xf32>
    %22 = arith.truncf %21 : vector<256x128xf32> to vector<256x128xbf16>
    %c0_15 = arith.constant 0 : index
    %c0_16 = arith.constant 0 : index
    %23 = vector.load %arg7[%c0_15, %c0_16] : memref<128x1024xbf16, #tpu.memory_space<vmem>>, vector<128x1024xbf16>
    %cst_17 = arith.constant dense<0.000000e+00> : vector<256x1024xf32>
    %24 = tpu.matmul %22, %23, %cst_17 {dimension_numbers = #tpu.dot_dimension_numbers<[1], [0], [0], [1], [0, 0, 1, 1], [], []>} : vector<256x128xbf16>, vector<128x1024xbf16>, vector<256x1024xf32> -> vector<256x1024xf32>
    %c0_18 = arith.constant 0 : index
    %c0_19 = arith.constant 0 : index
    %25 = vector.load %arg8[%c0_18, %c0_19] : memref<1x1024xf32, #tpu.memory_space<vmem>>, vector<1x1024xf32>
    %26 = vector.broadcast %25 : vector<1x1024xf32> to vector<256x1024xf32>
    %27 = arith.addf %24, %26 : vector<256x1024xf32>
    %c0_20 = arith.constant 0 : index
    %c0_21 = arith.constant 0 : index
    %28 = vector.load %arg16[%c0_20, %c0_21] : memref<1x1024xf32, #tpu.memory_space<vmem>>, vector<1x1024xf32>
    %cst_22 = arith.constant dense<0xFF800000> : vector<1024xf32>
    %29 = vector.multi_reduction <maximumf>, %27, %cst_22 [0] : vector<256x1024xf32> to vector<1024xf32>
    %30 = vector.shape_cast %29 : vector<1024xf32> to vector<1x1024xf32>
    %31 = arith.maximumf %28, %30 : vector<1x1024xf32>
    %c0_23 = arith.constant 0 : index
    %c0_24 = arith.constant 0 : index
    %32 = vector.load %arg16[%c0_23, %c0_24] : memref<1x1024xf32, #tpu.memory_space<vmem>>, vector<1x1024xf32>
    tpu.vector_store %arg16[%c0_23, %c0_24], %31 {strides = array<i32>} : memref<1x1024xf32, #tpu.memory_space<vmem>>, vector<1x1024xf32>,
    %c1_i32 = arith.constant 1 : i32
    %33 = arith.cmpi eq, %arg1, %c1_i32 : i32
    %34 = arith.extui %33 : i1 to i32
    %c0_i32_25 = arith.constant 0 : i32
    %35 = arith.cmpi ne, %34, %c0_i32_25 : i32
    scf.if %35 {
      %c0_26 = arith.constant 0 : index
      %c0_27 = arith.constant 0 : index
      %36 = vector.load %arg16[%c0_26, %c0_27] : memref<1x1024xf32, #tpu.memory_space<vmem>>, vector<1x1024xf32>
      %37 = arith.truncf %36 : vector<1x1024xf32> to vector<1x1024xbf16>
      %c0_28 = arith.constant 0 : index
      %c0_29 = arith.constant 0 : index
      %38 = vector.load %arg9[%c0_28, %c0_29] : memref<1024x512xbf16, #tpu.memory_space<vmem>>, vector<1024x512xbf16>
      %cst_30 = arith.constant dense<0.000000e+00> : vector<1x512xf32>
      %39 = tpu.matmul %37, %38, %cst_30 {dimension_numbers = #tpu.dot_dimension_numbers<[1], [0], [0], [1], [0, 0, 1, 1], [], []>} : vector<1x1024xbf16>, vector<1024x512xbf16>, vector<1x512xf32> -> vector<1x512xf32>
      %c0_31 = arith.constant 0 : index
      %c0_32 = arith.constant 0 : index
      %40 = vector.load %arg10[%c0_31, %c0_32] : memref<1x512xf32, #tpu.memory_space<vmem>>, vector<1x512xf32>
      %41 = arith.addf %39, %40 : vector<1x512xf32>
      %cst_33 = arith.constant 0.000000e+00 : f32
      %42 = vector.broadcast %cst_33 : f32 to vector<1x512xf32>
      %43 = arith.maximumf %41, %42 : vector<1x512xf32>
      %44 = arith.truncf %43 : vector<1x512xf32> to vector<1x512xbf16>
      %c0_34 = arith.constant 0 : index
      %c0_35 = arith.constant 0 : index
      %45 = vector.load %arg11[%c0_34, %c0_35] : memref<512x256xbf16, #tpu.memory_space<vmem>>, vector<512x256xbf16>
      %cst_36 = arith.constant dense<0.000000e+00> : vector<1x256xf32>
      %46 = tpu.matmul %44, %45, %cst_36 {dimension_numbers = #tpu.dot_dimension_numbers<[1], [0], [0], [1], [0, 0, 1, 1], [], []>} : vector<1x512xbf16>, vector<512x256xbf16>, vector<1x256xf32> -> vector<1x256xf32>
      %c0_37 = arith.constant 0 : index
      %c0_38 = arith.constant 0 : index
      %47 = vector.load %arg12[%c0_37, %c0_38] : memref<1x256xf32, #tpu.memory_space<vmem>>, vector<1x256xf32>
      %48 = arith.addf %46, %47 : vector<1x256xf32>
      %cst_39 = arith.constant 0.000000e+00 : f32
      %49 = vector.broadcast %cst_39 : f32 to vector<1x256xf32>
      %50 = arith.maximumf %48, %49 : vector<1x256xf32>
      %51 = arith.truncf %50 : vector<1x256xf32> to vector<1x256xbf16>
      %c0_40 = arith.constant 0 : index
      %c0_41 = arith.constant 0 : index
      %52 = vector.load %arg13[%c0_40, %c0_41] : memref<256x128xbf16, #tpu.memory_space<vmem>>, vector<256x128xbf16>
      %cst_42 = arith.constant dense<0.000000e+00> : vector<1x128xf32>
      %53 = tpu.matmul %51, %52, %cst_42 {dimension_numbers = #tpu.dot_dimension_numbers<[1], [0], [0], [1], [0, 0, 1, 1], [], []>} : vector<1x256xbf16>, vector<256x128xbf16>, vector<1x128xf32> -> vector<1x128xf32>
      %c0_43 = arith.constant 0 : index
      %c0_44 = arith.constant 0 : index
      %54 = vector.load %arg14[%c0_43, %c0_44] : memref<1x128xf32, #tpu.memory_space<vmem>>, vector<1x128xf32>
      %55 = arith.addf %53, %54 : vector<1x128xf32>
      %56 = vector.shape_cast %55 : vector<1x128xf32> to vector<1x128xf32>
      %57 = vector.broadcast %56 : vector<1x128xf32> to vector<8x128xf32>
      %c0_45 = arith.constant 0 : index
      %c0_46 = arith.constant 0 : index
      %c0_47 = arith.constant 0 : index
      %58 = vector.load %arg15[%c0_45, %c0_46, %c0_47] : memref<1x8x128xf32, #tpu.memory_space<vmem>>, vector<1x8x128xf32>
      %59 = vector.shape_cast %58 : vector<1x8x128xf32> to vector<8x128xf32>
      %60 = vector.shape_cast %57 : vector<8x128xf32> to vector<1x8x128xf32>
      tpu.vector_store %arg15[%c0_45, %c0_46, %c0_47], %60 {strides = array<i32>} : memref<1x8x128xf32, #tpu.memory_space<vmem>>, vector<1x8x128xf32>,
    } else {
    }
    return
  }
  func.func @transform_0(%arg0: i32, %arg1: i32) -> (i32, i32, i32) {
    %c0_i32 = arith.constant 0 : i32
    %c0_i32_0 = arith.constant 0 : i32
    return %arg0, %arg1, %c0_i32 : i32, i32, i32
  }
  func.func @transform_1(%arg0: i32, %arg1: i32) -> (i32, i32, i32) {
    %c0_i32 = arith.constant 0 : i32
    %c0_i32_0 = arith.constant 0 : i32
    %c0_i32_1 = arith.constant 0 : i32
    %c0_i32_2 = arith.constant 0 : i32
    return %c0_i32, %c0_i32_0, %c0_i32_1 : i32, i32, i32
  }
  func.func @transform_2(%arg0: i32, %arg1: i32) -> (i32, i32) {
    %c0_i32 = arith.constant 0 : i32
    %c0_i32_0 = arith.constant 0 : i32
    %c0_i32_1 = arith.constant 0 : i32
    return %c0_i32, %c0_i32_0 : i32, i32
  }
  func.func @transform_3(%arg0: i32, %arg1: i32) -> (i32, i32) {
    %c0_i32 = arith.constant 0 : i32
    %c0_i32_0 = arith.constant 0 : i32
    %c0_i32_1 = arith.constant 0 : i32
    return %c0_i32, %c0_i32_0 : i32, i32
  }
  func.func @transform_4(%arg0: i32, %arg1: i32) -> (i32, i32) {
    %c0_i32 = arith.constant 0 : i32
    %c0_i32_0 = arith.constant 0 : i32
    %c0_i32_1 = arith.constant 0 : i32
    return %c0_i32, %c0_i32_0 : i32, i32
  }
  func.func @transform_5(%arg0: i32, %arg1: i32) -> (i32, i32) {
    %c0_i32 = arith.constant 0 : i32
    %c0_i32_0 = arith.constant 0 : i32
    %c0_i32_1 = arith.constant 0 : i32
    return %c0_i32, %c0_i32_0 : i32, i32
  }
  func.func @transform_6(%arg0: i32, %arg1: i32) -> (i32, i32) {
    %c0_i32 = arith.constant 0 : i32
    %c0_i32_0 = arith.constant 0 : i32
    %c0_i32_1 = arith.constant 0 : i32
    return %c0_i32, %c0_i32_0 : i32, i32
  }
  func.func @transform_7(%arg0: i32, %arg1: i32) -> (i32, i32) {
    %c0_i32 = arith.constant 0 : i32
    %c0_i32_0 = arith.constant 0 : i32
    %c0_i32_1 = arith.constant 0 : i32
    return %c0_i32, %c0_i32_0 : i32, i32
  }
  func.func @transform_8(%arg0: i32, %arg1: i32) -> (i32, i32) {
    %c0_i32 = arith.constant 0 : i32
    %c0_i32_0 = arith.constant 0 : i32
    %c0_i32_1 = arith.constant 0 : i32
    return %c0_i32, %c0_i32_0 : i32, i32
  }
  func.func @transform_9(%arg0: i32, %arg1: i32) -> (i32, i32) {
    %c0_i32 = arith.constant 0 : i32
    %c0_i32_0 = arith.constant 0 : i32
    %c0_i32_1 = arith.constant 0 : i32
    return %c0_i32, %c0_i32_0 : i32, i32
  }
  func.func @transform_10(%arg0: i32, %arg1: i32) -> (i32, i32) {
    %c0_i32 = arith.constant 0 : i32
    %c0_i32_0 = arith.constant 0 : i32
    %c0_i32_1 = arith.constant 0 : i32
    return %c0_i32, %c0_i32_0 : i32, i32
  }
  func.func @transform_11(%arg0: i32, %arg1: i32) -> (i32, i32) {
    %c0_i32 = arith.constant 0 : i32
    %c0_i32_0 = arith.constant 0 : i32
    %c0_i32_1 = arith.constant 0 : i32
    return %c0_i32, %c0_i32_0 : i32, i32
  }
  func.func @transform_12(%arg0: i32, %arg1: i32) -> (i32, i32) {
    %c0_i32 = arith.constant 0 : i32
    %c0_i32_0 = arith.constant 0 : i32
    %c0_i32_1 = arith.constant 0 : i32
    return %c0_i32, %c0_i32_0 : i32, i32
  }
  func.func @transform_13(%arg0: i32, %arg1: i32) -> (i32, i32, i32) {
    %c0_i32 = arith.constant 0 : i32
    %c0_i32_0 = arith.constant 0 : i32
    %c0_i32_1 = arith.constant 0 : i32
    return %arg0, %c0_i32, %c0_i32_0 : i32, i32, i32
  }
}

module attributes {stable_mosaic.version = 11 : i64} {
  func.func @_point_mlp_fc_kernel(%arg0: i32, %arg1: i32, %arg2: memref<1x256x3xf32, #tpu.memory_space<vmem>>, %arg3: memref<1x3x64xbf16, #tpu.memory_space<vmem>>, %arg4: memref<1x64xf32, #tpu.memory_space<vmem>>, %arg5: memref<64x128xbf16, #tpu.memory_space<vmem>>, %arg6: memref<1x128xf32, #tpu.memory_space<vmem>>, %arg7: memref<128x1024xbf16, #tpu.memory_space<vmem>>, %arg8: memref<1x1024xf32, #tpu.memory_space<vmem>>, %arg9: memref<1024x512xbf16, #tpu.memory_space<vmem>>, %arg10: memref<1x512xf32, #tpu.memory_space<vmem>>, %arg11: memref<512x256xbf16, #tpu.memory_space<vmem>>, %arg12: memref<1x256xf32, #tpu.memory_space<vmem>>, %arg13: memref<256x128xbf16, #tpu.memory_space<vmem>>, %arg14: memref<1x128xf32, #tpu.memory_space<vmem>>, %arg15: memref<1x8x128xf32, #tpu.memory_space<vmem>>, %arg16: memref<1x1024xf32, #tpu.memory_space<vmem>>) attributes {dimension_semantics = [#tpu.dimension_semantics<parallel>, #tpu.dimension_semantics<arbitrary>], iteration_bounds = array<i64: 2, 2>, scalar_prefetch = 0 : i64, scratch_operands = 1 : i64, tpu.core_type = #tpu.core_type<tc>, window_params = [{transform_indices = @transform_0, window_bounds = array<i64: 1, 256, 3>}, {transform_indices = @transform_1, window_bounds = array<i64: 1, 3, 64>}, {pipeline_mode = #tpu.pipeline_mode<synchronous>, transform_indices = @transform_2, window_bounds = array<i64: 1, 64>}, {pipeline_mode = #tpu.pipeline_mode<synchronous>, transform_indices = @transform_3, window_bounds = array<i64: 64, 128>}, {pipeline_mode = #tpu.pipeline_mode<synchronous>, transform_indices = @transform_4, window_bounds = array<i64: 1, 128>}, {pipeline_mode = #tpu.pipeline_mode<synchronous>, transform_indices = @transform_5, window_bounds = array<i64: 128, 1024>}, {pipeline_mode = #tpu.pipeline_mode<synchronous>, transform_indices = @transform_6, window_bounds = array<i64: 1, 1024>}, {pipeline_mode = #tpu.pipeline_mode<synchronous>, transform_indices = @transform_7, window_bounds = array<i64: 1024, 512>}, {pipeline_mode = #tpu.pipeline_mode<synchronous>, transform_indices = @transform_8, window_bounds = array<i64: 1, 512>}, {pipeline_mode = #tpu.pipeline_mode<synchronous>, transform_indices = @transform_9, window_bounds = array<i64: 512, 256>}, {pipeline_mode = #tpu.pipeline_mode<synchronous>, transform_indices = @transform_10, window_bounds = array<i64: 1, 256>}, {pipeline_mode = #tpu.pipeline_mode<synchronous>, transform_indices = @transform_11, window_bounds = array<i64: 256, 128>}, {pipeline_mode = #tpu.pipeline_mode<synchronous>, transform_indices = @transform_12, window_bounds = array<i64: 1, 128>}, {transform_indices = @transform_13, window_bounds = array<i64: 1, 8, 128>}]} {
    %c0_i32 = arith.constant 0 : i32
    %0 = arith.cmpi eq, %arg1, %c0_i32 : i32
    %1 = arith.extui %0 : i1 to i32
    %c0_i32_0 = arith.constant 0 : i32
    %2 = arith.cmpi ne, %1, %c0_i32_0 : i32
    scf.if %2 {
      %cst_26 = arith.constant 0xFF800000 : f32
      %36 = vector.broadcast %cst_26 : f32 to vector<1x1024xf32>
      %c0_27 = arith.constant 0 : index
      %c0_28 = arith.constant 0 : index
      %37 = vector.load %arg16[%c0_27, %c0_28] : memref<1x1024xf32, #tpu.memory_space<vmem>>, vector<1x1024xf32>
      tpu.vector_store %arg16[%c0_27, %c0_28], %36 {strides = array<i32>} : memref<1x1024xf32, #tpu.memory_space<vmem>>, vector<1x1024xf32>,
    } else {
    }
    %c0 = arith.constant 0 : index
    %c0_1 = arith.constant 0 : index
    %c0_2 = arith.constant 0 : index
    %3 = vector.load %arg2[%c0, %c0_1, %c0_2] : memref<1x256x3xf32, #tpu.memory_space<vmem>>, vector<1x256x3xf32>
    %4 = vector.shape_cast %3 : vector<1x256x3xf32> to vector<256x3xf32>
    %5 = arith.truncf %4 : vector<256x3xf32> to vector<256x3xbf16>
    %c0_3 = arith.constant 0 : index
    %c0_4 = arith.constant 0 : index
    %c0_5 = arith.constant 0 : index
    %6 = vector.load %arg3[%c0_3, %c0_4, %c0_5] : memref<1x3x64xbf16, #tpu.memory_space<vmem>>, vector<1x3x64xbf16>
    %7 = vector.shape_cast %6 : vector<1x3x64xbf16> to vector<3x64xbf16>
    %cst = arith.constant dense<0.000000e+00> : vector<256x64xf32>
    %8 = tpu.matmul %5, %7, %cst {dimension_numbers = #tpu.dot_dimension_numbers<[1], [0], [0], [1], [0, 0, 1, 1], [], []>} : vector<256x3xbf16>, vector<3x64xbf16>, vector<256x64xf32> -> vector<256x64xf32>
    %c0_6 = arith.constant 0 : index
    %c0_7 = arith.constant 0 : index
    %9 = vector.load %arg4[%c0_6, %c0_7] : memref<1x64xf32, #tpu.memory_space<vmem>>, vector<1x64xf32>
    %10 = vector.broadcast %9 : vector<1x64xf32> to vector<256x64xf32>
    %11 = arith.addf %8, %10 : vector<256x64xf32>
    %cst_8 = arith.constant 0.000000e+00 : f32
    %12 = vector.broadcast %cst_8 : f32 to vector<256x64xf32>
    %13 = arith.maximumf %11, %12 : vector<256x64xf32>
    %14 = arith.truncf %13 : vector<256x64xf32> to vector<256x64xbf16>
    %c0_9 = arith.constant 0 : index
    %c0_10 = arith.constant 0 : index
    %15 = vector.load %arg5[%c0_9, %c0_10] : memref<64x128xbf16, #tpu.memory_space<vmem>>, vector<64x128xbf16>
    %cst_11 = arith.constant dense<0.000000e+00> : vector<256x128xf32>
    %16 = tpu.matmul %14, %15, %cst_11 {dimension_numbers = #tpu.dot_dimension_numbers<[1], [0], [0], [1], [0, 0, 1, 1], [], []>} : vector<256x64xbf16>, vector<64x128xbf16>, vector<256x128xf32> -> vector<256x128xf32>
    %c0_12 = arith.constant 0 : index
    %c0_13 = arith.constant 0 : index
    %17 = vector.load %arg6[%c0_12, %c0_13] : memref<1x128xf32, #tpu.memory_space<vmem>>, vector<1x128xf32>
    %18 = vector.broadcast %17 : vector<1x128xf32> to vector<256x128xf32>
    %19 = arith.addf %16, %18 : vector<256x128xf32>
    %cst_14 = arith.constant 0.000000e+00 : f32
    %20 = vector.broadcast %cst_14 : f32 to vector<256x128xf32>
    %21 = arith.maximumf %19, %20 : vector<256x128xf32>
    %22 = arith.truncf %21 : vector<256x128xf32> to vector<256x128xbf16>
    %c0_15 = arith.constant 0 : index
    %c0_16 = arith.constant 0 : index
    %23 = vector.load %arg7[%c0_15, %c0_16] : memref<128x1024xbf16, #tpu.memory_space<vmem>>, vector<128x1024xbf16>
    %cst_17 = arith.constant dense<0.000000e+00> : vector<256x1024xf32>
    %24 = tpu.matmul %22, %23, %cst_17 {dimension_numbers = #tpu.dot_dimension_numbers<[1], [0], [0], [1], [0, 0, 1, 1], [], []>} : vector<256x128xbf16>, vector<128x1024xbf16>, vector<256x1024xf32> -> vector<256x1024xf32>
    %c0_18 = arith.constant 0 : index
    %c0_19 = arith.constant 0 : index
    %25 = vector.load %arg8[%c0_18, %c0_19] : memref<1x1024xf32, #tpu.memory_space<vmem>>, vector<1x1024xf32>
    %26 = vector.broadcast %25 : vector<1x1024xf32> to vector<256x1024xf32>
    %27 = arith.addf %24, %26 : vector<256x1024xf32>
    %c0_20 = arith.constant 0 : index
    %c0_21 = arith.constant 0 : index
    %28 = vector.load %arg16[%c0_20, %c0_21] : memref<1x1024xf32, #tpu.memory_space<vmem>>, vector<1x1024xf32>
    %cst_22 = arith.constant dense<0xFF800000> : vector<1024xf32>
    %29 = vector.multi_reduction <maximumf>, %27, %cst_22 [0] : vector<256x1024xf32> to vector<1024xf32>
    %30 = vector.shape_cast %29 : vector<1024xf32> to vector<1x1024xf32>
    %31 = arith.maximumf %28, %30 : vector<1x1024xf32>
    %c0_23 = arith.constant 0 : index
    %c0_24 = arith.constant 0 : index
    %32 = vector.load %arg16[%c0_23, %c0_24] : memref<1x1024xf32, #tpu.memory_space<vmem>>, vector<1x1024xf32>
    tpu.vector_store %arg16[%c0_23, %c0_24], %31 {strides = array<i32>} : memref<1x1024xf32, #tpu.memory_space<vmem>>, vector<1x1024xf32>,
    %c1_i32 = arith.constant 1 : i32
    %33 = arith.cmpi eq, %arg1, %c1_i32 : i32
    %34 = arith.extui %33 : i1 to i32
    %c0_i32_25 = arith.constant 0 : i32
    %35 = arith.cmpi ne, %34, %c0_i32_25 : i32
    scf.if %35 {
      %c0_26 = arith.constant 0 : index
      %c0_27 = arith.constant 0 : index
      %36 = vector.load %arg16[%c0_26, %c0_27] : memref<1x1024xf32, #tpu.memory_space<vmem>>, vector<1x1024xf32>
      %37 = arith.truncf %36 : vector<1x1024xf32> to vector<1x1024xbf16>
      %c0_28 = arith.constant 0 : index
      %c0_29 = arith.constant 0 : index
      %38 = vector.load %arg9[%c0_28, %c0_29] : memref<1024x512xbf16, #tpu.memory_space<vmem>>, vector<1024x512xbf16>
      %cst_30 = arith.constant dense<0.000000e+00> : vector<1x512xf32>
      %39 = tpu.matmul %37, %38, %cst_30 {dimension_numbers = #tpu.dot_dimension_numbers<[1], [0], [0], [1], [0, 0, 1, 1], [], []>} : vector<1x1024xbf16>, vector<1024x512xbf16>, vector<1x512xf32> -> vector<1x512xf32>
      %c0_31 = arith.constant 0 : index
      %c0_32 = arith.constant 0 : index
      %40 = vector.load %arg10[%c0_31, %c0_32] : memref<1x512xf32, #tpu.memory_space<vmem>>, vector<1x512xf32>
      %41 = arith.addf %39, %40 : vector<1x512xf32>
      %cst_33 = arith.constant 0.000000e+00 : f32
      %42 = vector.broadcast %cst_33 : f32 to vector<1x512xf32>
      %43 = arith.maximumf %41, %42 : vector<1x512xf32>
      %44 = arith.truncf %43 : vector<1x512xf32> to vector<1x512xbf16>
      %c0_34 = arith.constant 0 : index
      %c0_35 = arith.constant 0 : index
      %45 = vector.load %arg11[%c0_34, %c0_35] : memref<512x256xbf16, #tpu.memory_space<vmem>>, vector<512x256xbf16>
      %cst_36 = arith.constant dense<0.000000e+00> : vector<1x256xf32>
      %46 = tpu.matmul %44, %45, %cst_36 {dimension_numbers = #tpu.dot_dimension_numbers<[1], [0], [0], [1], [0, 0, 1, 1], [], []>} : vector<1x512xbf16>, vector<512x256xbf16>, vector<1x256xf32> -> vector<1x256xf32>
      %c0_37 = arith.constant 0 : index
      %c0_38 = arith.constant 0 : index
      %47 = vector.load %arg12[%c0_37, %c0_38] : memref<1x256xf32, #tpu.memory_space<vmem>>, vector<1x256xf32>
      %48 = arith.addf %46, %47 : vector<1x256xf32>
      %cst_39 = arith.constant 0.000000e+00 : f32
      %49 = vector.broadcast %cst_39 : f32 to vector<1x256xf32>
      %50 = arith.maximumf %48, %49 : vector<1x256xf32>
      %51 = arith.truncf %50 : vector<1x256xf32> to vector<1x256xbf16>
      %c0_40 = arith.constant 0 : index
      %c0_41 = arith.constant 0 : index
      %52 = vector.load %arg13[%c0_40, %c0_41] : memref<256x128xbf16, #tpu.memory_space<vmem>>, vector<256x128xbf16>
      %cst_42 = arith.constant dense<0.000000e+00> : vector<1x128xf32>
      %53 = tpu.matmul %51, %52, %cst_42 {dimension_numbers = #tpu.dot_dimension_numbers<[1], [0], [0], [1], [0, 0, 1, 1], [], []>} : vector<1x256xbf16>, vector<256x128xbf16>, vector<1x128xf32> -> vector<1x128xf32>
      %c0_43 = arith.constant 0 : index
      %c0_44 = arith.constant 0 : index
      %54 = vector.load %arg14[%c0_43, %c0_44] : memref<1x128xf32, #tpu.memory_space<vmem>>, vector<1x128xf32>
      %55 = arith.addf %53, %54 : vector<1x128xf32>
      %56 = vector.shape_cast %55 : vector<1x128xf32> to vector<1x128xf32>
      %57 = vector.broadcast %56 : vector<1x128xf32> to vector<8x128xf32>
      %c0_45 = arith.constant 0 : index
      %c0_46 = arith.constant 0 : index
      %c0_47 = arith.constant 0 : index
      %58 = vector.load %arg15[%c0_45, %c0_46, %c0_47] : memref<1x8x128xf32, #tpu.memory_space<vmem>>, vector<1x8x128xf32>
      %59 = vector.shape_cast %58 : vector<1x8x128xf32> to vector<8x128xf32>
      %60 = vector.shape_cast %57 : vector<8x128xf32> to vector<1x8x128xf32>
      tpu.vector_store %arg15[%c0_45, %c0_46, %c0_47], %60 {strides = array<i32>} : memref<1x8x128xf32, #tpu.memory_space<vmem>>, vector<1x8x128xf32>,
    } else {
    }
    return
  }
  func.func @transform_0(%arg0: i32, %arg1: i32) -> (i32, i32, i32) {
    %c0_i32 = arith.constant 0 : i32
    %c0_i32_0 = arith.constant 0 : i32
    return %arg0, %arg1, %c0_i32 : i32, i32, i32
  }
  func.func @transform_1(%arg0: i32, %arg1: i32) -> (i32, i32, i32) {
    %c0_i32 = arith.constant 0 : i32
    %c0_i32_0 = arith.constant 0 : i32
    %c0_i32_1 = arith.constant 0 : i32
    return %arg0, %c0_i32, %c0_i32_0 : i32, i32, i32
  }
  func.func @transform_2(%arg0: i32, %arg1: i32) -> (i32, i32) {
    %c0_i32 = arith.constant 0 : i32
    %c0_i32_0 = arith.constant 0 : i32
    %c0_i32_1 = arith.constant 0 : i32
    return %c0_i32, %c0_i32_0 : i32, i32
  }
  func.func @transform_3(%arg0: i32, %arg1: i32) -> (i32, i32) {
    %c0_i32 = arith.constant 0 : i32
    %c0_i32_0 = arith.constant 0 : i32
    %c0_i32_1 = arith.constant 0 : i32
    return %c0_i32, %c0_i32_0 : i32, i32
  }
  func.func @transform_4(%arg0: i32, %arg1: i32) -> (i32, i32) {
    %c0_i32 = arith.constant 0 : i32
    %c0_i32_0 = arith.constant 0 : i32
    %c0_i32_1 = arith.constant 0 : i32
    return %c0_i32, %c0_i32_0 : i32, i32
  }
  func.func @transform_5(%arg0: i32, %arg1: i32) -> (i32, i32) {
    %c0_i32 = arith.constant 0 : i32
    %c0_i32_0 = arith.constant 0 : i32
    %c0_i32_1 = arith.constant 0 : i32
    return %c0_i32, %c0_i32_0 : i32, i32
  }
  func.func @transform_6(%arg0: i32, %arg1: i32) -> (i32, i32) {
    %c0_i32 = arith.constant 0 : i32
    %c0_i32_0 = arith.constant 0 : i32
    %c0_i32_1 = arith.constant 0 : i32
    return %c0_i32, %c0_i32_0 : i32, i32
  }
  func.func @transform_7(%arg0: i32, %arg1: i32) -> (i32, i32) {
    %c0_i32 = arith.constant 0 : i32
    %c0_i32_0 = arith.constant 0 : i32
    %c0_i32_1 = arith.constant 0 : i32
    return %c0_i32, %c0_i32_0 : i32, i32
  }
  func.func @transform_8(%arg0: i32, %arg1: i32) -> (i32, i32) {
    %c0_i32 = arith.constant 0 : i32
    %c0_i32_0 = arith.constant 0 : i32
    %c0_i32_1 = arith.constant 0 : i32
    return %c0_i32, %c0_i32_0 : i32, i32
  }
  func.func @transform_9(%arg0: i32, %arg1: i32) -> (i32, i32) {
    %c0_i32 = arith.constant 0 : i32
    %c0_i32_0 = arith.constant 0 : i32
    %c0_i32_1 = arith.constant 0 : i32
    return %c0_i32, %c0_i32_0 : i32, i32
  }
  func.func @transform_10(%arg0: i32, %arg1: i32) -> (i32, i32) {
    %c0_i32 = arith.constant 0 : i32
    %c0_i32_0 = arith.constant 0 : i32
    %c0_i32_1 = arith.constant 0 : i32
    return %c0_i32, %c0_i32_0 : i32, i32
  }
  func.func @transform_11(%arg0: i32, %arg1: i32) -> (i32, i32) {
    %c0_i32 = arith.constant 0 : i32
    %c0_i32_0 = arith.constant 0 : i32
    %c0_i32_1 = arith.constant 0 : i32
    return %c0_i32, %c0_i32_0 : i32, i32
  }
  func.func @transform_12(%arg0: i32, %arg1: i32) -> (i32, i32) {
    %c0_i32 = arith.constant 0 : i32
    %c0_i32_0 = arith.constant 0 : i32
    %c0_i32_1 = arith.constant 0 : i32
    return %c0_i32, %c0_i32_0 : i32, i32
  }
  func.func @transform_13(%arg0: i32, %arg1: i32) -> (i32, i32, i32) {
    %c0_i32 = arith.constant 0 : i32
    %c0_i32_0 = arith.constant 0 : i32
    %c0_i32_1 = arith.constant 0 : i32
    return %arg0, %c0_i32, %c0_i32_0 : i32, i32, i32
  }
}

</mosaic_0001>

<llo_original>
// kernel: classification_layer_forward.2
$region0: #{classification_layer_forward.2}
  #allocation0 [shape = 'u32[]', space=smem, size = 0x4, offset = 0x4, fixed_abs, tag = 'smem constant byte address 0x4 - core index']
  #allocation1 [shape = 'u32[144,128]{1,0:T(1,128)}', space=vmem, size = 0x12000, scoped, tag = 'internal scratch']
  #allocation2 [shape = 'f32[1,1024]{1,0:T(1,128)}', space=vmem, size = 0x1000, scoped, tag = 'scratch operand']
  %s0 = inlined_call_operand.vmem [shape: f32[2,512,3], index: 0, kind: input, shape index: {}]
  %s1 = inlined_call_operand.vmem [shape: bf16[1,3,64], index: 1, kind: input, shape index: {}]
  %s2 = inlined_call_operand.vmem [shape: f32[1,64], index: 2, kind: input, shape index: {}]
  %s3 = inlined_call_operand.vmem [shape: bf16[64,128], index: 3, kind: input, shape index: {}]
  %s4 = inlined_call_operand.hbm [shape: f32[1,128], index: 4, kind: input, shape index: {}]
  %s5 = inlined_call_operand.vmem [shape: bf16[128,1024], index: 5, kind: input, shape index: {}]
  %s6 = inlined_call_operand.vmem [shape: f32[1,1024], index: 6, kind: input, shape index: {}]
  %s7 = inlined_call_operand.hbm [shape: bf16[1024,512], index: 7, kind: input, shape index: {}]
  %s8 = inlined_call_operand.vmem [shape: f32[1,512], index: 8, kind: input, shape index: {}]
  %s9 = inlined_call_operand.vmem [shape: bf16[512,256], index: 9, kind: input, shape index: {}]
  %s10 = inlined_call_operand.vmem [shape: f32[1,256], index: 10, kind: input, shape index: {}]
  %s11 = inlined_call_operand.hbm [shape: bf16[256,128], index: 11, kind: input, shape index: {}]
  %s12 = inlined_call_operand.vmem [shape: f32[1,128], index: 12, kind: input, shape index: {}]
  %s13 = inlined_call_operand.vmem [shape: f32[2,8,128], index: 13, kind: output, shape index: {}]
  %s14 = sld [smem:[#allocation0]]
  $region105: #{classification_layer_forward.2} parent=0
    _
  %s16 = ssub.s32 1, %s14
  %s17 = scalar_select 0, %s16, %s14
  $region1: #{classification_layer_forward.2} parent=0
    #allocation3 [shape = 'u8[512]{0}', space=vmem, size = 0x400, scoped, tag = 'input window, operand 4, single buffered']
    #allocation4 [shape = 's32[2]{0}', space=sflag, size = 0x8, scoped, tag = 'scoped memory for classification_layer_forward.2']
    #allocation5 [shape = 'u8[1048576]{0}', space=vmem, size = 0x100000, scoped, tag = 'input window, operand 7, single buffered']
    #allocation6 [shape = 's32[1]{0}', space=sflag, size = 0x4, scoped, tag = 'scoped memory for classification_layer_forward.2']
    #allocation7 [shape = 'u8[65536]{0}', space=vmem, size = 0x10000, scoped, tag = 'input window, operand 11, single buffered']
    %18 = vsyncpa [#allocation4], 0
    %19 = vsyncpa [#allocation6], 0
    loop: start=0, step=1, limit=6
    $region2: #{classification_layer_forward.2} parent=1 // loop_pre_header
      _
    $region3: #{classification_layer_forward.2} parent=1 // loop_header
      %s21 = sphi 0, %s25
      %p22 = scmp.ge.s32.totalorder %s21, 6
      %s28 = sphi 0, %s40
      %s29 = sphi 0, %s36
      %s30 = sphi 0, %s28
      %s31 = sphi 0, %s29
      %s32 = sphi 0, %s30
      %s33 = sphi 0, %s31
      %s45 = sphi 0, %s47
      %s48 = sphi 0, %s45
      %s49 = sphi 0, %s48
      %s65 = sphi 0, %s49
      %s69 = sphi 0, %s69
      %s71 = sphi 0, %s69
      %s72 = sphi 0, %s71
      %s86 = sphi 0, %s72
      %s90 = sphi 0, %s90
      %s92 = sphi 0, %s90
      %s93 = sphi 0, %s92
      %s107 = sphi 0, %s93
      %s111 = sphi 0, %s111
      %s113 = sphi 0, %s111
      %s114 = sphi 0, %s113
      %s128 = sphi 0, %s114
      %s132 = sphi 0, %s132
      %s134 = sphi 0, %s132
      %s135 = sphi 0, %s134
      %s149 = sphi 0, %s135
      %s153 = sphi 0, %s153
      %s155 = sphi 0, %s153
      %s156 = sphi 0, %s155
      %s170 = sphi 0, %s156
      %s174 = sphi 0, %s174
      %s176 = sphi 0, %s174
      %s177 = sphi 0, %s176
      %s191 = sphi 0, %s177
      %s195 = sphi 0, %s195
      %s197 = sphi 0, %s195
      %s198 = sphi 0, %s197
      %s212 = sphi 0, %s198
      %s216 = sphi 0, %s216
      %s218 = sphi 0, %s216
      %s219 = sphi 0, %s218
      %s233 = sphi 0, %s219
      %s237 = sphi 0, %s237
      %s239 = sphi 0, %s237
      %s240 = sphi 0, %s239
      %s254 = sphi 0, %s240
      %s258 = sphi 0, %s258
      %s260 = sphi 0, %s258
      %s261 = sphi 0, %s260
      %s275 = sphi 0, %s261
      %s279 = sphi 0, %s279
      %s281 = sphi 0, %s279
      %s282 = sphi 0, %s281
      %s296 = sphi 0, %s282
      %s300 = sphi 0, %s300
      %s302 = sphi 0, %s300
      %s303 = sphi 0, %s302
      %s317 = sphi 0, %s303
      %s323 = sphi 0, %s325
      %s326 = sphi 0, %s323
      %s327 = sphi 0, %s326
      %s343 = sphi 0, %s327
    $region4: #{classification_layer_forward.2} parent=1 // loop_header_branch
      %24 = sbr.rel (%p22) target = $region8
    $region5: #{classification_layer_forward.2} parent=1 // loop_body
      %s26 = ssub.s32 %s21, 1
      %s27 = ssub.s32 %s21, 2
      %s34 = sadd.s32 1, %s29
      %p35 = scmp.ge.s32.totalorder %s34, 2
      %s36 = scalar_select %p35, 0, %s34
      %s37 = sadd.s32 1, %s28
      %s38 = scalar_select %p35, %s37, %s28
      %p39 = scmp.ge.s32.totalorder %s38, 2
      %s40 = scalar_select %p39, 0, %s38
      %s41 = ssub.s32 %s28, %s40
      %s42 = ssub.s32 %s29, %s36
      %s43 = sor.u32 %s41, %s42
      %p44 = scmp.eq.s32.totalorder %s43, 0
      %s46 = sadd.s32 %s45, 1
      %s47 = scalar_select %p44, %s45, %s46
      %p50 = pneg %p44
      %p51 = scmp.eq.s32.totalorder %s21, 3
      %p52 = por %p50, %p51
      %p53 = scmp.ne.s32.totalorder %s45, %s48
      %p54 = scmp.eq.s32.totalorder %s21, 0
      %p55 = por %p53, %p54
      %p56 = scmp.ne.s32.totalorder %s45, %s48
      %p57 = scmp.eq.s32.totalorder %s26, 3
      %p58 = por %p56, %p57
      %p59 = scmp.ne.s32.totalorder %s48, %s49
      %p60 = scmp.eq.s32.totalorder %s26, 0
      %p61 = por %p59, %p60
      %p62 = scmp.ne.s32.totalorder %s48, %s49
      %p63 = scmp.eq.s32.totalorder %s27, 3
      %p64 = por %p62, %p63
      %p66 = scmp.ne.s32.totalorder %s49, %s65
      %p67 = scmp.eq.s32.totalorder %s27, 0
      %p68 = por %p66, %p67
      %s70 = sadd.s32 %s69, 1
      %p73 = scmp.eq.s32.totalorder %s21, 3
      %p74 = scmp.ne.s32.totalorder %s69, %s71
      %p75 = scmp.eq.s32.totalorder %s21, 0
      %p76 = por %p74, %p75
      %p77 = scmp.ne.s32.totalorder %s69, %s71
      %p78 = scmp.eq.s32.totalorder %s26, 3
      %p79 = por %p77, %p78
      %p80 = scmp.ne.s32.totalorder %s71, %s72
      %p81 = scmp.eq.s32.totalorder %s26, 0
      %p82 = por %p80, %p81
      %p83 = scmp.ne.s32.totalorder %s71, %s72
      %p84 = scmp.eq.s32.totalorder %s27, 3
      %p85 = por %p83, %p84
      %p87 = scmp.ne.s32.totalorder %s72, %s86
      %p88 = scmp.eq.s32.totalorder %s27, 0
      %p89 = por %p87, %p88
      %s91 = sadd.s32 %s90, 1
      %p94 = scmp.eq.s32.totalorder %s21, 3
      %p95 = scmp.ne.s32.totalorder %s90, %s92
      %p96 = scmp.eq.s32.totalorder %s21, 0
      %p97 = por %p95, %p96
      %p98 = scmp.ne.s32.totalorder %s90, %s92
      %p99 = scmp.eq.s32.totalorder %s26, 3
      %p100 = por %p98, %p99
      %p101 = scmp.ne.s32.totalorder %s92, %s93
      %p102 = scmp.eq.s32.totalorder %s26, 0
      %p103 = por %p101, %p102
      %p104 = scmp.ne.s32.totalorder %s92, %s93
      %p105 = scmp.eq.s32.totalorder %s27, 3
      %p106 = por %p104, %p105
      %p108 = scmp.ne.s32.totalorder %s93, %s107
      %p109 = scmp.eq.s32.totalorder %s27, 0
      %p110 = por %p108, %p109
      %s112 = sadd.s32 %s111, 1
      %p115 = scmp.eq.s32.totalorder %s21, 3
      %p116 = scmp.ne.s32.totalorder %s111, %s113
      %p117 = scmp.eq.s32.totalorder %s21, 0
      %p118 = por %p116, %p117
      %p119 = scmp.ne.s32.totalorder %s111, %s113
      %p120 = scmp.eq.s32.totalorder %s26, 3
      %p121 = por %p119, %p120
      %p122 = scmp.ne.s32.totalorder %s113, %s114
      %p123 = scmp.eq.s32.totalorder %s26, 0
      %p124 = por %p122, %p123
      %p125 = scmp.ne.s32.totalorder %s113, %s114
      %p126 = scmp.eq.s32.totalorder %s27, 3
      %p127 = por %p125, %p126
      %p129 = scmp.ne.s32.totalorder %s114, %s128
      %p130 = scmp.eq.s32.totalorder %s27, 0
      %p131 = por %p129, %p130
      %s133 = sadd.s32 %s132, 1
      %p136 = scmp.eq.s32.totalorder %s21, 3
      %p137 = scmp.ne.s32.totalorder %s132, %s134
      %p138 = scmp.eq.s32.totalorder %s21, 0
      %p139 = por %p137, %p138
      %p140 = scmp.ne.s32.totalorder %s132, %s134
      %p141 = scmp.eq.s32.totalorder %s26, 3
      %p142 = por %p140, %p141
      %p143 = scmp.ne.s32.totalorder %s134, %s135
      %p144 = scmp.eq.s32.totalorder %s26, 0
      %p145 = por %p143, %p144
      %p146 = scmp.ne.s32.totalorder %s134, %s135
      %p147 = scmp.eq.s32.totalorder %s27, 3
      %p148 = por %p146, %p147
      %p150 = scmp.ne.s32.totalorder %s135, %s149
      %p151 = scmp.eq.s32.totalorder %s27, 0
      %p152 = por %p150, %p151
      %s154 = sadd.s32 %s153, 1
      %p157 = scmp.eq.s32.totalorder %s21, 3
      %p158 = scmp.ne.s32.totalorder %s153, %s155
      %p159 = scmp.eq.s32.totalorder %s21, 0
      %p160 = por %p158, %p159
      %p161 = scmp.ne.s32.totalorder %s153, %s155
      %p162 = scmp.eq.s32.totalorder %s26, 3
      %p163 = por %p161, %p162
      %p164 = scmp.ne.s32.totalorder %s155, %s156
      %p165 = scmp.eq.s32.totalorder %s26, 0
      %p166 = por %p164, %p165
      %p167 = scmp.ne.s32.totalorder %s155, %s156
      %p168 = scmp.eq.s32.totalorder %s27, 3
      %p169 = por %p167, %p168
      %p171 = scmp.ne.s32.totalorder %s156, %s170
      %p172 = scmp.eq.s32.totalorder %s27, 0
      %p173 = por %p171, %p172
      %s175 = sadd.s32 %s174, 1
      %p178 = scmp.eq.s32.totalorder %s21, 3
      %p179 = scmp.ne.s32.totalorder %s174, %s176
      %p180 = scmp.eq.s32.totalorder %s21, 0
      %p181 = por %p179, %p180
      %p182 = scmp.ne.s32.totalorder %s174, %s176
      %p183 = scmp.eq.s32.totalorder %s26, 3
      %p184 = por %p182, %p183
      %p185 = scmp.ne.s32.totalorder %s176, %s177
      %p186 = scmp.eq.s32.totalorder %s26, 0
      %p187 = por %p185, %p186
      %p188 = scmp.ne.s32.totalorder %s176, %s177
      %p189 = scmp.eq.s32.totalorder %s27, 3
      %p190 = por %p188, %p189
      %p192 = scmp.ne.s32.totalorder %s177, %s191
      %p193 = scmp.eq.s32.totalorder %s27, 0
      %p194 = por %p192, %p193
      %s196 = sadd.s32 %s195, 1
      %p199 = scmp.eq.s32.totalorder %s21, 3
      %p200 = scmp.ne.s32.totalorder %s195, %s197
      %p201 = scmp.eq.s32.totalorder %s21, 0
      %p202 = por %p200, %p201
      %p203 = scmp.ne.s32.totalorder %s195, %s197
      %p204 = scmp.eq.s32.totalorder %s26, 3
      %p205 = por %p203, %p204
      %p206 = scmp.ne.s32.totalorder %s197, %s198
      %p207 = scmp.eq.s32.totalorder %s26, 0
      %p208 = por %p206, %p207
      %p209 = scmp.ne.s32.totalorder %s197, %s198
      %p210 = scmp.eq.s32.totalorder %s27, 3
      %p211 = por %p209, %p210
      %p213 = scmp.ne.s32.totalorder %s198, %s212
      %p214 = scmp.eq.s32.totalorder %s27, 0
      %p215 = por %p213, %p214
      %s217 = sadd.s32 %s216, 1
      %p220 = scmp.eq.s32.totalorder %s21, 3
      %p221 = scmp.ne.s32.totalorder %s216, %s218
      %p222 = scmp.eq.s32.totalorder %s21, 0
      %p223 = por %p221, %p222
      %p224 = scmp.ne.s32.totalorder %s216, %s218
      %p225 = scmp.eq.s32.totalorder %s26, 3
      %p226 = por %p224, %p225
      %p227 = scmp.ne.s32.totalorder %s218, %s219
      %p228 = scmp.eq.s32.totalorder %s26, 0
      %p229 = por %p227, %p228
      %p230 = scmp.ne.s32.totalorder %s218, %s219
      %p231 = scmp.eq.s32.totalorder %s27, 3
      %p232 = por %p230, %p231
      %p234 = scmp.ne.s32.totalorder %s219, %s233
      %p235 = scmp.eq.s32.totalorder %s27, 0
      %p236 = por %p234, %p235
      %s238 = sadd.s32 %s237, 1
      %p241 = scmp.eq.s32.totalorder %s21, 3
      %p242 = scmp.ne.s32.totalorder %s237, %s239
      %p243 = scmp.eq.s32.totalorder %s21, 0
      %p244 = por %p242, %p243
      %p245 = scmp.ne.s32.totalorder %s237, %s239
      %p246 = scmp.eq.s32.totalorder %s26, 3
      %p247 = por %p245, %p246
      %p248 = scmp.ne.s32.totalorder %s239, %s240
      %p249 = scmp.eq.s32.totalorder %s26, 0
      %p250 = por %p248, %p249
      %p251 = scmp.ne.s32.totalorder %s239, %s240
      %p252 = scmp.eq.s32.totalorder %s27, 3
      %p253 = por %p251, %p252
      %p255 = scmp.ne.s32.totalorder %s240, %s254
      %p256 = scmp.eq.s32.totalorder %s27, 0
      %p257 = por %p255, %p256
      %s259 = sadd.s32 %s258, 1
      %p262 = scmp.eq.s32.totalorder %s21, 3
      %p263 = scmp.ne.s32.totalorder %s258, %s260
      %p264 = scmp.eq.s32.totalorder %s21, 0
      %p265 = por %p263, %p264
      %p266 = scmp.ne.s32.totalorder %s258, %s260
      %p267 = scmp.eq.s32.totalorder %s26, 3
      %p268 = por %p266, %p267
      %p269 = scmp.ne.s32.totalorder %s260, %s261
      %p270 = scmp.eq.s32.totalorder %s26, 0
      %p271 = por %p269, %p270
      %p272 = scmp.ne.s32.totalorder %s260, %s261
      %p273 = scmp.eq.s32.totalorder %s27, 3
      %p274 = por %p272, %p273
      %p276 = scmp.ne.s32.totalorder %s261, %s275
      %p277 = scmp.eq.s32.totalorder %s27, 0
      %p278 = por %p276, %p277
      %s280 = sadd.s32 %s279, 1
      %p283 = scmp.eq.s32.totalorder %s21, 3
      %p284 = scmp.ne.s32.totalorder %s279, %s281
      %p285 = scmp.eq.s32.totalorder %s21, 0
      %p286 = por %p284, %p285
      %p287 = scmp.ne.s32.totalorder %s279, %s281
      %p288 = scmp.eq.s32.totalorder %s26, 3
      %p289 = por %p287, %p288
      %p290 = scmp.ne.s32.totalorder %s281, %s282
      %p291 = scmp.eq.s32.totalorder %s26, 0
      %p292 = por %p290, %p291
      %p293 = scmp.ne.s32.totalorder %s281, %s282
      %p294 = scmp.eq.s32.totalorder %s27, 3
      %p295 = por %p293, %p294
      %p297 = scmp.ne.s32.totalorder %s282, %s296
      %p298 = scmp.eq.s32.totalorder %s27, 0
      %p299 = por %p297, %p298
      %s301 = sadd.s32 %s300, 1
      %p304 = scmp.eq.s32.totalorder %s21, 3
      %p305 = scmp.ne.s32.totalorder %s300, %s302
      %p306 = scmp.eq.s32.totalorder %s21, 0
      %p307 = por %p305, %p306
      %p308 = scmp.ne.s32.totalorder %s300, %s302
      %p309 = scmp.eq.s32.totalorder %s26, 3
      %p310 = por %p308, %p309
      %p311 = scmp.ne.s32.totalorder %s302, %s303
      %p312 = scmp.eq.s32.totalorder %s26, 0
      %p313 = por %p311, %p312
      %p314 = scmp.ne.s32.totalorder %s302, %s303
      %p315 = scmp.eq.s32.totalorder %s27, 3
      %p316 = por %p314, %p315
      %p318 = scmp.ne.s32.totalorder %s303, %s317
      %p319 = scmp.eq.s32.totalorder %s27, 0
      %p320 = por %p318, %p319
      %s321 = ssub.s32 %s28, %s40
      %p322 = scmp.eq.s32.totalorder %s321, 0
      %s324 = sadd.s32 %s323, 1
      %s325 = scalar_select %p322, %s323, %s324
      %p328 = pneg %p322
      %p329 = scmp.eq.s32.totalorder %s21, 3
      %p330 = por %p328, %p329
      %p331 = scmp.ne.s32.totalorder %s323, %s326
      %p332 = scmp.eq.s32.totalorder %s21, 0
      %p333 = por %p331, %p332
      %p334 = scmp.ne.s32.totalorder %s323, %s326
      %p335 = scmp.eq.s32.totalorder %s26, 3
      %p336 = por %p334, %p335
      %p337 = scmp.ne.s32.totalorder %s326, %s327
      %p338 = scmp.eq.s32.totalorder %s26, 0
      %p339 = por %p337, %p338
      %p340 = scmp.ne.s32.totalorder %s326, %s327
      %p341 = scmp.eq.s32.totalorder %s27, 3
      %p342 = por %p340, %p341
      %p344 = scmp.ne.s32.totalorder %s327, %s343
      %p345 = scmp.eq.s32.totalorder %s27, 0
      %p346 = por %p344, %p345
      %p347 = scmp.le.s32.totalorder 1, %s21
      %p348 = scmp.lt.s32.totalorder %s21, 5
      %p349 = pnand %p347, %p348
      %p350 = pneg %p349
      // Predicated region
      $region9: #{classification_layer_forward.2} parent=5 // pred_check
        _
      $region10: #{classification_layer_forward.2} parent=5 // pred_check_branch
        %352 = sbr.rel (%p349) target = $region12
      $region11: #{classification_layer_forward.2} parent=5 // pred_region
        %s353 = ssub.s32 %s21, 1
        // Predicated region
        $region13: #{classification_layer_forward.2} parent=11 // pred_check
          %p354 = pneg %p82
        $region14: #{classification_layer_forward.2} parent=11 // pred_check_branch
          %356 = sbr.rel (%p354) target = $region16
        $region15: #{classification_layer_forward.2} parent=11 // pred_region
          _
        $region16: #{classification_layer_forward.2} parent=11 // pred_fallthru
          _
        // Predicated region
        $region17: #{classification_layer_forward.2} parent=11 // pred_check
          %p357 = pneg %p103
        $region18: #{classification_layer_forward.2} parent=11 // pred_check_branch
          %359 = sbr.rel (%p357) target = $region20
        $region19: #{classification_layer_forward.2} parent=11 // pred_region
          _
        $region20: #{classification_layer_forward.2} parent=11 // pred_fallthru
          _
        // Predicated region
        $region21: #{classification_layer_forward.2} parent=11 // pred_check
          %p360 = pneg %p124
        $region22: #{classification_layer_forward.2} parent=11 // pred_check_branch
          %362 = sbr.rel (%p360) target = $region24
        $region23: #{classification_layer_forward.2} parent=11 // pred_region
          _
        $region24: #{classification_layer_forward.2} parent=11 // pred_fallthru
          _
        // Predicated region
        $region25: #{classification_layer_forward.2} parent=11 // pred_check
          %p363 = pneg %p145
        $region26: #{classification_layer_forward.2} parent=11 // pred_check_branch
          %365 = sbr.rel (%p363) target = $region28
        $region27: #{classification_layer_forward.2} parent=11 // pred_region
          %s367 = ssub.s32 16, 16
          %368 = vsyncadd [#allocation4], %s367
          %s370 = sshll.u32 [#allocation3], 4
          %s371 = int_to_ptr.vmem [resolvable:$true] %s370
          %373 = dma.hbm_to_vmem [thread:$0]  %s4, 16, %s371, [#allocation4]
        $region28: #{classification_layer_forward.2} parent=11 // pred_fallthru
          _
        // Predicated region
        $region29: #{classification_layer_forward.2} parent=11 // pred_check
          %p374 = pneg %p166
        $region30: #{classification_layer_forward.2} parent=11 // pred_check_branch
          %376 = sbr.rel (%p374) target = $region32
        $region31: #{classification_layer_forward.2} parent=11 // pred_region
          _
        $region32: #{classification_layer_forward.2} parent=11 // pred_fallthru
          _
        // Predicated region
        $region33: #{classification_layer_forward.2} parent=11 // pred_check
          %p377 = pneg %p187
        $region34: #{classification_layer_forward.2} parent=11 // pred_check_branch
          %379 = sbr.rel (%p377) target = $region36
        $region35: #{classification_layer_forward.2} parent=11 // pred_region
          _
        $region36: #{classification_layer_forward.2} parent=11 // pred_fallthru
          _
        // Predicated region
        $region37: #{classification_layer_forward.2} parent=11 // pred_check
          %p380 = pneg %p208
        $region38: #{classification_layer_forward.2} parent=11 // pred_check_branch
          %382 = sbr.rel (%p380) target = $region40
        $region39: #{classification_layer_forward.2} parent=11 // pred_region
          %s384 = ssub.s32 32768, 32768
          %385 = vsyncadd [#allocation6], %s384
          %s386 = sshll.u32 [#allocation5], 4
          %s387 = int_to_ptr.vmem [resolvable:$true] %s386
          %392 = dma.hbm_to_vmem [thread:$0]  %s7, 32768, %s387, [#allocation6], 256, 256, 16
        $region40: #{classification_layer_forward.2} parent=11 // pred_fallthru
          _
        // Predicated region
        $region41: #{classification_layer_forward.2} parent=11 // pred_check
          %p393 = pneg %p229
        $region42: #{classification_layer_forward.2} parent=11 // pred_check_branch
          %395 = sbr.rel (%p393) target = $region44
        $region43: #{classification_layer_forward.2} parent=11 // pred_region
          _
        $region44: #{classification_layer_forward.2} parent=11 // pred_fallthru
          _
        // Predicated region
        $region45: #{classification_layer_forward.2} parent=11 // pred_check
          %p396 = pneg %p250
        $region46: #{classification_layer_forward.2} parent=11 // pred_check_branch
          %398 = sbr.rel (%p396) target = $region48
        $region47: #{classification_layer_forward.2} parent=11 // pred_region
          _
        $region48: #{classification_layer_forward.2} parent=11 // pred_fallthru
          _
        // Predicated region
        $region49: #{classification_layer_forward.2} parent=11 // pred_check
          %p399 = pneg %p271
        $region50: #{classification_layer_forward.2} parent=11 // pred_check_branch
          %401 = sbr.rel (%p399) target = $region52
        $region51: #{classification_layer_forward.2} parent=11 // pred_region
          _
        $region52: #{classification_layer_forward.2} parent=11 // pred_fallthru
          _
        // Predicated region
        $region53: #{classification_layer_forward.2} parent=11 // pred_check
          %p402 = pneg %p292
        $region54: #{classification_layer_forward.2} parent=11 // pred_check_branch
          %404 = sbr.rel (%p402) target = $region56
        $region55: #{classification_layer_forward.2} parent=11 // pred_region
          %s406 = ssub.s32 2048, 2048
          %407 = vsyncadd [#allocation6], %s406
          %s408 = sshll.u32 [#allocation7], 4
          %s409 = int_to_ptr.vmem [resolvable:$true] %s408
          %414 = dma.hbm_to_vmem [thread:$0]  %s11, 2048, %s409, [#allocation6], 64, 64, 4
        $region56: #{classification_layer_forward.2} parent=11 // pred_fallthru
          _
        // Predicated region
        $region57: #{classification_layer_forward.2} parent=11 // pred_check
          %p415 = pneg %p313
        $region58: #{classification_layer_forward.2} parent=11 // pred_check_branch
          %417 = sbr.rel (%p415) target = $region60
        $region59: #{classification_layer_forward.2} parent=11 // pred_region
          _
        $region60: #{classification_layer_forward.2} parent=11 // pred_fallthru
          _
      $region12: #{classification_layer_forward.2} parent=5 // pred_fallthru
        _
      %p418 = scmp.lt.s32.totalorder %s21, 4
      // Predicated region
      $region61: #{classification_layer_forward.2} parent=5 // pred_check
        %p419 = pneg %p418
      $region62: #{classification_layer_forward.2} parent=5 // pred_check_branch
        %421 = sbr.rel (%p419) target = $region64
      $region63: #{classification_layer_forward.2} parent=5 // pred_region
        // Predicated region
        $region65: #{classification_layer_forward.2} parent=63 // pred_check
          %p422 = pneg %p55
        $region66: #{classification_layer_forward.2} parent=63 // pred_check_branch
          %424 = sbr.rel (%p422) target = $region68
        $region67: #{classification_layer_forward.2} parent=63 // pred_region
          %s425 = smul.u32 32, %s29
          %p426 = scmp.lt.s32.totalorder %s28, 1
          %s427 = scalar_select %p426, %s28, 1
          %p428 = scmp.lt.s32.totalorder %s425, 63
          %s429 = scalar_select %p428, %s425, 63
          %s430 = smul.addr %s427, 64
          %s431 = sadd.s32 %s429, %s430
          %s432 = smul.addr %s431, 8
          %s433 = scalar_lea.vmem %s0, %s432
          %s434 = smul.u32 32, %s29
        $region68: #{classification_layer_forward.2} parent=63 // pred_fallthru
          _
      $region64: #{classification_layer_forward.2} parent=5 // pred_fallthru
        _
      %p435 = scmp.le.s32.totalorder 1, %s21
      %p436 = scmp.lt.s32.totalorder %s21, 5
      %p437 = pnand %p435, %p436
      %p438 = pneg %p437
      // Predicated region
      $region69: #{classification_layer_forward.2} parent=5 // pred_check
        _
      $region70: #{classification_layer_forward.2} parent=5 // pred_check_branch
        %440 = sbr.rel (%p437) target = $region72
      $region71: #{classification_layer_forward.2} parent=5 // pred_region
        %s441 = ssub.s32 %s21, 1
        // Predicated region
        $region73: #{classification_layer_forward.2} parent=71 // pred_check
          %p442 = pneg %p145
        $region74: #{classification_layer_forward.2} parent=71 // pred_check_branch
          %444 = sbr.rel (%p442) target = $region76
        $region75: #{classification_layer_forward.2} parent=71 // pred_region
          %445 = dma.done [#allocation4], 16
        $region76: #{classification_layer_forward.2} parent=71 // pred_fallthru
          _
        // Predicated region
        $region77: #{classification_layer_forward.2} parent=71 // pred_check
          %p446 = pneg %p208
        $region78: #{classification_layer_forward.2} parent=71 // pred_check_branch
          %448 = sbr.rel (%p446) target = $region80
        $region79: #{classification_layer_forward.2} parent=71 // pred_region
          %449 = dma.done [#allocation6], 32768
        $region80: #{classification_layer_forward.2} parent=71 // pred_fallthru
          _
        // Predicated region
        $region81: #{classification_layer_forward.2} parent=71 // pred_check
          %p450 = pneg %p292
        $region82: #{classification_layer_forward.2} parent=71 // pred_check_branch
          %452 = sbr.rel (%p450) target = $region84
        $region83: #{classification_layer_forward.2} parent=71 // pred_region
          %453 = dma.done [#allocation6], 2048
        $region84: #{classification_layer_forward.2} parent=71 // pred_fallthru
          _
        %s454 = smul.u32 32, %s31
        %p455 = scmp.lt.s32.totalorder %s30, 1
        %s456 = scalar_select %p455, %s30, 1
        %p457 = scmp.lt.s32.totalorder %s454, 63
        %s458 = scalar_select %p457, %s454, 63
        %s459 = smul.addr %s456, 64
        %s460 = sadd.s32 %s458, %s459
        %s461 = smul.addr %s460, 8
        %s462 = scalar_lea.vmem %s0, %s461
        %p463 = pneg %p61
        %p464 = pneg %p58
        %p465 = pneg %p82
        %p466 = pneg %p79
        %p467 = pneg %p103
        %p468 = pneg %p100
        %p469 = pneg %p124
        %p470 = pneg %p121
        %p471 = pneg %p145
        %p472 = pneg %p142
        %p473 = pneg %p166
        %p474 = pneg %p163
        %p475 = pneg %p187
        %p476 = pneg %p184
        %p477 = pneg %p208
        %p478 = pneg %p205
        %p479 = pneg %p229
        %p480 = pneg %p226
        %p481 = pneg %p250
        %p482 = pneg %p247
        %p483 = pneg %p271
        %p484 = pneg %p268
        %p485 = pneg %p292
        %p486 = pneg %p289
        %p487 = pneg %p313
        %p488 = pneg %p310
        %p489 = pneg %p339
        %p490 = pneg %p336
        %p491 = scmp.lt.s32.totalorder %s30, 1
        %s492 = scalar_select %p491, %s30, 1
        %s493 = smul.addr %s492, 8
        %s494 = scalar_lea.vmem %s13, %s493
        %s495 = smul.u32 32, %s31
        %p496 = scmp.lt.s32.totalorder %s30, 1
        %s497 = scalar_select %p496, %s30, 1
        %p498 = scmp.lt.s32.totalorder %s495, 63
        %s499 = scalar_select %p498, %s495, 63
        %s500 = smul.addr %s497, 64
        %s501 = sadd.s32 %s499, %s500
        %s502 = smul.addr %s501, 8
        %s503 = scalar_lea.vmem %s0, %s502
        %s504 = smul.u32 32, %s31
        %p505 = scmp.lt.s32.totalorder %s30, 1
        %s506 = scalar_select %p505, %s30, 1
        %s507 = smul.addr %s506, 8
        %s508 = scalar_lea.vmem %s13, %s507
        %p510 = scmp.eq.s32.totalorder %s31, 0
        // Predicated region
        $region85: #{classification_layer_forward.2} parent=71 // pred_check
          %p511 = pneg %p510
        $region86: #{classification_layer_forward.2} parent=71 // pred_check_branch
          %513 = sbr.rel (%p511) target = $region88
        $region87: #{classification_layer_forward.2} parent=71 // pred_region
          %514 = vst [vmem:[#allocation2] sm:$0xff] -inf
        $region88: #{classification_layer_forward.2} parent=71 // pred_fallthru
          _
        %v515 = vld [vmem:[%s503] sm:$0xff]
        %v516 = vld [vmem:[%s503 + $0x8] sm:$0xff]
        %v517 = vld [vmem:[%s503 + $0x10] sm:$0xff]
        %v518 = vld [vmem:[%s503 + $0x18] sm:$0xff]
        %v519 = vld [vmem:[%s503 + $0x20] sm:$0xff]
        %v520 = vld [vmem:[%s503 + $0x28] sm:$0xff]
        %v521 = vld [vmem:[%s503 + $0x30] sm:$0xff]
        %v522 = vld [vmem:[%s503 + $0x38] sm:$0xff]
        %v523 = vld [vmem:[%s503 + $0x40] sm:$0xff]
        %v524 = vld [vmem:[%s503 + $0x48] sm:$0xff]
        %v525 = vld [vmem:[%s503 + $0x50] sm:$0xff]
        %v526 = vld [vmem:[%s503 + $0x58] sm:$0xff]
        %v527 = vld [vmem:[%s503 + $0x60] sm:$0xff]
        %v528 = vld [vmem:[%s503 + $0x68] sm:$0xff]
        %v529 = vld [vmem:[%s503 + $0x70] sm:$0xff]
        %v530 = vld [vmem:[%s503 + $0x78] sm:$0xff]
        %v531 = vld [vmem:[%s503 + $0x80] sm:$0xff]
        %v532 = vld [vmem:[%s503 + $0x88] sm:$0xff]
        %v533 = vld [vmem:[%s503 + $0x90] sm:$0xff]
        %v534 = vld [vmem:[%s503 + $0x98] sm:$0xff]
        %v535 = vld [vmem:[%s503 + $0xa0] sm:$0xff]
        %v536 = vld [vmem:[%s503 + $0xa8] sm:$0xff]
        %v537 = vld [vmem:[%s503 + $0xb0] sm:$0xff]
        %v538 = vld [vmem:[%s503 + $0xb8] sm:$0xff]
        %v539 = vld [vmem:[%s503 + $0xc0] sm:$0xff]
        %v540 = vld [vmem:[%s503 + $0xc8] sm:$0xff]
        %v541 = vld [vmem:[%s503 + $0xd0] sm:$0xff]
        %v542 = vld [vmem:[%s503 + $0xd8] sm:$0xff]
        %v543 = vld [vmem:[%s503 + $0xe0] sm:$0xff]
        %v544 = vld [vmem:[%s503 + $0xe8] sm:$0xff]
        %v545 = vld [vmem:[%s503 + $0xf0] sm:$0xff]
        %v546 = vld [vmem:[%s503 + $0xf8] sm:$0xff]
        %v547 = vpack.c.bf16 %v516, %v515
        %v548 = vpack.c.bf16 %v518, %v517
        %v549 = vpack.c.bf16 %v520, %v519
        %v550 = vpack.c.bf16 %v522, %v521
        %v551 = vpack.c.bf16 %v524, %v523
        %v552 = vpack.c.bf16 %v526, %v525
        %v553 = vpack.c.bf16 %v528, %v527
        %v554 = vpack.c.bf16 %v530, %v529
        %v555 = vpack.c.bf16 %v532, %v531
        %v556 = vpack.c.bf16 %v534, %v533
        %v557 = vpack.c.bf16 %v536, %v535
        %v558 = vpack.c.bf16 %v538, %v537
        %v559 = vpack.c.bf16 %v540, %v539
        %v560 = vpack.c.bf16 %v542, %v541
        %v561 = vpack.c.bf16 %v544, %v543
        %v562 = vpack.c.bf16 %v546, %v545
        %v563 = vld [vmem:[%s1] sm:$0x3]
        %v564 = vld [vmem:[%s2] sm:$0x1]
        %v566 = vlaneseq
        %v567 = vshrl.u32 %v566, 7
        %v568 = vsub.s32 0, %v567
        %v569 = vrot.slane %v564, %v568
        %vm571 = vcmask 23552
        %v573 = vsel %vm571, %v547, 0
        %v576 = vsel %vm571, %v548, 0
        %v579 = vsel %vm571, %v549, 0
        %v582 = vsel %vm571, %v550, 0
        %v585 = vsel %vm571, %v551, 0
        %v588 = vsel %vm571, %v552, 0
        %v591 = vsel %vm571, %v553, 0
        %v594 = vsel %vm571, %v554, 0
        %v597 = vsel %vm571, %v555, 0
        %v600 = vsel %vm571, %v556, 0
        %v603 = vsel %vm571, %v557, 0
        %v606 = vsel %vm571, %v558, 0
        %v609 = vsel %vm571, %v559, 0
        %v612 = vsel %vm571, %v560, 0
        %v615 = vsel %vm571, %v561, 0
        %v618 = vsel %vm571, %v562, 0
        %vm620 = vcmask 1040384
        %vm621 = vcmask 1041408
        %v622 = vsel %vm620, 4294967295, 65535
        %v623 = vsel %vm621, %v622, 0
        %v625 = vand.u32 %v563, %v623
        %627 = vmatprep.subr.bf16.mxu0 0
        %628 = vmatpush1.bf16.msra.mxu0 0
        %629 = vmatprep.subr.bf16.mxu0 0
        %630 = vmatpush1.bf16.msra.mxu0 0
        %631 = vmatprep.subr.bf16.mxu0 0
        %632 = vmatpush1.bf16.msra.mxu0 0
        %633 = vmatprep.subr.bf16.mxu0 0
        %634 = vmatpush1.bf16.msra.mxu0 0
        %635 = vmatprep.subr.bf16.mxu0 0
        %636 = vmatpush1.bf16.msra.mxu0 0
        %637 = vmatprep.subr.bf16.mxu0 0
        %638 = vmatpush1.bf16.msra.mxu0 0
        %639 = vmatprep.subr.bf16.mxu0 0
        %640 = vmatpush1.bf16.msra.mxu0 0
        %641 = vmatprep.subr.bf16.mxu0 0
        %642 = vmatpush1.bf16.msra.mxu0 %v625
        %643 = vmatprep.subr.bf16.mxu0 0
        %644 = vmatpush2.bf16.msra.mxu0 0
        %645 = vmatprep.subr.bf16.mxu0 0
        %646 = vmatpush2.bf16.msra.mxu0 0
        %647 = vmatprep.subr.bf16.mxu0 0
        %648 = vmatpush2.bf16.msra.mxu0 0
        %649 = vmatprep.subr.bf16.mxu0 0
        %650 = vmatpush2.bf16.msra.mxu0 0
        %651 = vmatprep.subr.bf16.mxu0 0
        %652 = vmatpush2.bf16.msra.mxu0 0
        %653 = vmatprep.subr.bf16.mxu0 0
        %654 = vmatpush2.bf16.msra.mxu0 0
        %655 = vmatprep.subr.bf16.mxu0 0
        %656 = vmatpush2.bf16.msra.mxu0 0
        %657 = vmatprep.subr.bf16.mxu0 0
        %658 = vmatpush2.bf16.msra.mxu0 0
        %659 = vmatprep.mubr.bf16.mxu0 0
        %660 = vmatmul.mubr.bf16.gmra.mxu0 %v573
        %v661 = vpop.f32.mrf.mxu0
        %v662 = vadd.f32 %v569, %v661
        %v663 = vpop.f32.mrf.mxu0
        %v664 = vpop.f32.mrf.mxu0
        %v665 = vadd.f32 %v569, %v664
        %v666 = vpop.f32.mrf.mxu0
        %667 = vmatprep.mubr.bf16.mxu0 0
        %668 = vmatmul.mubr.bf16.gmra.mxu0 %v576
        %v669 = vpop.f32.mrf.mxu0
        %v670 = vadd.f32 %v569, %v669
        %v671 = vpop.f32.mrf.mxu0
        %v672 = vpop.f32.mrf.mxu0
        %v673 = vadd.f32 %v569, %v672
        %v674 = vpop.f32.mrf.mxu0
        %675 = vmatprep.mubr.bf16.mxu0 0
        %676 = vmatmul.mubr.bf16.gmra.mxu0 %v579
        %v677 = vpop.f32.mrf.mxu0
        %v678 = vadd.f32 %v569, %v677
        %v679 = vpop.f32.mrf.mxu0
        %v680 = vpop.f32.mrf.mxu0
        %v681 = vadd.f32 %v569, %v680
        %v682 = vpop.f32.mrf.mxu0
        %683 = vmatprep.mubr.bf16.mxu0 0
        %684 = vmatmul.mubr.bf16.gmra.mxu0 %v582
        %v685 = vpop.f32.mrf.mxu0
        %v686 = vadd.f32 %v569, %v685
        %v687 = vpop.f32.mrf.mxu0
        %v688 = vpop.f32.mrf.mxu0
        %v689 = vadd.f32 %v569, %v688
        %v690 = vpop.f32.mrf.mxu0
        %691 = vmatprep.mubr.bf16.mxu0 0
        %692 = vmatmul.mubr.bf16.gmra.mxu0 %v585
        %v693 = vpop.f32.mrf.mxu0
        %v694 = vadd.f32 %v569, %v693
        %v695 = vpop.f32.mrf.mxu0
        %v696 = vpop.f32.mrf.mxu0
        %v697 = vadd.f32 %v569, %v696
        %v698 = vpop.f32.mrf.mxu0
        %699 = vmatprep.mubr.bf16.mxu0 0
        %700 = vmatmul.mubr.bf16.gmra.mxu0 %v588
        %v701 = vpop.f32.mrf.mxu0
        %v702 = vadd.f32 %v569, %v701
        %v703 = vpop.f32.mrf.mxu0
        %v704 = vpop.f32.mrf.mxu0
        %v705 = vadd.f32 %v569, %v704
        %v706 = vpop.f32.mrf.mxu0
        %707 = vmatprep.mubr.bf16.mxu0 0
        %708 = vmatmul.mubr.bf16.gmra.mxu0 %v591
        %v709 = vpop.f32.mrf.mxu0
        %v710 = vadd.f32 %v569, %v709
        %v711 = vpop.f32.mrf.mxu0
        %v712 = vpop.f32.mrf.mxu0
        %v713 = vadd.f32 %v569, %v712
        %v714 = vpop.f32.mrf.mxu0
        %715 = vmatprep.mubr.bf16.mxu0 0
        %716 = vmatmul.mubr.bf16.gmra.mxu0 %v594
        %v717 = vpop.f32.mrf.mxu0
        %v718 = vadd.f32 %v569, %v717
        %v719 = vpop.f32.mrf.mxu0
        %v720 = vpop.f32.mrf.mxu0
        %v721 = vadd.f32 %v569, %v720
        %v722 = vpop.f32.mrf.mxu0
        %723 = vmatprep.mubr.bf16.mxu0 0
        %724 = vmatmul.mubr.bf16.gmra.mxu0 %v597
        %v725 = vpop.f32.mrf.mxu0
        %v726 = vadd.f32 %v569, %v725
        %v727 = vpop.f32.mrf.mxu0
        %v728 = vpop.f32.mrf.mxu0
        %v729 = vadd.f32 %v569, %v728
        %v730 = vpop.f32.mrf.mxu0
        %731 = vmatprep.mubr.bf16.mxu0 0
        %732 = vmatmul.mubr.bf16.gmra.mxu0 %v600
        %v733 = vpop.f32.mrf.mxu0
        %v734 = vadd.f32 %v569, %v733
        %v735 = vpop.f32.mrf.mxu0
        %v736 = vpop.f32.mrf.mxu0
        %v737 = vadd.f32 %v569, %v736
        %v738 = vpop.f32.mrf.mxu0
        %739 = vmatprep.mubr.bf16.mxu0 0
        %740 = vmatmul.mubr.bf16.gmra.mxu0 %v603
        %v741 = vpop.f32.mrf.mxu0
        %v742 = vadd.f32 %v569, %v741
        %v743 = vpop.f32.mrf.mxu0
        %v744 = vpop.f32.mrf.mxu0
        %v745 = vadd.f32 %v569, %v744
        %v746 = vpop.f32.mrf.mxu0
        %747 = vmatprep.mubr.bf16.mxu0 0
        %748 = vmatmul.mubr.bf16.gmra.mxu0 %v606
        %v749 = vpop.f32.mrf.mxu0
        %v750 = vadd.f32 %v569, %v749
        %v751 = vpop.f32.mrf.mxu0
        %v752 = vpop.f32.mrf.mxu0
        %v753 = vadd.f32 %v569, %v752
        %v754 = vpop.f32.mrf.mxu0
        %755 = vmatprep.mubr.bf16.mxu0 0
        %756 = vmatmul.mubr.bf16.gmra.mxu0 %v609
        %v757 = vpop.f32.mrf.mxu0
        %v758 = vadd.f32 %v569, %v757
        %v759 = vpop.f32.mrf.mxu0
        %v760 = vpop.f32.mrf.mxu0
        %v761 = vadd.f32 %v569, %v760
        %v762 = vpop.f32.mrf.mxu0
        %763 = vmatprep.mubr.bf16.mxu0 0
        %764 = vmatmul.mubr.bf16.gmra.mxu0 %v612
        %v765 = vpop.f32.mrf.mxu0
        %v766 = vadd.f32 %v569, %v765
        %v767 = vpop.f32.mrf.mxu0
        %v768 = vpop.f32.mrf.mxu0
        %v769 = vadd.f32 %v569, %v768
        %v770 = vpop.f32.mrf.mxu0
        %771 = vmatprep.mubr.bf16.mxu0 0
        %772 = vmatmul.mubr.bf16.gmra.mxu0 %v615
        %v773 = vpop.f32.mrf.mxu0
        %v774 = vadd.f32 %v569, %v773
        %v775 = vpop.f32.mrf.mxu0
        %v776 = vpop.f32.mrf.mxu0
        %v777 = vadd.f32 %v569, %v776
        %v778 = vpop.f32.mrf.mxu0
        %779 = vmatprep.mubr.bf16.mxu0 0
        %780 = vmatmul.mubr.bf16.gmra.mxu0 %v618
        %v781 = vpop.f32.mrf.mxu0
        %v782 = vadd.f32 %v569, %v781
        %v783 = vpop.f32.mrf.mxu0
        %v784 = vpop.f32.mrf.mxu0
        %v785 = vadd.f32 %v569, %v784
        %v786 = vpop.f32.mrf.mxu0
        %787 = vdwg.mxu0
        %v788 = vmax.f32 %v662, 0.0
        %v789 = vmax.f32 %v665, 0.0
        %v790 = vmax.f32 %v670, 0.0
        %v791 = vmax.f32 %v673, 0.0
        %v792 = vmax.f32 %v678, 0.0
        %v793 = vmax.f32 %v681, 0.0
        %v794 = vmax.f32 %v686, 0.0
        %v795 = vmax.f32 %v689, 0.0
        %v796 = vmax.f32 %v694, 0.0
        %v797 = vmax.f32 %v697, 0.0
        %v798 = vmax.f32 %v702, 0.0
        %v799 = vmax.f32 %v705, 0.0
        %v800 = vmax.f32 %v710, 0.0
        %v801 = vmax.f32 %v713, 0.0
        %v802 = vmax.f32 %v718, 0.0
        %v803 = vmax.f32 %v721, 0.0
        %v804 = vmax.f32 %v726, 0.0
        %v805 = vmax.f32 %v729, 0.0
        %v806 = vmax.f32 %v734, 0.0
        %v807 = vmax.f32 %v737, 0.0
        %v808 = vmax.f32 %v742, 0.0
        %v809 = vmax.f32 %v745, 0.0
        %v810 = vmax.f32 %v750, 0.0
        %v811 = vmax.f32 %v753, 0.0
        %v812 = vmax.f32 %v758, 0.0
        %v813 = vmax.f32 %v761, 0.0
        %v814 = vmax.f32 %v766, 0.0
        %v815 = vmax.f32 %v769, 0.0
        %v816 = vmax.f32 %v774, 0.0
        %v817 = vmax.f32 %v777, 0.0
        %v818 = vmax.f32 %v782, 0.0
        %v819 = vmax.f32 %v785, 0.0
        %v820 = vpack.c.bf16 %v789, %v788
        %v821 = vpack.c.bf16 %v791, %v790
        %v822 = vpack.c.bf16 %v793, %v792
        %v823 = vpack.c.bf16 %v795, %v794
        %v824 = vpack.c.bf16 %v797, %v796
        %v825 = vpack.c.bf16 %v799, %v798
        %v826 = vpack.c.bf16 %v801, %v800
        %v827 = vpack.c.bf16 %v803, %v802
        %v828 = vpack.c.bf16 %v805, %v804
        %v829 = vpack.c.bf16 %v807, %v806
        %v830 = vpack.c.bf16 %v809, %v808
        %v831 = vpack.c.bf16 %v811, %v810
        %v832 = vpack.c.bf16 %v813, %v812
        %v833 = vpack.c.bf16 %v815, %v814
        %v834 = vpack.c.bf16 %v817, %v816
        %v835 = vpack.c.bf16 %v819, %v818
        %v836 = vld [vmem:[%s3] sm:$0xf]
        %v837 = vld [vmem:[%s3 + $0x4] sm:$0xf]
        %v838 = vld [vmem:[%s3 + $0x8] sm:$0xf]
        %v839 = vld [vmem:[%s3 + $0xc] sm:$0xf]
        %v840 = vld [vmem:[%s3 + $0x10] sm:$0xf]
        %v841 = vld [vmem:[%s3 + $0x14] sm:$0xf]
        %v842 = vld [vmem:[%s3 + $0x18] sm:$0xf]
        %v843 = vld [vmem:[%s3 + $0x1c] sm:$0xf]
        %v844 = vld [vmem:[#allocation3] sm:$0x1]
        %v846 = vlaneseq
        %v847 = vshrl.u32 %v846, 7
        %v848 = vsub.s32 0, %v847
        %v849 = vrot.slane %v844, %v848
        %v859 = vunpack.c.l.b16 %v836
        %v860 = vunpack.c.l.b16 %v837
        %v861 = vunpack.c.l.b16 %v838
        %v862 = vunpack.c.l.b16 %v839
        %v863 = vunpack.c.l.b16 %v840
        %v864 = vunpack.c.l.b16 %v841
        %v865 = vunpack.c.l.b16 %v842
        %v866 = vunpack.c.l.b16 %v843
        %v867 = vpack.c.b16 %v860, %v859
        %v868 = vpack.c.b16 %v862, %v861
        %v869 = vpack.c.b16 %v864, %v863
        %v870 = vpack.c.b16 %v866, %v865
        %vm875 = vcmask 523264
        %v877 = vsel %vm875, %v820, 0
        %v880 = vsel %vm875, %v821, 0
        %v883 = vsel %vm875, %v822, 0
        %v886 = vsel %vm875, %v823, 0
        %v889 = vsel %vm875, %v824, 0
        %v892 = vsel %vm875, %v825, 0
        %v895 = vsel %vm875, %v826, 0
        %v898 = vsel %vm875, %v827, 0
        %v901 = vsel %vm875, %v828, 0
        %v904 = vsel %vm875, %v829, 0
        %v907 = vsel %vm875, %v830, 0
        %v910 = vsel %vm875, %v831, 0
        %v913 = vsel %vm875, %v832, 0
        %v916 = vsel %vm875, %v833, 0
        %v919 = vsel %vm875, %v834, 0
        %v922 = vsel %vm875, %v835, 0
        %924 = vmatprep.subr.bf16.mxu0 0
        %925 = vmatpush1.bf16.msra.mxu0 0
        %926 = vmatprep.subr.bf16.mxu0 0
        %927 = vmatpush1.bf16.msra.mxu0 0
        %928 = vmatprep.subr.bf16.mxu0 0
        %929 = vmatpush1.bf16.msra.mxu0 0
        %930 = vmatprep.subr.bf16.mxu0 0
        %931 = vmatpush1.bf16.msra.mxu0 0
        %932 = vmatprep.subr.bf16.mxu0 0
        %933 = vmatpush1.bf16.msra.mxu0 %v870
        %934 = vmatprep.subr.bf16.mxu0 0
        %935 = vmatpush1.bf16.msra.mxu0 %v869
        %936 = vmatprep.subr.bf16.mxu0 0
        %937 = vmatpush1.bf16.msra.mxu0 %v868
        %938 = vmatprep.subr.bf16.mxu0 0
        %939 = vmatpush1.bf16.msra.mxu0 %v867
        %940 = vmatprep.subr.bf16.mxu0 0
        %941 = vmatpush2.bf16.msra.mxu0 0
        %942 = vmatprep.subr.bf16.mxu0 0
        %943 = vmatpush2.bf16.msra.mxu0 0
        %944 = vmatprep.subr.bf16.mxu0 0
        %945 = vmatpush2.bf16.msra.mxu0 0
        %946 = vmatprep.subr.bf16.mxu0 0
        %947 = vmatpush2.bf16.msra.mxu0 0
        %948 = vmatprep.subr.bf16.mxu0 0
        %949 = vmatpush2.bf16.msra.mxu0 0
        %950 = vmatprep.subr.bf16.mxu0 0
        %951 = vmatpush2.bf16.msra.mxu0 0
        %952 = vmatprep.subr.bf16.mxu0 0
        %953 = vmatpush2.bf16.msra.mxu0 0
        %954 = vmatprep.subr.bf16.mxu0 0
        %955 = vmatpush2.bf16.msra.mxu0 0
        %956 = vmatprep.mubr.bf16.mxu0 0
        %957 = vmatmul.mubr.bf16.gmra.mxu0 %v877
        %v958 = vpop.f32.mrf.mxu0
        %v959 = vadd.f32 %v849, %v958
        %v960 = vpop.f32.mrf.mxu0
        %v961 = vpop.f32.mrf.mxu0
        %v962 = vadd.f32 %v849, %v961
        %v963 = vpop.f32.mrf.mxu0
        %964 = vmatprep.mubr.bf16.mxu0 0
        %965 = vmatmul.mubr.bf16.gmra.mxu0 %v880
        %v966 = vpop.f32.mrf.mxu0
        %v967 = vadd.f32 %v849, %v966
        %v968 = vpop.f32.mrf.mxu0
        %v969 = vpop.f32.mrf.mxu0
        %v970 = vadd.f32 %v849, %v969
        %v971 = vpop.f32.mrf.mxu0
        %972 = vmatprep.mubr.bf16.mxu0 0
        %973 = vmatmul.mubr.bf16.gmra.mxu0 %v883
        %v974 = vpop.f32.mrf.mxu0
        %v975 = vadd.f32 %v849, %v974
        %v976 = vpop.f32.mrf.mxu0
        %v977 = vpop.f32.mrf.mxu0
        %v978 = vadd.f32 %v849, %v977
        %v979 = vpop.f32.mrf.mxu0
        %980 = vmatprep.mubr.bf16.mxu0 0
        %981 = vmatmul.mubr.bf16.gmra.mxu0 %v886
        %v982 = vpop.f32.mrf.mxu0
        %v983 = vadd.f32 %v849, %v982
        %v984 = vpop.f32.mrf.mxu0
        %v985 = vpop.f32.mrf.mxu0
        %v986 = vadd.f32 %v849, %v985
        %v987 = vpop.f32.mrf.mxu0
        %988 = vmatprep.mubr.bf16.mxu0 0
        %989 = vmatmul.mubr.bf16.gmra.mxu0 %v889
        %v990 = vpop.f32.mrf.mxu0
        %v991 = vadd.f32 %v849, %v990
        %v992 = vpop.f32.mrf.mxu0
        %v993 = vpop.f32.mrf.mxu0
        %v994 = vadd.f32 %v849, %v993
        %v995 = vpop.f32.mrf.mxu0
        %996 = vmatprep.mubr.bf16.mxu0 0
        %997 = vmatmul.mubr.bf16.gmra.mxu0 %v892
        %v998 = vpop.f32.mrf.mxu0
        %v999 = vadd.f32 %v849, %v998
        %v1000 = vpop.f32.mrf.mxu0
        %v1001 = vpop.f32.mrf.mxu0
        %v1002 = vadd.f32 %v849, %v1001
        %v1003 = vpop.f32.mrf.mxu0
        %1004 = vmatprep.mubr.bf16.mxu0 0
        %1005 = vmatmul.mubr.bf16.gmra.mxu0 %v895
        %v1006 = vpop.f32.mrf.mxu0
        %v1007 = vadd.f32 %v849, %v1006
        %v1008 = vpop.f32.mrf.mxu0
        %v1009 = vpop.f32.mrf.mxu0
        %v1010 = vadd.f32 %v849, %v1009
        %v1011 = vpop.f32.mrf.mxu0
        %1012 = vmatprep.mubr.bf16.mxu0 0
        %1013 = vmatmul.mubr.bf16.gmra.mxu0 %v898
        %v1014 = vpop.f32.mrf.mxu0
        %v1015 = vadd.f32 %v849, %v1014
        %v1016 = vpop.f32.mrf.mxu0
        %v1017 = vpop.f32.mrf.mxu0
        %v1018 = vadd.f32 %v849, %v1017
        %v1019 = vpop.f32.mrf.mxu0
        %1020 = vmatprep.mubr.bf16.mxu0 0
        %1021 = vmatmul.mubr.bf16.gmra.mxu0 %v901
        %v1022 = vpop.f32.mrf.mxu0
        %v1023 = vadd.f32 %v849, %v1022
        %v1024 = vpop.f32.mrf.mxu0
        %v1025 = vpop.f32.mrf.mxu0
        %v1026 = vadd.f32 %v849, %v1025
        %v1027 = vpop.f32.mrf.mxu0
        %1028 = vmatprep.mubr.bf16.mxu0 0
        %1029 = vmatmul.mubr.bf16.gmra.mxu0 %v904
        %v1030 = vpop.f32.mrf.mxu0
        %v1031 = vadd.f32 %v849, %v1030
        %v1032 = vpop.f32.mrf.mxu0
        %v1033 = vpop.f32.mrf.mxu0
        %v1034 = vadd.f32 %v849, %v1033
        %v1035 = vpop.f32.mrf.mxu0
        %1036 = vmatprep.mubr.bf16.mxu0 0
        %1037 = vmatmul.mubr.bf16.gmra.mxu0 %v907
        %v1038 = vpop.f32.mrf.mxu0
        %v1039 = vadd.f32 %v849, %v1038
        %v1040 = vpop.f32.mrf.mxu0
        %v1041 = vpop.f32.mrf.mxu0
        %v1042 = vadd.f32 %v849, %v1041
        %v1043 = vpop.f32.mrf.mxu0
        %1044 = vmatprep.mubr.bf16.mxu0 0
        %1045 = vmatmul.mubr.bf16.gmra.mxu0 %v910
        %v1046 = vpop.f32.mrf.mxu0
        %v1047 = vadd.f32 %v849, %v1046
        %v1048 = vpop.f32.mrf.mxu0
        %v1049 = vpop.f32.mrf.mxu0
        %v1050 = vadd.f32 %v849, %v1049
        %v1051 = vpop.f32.mrf.mxu0
        %1052 = vmatprep.mubr.bf16.mxu0 0
        %1053 = vmatmul.mubr.bf16.gmra.mxu0 %v913
        %v1054 = vpop.f32.mrf.mxu0
        %v1055 = vadd.f32 %v849, %v1054
        %v1056 = vpop.f32.mrf.mxu0
        %v1057 = vpop.f32.mrf.mxu0
        %v1058 = vadd.f32 %v849, %v1057
        %v1059 = vpop.f32.mrf.mxu0
        %1060 = vmatprep.mubr.bf16.mxu0 0
        %1061 = vmatmul.mubr.bf16.gmra.mxu0 %v916
        %v1062 = vpop.f32.mrf.mxu0
        %v1063 = vadd.f32 %v849, %v1062
        %v1064 = vpop.f32.mrf.mxu0
        %v1065 = vpop.f32.mrf.mxu0
        %v1066 = vadd.f32 %v849, %v1065
        %v1067 = vpop.f32.mrf.mxu0
        %1068 = vmatprep.mubr.bf16.mxu0 0
        %1069 = vmatmul.mubr.bf16.gmra.mxu0 %v919
        %v1070 = vpop.f32.mrf.mxu0
        %v1071 = vadd.f32 %v849, %v1070
        %v1072 = vpop.f32.mrf.mxu0
        %v1073 = vpop.f32.mrf.mxu0
        %v1074 = vadd.f32 %v849, %v1073
        %v1075 = vpop.f32.mrf.mxu0
        %1076 = vmatprep.mubr.bf16.mxu0 0
        %1077 = vmatmul.mubr.bf16.gmra.mxu0 %v922
        %v1078 = vpop.f32.mrf.mxu0
        %v1079 = vadd.f32 %v849, %v1078
        %v1080 = vpop.f32.mrf.mxu0
        %v1081 = vpop.f32.mrf.mxu0
        %v1082 = vadd.f32 %v849, %v1081
        %v1083 = vpop.f32.mrf.mxu0
        %1084 = vdwg.mxu0
        %v1085 = vmax.f32 %v959, 0.0
        %v1086 = vmax.f32 %v962, 0.0
        %v1087 = vmax.f32 %v967, 0.0
        %v1088 = vmax.f32 %v970, 0.0
        %v1089 = vmax.f32 %v975, 0.0
        %v1090 = vmax.f32 %v978, 0.0
        %v1091 = vmax.f32 %v983, 0.0
        %v1092 = vmax.f32 %v986, 0.0
        %v1093 = vmax.f32 %v991, 0.0
        %v1094 = vmax.f32 %v994, 0.0
        %v1095 = vmax.f32 %v999, 0.0
        %v1096 = vmax.f32 %v1002, 0.0
        %v1097 = vmax.f32 %v1007, 0.0
        %v1098 = vmax.f32 %v1010, 0.0
        %v1099 = vmax.f32 %v1015, 0.0
        %v1100 = vmax.f32 %v1018, 0.0
        %v1101 = vmax.f32 %v1023, 0.0
        %v1102 = vmax.f32 %v1026, 0.0
        %v1103 = vmax.f32 %v1031, 0.0
        %v1104 = vmax.f32 %v1034, 0.0
        %v1105 = vmax.f32 %v1039, 0.0
        %v1106 = vmax.f32 %v1042, 0.0
        %v1107 = vmax.f32 %v1047, 0.0
        %v1108 = vmax.f32 %v1050, 0.0
        %v1109 = vmax.f32 %v1055, 0.0
        %v1110 = vmax.f32 %v1058, 0.0
        %v1111 = vmax.f32 %v1063, 0.0
        %v1112 = vmax.f32 %v1066, 0.0
        %v1113 = vmax.f32 %v1071, 0.0
        %v1114 = vmax.f32 %v1074, 0.0
        %v1115 = vmax.f32 %v1079, 0.0
        %v1116 = vmax.f32 %v1082, 0.0
        %v1117 = vpack.c.bf16 %v1086, %v1085
        %v1118 = vpack.c.bf16 %v1088, %v1087
        %v1119 = vpack.c.bf16 %v1090, %v1089
        %v1120 = vpack.c.bf16 %v1092, %v1091
        %v1121 = vpack.c.bf16 %v1094, %v1093
        %v1122 = vpack.c.bf16 %v1096, %v1095
        %v1123 = vpack.c.bf16 %v1098, %v1097
        %v1124 = vpack.c.bf16 %v1100, %v1099
        %v1125 = vpack.c.bf16 %v1102, %v1101
        %v1126 = vpack.c.bf16 %v1104, %v1103
        %v1127 = vpack.c.bf16 %v1106, %v1105
        %v1128 = vpack.c.bf16 %v1108, %v1107
        %v1129 = vpack.c.bf16 %v1110, %v1109
        %v1130 = vpack.c.bf16 %v1112, %v1111
        %v1131 = vpack.c.bf16 %v1114, %v1113
        %v1132 = vpack.c.bf16 %v1116, %v1115
        %v1133 = vld [vmem:[%s5] sm:$0xff]
        %v1134 = vld [vmem:[%s5 + $0x8] sm:$0xff]
        %v1135 = vld [vmem:[%s5 + $0x10] sm:$0xff]
        %v1136 = vld [vmem:[%s5 + $0x18] sm:$0xff]
        %v1137 = vld [vmem:[%s5 + $0x20] sm:$0xff]
        %v1138 = vld [vmem:[%s5 + $0x28] sm:$0xff]
        %v1139 = vld [vmem:[%s5 + $0x30] sm:$0xff]
        %v1140 = vld [vmem:[%s5 + $0x38] sm:$0xff]
        %v1141 = vld [vmem:[%s5 + $0x40] sm:$0xff]
        %v1142 = vld [vmem:[%s5 + $0x48] sm:$0xff]
        %v1143 = vld [vmem:[%s5 + $0x50] sm:$0xff]
        %v1144 = vld [vmem:[%s5 + $0x58] sm:$0xff]
        %v1145 = vld [vmem:[%s5 + $0x60] sm:$0xff]
        %v1146 = vld [vmem:[%s5 + $0x68] sm:$0xff]
        %v1147 = vld [vmem:[%s5 + $0x70] sm:$0xff]
        %v1148 = vld [vmem:[%s5 + $0x78] sm:$0xff]
        %v1149 = vld [vmem:[%s5 + $0x80] sm:$0xff]
        %v1150 = vld [vmem:[%s5 + $0x88] sm:$0xff]
        %v1151 = vld [vmem:[%s5 + $0x90] sm:$0xff]
        %v1152 = vld [vmem:[%s5 + $0x98] sm:$0xff]
        %v1153 = vld [vmem:[%s5 + $0xa0] sm:$0xff]
        %v1154 = vld [vmem:[%s5 + $0xa8] sm:$0xff]
        %v1155 = vld [vmem:[%s5 + $0xb0] sm:$0xff]
        %v1156 = vld [vmem:[%s5 + $0xb8] sm:$0xff]
        %v1157 = vld [vmem:[%s5 + $0xc0] sm:$0xff]
        %v1158 = vld [vmem:[%s5 + $0xc8] sm:$0xff]
        %v1159 = vld [vmem:[%s5 + $0xd0] sm:$0xff]
        %v1160 = vld [vmem:[%s5 + $0xd8] sm:$0xff]
        %v1161 = vld [vmem:[%s5 + $0xe0] sm:$0xff]
        %v1162 = vld [vmem:[%s5 + $0xe8] sm:$0xff]
        %v1163 = vld [vmem:[%s5 + $0xf0] sm:$0xff]
        %v1164 = vld [vmem:[%s5 + $0xf8] sm:$0xff]
        %v1165 = vld [vmem:[%s5 + $0x100] sm:$0xff]
        %v1166 = vld [vmem:[%s5 + $0x108] sm:$0xff]
        %v1167 = vld [vmem:[%s5 + $0x110] sm:$0xff]
        %v1168 = vld [vmem:[%s5 + $0x118] sm:$0xff]
        %v1169 = vld [vmem:[%s5 + $0x120] sm:$0xff]
        %v1170 = vld [vmem:[%s5 + $0x128] sm:$0xff]
        %v1171 = vld [vmem:[%s5 + $0x130] sm:$0xff]
        %v1172 = vld [vmem:[%s5 + $0x138] sm:$0xff]
        %v1173 = vld [vmem:[%s5 + $0x140] sm:$0xff]
        %v1174 = vld [vmem:[%s5 + $0x148] sm:$0xff]
        %v1175 = vld [vmem:[%s5 + $0x150] sm:$0xff]
        %v1176 = vld [vmem:[%s5 + $0x158] sm:$0xff]
        %v1177 = vld [vmem:[%s5 + $0x160] sm:$0xff]
        %v1178 = vld [vmem:[%s5 + $0x168] sm:$0xff]
        %v1179 = vld [vmem:[%s5 + $0x170] sm:$0xff]
        %v1180 = vld [vmem:[%s5 + $0x178] sm:$0xff]
        %v1181 = vld [vmem:[%s5 + $0x180] sm:$0xff]
        %v1182 = vld [vmem:[%s5 + $0x188] sm:$0xff]
        %v1183 = vld [vmem:[%s5 + $0x190] sm:$0xff]
        %v1184 = vld [vmem:[%s5 + $0x198] sm:$0xff]
        %v1185 = vld [vmem:[%s5 + $0x1a0] sm:$0xff]
        %v1186 = vld [vmem:[%s5 + $0x1a8] sm:$0xff]
        %v1187 = vld [vmem:[%s5 + $0x1b0] sm:$0xff]
        %v1188 = vld [vmem:[%s5 + $0x1b8] sm:$0xff]
        %v1189 = vld [vmem:[%s5 + $0x1c0] sm:$0xff]
        %v1190 = vld [vmem:[%s5 + $0x1c8] sm:$0xff]
        %v1191 = vld [vmem:[%s5 + $0x1d0] sm:$0xff]
        %v1192 = vld [vmem:[%s5 + $0x1d8] sm:$0xff]
        %v1193 = vld [vmem:[%s5 + $0x1e0] sm:$0xff]
        %v1194 = vld [vmem:[%s5 + $0x1e8] sm:$0xff]
        %v1195 = vld [vmem:[%s5 + $0x1f0] sm:$0xff]
        %v1196 = vld [vmem:[%s5 + $0x1f8] sm:$0xff]
        %v1197 = vld [vmem:[%s6] sm:$0xff]
        %v1199 = vlaneseq
        %v1200 = vshrl.u32 %v1199, 7
        %v1201 = vsub.s32 0, %v1200
        %v1202 = vrot.slane %v1197, %v1201
        %v1203 = vlaneseq
        %v1204 = vshrl.u32 %v1203, 7
        %v1205 = vsub.s32 1, %v1204
        %v1206 = vrot.slane %v1197, %v1205
        %v1207 = vlaneseq
        %v1208 = vshrl.u32 %v1207, 7
        %v1209 = vsub.s32 2, %v1208
        %v1210 = vrot.slane %v1197, %v1209
        %v1211 = vlaneseq
        %v1212 = vshrl.u32 %v1211, 7
        %v1213 = vsub.s32 3, %v1212
        %v1214 = vrot.slane %v1197, %v1213
        %v1215 = vlaneseq
        %v1216 = vshrl.u32 %v1215, 7
        %v1217 = vsub.s32 4, %v1216
        %v1218 = vrot.slane %v1197, %v1217
        %v1219 = vlaneseq
        %v1220 = vshrl.u32 %v1219, 7
        %v1221 = vsub.s32 5, %v1220
        %v1222 = vrot.slane %v1197, %v1221
        %v1223 = vlaneseq
        %v1224 = vshrl.u32 %v1223, 7
        %v1225 = vsub.s32 6, %v1224
        %v1226 = vrot.slane %v1197, %v1225
        %v1227 = vlaneseq
        %v1228 = vshrl.u32 %v1227, 7
        %v1229 = vsub.s32 7, %v1228
        %v1230 = vrot.slane %v1197, %v1229
        %v1303 = vunpack.c.l.b16 %v1133
        %v1304 = vunpack.c.h.b16 %v1133
        %v1305 = vunpack.c.l.b16 %v1134
        %v1306 = vunpack.c.h.b16 %v1134
        %v1307 = vunpack.c.l.b16 %v1135
        %v1308 = vunpack.c.h.b16 %v1135
        %v1309 = vunpack.c.l.b16 %v1136
        %v1310 = vunpack.c.h.b16 %v1136
        %v1311 = vunpack.c.l.b16 %v1137
        %v1312 = vunpack.c.h.b16 %v1137
        %v1313 = vunpack.c.l.b16 %v1138
        %v1314 = vunpack.c.h.b16 %v1138
        %v1315 = vunpack.c.l.b16 %v1139
        %v1316 = vunpack.c.h.b16 %v1139
        %v1317 = vunpack.c.l.b16 %v1140
        %v1318 = vunpack.c.h.b16 %v1140
        %v1319 = vunpack.c.l.b16 %v1141
        %v1320 = vunpack.c.h.b16 %v1141
        %v1321 = vunpack.c.l.b16 %v1142
        %v1322 = vunpack.c.h.b16 %v1142
        %v1323 = vunpack.c.l.b16 %v1143
        %v1324 = vunpack.c.h.b16 %v1143
        %v1325 = vunpack.c.l.b16 %v1144
        %v1326 = vunpack.c.h.b16 %v1144
        %v1327 = vunpack.c.l.b16 %v1145
        %v1328 = vunpack.c.h.b16 %v1145
        %v1329 = vunpack.c.l.b16 %v1146
        %v1330 = vunpack.c.h.b16 %v1146
        %v1331 = vunpack.c.l.b16 %v1147
        %v1332 = vunpack.c.h.b16 %v1147
        %v1333 = vunpack.c.l.b16 %v1148
        %v1334 = vunpack.c.h.b16 %v1148
        %v1335 = vunpack.c.l.b16 %v1149
        %v1336 = vunpack.c.h.b16 %v1149
        %v1337 = vunpack.c.l.b16 %v1150
        %v1338 = vunpack.c.h.b16 %v1150
        %v1339 = vunpack.c.l.b16 %v1151
        %v1340 = vunpack.c.h.b16 %v1151
        %v1341 = vunpack.c.l.b16 %v1152
        %v1342 = vunpack.c.h.b16 %v1152
        %v1343 = vunpack.c.l.b16 %v1153
        %v1344 = vunpack.c.h.b16 %v1153
        %v1345 = vunpack.c.l.b16 %v1154
        %v1346 = vunpack.c.h.b16 %v1154
        %v1347 = vunpack.c.l.b16 %v1155
        %v1348 = vunpack.c.h.b16 %v1155
        %v1349 = vunpack.c.l.b16 %v1156
        %v1350 = vunpack.c.h.b16 %v1156
        %v1351 = vunpack.c.l.b16 %v1157
        %v1352 = vunpack.c.h.b16 %v1157
        %v1353 = vunpack.c.l.b16 %v1158
        %v1354 = vunpack.c.h.b16 %v1158
        %v1355 = vunpack.c.l.b16 %v1159
        %v1356 = vunpack.c.h.b16 %v1159
        %v1357 = vunpack.c.l.b16 %v1160
        %v1358 = vunpack.c.h.b16 %v1160
        %v1359 = vunpack.c.l.b16 %v1161
        %v1360 = vunpack.c.h.b16 %v1161
        %v1361 = vunpack.c.l.b16 %v1162
        %v1362 = vunpack.c.h.b16 %v1162
        %v1363 = vunpack.c.l.b16 %v1163
        %v1364 = vunpack.c.h.b16 %v1163
        %v1365 = vunpack.c.l.b16 %v1164
        %v1366 = vunpack.c.h.b16 %v1164
        %v1367 = vunpack.c.l.b16 %v1165
        %v1368 = vunpack.c.h.b16 %v1165
        %v1369 = vunpack.c.l.b16 %v1166
        %v1370 = vunpack.c.h.b16 %v1166
        %v1371 = vunpack.c.l.b16 %v1167
        %v1372 = vunpack.c.h.b16 %v1167
        %v1373 = vunpack.c.l.b16 %v1168
        %v1374 = vunpack.c.h.b16 %v1168
        %v1375 = vunpack.c.l.b16 %v1169
        %v1376 = vunpack.c.h.b16 %v1169
        %v1377 = vunpack.c.l.b16 %v1170
        %v1378 = vunpack.c.h.b16 %v1170
        %v1379 = vunpack.c.l.b16 %v1171
        %v1380 = vunpack.c.h.b16 %v1171
        %v1381 = vunpack.c.l.b16 %v1172
        %v1382 = vunpack.c.h.b16 %v1172
        %v1383 = vunpack.c.l.b16 %v1173
        %v1384 = vunpack.c.h.b16 %v1173
        %v1385 = vunpack.c.l.b16 %v1174
        %v1386 = vunpack.c.h.b16 %v1174
        %v1387 = vunpack.c.l.b16 %v1175
        %v1388 = vunpack.c.h.b16 %v1175
        %v1389 = vunpack.c.l.b16 %v1176
        %v1390 = vunpack.c.h.b16 %v1176
        %v1391 = vunpack.c.l.b16 %v1177
        %v1392 = vunpack.c.h.b16 %v1177
        %v1393 = vunpack.c.l.b16 %v1178
        %v1394 = vunpack.c.h.b16 %v1178
        %v1395 = vunpack.c.l.b16 %v1179
        %v1396 = vunpack.c.h.b16 %v1179
        %v1397 = vunpack.c.l.b16 %v1180
        %v1398 = vunpack.c.h.b16 %v1180
        %v1399 = vunpack.c.l.b16 %v1181
        %v1400 = vunpack.c.h.b16 %v1181
        %v1401 = vunpack.c.l.b16 %v1182
        %v1402 = vunpack.c.h.b16 %v1182
        %v1403 = vunpack.c.l.b16 %v1183
        %v1404 = vunpack.c.h.b16 %v1183
        %v1405 = vunpack.c.l.b16 %v1184
        %v1406 = vunpack.c.h.b16 %v1184
        %v1407 = vunpack.c.l.b16 %v1185
        %v1408 = vunpack.c.h.b16 %v1185
        %v1409 = vunpack.c.l.b16 %v1186
        %v1410 = vunpack.c.h.b16 %v1186
        %v1411 = vunpack.c.l.b16 %v1187
        %v1412 = vunpack.c.h.b16 %v1187
        %v1413 = vunpack.c.l.b16 %v1188
        %v1414 = vunpack.c.h.b16 %v1188
        %v1415 = vunpack.c.l.b16 %v1189
        %v1416 = vunpack.c.h.b16 %v1189
        %v1417 = vunpack.c.l.b16 %v1190
        %v1418 = vunpack.c.h.b16 %v1190
        %v1419 = vunpack.c.l.b16 %v1191
        %v1420 = vunpack.c.h.b16 %v1191
        %v1421 = vunpack.c.l.b16 %v1192
        %v1422 = vunpack.c.h.b16 %v1192
        %v1423 = vunpack.c.l.b16 %v1193
        %v1424 = vunpack.c.h.b16 %v1193
        %v1425 = vunpack.c.l.b16 %v1194
        %v1426 = vunpack.c.h.b16 %v1194
        %v1427 = vunpack.c.l.b16 %v1195
        %v1428 = vunpack.c.h.b16 %v1195
        %v1429 = vunpack.c.l.b16 %v1196
        %v1430 = vunpack.c.h.b16 %v1196
        %v1431 = vpack.c.b16 %v1311, %v1303
        %v1432 = vpack.c.b16 %v1312, %v1304
        %v1433 = vpack.c.b16 %v1313, %v1305
        %v1434 = vpack.c.b16 %v1314, %v1306
        %v1435 = vpack.c.b16 %v1315, %v1307
        %v1436 = vpack.c.b16 %v1316, %v1308
        %v1437 = vpack.c.b16 %v1317, %v1309
        %v1438 = vpack.c.b16 %v1318, %v1310
        %v1439 = vpack.c.b16 %v1327, %v1319
        %v1440 = vpack.c.b16 %v1328, %v1320
        %v1441 = vpack.c.b16 %v1329, %v1321
        %v1442 = vpack.c.b16 %v1330, %v1322
        %v1443 = vpack.c.b16 %v1331, %v1323
        %v1444 = vpack.c.b16 %v1332, %v1324
        %v1445 = vpack.c.b16 %v1333, %v1325
        %v1446 = vpack.c.b16 %v1334, %v1326
        %v1447 = vpack.c.b16 %v1343, %v1335
        %v1448 = vpack.c.b16 %v1344, %v1336
        %v1449 = vpack.c.b16 %v1345, %v1337
        %v1450 = vpack.c.b16 %v1346, %v1338
        %v1451 = vpack.c.b16 %v1347, %v1339
        %v1452 = vpack.c.b16 %v1348, %v1340
        %v1453 = vpack.c.b16 %v1349, %v1341
        %v1454 = vpack.c.b16 %v1350, %v1342
        %v1455 = vpack.c.b16 %v1359, %v1351
        %v1456 = vpack.c.b16 %v1360, %v1352
        %v1457 = vpack.c.b16 %v1361, %v1353
        %v1458 = vpack.c.b16 %v1362, %v1354
        %v1459 = vpack.c.b16 %v1363, %v1355
        %v1460 = vpack.c.b16 %v1364, %v1356
        %v1461 = vpack.c.b16 %v1365, %v1357
        %v1462 = vpack.c.b16 %v1366, %v1358
        %v1463 = vpack.c.b16 %v1375, %v1367
        %v1464 = vpack.c.b16 %v1376, %v1368
        %v1465 = vpack.c.b16 %v1377, %v1369
        %v1466 = vpack.c.b16 %v1378, %v1370
        %v1467 = vpack.c.b16 %v1379, %v1371
        %v1468 = vpack.c.b16 %v1380, %v1372
        %v1469 = vpack.c.b16 %v1381, %v1373
        %v1470 = vpack.c.b16 %v1382, %v1374
        %v1471 = vpack.c.b16 %v1391, %v1383
        %v1472 = vpack.c.b16 %v1392, %v1384
        %v1473 = vpack.c.b16 %v1393, %v1385
        %v1474 = vpack.c.b16 %v1394, %v1386
        %v1475 = vpack.c.b16 %v1395, %v1387
        %v1476 = vpack.c.b16 %v1396, %v1388
        %v1477 = vpack.c.b16 %v1397, %v1389
        %v1478 = vpack.c.b16 %v1398, %v1390
        %v1479 = vpack.c.b16 %v1407, %v1399
        %v1480 = vpack.c.b16 %v1408, %v1400
        %v1481 = vpack.c.b16 %v1409, %v1401
        %v1482 = vpack.c.b16 %v1410, %v1402
        %v1483 = vpack.c.b16 %v1411, %v1403
        %v1484 = vpack.c.b16 %v1412, %v1404
        %v1485 = vpack.c.b16 %v1413, %v1405
        %v1486 = vpack.c.b16 %v1414, %v1406
        %v1487 = vpack.c.b16 %v1423, %v1415
        %v1488 = vpack.c.b16 %v1424, %v1416
        %v1489 = vpack.c.b16 %v1425, %v1417
        %v1490 = vpack.c.b16 %v1426, %v1418
        %v1491 = vpack.c.b16 %v1427, %v1419
        %v1492 = vpack.c.b16 %v1428, %v1420
        %v1493 = vpack.c.b16 %v1429, %v1421
        %v1494 = vpack.c.b16 %v1430, %v1422
        %1559 = vmatprep.subr.bf16.mxu0 %v1488
        %1560 = vmatpush1.bf16.msra.mxu0 %v1487
        %1561 = vmatprep.subr.bf16.mxu0 %v1480
        %1562 = vmatpush1.bf16.msra.mxu0 %v1479
        %1563 = vmatprep.subr.bf16.mxu0 %v1472
        %1564 = vmatpush1.bf16.msra.mxu0 %v1471
        %1565 = vmatprep.subr.bf16.mxu0 %v1464
        %1566 = vmatpush1.bf16.msra.mxu0 %v1463
        %1567 = vmatprep.subr.bf16.mxu0 %v1456
        %1568 = vmatpush1.bf16.msra.mxu0 %v1455
        %1569 = vmatprep.subr.bf16.mxu0 %v1448
        %1570 = vmatpush1.bf16.msra.mxu0 %v1447
        %1571 = vmatprep.subr.bf16.mxu0 %v1440
        %1572 = vmatpush1.bf16.msra.mxu0 %v1439
        %1573 = vmatprep.subr.bf16.mxu0 %v1432
        %1574 = vmatpush1.bf16.msra.mxu0 %v1431
        %1575 = vmatprep.subr.bf16.mxu0 0
        %1576 = vmatpush2.bf16.msra.mxu0 0
        %1577 = vmatprep.subr.bf16.mxu0 0
        %1578 = vmatpush2.bf16.msra.mxu0 0
        %1579 = vmatprep.subr.bf16.mxu0 0
        %1580 = vmatpush2.bf16.msra.mxu0 0
        %1581 = vmatprep.subr.bf16.mxu0 0
        %1582 = vmatpush2.bf16.msra.mxu0 0
        %1583 = vmatprep.subr.bf16.mxu0 0
        %1584 = vmatpush2.bf16.msra.mxu0 0
        %1585 = vmatprep.subr.bf16.mxu0 0
        %1586 = vmatpush2.bf16.msra.mxu0 0
        %1587 = vmatprep.subr.bf16.mxu0 0
        %1588 = vmatpush2.bf16.msra.mxu0 0
        %1589 = vmatprep.subr.bf16.mxu0 0
        %1590 = vmatpush2.bf16.msra.mxu0 0
        %1591 = vmatprep.mubr.bf16.mxu0 0
        %1592 = vmatmul.mubr.bf16.gmra.mxu0 %v1117
        %v1593 = vpop.f32.mrf.mxu0
        %v1594 = vadd.f32 %v1202, %v1593
        %v1595 = vpop.f32.mrf.mxu0
        %v1596 = vadd.f32 %v1206, %v1595
        %v1597 = vpop.f32.mrf.mxu0
        %v1598 = vadd.f32 %v1202, %v1597
        %v1599 = vpop.f32.mrf.mxu0
        %v1600 = vadd.f32 %v1206, %v1599
        %1601 = vmatprep.mubr.bf16.mxu0 0
        %1602 = vmatmul.mubr.bf16.gmra.mxu0 %v1118
        %v1603 = vpop.f32.mrf.mxu0
        %v1604 = vadd.f32 %v1202, %v1603
        %v1605 = vpop.f32.mrf.mxu0
        %v1606 = vadd.f32 %v1206, %v1605
        %v1607 = vpop.f32.mrf.mxu0
        %v1608 = vadd.f32 %v1202, %v1607
        %v1609 = vpop.f32.mrf.mxu0
        %v1610 = vadd.f32 %v1206, %v1609
        %1611 = vmatprep.mubr.bf16.mxu0 0
        %1612 = vmatmul.mubr.bf16.gmra.mxu0 %v1119
        %v1613 = vpop.f32.mrf.mxu0
        %v1614 = vadd.f32 %v1202, %v1613
        %v1615 = vpop.f32.mrf.mxu0
        %v1616 = vadd.f32 %v1206, %v1615
        %v1617 = vpop.f32.mrf.mxu0
        %v1618 = vadd.f32 %v1202, %v1617
        %v1619 = vpop.f32.mrf.mxu0
        %v1620 = vadd.f32 %v1206, %v1619
        %1621 = vmatprep.mubr.bf16.mxu0 0
        %1622 = vmatmul.mubr.bf16.gmra.mxu0 %v1120
        %v1623 = vpop.f32.mrf.mxu0
        %v1624 = vadd.f32 %v1202, %v1623
        %v1625 = vpop.f32.mrf.mxu0
        %v1626 = vadd.f32 %v1206, %v1625
        %v1627 = vpop.f32.mrf.mxu0
        %v1628 = vadd.f32 %v1202, %v1627
        %v1629 = vpop.f32.mrf.mxu0
        %v1630 = vadd.f32 %v1206, %v1629
        %1631 = vmatprep.mubr.bf16.mxu0 0
        %1632 = vmatmul.mubr.bf16.gmra.mxu0 %v1121
        %v1633 = vpop.f32.mrf.mxu0
        %v1634 = vadd.f32 %v1202, %v1633
        %v1635 = vpop.f32.mrf.mxu0
        %v1636 = vadd.f32 %v1206, %v1635
        %v1637 = vpop.f32.mrf.mxu0
        %v1638 = vadd.f32 %v1202, %v1637
        %v1639 = vpop.f32.mrf.mxu0
        %v1640 = vadd.f32 %v1206, %v1639
        %1641 = vmatprep.mubr.bf16.mxu0 0
        %1642 = vmatmul.mubr.bf16.gmra.mxu0 %v1122
        %v1643 = vpop.f32.mrf.mxu0
        %v1644 = vadd.f32 %v1202, %v1643
        %v1645 = vpop.f32.mrf.mxu0
        %v1646 = vadd.f32 %v1206, %v1645
        %v1647 = vpop.f32.mrf.mxu0
        %v1648 = vadd.f32 %v1202, %v1647
        %v1649 = vpop.f32.mrf.mxu0
        %v1650 = vadd.f32 %v1206, %v1649
        %1651 = vmatprep.mubr.bf16.mxu0 0
        %1652 = vmatmul.mubr.bf16.gmra.mxu0 %v1123
        %v1653 = vpop.f32.mrf.mxu0
        %v1654 = vadd.f32 %v1202, %v1653
        %v1655 = vpop.f32.mrf.mxu0
        %v1656 = vadd.f32 %v1206, %v1655
        %v1657 = vpop.f32.mrf.mxu0
        %v1658 = vadd.f32 %v1202, %v1657
        %v1659 = vpop.f32.mrf.mxu0
        %v1660 = vadd.f32 %v1206, %v1659
        %1661 = vmatprep.mubr.bf16.mxu0 0
        %1662 = vmatmul.mubr.bf16.gmra.mxu0 %v1124
        %v1663 = vpop.f32.mrf.mxu0
        %v1664 = vadd.f32 %v1202, %v1663
        %v1665 = vpop.f32.mrf.mxu0
        %v1666 = vadd.f32 %v1206, %v1665
        %v1667 = vpop.f32.mrf.mxu0
        %v1668 = vadd.f32 %v1202, %v1667
        %v1669 = vpop.f32.mrf.mxu0
        %v1670 = vadd.f32 %v1206, %v1669
        %1671 = vmatprep.mubr.bf16.mxu0 0
        %1672 = vmatmul.mubr.bf16.gmra.mxu0 %v1125
        %v1673 = vpop.f32.mrf.mxu0
        %v1674 = vadd.f32 %v1202, %v1673
        %v1675 = vpop.f32.mrf.mxu0
        %v1676 = vadd.f32 %v1206, %v1675
        %v1677 = vpop.f32.mrf.mxu0
        %v1678 = vadd.f32 %v1202, %v1677
        %v1679 = vpop.f32.mrf.mxu0
        %v1680 = vadd.f32 %v1206, %v1679
        %1681 = vmatprep.mubr.bf16.mxu0 0
        %1682 = vmatmul.mubr.bf16.gmra.mxu0 %v1126
        %v1683 = vpop.f32.mrf.mxu0
        %v1684 = vadd.f32 %v1202, %v1683
        %v1685 = vpop.f32.mrf.mxu0
        %v1686 = vadd.f32 %v1206, %v1685
        %v1687 = vpop.f32.mrf.mxu0
        %v1688 = vadd.f32 %v1202, %v1687
        %v1689 = vpop.f32.mrf.mxu0
        %v1690 = vadd.f32 %v1206, %v1689
        %1691 = vmatprep.mubr.bf16.mxu0 0
        %1692 = vmatmul.mubr.bf16.gmra.mxu0 %v1127
        %v1693 = vpop.f32.mrf.mxu0
        %v1694 = vadd.f32 %v1202, %v1693
        %v1695 = vpop.f32.mrf.mxu0
        %v1696 = vadd.f32 %v1206, %v1695
        %v1697 = vpop.f32.mrf.mxu0
        %v1698 = vadd.f32 %v1202, %v1697
        %v1699 = vpop.f32.mrf.mxu0
        %v1700 = vadd.f32 %v1206, %v1699
        %1701 = vmatprep.mubr.bf16.mxu0 0
        %1702 = vmatmul.mubr.bf16.gmra.mxu0 %v1128
        %v1703 = vpop.f32.mrf.mxu0
        %v1704 = vadd.f32 %v1202, %v1703
        %v1705 = vpop.f32.mrf.mxu0
        %v1706 = vadd.f32 %v1206, %v1705
        %v1707 = vpop.f32.mrf.mxu0
        %v1708 = vadd.f32 %v1202, %v1707
        %v1709 = vpop.f32.mrf.mxu0
        %v1710 = vadd.f32 %v1206, %v1709
        %1711 = vmatprep.mubr.bf16.mxu0 0
        %1712 = vmatmul.mubr.bf16.gmra.mxu0 %v1129
        %v1713 = vpop.f32.mrf.mxu0
        %v1714 = vadd.f32 %v1202, %v1713
        %v1715 = vpop.f32.mrf.mxu0
        %v1716 = vadd.f32 %v1206, %v1715
        %v1717 = vpop.f32.mrf.mxu0
        %v1718 = vadd.f32 %v1202, %v1717
        %v1719 = vpop.f32.mrf.mxu0
        %v1720 = vadd.f32 %v1206, %v1719
        %1721 = vmatprep.mubr.bf16.mxu0 0
        %1722 = vmatmul.mubr.bf16.gmra.mxu0 %v1130
        %v1723 = vpop.f32.mrf.mxu0
        %v1724 = vadd.f32 %v1202, %v1723
        %v1725 = vpop.f32.mrf.mxu0
        %v1726 = vadd.f32 %v1206, %v1725
        %v1727 = vpop.f32.mrf.mxu0
        %v1728 = vadd.f32 %v1202, %v1727
        %v1729 = vpop.f32.mrf.mxu0
        %v1730 = vadd.f32 %v1206, %v1729
        %1731 = vmatprep.mubr.bf16.mxu0 0
        %1732 = vmatmul.mubr.bf16.gmra.mxu0 %v1131
        %v1733 = vpop.f32.mrf.mxu0
        %v1734 = vadd.f32 %v1202, %v1733
        %v1735 = vpop.f32.mrf.mxu0
        %v1736 = vadd.f32 %v1206, %v1735
        %v1737 = vpop.f32.mrf.mxu0
        %v1738 = vadd.f32 %v1202, %v1737
        %v1739 = vpop.f32.mrf.mxu0
        %v1740 = vadd.f32 %v1206, %v1739
        %1741 = vmatprep.mubr.bf16.mxu0 0
        %1742 = vmatmul.mubr.bf16.gmra.mxu0 %v1132
        %v1743 = vpop.f32.mrf.mxu0
        %v1744 = vadd.f32 %v1202, %v1743
        %v1745 = vpop.f32.mrf.mxu0
        %v1746 = vadd.f32 %v1206, %v1745
        %v1747 = vpop.f32.mrf.mxu0
        %v1748 = vadd.f32 %v1202, %v1747
        %v1749 = vpop.f32.mrf.mxu0
        %v1750 = vadd.f32 %v1206, %v1749
        %1751 = vdwg.mxu0
        %1752 = vmatprep.subr.bf16.mxu0 %v1490
        %1753 = vmatpush1.bf16.msra.mxu0 %v1489
        %1754 = vmatprep.subr.bf16.mxu0 %v1482
        %1755 = vmatpush1.bf16.msra.mxu0 %v1481
        %1756 = vmatprep.subr.bf16.mxu0 %v1474
        %1757 = vmatpush1.bf16.msra.mxu0 %v1473
        %1758 = vmatprep.subr.bf16.mxu0 %v1466
        %1759 = vmatpush1.bf16.msra.mxu0 %v1465
        %1760 = vmatprep.subr.bf16.mxu0 %v1458
        %1761 = vmatpush1.bf16.msra.mxu0 %v1457
        %1762 = vmatprep.subr.bf16.mxu0 %v1450
        %1763 = vmatpush1.bf16.msra.mxu0 %v1449
        %1764 = vmatprep.subr.bf16.mxu0 %v1442
        %1765 = vmatpush1.bf16.msra.mxu0 %v1441
        %1766 = vmatprep.subr.bf16.mxu0 %v1434
        %1767 = vmatpush1.bf16.msra.mxu0 %v1433
        %1768 = vmatprep.subr.bf16.mxu0 0
        %1769 = vmatpush2.bf16.msra.mxu0 0
        %1770 = vmatprep.subr.bf16.mxu0 0
        %1771 = vmatpush2.bf16.msra.mxu0 0
        %1772 = vmatprep.subr.bf16.mxu0 0
        %1773 = vmatpush2.bf16.msra.mxu0 0
        %1774 = vmatprep.subr.bf16.mxu0 0
        %1775 = vmatpush2.bf16.msra.mxu0 0
        %1776 = vmatprep.subr.bf16.mxu0 0
        %1777 = vmatpush2.bf16.msra.mxu0 0
        %1778 = vmatprep.subr.bf16.mxu0 0
        %1779 = vmatpush2.bf16.msra.mxu0 0
        %1780 = vmatprep.subr.bf16.mxu0 0
        %1781 = vmatpush2.bf16.msra.mxu0 0
        %1782 = vmatprep.subr.bf16.mxu0 0
        %1783 = vmatpush2.bf16.msra.mxu0 0
        %1784 = vmatprep.mubr.bf16.mxu0 0
        %1785 = vmatmul.mubr.bf16.gmra.mxu0 %v1117
        %v1786 = vpop.f32.mrf.mxu0
        %v1787 = vadd.f32 %v1210, %v1786
        %v1788 = vpop.f32.mrf.mxu0
        %v1789 = vadd.f32 %v1214, %v1788
        %v1790 = vpop.f32.mrf.mxu0
        %v1791 = vadd.f32 %v1210, %v1790
        %v1792 = vpop.f32.mrf.mxu0
        %v1793 = vadd.f32 %v1214, %v1792
        %1794 = vmatprep.mubr.bf16.mxu0 0
        %1795 = vmatmul.mubr.bf16.gmra.mxu0 %v1118
        %v1796 = vpop.f32.mrf.mxu0
        %v1797 = vadd.f32 %v1210, %v1796
        %v1798 = vpop.f32.mrf.mxu0
        %v1799 = vadd.f32 %v1214, %v1798
        %v1800 = vpop.f32.mrf.mxu0
        %v1801 = vadd.f32 %v1210, %v1800
        %v1802 = vpop.f32.mrf.mxu0
        %v1803 = vadd.f32 %v1214, %v1802
        %1804 = vmatprep.mubr.bf16.mxu0 0
        %1805 = vmatmul.mubr.bf16.gmra.mxu0 %v1119
        %v1806 = vpop.f32.mrf.mxu0
        %v1807 = vadd.f32 %v1210, %v1806
        %v1808 = vpop.f32.mrf.mxu0
        %v1809 = vadd.f32 %v1214, %v1808
        %v1810 = vpop.f32.mrf.mxu0
        %v1811 = vadd.f32 %v1210, %v1810
        %v1812 = vpop.f32.mrf.mxu0
        %v1813 = vadd.f32 %v1214, %v1812
        %1814 = vmatprep.mubr.bf16.mxu0 0
        %1815 = vmatmul.mubr.bf16.gmra.mxu0 %v1120
        %v1816 = vpop.f32.mrf.mxu0
        %v1817 = vadd.f32 %v1210, %v1816
        %v1818 = vpop.f32.mrf.mxu0
        %v1819 = vadd.f32 %v1214, %v1818
        %v1820 = vpop.f32.mrf.mxu0
        %v1821 = vadd.f32 %v1210, %v1820
        %v1822 = vpop.f32.mrf.mxu0
        %v1823 = vadd.f32 %v1214, %v1822
        %1824 = vmatprep.mubr.bf16.mxu0 0
        %1825 = vmatmul.mubr.bf16.gmra.mxu0 %v1121
        %v1826 = vpop.f32.mrf.mxu0
        %v1827 = vadd.f32 %v1210, %v1826
        %v1828 = vpop.f32.mrf.mxu0
        %v1829 = vadd.f32 %v1214, %v1828
        %v1830 = vpop.f32.mrf.mxu0
        %v1831 = vadd.f32 %v1210, %v1830
        %v1832 = vpop.f32.mrf.mxu0
        %v1833 = vadd.f32 %v1214, %v1832
        %1834 = vmatprep.mubr.bf16.mxu0 0
        %1835 = vmatmul.mubr.bf16.gmra.mxu0 %v1122
        %v1836 = vpop.f32.mrf.mxu0
        %v1837 = vadd.f32 %v1210, %v1836
        %v1838 = vpop.f32.mrf.mxu0
        %v1839 = vadd.f32 %v1214, %v1838
        %v1840 = vpop.f32.mrf.mxu0
        %v1841 = vadd.f32 %v1210, %v1840
        %v1842 = vpop.f32.mrf.mxu0
        %v1843 = vadd.f32 %v1214, %v1842
        %1844 = vmatprep.mubr.bf16.mxu0 0
        %1845 = vmatmul.mubr.bf16.gmra.mxu0 %v1123
        %v1846 = vpop.f32.mrf.mxu0
        %v1847 = vadd.f32 %v1210, %v1846
        %v1848 = vpop.f32.mrf.mxu0
        %v1849 = vadd.f32 %v1214, %v1848
        %v1850 = vpop.f32.mrf.mxu0
        %v1851 = vadd.f32 %v1210, %v1850
        %v1852 = vpop.f32.mrf.mxu0
        %v1853 = vadd.f32 %v1214, %v1852
        %1854 = vmatprep.mubr.bf16.mxu0 0
        %1855 = vmatmul.mubr.bf16.gmra.mxu0 %v1124
        %v1856 = vpop.f32.mrf.mxu0
        %v1857 = vadd.f32 %v1210, %v1856
        %v1858 = vpop.f32.mrf.mxu0
        %v1859 = vadd.f32 %v1214, %v1858
        %v1860 = vpop.f32.mrf.mxu0
        %v1861 = vadd.f32 %v1210, %v1860
        %v1862 = vpop.f32.mrf.mxu0
        %v1863 = vadd.f32 %v1214, %v1862
        %1864 = vmatprep.mubr.bf16.mxu0 0
        %1865 = vmatmul.mubr.bf16.gmra.mxu0 %v1125
        %v1866 = vpop.f32.mrf.mxu0
        %v1867 = vadd.f32 %v1210, %v1866
        %v1868 = vpop.f32.mrf.mxu0
        %v1869 = vadd.f32 %v1214, %v1868
        %v1870 = vpop.f32.mrf.mxu0
        %v1871 = vadd.f32 %v1210, %v1870
        %v1872 = vpop.f32.mrf.mxu0
        %v1873 = vadd.f32 %v1214, %v1872
        %1874 = vmatprep.mubr.bf16.mxu0 0
        %1875 = vmatmul.mubr.bf16.gmra.mxu0 %v1126
        %v1876 = vpop.f32.mrf.mxu0
        %v1877 = vadd.f32 %v1210, %v1876
        %v1878 = vpop.f32.mrf.mxu0
        %v1879 = vadd.f32 %v1214, %v1878
        %v1880 = vpop.f32.mrf.mxu0
        %v1881 = vadd.f32 %v1210, %v1880
        %v1882 = vpop.f32.mrf.mxu0
        %v1883 = vadd.f32 %v1214, %v1882
        %1884 = vmatprep.mubr.bf16.mxu0 0
        %1885 = vmatmul.mubr.bf16.gmra.mxu0 %v1127
        %v1886 = vpop.f32.mrf.mxu0
        %v1887 = vadd.f32 %v1210, %v1886
        %v1888 = vpop.f32.mrf.mxu0
        %v1889 = vadd.f32 %v1214, %v1888
        %v1890 = vpop.f32.mrf.mxu0
        %v1891 = vadd.f32 %v1210, %v1890
        %v1892 = vpop.f32.mrf.mxu0
        %v1893 = vadd.f32 %v1214, %v1892
        %1894 = vmatprep.mubr.bf16.mxu0 0
        %1895 = vmatmul.mubr.bf16.gmra.mxu0 %v1128
        %v1896 = vpop.f32.mrf.mxu0
        %v1897 = vadd.f32 %v1210, %v1896
        %v1898 = vpop.f32.mrf.mxu0
        %v1899 = vadd.f32 %v1214, %v1898
        %v1900 = vpop.f32.mrf.mxu0
        %v1901 = vadd.f32 %v1210, %v1900
        %v1902 = vpop.f32.mrf.mxu0
        %v1903 = vadd.f32 %v1214, %v1902
        %1904 = vmatprep.mubr.bf16.mxu0 0
        %1905 = vmatmul.mubr.bf16.gmra.mxu0 %v1129
        %v1906 = vpop.f32.mrf.mxu0
        %v1907 = vadd.f32 %v1210, %v1906
        %v1908 = vpop.f32.mrf.mxu0
        %v1909 = vadd.f32 %v1214, %v1908
        %v1910 = vpop.f32.mrf.mxu0
        %v1911 = vadd.f32 %v1210, %v1910
        %v1912 = vpop.f32.mrf.mxu0
        %v1913 = vadd.f32 %v1214, %v1912
        %1914 = vmatprep.mubr.bf16.mxu0 0
        %1915 = vmatmul.mubr.bf16.gmra.mxu0 %v1130
        %v1916 = vpop.f32.mrf.mxu0
        %v1917 = vadd.f32 %v1210, %v1916
        %v1918 = vpop.f32.mrf.mxu0
        %v1919 = vadd.f32 %v1214, %v1918
        %v1920 = vpop.f32.mrf.mxu0
        %v1921 = vadd.f32 %v1210, %v1920
        %v1922 = vpop.f32.mrf.mxu0
        %v1923 = vadd.f32 %v1214, %v1922
        %1924 = vmatprep.mubr.bf16.mxu0 0
        %1925 = vmatmul.mubr.bf16.gmra.mxu0 %v1131
        %v1926 = vpop.f32.mrf.mxu0
        %v1927 = vadd.f32 %v1210, %v1926
        %v1928 = vpop.f32.mrf.mxu0
        %v1929 = vadd.f32 %v1214, %v1928
        %v1930 = vpop.f32.mrf.mxu0
        %v1931 = vadd.f32 %v1210, %v1930
        %v1932 = vpop.f32.mrf.mxu0
        %v1933 = vadd.f32 %v1214, %v1932
        %1934 = vmatprep.mubr.bf16.mxu0 0
        %1935 = vmatmul.mubr.bf16.gmra.mxu0 %v1132
        %v1936 = vpop.f32.mrf.mxu0
        %v1937 = vadd.f32 %v1210, %v1936
        %v1938 = vpop.f32.mrf.mxu0
        %v1939 = vadd.f32 %v1214, %v1938
        %v1940 = vpop.f32.mrf.mxu0
        %v1941 = vadd.f32 %v1210, %v1940
        %v1942 = vpop.f32.mrf.mxu0
        %v1943 = vadd.f32 %v1214, %v1942
        %1944 = vdwg.mxu0
        %1945 = vmatprep.subr.bf16.mxu0 %v1492
        %1946 = vmatpush1.bf16.msra.mxu0 %v1491
        %1947 = vmatprep.subr.bf16.mxu0 %v1484
        %1948 = vmatpush1.bf16.msra.mxu0 %v1483
        %1949 = vmatprep.subr.bf16.mxu0 %v1476
        %1950 = vmatpush1.bf16.msra.mxu0 %v1475
        %1951 = vmatprep.subr.bf16.mxu0 %v1468
        %1952 = vmatpush1.bf16.msra.mxu0 %v1467
        %1953 = vmatprep.subr.bf16.mxu0 %v1460
        %1954 = vmatpush1.bf16.msra.mxu0 %v1459
        %1955 = vmatprep.subr.bf16.mxu0 %v1452
        %1956 = vmatpush1.bf16.msra.mxu0 %v1451
        %1957 = vmatprep.subr.bf16.mxu0 %v1444
        %1958 = vmatpush1.bf16.msra.mxu0 %v1443
        %1959 = vmatprep.subr.bf16.mxu0 %v1436
        %1960 = vmatpush1.bf16.msra.mxu0 %v1435
        %1961 = vmatprep.subr.bf16.mxu0 0
        %1962 = vmatpush2.bf16.msra.mxu0 0
        %1963 = vmatprep.subr.bf16.mxu0 0
        %1964 = vmatpush2.bf16.msra.mxu0 0
        %1965 = vmatprep.subr.bf16.mxu0 0
        %1966 = vmatpush2.bf16.msra.mxu0 0
        %1967 = vmatprep.subr.bf16.mxu0 0
        %1968 = vmatpush2.bf16.msra.mxu0 0
        %1969 = vmatprep.subr.bf16.mxu0 0
        %1970 = vmatpush2.bf16.msra.mxu0 0
        %1971 = vmatprep.subr.bf16.mxu0 0
        %1972 = vmatpush2.bf16.msra.mxu0 0
        %1973 = vmatprep.subr.bf16.mxu0 0
        %1974 = vmatpush2.bf16.msra.mxu0 0
        %1975 = vmatprep.subr.bf16.mxu0 0
        %1976 = vmatpush2.bf16.msra.mxu0 0
        %1977 = vmatprep.mubr.bf16.mxu0 0
        %1978 = vmatmul.mubr.bf16.gmra.mxu0 %v1117
        %v1979 = vpop.f32.mrf.mxu0
        %v1980 = vadd.f32 %v1218, %v1979
        %v1981 = vpop.f32.mrf.mxu0
        %v1982 = vadd.f32 %v1222, %v1981
        %v1983 = vpop.f32.mrf.mxu0
        %v1984 = vadd.f32 %v1218, %v1983
        %v1985 = vpop.f32.mrf.mxu0
        %v1986 = vadd.f32 %v1222, %v1985
        %1987 = vmatprep.mubr.bf16.mxu0 0
        %1988 = vmatmul.mubr.bf16.gmra.mxu0 %v1118
        %v1989 = vpop.f32.mrf.mxu0
        %v1990 = vadd.f32 %v1218, %v1989
        %v1991 = vpop.f32.mrf.mxu0
        %v1992 = vadd.f32 %v1222, %v1991
        %v1993 = vpop.f32.mrf.mxu0
        %v1994 = vadd.f32 %v1218, %v1993
        %v1995 = vpop.f32.mrf.mxu0
        %v1996 = vadd.f32 %v1222, %v1995
        %1997 = vmatprep.mubr.bf16.mxu0 0
        %1998 = vmatmul.mubr.bf16.gmra.mxu0 %v1119
        %v1999 = vpop.f32.mrf.mxu0
        %v2000 = vadd.f32 %v1218, %v1999
        %v2001 = vpop.f32.mrf.mxu0
        %v2002 = vadd.f32 %v1222, %v2001
        %v2003 = vpop.f32.mrf.mxu0
        %v2004 = vadd.f32 %v1218, %v2003
        %v2005 = vpop.f32.mrf.mxu0
        %v2006 = vadd.f32 %v1222, %v2005
        %2007 = vmatprep.mubr.bf16.mxu0 0
        %2008 = vmatmul.mubr.bf16.gmra.mxu0 %v1120
        %v2009 = vpop.f32.mrf.mxu0
        %v2010 = vadd.f32 %v1218, %v2009
        %v2011 = vpop.f32.mrf.mxu0
        %v2012 = vadd.f32 %v1222, %v2011
        %v2013 = vpop.f32.mrf.mxu0
        %v2014 = vadd.f32 %v1218, %v2013
        %v2015 = vpop.f32.mrf.mxu0
        %v2016 = vadd.f32 %v1222, %v2015
        %2017 = vmatprep.mubr.bf16.mxu0 0
        %2018 = vmatmul.mubr.bf16.gmra.mxu0 %v1121
        %v2019 = vpop.f32.mrf.mxu0
        %v2020 = vadd.f32 %v1218, %v2019
        %v2021 = vpop.f32.mrf.mxu0
        %v2022 = vadd.f32 %v1222, %v2021
        %v2023 = vpop.f32.mrf.mxu0
        %v2024 = vadd.f32 %v1218, %v2023
        %v2025 = vpop.f32.mrf.mxu0
        %v2026 = vadd.f32 %v1222, %v2025
        %2027 = vmatprep.mubr.bf16.mxu0 0
        %2028 = vmatmul.mubr.bf16.gmra.mxu0 %v1122
        %v2029 = vpop.f32.mrf.mxu0
        %v2030 = vadd.f32 %v1218, %v2029
        %v2031 = vpop.f32.mrf.mxu0
        %v2032 = vadd.f32 %v1222, %v2031
        %v2033 = vpop.f32.mrf.mxu0
        %v2034 = vadd.f32 %v1218, %v2033
        %v2035 = vpop.f32.mrf.mxu0
        %v2036 = vadd.f32 %v1222, %v2035
        %2037 = vmatprep.mubr.bf16.mxu0 0
        %2038 = vmatmul.mubr.bf16.gmra.mxu0 %v1123
        %v2039 = vpop.f32.mrf.mxu0
        %v2040 = vadd.f32 %v1218, %v2039
        %v2041 = vpop.f32.mrf.mxu0
        %v2042 = vadd.f32 %v1222, %v2041
        %v2043 = vpop.f32.mrf.mxu0
        %v2044 = vadd.f32 %v1218, %v2043
        %v2045 = vpop.f32.mrf.mxu0
        %v2046 = vadd.f32 %v1222, %v2045
        %2047 = vmatprep.mubr.bf16.mxu0 0
        %2048 = vmatmul.mubr.bf16.gmra.mxu0 %v1124
        %v2049 = vpop.f32.mrf.mxu0
        %v2050 = vadd.f32 %v1218, %v2049
        %v2051 = vpop.f32.mrf.mxu0
        %v2052 = vadd.f32 %v1222, %v2051
        %v2053 = vpop.f32.mrf.mxu0
        %v2054 = vadd.f32 %v1218, %v2053
        %v2055 = vpop.f32.mrf.mxu0
        %v2056 = vadd.f32 %v1222, %v2055
        %2057 = vmatprep.mubr.bf16.mxu0 0
        %2058 = vmatmul.mubr.bf16.gmra.mxu0 %v1125
        %v2059 = vpop.f32.mrf.mxu0
        %v2060 = vadd.f32 %v1218, %v2059
        %v2061 = vpop.f32.mrf.mxu0
        %v2062 = vadd.f32 %v1222, %v2061
        %v2063 = vpop.f32.mrf.mxu0
        %v2064 = vadd.f32 %v1218, %v2063
        %v2065 = vpop.f32.mrf.mxu0
        %v2066 = vadd.f32 %v1222, %v2065
        %2067 = vmatprep.mubr.bf16.mxu0 0
        %2068 = vmatmul.mubr.bf16.gmra.mxu0 %v1126
        %v2069 = vpop.f32.mrf.mxu0
        %v2070 = vadd.f32 %v1218, %v2069
        %v2071 = vpop.f32.mrf.mxu0
        %v2072 = vadd.f32 %v1222, %v2071
        %v2073 = vpop.f32.mrf.mxu0
        %v2074 = vadd.f32 %v1218, %v2073
        %v2075 = vpop.f32.mrf.mxu0
        %v2076 = vadd.f32 %v1222, %v2075
        %2077 = vmatprep.mubr.bf16.mxu0 0
        %2078 = vmatmul.mubr.bf16.gmra.mxu0 %v1127
        %v2079 = vpop.f32.mrf.mxu0
        %v2080 = vadd.f32 %v1218, %v2079
        %v2081 = vpop.f32.mrf.mxu0
        %v2082 = vadd.f32 %v1222, %v2081
        %v2083 = vpop.f32.mrf.mxu0
        %v2084 = vadd.f32 %v1218, %v2083
        %v2085 = vpop.f32.mrf.mxu0
        %v2086 = vadd.f32 %v1222, %v2085
        %2087 = vmatprep.mubr.bf16.mxu0 0
        %2088 = vmatmul.mubr.bf16.gmra.mxu0 %v1128
        %v2089 = vpop.f32.mrf.mxu0
        %v2090 = vadd.f32 %v1218, %v2089
        %v2091 = vpop.f32.mrf.mxu0
        %v2092 = vadd.f32 %v1222, %v2091
        %v2093 = vpop.f32.mrf.mxu0
        %v2094 = vadd.f32 %v1218, %v2093
        %v2095 = vpop.f32.mrf.mxu0
        %v2096 = vadd.f32 %v1222, %v2095
        %2097 = vmatprep.mubr.bf16.mxu0 0
        %2098 = vmatmul.mubr.bf16.gmra.mxu0 %v1129
        %v2099 = vpop.f32.mrf.mxu0
        %v2100 = vadd.f32 %v1218, %v2099
        %v2101 = vpop.f32.mrf.mxu0
        %v2102 = vadd.f32 %v1222, %v2101
        %v2103 = vpop.f32.mrf.mxu0
        %v2104 = vadd.f32 %v1218, %v2103
        %v2105 = vpop.f32.mrf.mxu0
        %v2106 = vadd.f32 %v1222, %v2105
        %2107 = vmatprep.mubr.bf16.mxu0 0
        %2108 = vmatmul.mubr.bf16.gmra.mxu0 %v1130
        %v2109 = vpop.f32.mrf.mxu0
        %v2110 = vadd.f32 %v1218, %v2109
        %v2111 = vpop.f32.mrf.mxu0
        %v2112 = vadd.f32 %v1222, %v2111
        %v2113 = vpop.f32.mrf.mxu0
        %v2114 = vadd.f32 %v1218, %v2113
        %v2115 = vpop.f32.mrf.mxu0
        %v2116 = vadd.f32 %v1222, %v2115
        %2117 = vmatprep.mubr.bf16.mxu0 0
        %2118 = vmatmul.mubr.bf16.gmra.mxu0 %v1131
        %v2119 = vpop.f32.mrf.mxu0
        %v2120 = vadd.f32 %v1218, %v2119
        %v2121 = vpop.f32.mrf.mxu0
        %v2122 = vadd.f32 %v1222, %v2121
        %v2123 = vpop.f32.mrf.mxu0
        %v2124 = vadd.f32 %v1218, %v2123
        %v2125 = vpop.f32.mrf.mxu0
        %v2126 = vadd.f32 %v1222, %v2125
        %2127 = vmatprep.mubr.bf16.mxu0 0
        %2128 = vmatmul.mubr.bf16.gmra.mxu0 %v1132
        %v2129 = vpop.f32.mrf.mxu0
        %v2130 = vadd.f32 %v1218, %v2129
        %v2131 = vpop.f32.mrf.mxu0
        %v2132 = vadd.f32 %v1222, %v2131
        %v2133 = vpop.f32.mrf.mxu0
        %v2134 = vadd.f32 %v1218, %v2133
        %v2135 = vpop.f32.mrf.mxu0
        %v2136 = vadd.f32 %v1222, %v2135
        %2137 = vdwg.mxu0
        %2138 = vmatprep.subr.bf16.mxu0 %v1494
        %2139 = vmatpush1.bf16.msra.mxu0 %v1493
        %2140 = vmatprep.subr.bf16.mxu0 %v1486
        %2141 = vmatpush1.bf16.msra.mxu0 %v1485
        %2142 = vmatprep.subr.bf16.mxu0 %v1478
        %2143 = vmatpush1.bf16.msra.mxu0 %v1477
        %2144 = vmatprep.subr.bf16.mxu0 %v1470
        %2145 = vmatpush1.bf16.msra.mxu0 %v1469
        %2146 = vmatprep.subr.bf16.mxu0 %v1462
        %2147 = vmatpush1.bf16.msra.mxu0 %v1461
        %2148 = vmatprep.subr.bf16.mxu0 %v1454
        %2149 = vmatpush1.bf16.msra.mxu0 %v1453
        %2150 = vmatprep.subr.bf16.mxu0 %v1446
        %2151 = vmatpush1.bf16.msra.mxu0 %v1445
        %2152 = vmatprep.subr.bf16.mxu0 %v1438
        %2153 = vmatpush1.bf16.msra.mxu0 %v1437
        %2154 = vmatprep.subr.bf16.mxu0 0
        %2155 = vmatpush2.bf16.msra.mxu0 0
        %2156 = vmatprep.subr.bf16.mxu0 0
        %2157 = vmatpush2.bf16.msra.mxu0 0
        %2158 = vmatprep.subr.bf16.mxu0 0
        %2159 = vmatpush2.bf16.msra.mxu0 0
        %2160 = vmatprep.subr.bf16.mxu0 0
        %2161 = vmatpush2.bf16.msra.mxu0 0
        %2162 = vmatprep.subr.bf16.mxu0 0
        %2163 = vmatpush2.bf16.msra.mxu0 0
        %2164 = vmatprep.subr.bf16.mxu0 0
        %2165 = vmatpush2.bf16.msra.mxu0 0
        %2166 = vmatprep.subr.bf16.mxu0 0
        %2167 = vmatpush2.bf16.msra.mxu0 0
        %2168 = vmatprep.subr.bf16.mxu0 0
        %2169 = vmatpush2.bf16.msra.mxu0 0
        %2170 = vmatprep.mubr.bf16.mxu0 0
        %2171 = vmatmul.mubr.bf16.gmra.mxu0 %v1117
        %v2172 = vpop.f32.mrf.mxu0
        %v2173 = vadd.f32 %v1226, %v2172
        %v2174 = vpop.f32.mrf.mxu0
        %v2175 = vadd.f32 %v1230, %v2174
        %v2176 = vpop.f32.mrf.mxu0
        %v2177 = vadd.f32 %v1226, %v2176
        %v2178 = vpop.f32.mrf.mxu0
        %v2179 = vadd.f32 %v1230, %v2178
        %2180 = vmatprep.mubr.bf16.mxu0 0
        %2181 = vmatmul.mubr.bf16.gmra.mxu0 %v1118
        %v2182 = vpop.f32.mrf.mxu0
        %v2183 = vadd.f32 %v1226, %v2182
        %v2184 = vpop.f32.mrf.mxu0
        %v2185 = vadd.f32 %v1230, %v2184
        %v2186 = vpop.f32.mrf.mxu0
        %v2187 = vadd.f32 %v1226, %v2186
        %v2188 = vpop.f32.mrf.mxu0
        %v2189 = vadd.f32 %v1230, %v2188
        %2190 = vmatprep.mubr.bf16.mxu0 0
        %2191 = vmatmul.mubr.bf16.gmra.mxu0 %v1119
        %v2192 = vpop.f32.mrf.mxu0
        %v2193 = vadd.f32 %v1226, %v2192
        %v2194 = vpop.f32.mrf.mxu0
        %v2195 = vadd.f32 %v1230, %v2194
        %v2196 = vpop.f32.mrf.mxu0
        %v2197 = vadd.f32 %v1226, %v2196
        %v2198 = vpop.f32.mrf.mxu0
        %v2199 = vadd.f32 %v1230, %v2198
        %2200 = vmatprep.mubr.bf16.mxu0 0
        %2201 = vmatmul.mubr.bf16.gmra.mxu0 %v1120
        %v2202 = vpop.f32.mrf.mxu0
        %v2203 = vadd.f32 %v1226, %v2202
        %v2204 = vpop.f32.mrf.mxu0
        %v2205 = vadd.f32 %v1230, %v2204
        %v2206 = vpop.f32.mrf.mxu0
        %v2207 = vadd.f32 %v1226, %v2206
        %v2208 = vpop.f32.mrf.mxu0
        %v2209 = vadd.f32 %v1230, %v2208
        %2210 = vmatprep.mubr.bf16.mxu0 0
        %2211 = vmatmul.mubr.bf16.gmra.mxu0 %v1121
        %v2212 = vpop.f32.mrf.mxu0
        %v2213 = vadd.f32 %v1226, %v2212
        %v2214 = vpop.f32.mrf.mxu0
        %v2215 = vadd.f32 %v1230, %v2214
        %v2216 = vpop.f32.mrf.mxu0
        %v2217 = vadd.f32 %v1226, %v2216
        %v2218 = vpop.f32.mrf.mxu0
        %v2219 = vadd.f32 %v1230, %v2218
        %2220 = vmatprep.mubr.bf16.mxu0 0
        %2221 = vmatmul.mubr.bf16.gmra.mxu0 %v1122
        %v2222 = vpop.f32.mrf.mxu0
        %v2223 = vadd.f32 %v1226, %v2222
        %v2224 = vpop.f32.mrf.mxu0
        %v2225 = vadd.f32 %v1230, %v2224
        %v2226 = vpop.f32.mrf.mxu0
        %v2227 = vadd.f32 %v1226, %v2226
        %v2228 = vpop.f32.mrf.mxu0
        %v2229 = vadd.f32 %v1230, %v2228
        %2230 = vmatprep.mubr.bf16.mxu0 0
        %2231 = vmatmul.mubr.bf16.gmra.mxu0 %v1123
        %v2232 = vpop.f32.mrf.mxu0
        %v2233 = vadd.f32 %v1226, %v2232
        %v2234 = vpop.f32.mrf.mxu0
        %v2235 = vadd.f32 %v1230, %v2234
        %v2236 = vpop.f32.mrf.mxu0
        %v2237 = vadd.f32 %v1226, %v2236
        %v2238 = vpop.f32.mrf.mxu0
        %v2239 = vadd.f32 %v1230, %v2238
        %2240 = vmatprep.mubr.bf16.mxu0 0
        %2241 = vmatmul.mubr.bf16.gmra.mxu0 %v1124
        %v2242 = vpop.f32.mrf.mxu0
        %v2243 = vadd.f32 %v1226, %v2242
        %v2244 = vpop.f32.mrf.mxu0
        %v2245 = vadd.f32 %v1230, %v2244
        %v2246 = vpop.f32.mrf.mxu0
        %v2247 = vadd.f32 %v1226, %v2246
        %v2248 = vpop.f32.mrf.mxu0
        %v2249 = vadd.f32 %v1230, %v2248
        %2250 = vmatprep.mubr.bf16.mxu0 0
        %2251 = vmatmul.mubr.bf16.gmra.mxu0 %v1125
        %v2252 = vpop.f32.mrf.mxu0
        %v2253 = vadd.f32 %v1226, %v2252
        %v2254 = vpop.f32.mrf.mxu0
        %v2255 = vadd.f32 %v1230, %v2254
        %v2256 = vpop.f32.mrf.mxu0
        %v2257 = vadd.f32 %v1226, %v2256
        %v2258 = vpop.f32.mrf.mxu0
        %v2259 = vadd.f32 %v1230, %v2258
        %2260 = vmatprep.mubr.bf16.mxu0 0
        %2261 = vmatmul.mubr.bf16.gmra.mxu0 %v1126
        %v2262 = vpop.f32.mrf.mxu0
        %v2263 = vadd.f32 %v1226, %v2262
        %v2264 = vpop.f32.mrf.mxu0
        %v2265 = vadd.f32 %v1230, %v2264
        %v2266 = vpop.f32.mrf.mxu0
        %v2267 = vadd.f32 %v1226, %v2266
        %v2268 = vpop.f32.mrf.mxu0
        %v2269 = vadd.f32 %v1230, %v2268
        %2270 = vmatprep.mubr.bf16.mxu0 0
        %2271 = vmatmul.mubr.bf16.gmra.mxu0 %v1127
        %v2272 = vpop.f32.mrf.mxu0
        %v2273 = vadd.f32 %v1226, %v2272
        %v2274 = vpop.f32.mrf.mxu0
        %v2275 = vadd.f32 %v1230, %v2274
        %v2276 = vpop.f32.mrf.mxu0
        %v2277 = vadd.f32 %v1226, %v2276
        %v2278 = vpop.f32.mrf.mxu0
        %v2279 = vadd.f32 %v1230, %v2278
        %2280 = vmatprep.mubr.bf16.mxu0 0
        %2281 = vmatmul.mubr.bf16.gmra.mxu0 %v1128
        %v2282 = vpop.f32.mrf.mxu0
        %v2283 = vadd.f32 %v1226, %v2282
        %v2284 = vpop.f32.mrf.mxu0
        %v2285 = vadd.f32 %v1230, %v2284
        %v2286 = vpop.f32.mrf.mxu0
        %v2287 = vadd.f32 %v1226, %v2286
        %v2288 = vpop.f32.mrf.mxu0
        %v2289 = vadd.f32 %v1230, %v2288
        %2290 = vmatprep.mubr.bf16.mxu0 0
        %2291 = vmatmul.mubr.bf16.gmra.mxu0 %v1129
        %v2292 = vpop.f32.mrf.mxu0
        %v2293 = vadd.f32 %v1226, %v2292
        %v2294 = vpop.f32.mrf.mxu0
        %v2295 = vadd.f32 %v1230, %v2294
        %v2296 = vpop.f32.mrf.mxu0
        %v2297 = vadd.f32 %v1226, %v2296
        %v2298 = vpop.f32.mrf.mxu0
        %v2299 = vadd.f32 %v1230, %v2298
        %2300 = vmatprep.mubr.bf16.mxu0 0
        %2301 = vmatmul.mubr.bf16.gmra.mxu0 %v1130
        %v2302 = vpop.f32.mrf.mxu0
        %v2303 = vadd.f32 %v1226, %v2302
        %v2304 = vpop.f32.mrf.mxu0
        %v2305 = vadd.f32 %v1230, %v2304
        %v2306 = vpop.f32.mrf.mxu0
        %v2307 = vadd.f32 %v1226, %v2306
        %v2308 = vpop.f32.mrf.mxu0
        %v2309 = vadd.f32 %v1230, %v2308
        %2310 = vmatprep.mubr.bf16.mxu0 0
        %2311 = vmatmul.mubr.bf16.gmra.mxu0 %v1131
        %v2312 = vpop.f32.mrf.mxu0
        %v2313 = vadd.f32 %v1226, %v2312
        %v2314 = vpop.f32.mrf.mxu0
        %v2315 = vadd.f32 %v1230, %v2314
        %v2316 = vpop.f32.mrf.mxu0
        %v2317 = vadd.f32 %v1226, %v2316
        %v2318 = vpop.f32.mrf.mxu0
        %v2319 = vadd.f32 %v1230, %v2318
        %2320 = vmatprep.mubr.bf16.mxu0 0
        %2321 = vmatmul.mubr.bf16.gmra.mxu0 %v1132
        %v2322 = vpop.f32.mrf.mxu0
        %v2323 = vadd.f32 %v1226, %v2322
        %v2324 = vpop.f32.mrf.mxu0
        %v2325 = vadd.f32 %v1230, %v2324
        %v2326 = vpop.f32.mrf.mxu0
        %v2327 = vadd.f32 %v1226, %v2326
        %v2328 = vpop.f32.mrf.mxu0
        %v2329 = vadd.f32 %v1230, %v2328
        %2330 = vdwg.mxu0
        %v2331 = vld [vmem:[#allocation2] sm:$0xff]
        %v2332 = vmax.f32 %v1594, %v1598
        %v2333 = vmax.f32 %v2332, %v1604
        %v2334 = vmax.f32 %v2333, %v1608
        %v2335 = vmax.f32 %v2334, %v1614
        %v2336 = vmax.f32 %v2335, %v1618
        %v2337 = vmax.f32 %v2336, %v1624
        %v2338 = vmax.f32 %v2337, %v1628
        %v2339 = vmax.f32 %v2338, %v1634
        %v2340 = vmax.f32 %v2339, %v1638
        %v2341 = vmax.f32 %v2340, %v1644
        %v2342 = vmax.f32 %v2341, %v1648
        %v2343 = vmax.f32 %v2342, %v1654
        %v2344 = vmax.f32 %v2343, %v1658
        %v2345 = vmax.f32 %v2344, %v1664
        %v2346 = vmax.f32 %v2345, %v1668
        %v2347 = vmax.f32 %v2346, %v1674
        %v2348 = vmax.f32 %v2347, %v1678
        %v2349 = vmax.f32 %v2348, %v1684
        %v2350 = vmax.f32 %v2349, %v1688
        %v2351 = vmax.f32 %v2350, %v1694
        %v2352 = vmax.f32 %v2351, %v1698
        %v2353 = vmax.f32 %v2352, %v1704
        %v2354 = vmax.f32 %v2353, %v1708
        %v2355 = vmax.f32 %v2354, %v1714
        %v2356 = vmax.f32 %v2355, %v1718
        %v2357 = vmax.f32 %v2356, %v1724
        %v2358 = vmax.f32 %v2357, %v1728
        %v2359 = vmax.f32 %v2358, %v1734
        %v2360 = vmax.f32 %v2359, %v1738
        %v2361 = vmax.f32 %v2360, %v1744
        %v2362 = vmax.f32 %v2361, %v1748
        %v2363 = vrot.slane %v2362, 4
        %v2364 = vmax.f32 %v2362, %v2363
        %v2365 = vrot.slane %v2364, 2
        %v2366 = vmax.f32 %v2364, %v2365
        %v2367 = vrot.slane %v2366, 1
        %v2368 = vmax.f32 %v2366, %v2367
        %v2369 = vmax.f32 %v1596, %v1600
        %v2370 = vmax.f32 %v2369, %v1606
        %v2371 = vmax.f32 %v2370, %v1610
        %v2372 = vmax.f32 %v2371, %v1616
        %v2373 = vmax.f32 %v2372, %v1620
        %v2374 = vmax.f32 %v2373, %v1626
        %v2375 = vmax.f32 %v2374, %v1630
        %v2376 = vmax.f32 %v2375, %v1636
        %v2377 = vmax.f32 %v2376, %v1640
        %v2378 = vmax.f32 %v2377, %v1646
        %v2379 = vmax.f32 %v2378, %v1650
        %v2380 = vmax.f32 %v2379, %v1656
        %v2381 = vmax.f32 %v2380, %v1660
        %v2382 = vmax.f32 %v2381, %v1666
        %v2383 = vmax.f32 %v2382, %v1670
        %v2384 = vmax.f32 %v2383, %v1676
        %v2385 = vmax.f32 %v2384, %v1680
        %v2386 = vmax.f32 %v2385, %v1686
        %v2387 = vmax.f32 %v2386, %v1690
        %v2388 = vmax.f32 %v2387, %v1696
        %v2389 = vmax.f32 %v2388, %v1700
        %v2390 = vmax.f32 %v2389, %v1706
        %v2391 = vmax.f32 %v2390, %v1710
        %v2392 = vmax.f32 %v2391, %v1716
        %v2393 = vmax.f32 %v2392, %v1720
        %v2394 = vmax.f32 %v2393, %v1726
        %v2395 = vmax.f32 %v2394, %v1730
        %v2396 = vmax.f32 %v2395, %v1736
        %v2397 = vmax.f32 %v2396, %v1740
        %v2398 = vmax.f32 %v2397, %v1746
        %v2399 = vmax.f32 %v2398, %v1750
        %v2400 = vrot.slane %v2399, 4
        %v2401 = vmax.f32 %v2399, %v2400
        %v2402 = vrot.slane %v2401, 2
        %v2403 = vmax.f32 %v2401, %v2402
        %v2404 = vrot.slane %v2403, 1
        %v2405 = vmax.f32 %v2403, %v2404
        %v2406 = vmax.f32 %v1787, %v1791
        %v2407 = vmax.f32 %v2406, %v1797
        %v2408 = vmax.f32 %v2407, %v1801
        %v2409 = vmax.f32 %v2408, %v1807
        %v2410 = vmax.f32 %v2409, %v1811
        %v2411 = vmax.f32 %v2410, %v1817
        %v2412 = vmax.f32 %v2411, %v1821
        %v2413 = vmax.f32 %v2412, %v1827
        %v2414 = vmax.f32 %v2413, %v1831
        %v2415 = vmax.f32 %v2414, %v1837
        %v2416 = vmax.f32 %v2415, %v1841
        %v2417 = vmax.f32 %v2416, %v1847
        %v2418 = vmax.f32 %v2417, %v1851
        %v2419 = vmax.f32 %v2418, %v1857
        %v2420 = vmax.f32 %v2419, %v1861
        %v2421 = vmax.f32 %v2420, %v1867
        %v2422 = vmax.f32 %v2421, %v1871
        %v2423 = vmax.f32 %v2422, %v1877
        %v2424 = vmax.f32 %v2423, %v1881
        %v2425 = vmax.f32 %v2424, %v1887
        %v2426 = vmax.f32 %v2425, %v1891
        %v2427 = vmax.f32 %v2426, %v1897
        %v2428 = vmax.f32 %v2427, %v1901
        %v2429 = vmax.f32 %v2428, %v1907
        %v2430 = vmax.f32 %v2429, %v1911
        %v2431 = vmax.f32 %v2430, %v1917
        %v2432 = vmax.f32 %v2431, %v1921
        %v2433 = vmax.f32 %v2432, %v1927
        %v2434 = vmax.f32 %v2433, %v1931
        %v2435 = vmax.f32 %v2434, %v1937
        %v2436 = vmax.f32 %v2435, %v1941
        %v2437 = vrot.slane %v2436, 4
        %v2438 = vmax.f32 %v2436, %v2437
        %v2439 = vrot.slane %v2438, 2
        %v2440 = vmax.f32 %v2438, %v2439
        %v2441 = vrot.slane %v2440, 1
        %v2442 = vmax.f32 %v2440, %v2441
        %v2443 = vmax.f32 %v1789, %v1793
        %v2444 = vmax.f32 %v2443, %v1799
        %v2445 = vmax.f32 %v2444, %v1803
        %v2446 = vmax.f32 %v2445, %v1809
        %v2447 = vmax.f32 %v2446, %v1813
        %v2448 = vmax.f32 %v2447, %v1819
        %v2449 = vmax.f32 %v2448, %v1823
        %v2450 = vmax.f32 %v2449, %v1829
        %v2451 = vmax.f32 %v2450, %v1833
        %v2452 = vmax.f32 %v2451, %v1839
        %v2453 = vmax.f32 %v2452, %v1843
        %v2454 = vmax.f32 %v2453, %v1849
        %v2455 = vmax.f32 %v2454, %v1853
        %v2456 = vmax.f32 %v2455, %v1859
        %v2457 = vmax.f32 %v2456, %v1863
        %v2458 = vmax.f32 %v2457, %v1869
        %v2459 = vmax.f32 %v2458, %v1873
        %v2460 = vmax.f32 %v2459, %v1879
        %v2461 = vmax.f32 %v2460, %v1883
        %v2462 = vmax.f32 %v2461, %v1889
        %v2463 = vmax.f32 %v2462, %v1893
        %v2464 = vmax.f32 %v2463, %v1899
        %v2465 = vmax.f32 %v2464, %v1903
        %v2466 = vmax.f32 %v2465, %v1909
        %v2467 = vmax.f32 %v2466, %v1913
        %v2468 = vmax.f32 %v2467, %v1919
        %v2469 = vmax.f32 %v2468, %v1923
        %v2470 = vmax.f32 %v2469, %v1929
        %v2471 = vmax.f32 %v2470, %v1933
        %v2472 = vmax.f32 %v2471, %v1939
        %v2473 = vmax.f32 %v2472, %v1943
        %v2474 = vrot.slane %v2473, 4
        %v2475 = vmax.f32 %v2473, %v2474
        %v2476 = vrot.slane %v2475, 2
        %v2477 = vmax.f32 %v2475, %v2476
        %v2478 = vrot.slane %v2477, 1
        %v2479 = vmax.f32 %v2477, %v2478
        %v2480 = vmax.f32 %v1980, %v1984
        %v2481 = vmax.f32 %v2480, %v1990
        %v2482 = vmax.f32 %v2481, %v1994
        %v2483 = vmax.f32 %v2482, %v2000
        %v2484 = vmax.f32 %v2483, %v2004
        %v2485 = vmax.f32 %v2484, %v2010
        %v2486 = vmax.f32 %v2485, %v2014
        %v2487 = vmax.f32 %v2486, %v2020
        %v2488 = vmax.f32 %v2487, %v2024
        %v2489 = vmax.f32 %v2488, %v2030
        %v2490 = vmax.f32 %v2489, %v2034
        %v2491 = vmax.f32 %v2490, %v2040
        %v2492 = vmax.f32 %v2491, %v2044
        %v2493 = vmax.f32 %v2492, %v2050
        %v2494 = vmax.f32 %v2493, %v2054
        %v2495 = vmax.f32 %v2494, %v2060
        %v2496 = vmax.f32 %v2495, %v2064
        %v2497 = vmax.f32 %v2496, %v2070
        %v2498 = vmax.f32 %v2497, %v2074
        %v2499 = vmax.f32 %v2498, %v2080
        %v2500 = vmax.f32 %v2499, %v2084
        %v2501 = vmax.f32 %v2500, %v2090
        %v2502 = vmax.f32 %v2501, %v2094
        %v2503 = vmax.f32 %v2502, %v2100
        %v2504 = vmax.f32 %v2503, %v2104
        %v2505 = vmax.f32 %v2504, %v2110
        %v2506 = vmax.f32 %v2505, %v2114
        %v2507 = vmax.f32 %v2506, %v2120
        %v2508 = vmax.f32 %v2507, %v2124
        %v2509 = vmax.f32 %v2508, %v2130
        %v2510 = vmax.f32 %v2509, %v2134
        %v2511 = vrot.slane %v2510, 4
        %v2512 = vmax.f32 %v2510, %v2511
        %v2513 = vrot.slane %v2512, 2
        %v2514 = vmax.f32 %v2512, %v2513
        %v2515 = vrot.slane %v2514, 1
        %v2516 = vmax.f32 %v2514, %v2515
        %v2517 = vmax.f32 %v1982, %v1986
        %v2518 = vmax.f32 %v2517, %v1992
        %v2519 = vmax.f32 %v2518, %v1996
        %v2520 = vmax.f32 %v2519, %v2002
        %v2521 = vmax.f32 %v2520, %v2006
        %v2522 = vmax.f32 %v2521, %v2012
        %v2523 = vmax.f32 %v2522, %v2016
        %v2524 = vmax.f32 %v2523, %v2022
        %v2525 = vmax.f32 %v2524, %v2026
        %v2526 = vmax.f32 %v2525, %v2032
        %v2527 = vmax.f32 %v2526, %v2036
        %v2528 = vmax.f32 %v2527, %v2042
        %v2529 = vmax.f32 %v2528, %v2046
        %v2530 = vmax.f32 %v2529, %v2052
        %v2531 = vmax.f32 %v2530, %v2056
        %v2532 = vmax.f32 %v2531, %v2062
        %v2533 = vmax.f32 %v2532, %v2066
        %v2534 = vmax.f32 %v2533, %v2072
        %v2535 = vmax.f32 %v2534, %v2076
        %v2536 = vmax.f32 %v2535, %v2082
        %v2537 = vmax.f32 %v2536, %v2086
        %v2538 = vmax.f32 %v2537, %v2092
        %v2539 = vmax.f32 %v2538, %v2096
        %v2540 = vmax.f32 %v2539, %v2102
        %v2541 = vmax.f32 %v2540, %v2106
        %v2542 = vmax.f32 %v2541, %v2112
        %v2543 = vmax.f32 %v2542, %v2116
        %v2544 = vmax.f32 %v2543, %v2122
        %v2545 = vmax.f32 %v2544, %v2126
        %v2546 = vmax.f32 %v2545, %v2132
        %v2547 = vmax.f32 %v2546, %v2136
        %v2548 = vrot.slane %v2547, 4
        %v2549 = vmax.f32 %v2547, %v2548
        %v2550 = vrot.slane %v2549, 2
        %v2551 = vmax.f32 %v2549, %v2550
        %v2552 = vrot.slane %v2551, 1
        %v2553 = vmax.f32 %v2551, %v2552
        %v2554 = vmax.f32 %v2173, %v2177
        %v2555 = vmax.f32 %v2554, %v2183
        %v2556 = vmax.f32 %v2555, %v2187
        %v2557 = vmax.f32 %v2556, %v2193
        %v2558 = vmax.f32 %v2557, %v2197
        %v2559 = vmax.f32 %v2558, %v2203
        %v2560 = vmax.f32 %v2559, %v2207
        %v2561 = vmax.f32 %v2560, %v2213
        %v2562 = vmax.f32 %v2561, %v2217
        %v2563 = vmax.f32 %v2562, %v2223
        %v2564 = vmax.f32 %v2563, %v2227
        %v2565 = vmax.f32 %v2564, %v2233
        %v2566 = vmax.f32 %v2565, %v2237
        %v2567 = vmax.f32 %v2566, %v2243
        %v2568 = vmax.f32 %v2567, %v2247
        %v2569 = vmax.f32 %v2568, %v2253
        %v2570 = vmax.f32 %v2569, %v2257
        %v2571 = vmax.f32 %v2570, %v2263
        %v2572 = vmax.f32 %v2571, %v2267
        %v2573 = vmax.f32 %v2572, %v2273
        %v2574 = vmax.f32 %v2573, %v2277
        %v2575 = vmax.f32 %v2574, %v2283
        %v2576 = vmax.f32 %v2575, %v2287
        %v2577 = vmax.f32 %v2576, %v2293
        %v2578 = vmax.f32 %v2577, %v2297
        %v2579 = vmax.f32 %v2578, %v2303
        %v2580 = vmax.f32 %v2579, %v2307
        %v2581 = vmax.f32 %v2580, %v2313
        %v2582 = vmax.f32 %v2581, %v2317
        %v2583 = vmax.f32 %v2582, %v2323
        %v2584 = vmax.f32 %v2583, %v2327
        %v2585 = vrot.slane %v2584, 4
        %v2586 = vmax.f32 %v2584, %v2585
        %v2587 = vrot.slane %v2586, 2
        %v2588 = vmax.f32 %v2586, %v2587
        %v2589 = vrot.slane %v2588, 1
        %v2590 = vmax.f32 %v2588, %v2589
        %v2591 = vmax.f32 %v2175, %v2179
        %v2592 = vmax.f32 %v2591, %v2185
        %v2593 = vmax.f32 %v2592, %v2189
        %v2594 = vmax.f32 %v2593, %v2195
        %v2595 = vmax.f32 %v2594, %v2199
        %v2596 = vmax.f32 %v2595, %v2205
        %v2597 = vmax.f32 %v2596, %v2209
        %v2598 = vmax.f32 %v2597, %v2215
        %v2599 = vmax.f32 %v2598, %v2219
        %v2600 = vmax.f32 %v2599, %v2225
        %v2601 = vmax.f32 %v2600, %v2229
        %v2602 = vmax.f32 %v2601, %v2235
        %v2603 = vmax.f32 %v2602, %v2239
        %v2604 = vmax.f32 %v2603, %v2245
        %v2605 = vmax.f32 %v2604, %v2249
        %v2606 = vmax.f32 %v2605, %v2255
        %v2607 = vmax.f32 %v2606, %v2259
        %v2608 = vmax.f32 %v2607, %v2265
        %v2609 = vmax.f32 %v2608, %v2269
        %v2610 = vmax.f32 %v2609, %v2275
        %v2611 = vmax.f32 %v2610, %v2279
        %v2612 = vmax.f32 %v2611, %v2285
        %v2613 = vmax.f32 %v2612, %v2289
        %v2614 = vmax.f32 %v2613, %v2295
        %v2615 = vmax.f32 %v2614, %v2299
        %v2616 = vmax.f32 %v2615, %v2305
        %v2617 = vmax.f32 %v2616, %v2309
        %v2618 = vmax.f32 %v2617, %v2315
        %v2619 = vmax.f32 %v2618, %v2319
        %v2620 = vmax.f32 %v2619, %v2325
        %v2621 = vmax.f32 %v2620, %v2329
        %v2622 = vrot.slane %v2621, 4
        %v2623 = vmax.f32 %v2621, %v2622
        %v2624 = vrot.slane %v2623, 2
        %v2625 = vmax.f32 %v2623, %v2624
        %v2626 = vrot.slane %v2625, 1
        %v2627 = vmax.f32 %v2625, %v2626
        %v2636 = vcombine.low %v2368, %v2405
        %v2637 = vcombine.low %v2442, %v2479
        %v2638 = vcombine.low %v2516, %v2553
        %v2639 = vcombine.low %v2590, %v2627
        %v2641 = vunpack.c.l.s4 1966171168
        %v2642 = vunpack.c.0.s8 %v2641
        %v2643 = vlaneseq
        %v2644 = vshrl.u32 %v2643, 7
        %v2645 = vsub.s32 %v2642, %v2644
        %v2646 = vrot.slane %v2636, %v2645
        %v2648 = vunpack.c.l.s4 1966171168
        %v2649 = vunpack.c.0.s8 %v2648
        %v2650 = vlaneseq
        %v2651 = vshrl.u32 %v2650, 7
        %v2652 = vsub.s32 %v2649, %v2651
        %v2653 = vrot.slane %v2637, %v2652
        %v2655 = vunpack.c.l.s4 1966171168
        %v2656 = vunpack.c.0.s8 %v2655
        %v2657 = vlaneseq
        %v2658 = vshrl.u32 %v2657, 7
        %v2659 = vsub.s32 %v2656, %v2658
        %v2660 = vrot.slane %v2638, %v2659
        %v2662 = vunpack.c.l.s4 1966171168
        %v2663 = vunpack.c.0.s8 %v2662
        %v2664 = vlaneseq
        %v2665 = vshrl.u32 %v2664, 7
        %v2666 = vsub.s32 %v2663, %v2665
        %v2667 = vrot.slane %v2639, %v2666
        %v2668 = vcombine.low %v2646, %v2653
        %v2669 = vcombine.low %v2660, %v2667
        %v2671 = vunpack.c.l.s4 1966171168
        %v2672 = vunpack.c.0.s8 %v2671
        %v2673 = vlaneseq
        %v2674 = vshrl.u32 %v2673, 7
        %v2675 = vsub.s32 %v2672, %v2674
        %v2676 = vrot.slane %v2668, %v2675
        %v2678 = vunpack.c.l.s4 1966171168
        %v2679 = vunpack.c.0.s8 %v2678
        %v2680 = vlaneseq
        %v2681 = vshrl.u32 %v2680, 7
        %v2682 = vsub.s32 %v2679, %v2681
        %v2683 = vrot.slane %v2669, %v2682
        %v2684 = vcombine.low %v2676, %v2683
        %v2686 = vmax.f32 %v2331, %v2684
        %2687 = vst [vmem:[#allocation2] sm:$0xff] %v2686
        %p2688 = scmp.eq.s32.totalorder %s31, 1
        // Predicated region
        $region89: #{classification_layer_forward.2} parent=71 // pred_check
          %p2689 = pneg %p2688
        $region90: #{classification_layer_forward.2} parent=71 // pred_check_branch
          %2691 = sbr.rel (%p2689) target = $region92
        $region91: #{classification_layer_forward.2} parent=71 // pred_region
          %v2692 = vld [vmem:[#allocation2] sm:$0xff]
          %v2694 = vlaneseq
          %v2695 = vshrl.u32 %v2694, 7
          %v2696 = vsub.s32 0, %v2695
          %v2697 = vrot.slane %v2692, %v2696
          %v2698 = vlaneseq
          %v2699 = vshrl.u32 %v2698, 7
          %v2700 = vsub.s32 1, %v2699
          %v2701 = vrot.slane %v2692, %v2700
          %v2702 = vlaneseq
          %v2703 = vshrl.u32 %v2702, 7
          %v2704 = vsub.s32 2, %v2703
          %v2705 = vrot.slane %v2692, %v2704
          %v2706 = vlaneseq
          %v2707 = vshrl.u32 %v2706, 7
          %v2708 = vsub.s32 3, %v2707
          %v2709 = vrot.slane %v2692, %v2708
          %v2710 = vlaneseq
          %v2711 = vshrl.u32 %v2710, 7
          %v2712 = vsub.s32 4, %v2711
          %v2713 = vrot.slane %v2692, %v2712
          %v2714 = vlaneseq
          %v2715 = vshrl.u32 %v2714, 7
          %v2716 = vsub.s32 5, %v2715
          %v2717 = vrot.slane %v2692, %v2716
          %v2718 = vlaneseq
          %v2719 = vshrl.u32 %v2718, 7
          %v2720 = vsub.s32 6, %v2719
          %v2721 = vrot.slane %v2692, %v2720
          %v2722 = vlaneseq
          %v2723 = vshrl.u32 %v2722, 7
          %v2724 = vsub.s32 7, %v2723
          %v2725 = vrot.slane %v2692, %v2724
          %v2734 = vpack.c.bf16 %v2697, %v2697
          %v2735 = vpack.c.bf16 %v2701, %v2701
          %v2736 = vpack.c.bf16 %v2705, %v2705
          %v2737 = vpack.c.bf16 %v2709, %v2709
          %v2738 = vpack.c.bf16 %v2713, %v2713
          %v2739 = vpack.c.bf16 %v2717, %v2717
          %v2740 = vpack.c.bf16 %v2721, %v2721
          %v2741 = vpack.c.bf16 %v2725, %v2725
          %v2742 = vld [vmem:[#allocation5] sm:$0xff]
          %v2743 = vld [vmem:[#allocation5 + $0x8] sm:$0xff]
          %v2744 = vld [vmem:[#allocation5 + $0x10] sm:$0xff]
          %v2745 = vld [vmem:[#allocation5 + $0x18] sm:$0xff]
          %v2746 = vld [vmem:[#allocation5 + $0x20] sm:$0xff]
          %v2747 = vld [vmem:[#allocation5 + $0x28] sm:$0xff]
          %v2748 = vld [vmem:[#allocation5 + $0x30] sm:$0xff]
          %v2749 = vld [vmem:[#allocation5 + $0x38] sm:$0xff]
          %v2750 = vld [vmem:[#allocation5 + $0x40] sm:$0xff]
          %v2751 = vld [vmem:[#allocation5 + $0x48] sm:$0xff]
          %v2752 = vld [vmem:[#allocation5 + $0x50] sm:$0xff]
          %v2753 = vld [vmem:[#allocation5 + $0x58] sm:$0xff]
          %v2754 = vld [vmem:[#allocation5 + $0x60] sm:$0xff]
          %v2755 = vld [vmem:[#allocation5 + $0x68] sm:$0xff]
          %v2756 = vld [vmem:[#allocation5 + $0x70] sm:$0xff]
          %v2757 = vld [vmem:[#allocation5 + $0x78] sm:$0xff]
          %v2758 = vld [vmem:[#allocation5 + $0x80] sm:$0xff]
          %v2759 = vld [vmem:[#allocation5 + $0x88] sm:$0xff]
          %v2760 = vld [vmem:[#allocation5 + $0x90] sm:$0xff]
          %v2761 = vld [vmem:[#allocation5 + $0x98] sm:$0xff]
          %v2762 = vld [vmem:[#allocation5 + $0xa0] sm:$0xff]
          %v2763 = vld [vmem:[#allocation5 + $0xa8] sm:$0xff]
          %v2764 = vld [vmem:[#allocation5 + $0xb0] sm:$0xff]
          %v2765 = vld [vmem:[#allocation5 + $0xb8] sm:$0xff]
          %v2766 = vld [vmem:[#allocation5 + $0xc0] sm:$0xff]
          %v2767 = vld [vmem:[#allocation5 + $0xc8] sm:$0xff]
          %v2768 = vld [vmem:[#allocation5 + $0xd0] sm:$0xff]
          %v2769 = vld [vmem:[#allocation5 + $0xd8] sm:$0xff]
          %v2770 = vld [vmem:[#allocation5 + $0xe0] sm:$0xff]
          %v2771 = vld [vmem:[#allocation5 + $0xe8] sm:$0xff]
          %v2772 = vld [vmem:[#allocation5 + $0xf0] sm:$0xff]
          %v2773 = vld [vmem:[#allocation5 + $0xf8] sm:$0xff]
          %v2774 = vld [vmem:[#allocation5 + $0x100] sm:$0xff]
          %v2775 = vld [vmem:[#allocation5 + $0x108] sm:$0xff]
          %v2776 = vld [vmem:[#allocation5 + $0x110] sm:$0xff]
          %v2777 = vld [vmem:[#allocation5 + $0x118] sm:$0xff]
          %v2778 = vld [vmem:[#allocation5 + $0x120] sm:$0xff]
          %v2779 = vld [vmem:[#allocation5 + $0x128] sm:$0xff]
          %v2780 = vld [vmem:[#allocation5 + $0x130] sm:$0xff]
          %v2781 = vld [vmem:[#allocation5 + $0x138] sm:$0xff]
          %v2782 = vld [vmem:[#allocation5 + $0x140] sm:$0xff]
          %v2783 = vld [vmem:[#allocation5 + $0x148] sm:$0xff]
          %v2784 = vld [vmem:[#allocation5 + $0x150] sm:$0xff]
          %v2785 = vld [vmem:[#allocation5 + $0x158] sm:$0xff]
          %v2786 = vld [vmem:[#allocation5 + $0x160] sm:$0xff]
          %v2787 = vld [vmem:[#allocation5 + $0x168] sm:$0xff]
          %v2788 = vld [vmem:[#allocation5 + $0x170] sm:$0xff]
          %v2789 = vld [vmem:[#allocation5 + $0x178] sm:$0xff]
          %v2790 = vld [vmem:[#allocation5 + $0x180] sm:$0xff]
          %v2791 = vld [vmem:[#allocation5 + $0x188] sm:$0xff]
          %v2792 = vld [vmem:[#allocation5 + $0x190] sm:$0xff]
          %v2793 = vld [vmem:[#allocation5 + $0x198] sm:$0xff]
          %v2794 = vld [vmem:[#allocation5 + $0x1a0] sm:$0xff]
          %v2795 = vld [vmem:[#allocation5 + $0x1a8] sm:$0xff]
          %v2796 = vld [vmem:[#allocation5 + $0x1b0] sm:$0xff]
          %v2797 = vld [vmem:[#allocation5 + $0x1b8] sm:$0xff]
          %v2798 = vld [vmem:[#allocation5 + $0x1c0] sm:$0xff]
          %v2799 = vld [vmem:[#allocation5 + $0x1c8] sm:$0xff]
          %v2800 = vld [vmem:[#allocation5 + $0x1d0] sm:$0xff]
          %v2801 = vld [vmem:[#allocation5 + $0x1d8] sm:$0xff]
          %v2802 = vld [vmem:[#allocation5 + $0x1e0] sm:$0xff]
          %v2803 = vld [vmem:[#allocation5 + $0x1e8] sm:$0xff]
          %v2804 = vld [vmem:[#allocation5 + $0x1f0] sm:$0xff]
          %v2805 = vld [vmem:[#allocation5 + $0x1f8] sm:$0xff]
          %v2806 = vld [vmem:[#allocation5 + $0x200] sm:$0xff]
          %v2807 = vld [vmem:[#allocation5 + $0x208] sm:$0xff]
          %v2808 = vld [vmem:[#allocation5 + $0x210] sm:$0xff]
          %v2809 = vld [vmem:[#allocation5 + $0x218] sm:$0xff]
          %v2810 = vld [vmem:[#allocation5 + $0x220] sm:$0xff]
          %v2811 = vld [vmem:[#allocation5 + $0x228] sm:$0xff]
          %v2812 = vld [vmem:[#allocation5 + $0x230] sm:$0xff]
          %v2813 = vld [vmem:[#allocation5 + $0x238] sm:$0xff]
          %v2814 = vld [vmem:[#allocation5 + $0x240] sm:$0xff]
          %v2815 = vld [vmem:[#allocation5 + $0x248] sm:$0xff]
          %v2816 = vld [vmem:[#allocation5 + $0x250] sm:$0xff]
          %v2817 = vld [vmem:[#allocation5 + $0x258] sm:$0xff]
          %v2818 = vld [vmem:[#allocation5 + $0x260] sm:$0xff]
          %v2819 = vld [vmem:[#allocation5 + $0x268] sm:$0xff]
          %v2820 = vld [vmem:[#allocation5 + $0x270] sm:$0xff]
          %v2821 = vld [vmem:[#allocation5 + $0x278] sm:$0xff]
          %v2822 = vld [vmem:[#allocation5 + $0x280] sm:$0xff]
          %v2823 = vld [vmem:[#allocation5 + $0x288] sm:$0xff]
          %v2824 = vld [vmem:[#allocation5 + $0x290] sm:$0xff]
          %v2825 = vld [vmem:[#allocation5 + $0x298] sm:$0xff]
          %v2826 = vld [vmem:[#allocation5 + $0x2a0] sm:$0xff]
          %v2827 = vld [vmem:[#allocation5 + $0x2a8] sm:$0xff]
          %v2828 = vld [vmem:[#allocation5 + $0x2b0] sm:$0xff]
          %v2829 = vld [vmem:[#allocation5 + $0x2b8] sm:$0xff]
          %v2830 = vld [vmem:[#allocation5 + $0x2c0] sm:$0xff]
          %v2831 = vld [vmem:[#allocation5 + $0x2c8] sm:$0xff]
          %v2832 = vld [vmem:[#allocation5 + $0x2d0] sm:$0xff]
          %v2833 = vld [vmem:[#allocation5 + $0x2d8] sm:$0xff]
          %v2834 = vld [vmem:[#allocation5 + $0x2e0] sm:$0xff]
          %v2835 = vld [vmem:[#allocation5 + $0x2e8] sm:$0xff]
          %v2836 = vld [vmem:[#allocation5 + $0x2f0] sm:$0xff]
          %v2837 = vld [vmem:[#allocation5 + $0x2f8] sm:$0xff]
          %v2838 = vld [vmem:[#allocation5 + $0x300] sm:$0xff]
          %v2839 = vld [vmem:[#allocation5 + $0x308] sm:$0xff]
          %v2840 = vld [vmem:[#allocation5 + $0x310] sm:$0xff]
          %v2841 = vld [vmem:[#allocation5 + $0x318] sm:$0xff]
          %v2842 = vld [vmem:[#allocation5 + $0x320] sm:$0xff]
          %v2843 = vld [vmem:[#allocation5 + $0x328] sm:$0xff]
          %v2844 = vld [vmem:[#allocation5 + $0x330] sm:$0xff]
          %v2845 = vld [vmem:[#allocation5 + $0x338] sm:$0xff]
          %v2846 = vld [vmem:[#allocation5 + $0x340] sm:$0xff]
          %v2847 = vld [vmem:[#allocation5 + $0x348] sm:$0xff]
          %v2848 = vld [vmem:[#allocation5 + $0x350] sm:$0xff]
          %v2849 = vld [vmem:[#allocation5 + $0x358] sm:$0xff]
          %v2850 = vld [vmem:[#allocation5 + $0x360] sm:$0xff]
          %v2851 = vld [vmem:[#allocation5 + $0x368] sm:$0xff]
          %v2852 = vld [vmem:[#allocation5 + $0x370] sm:$0xff]
          %v2853 = vld [vmem:[#allocation5 + $0x378] sm:$0xff]
          %v2854 = vld [vmem:[#allocation5 + $0x380] sm:$0xff]
          %v2855 = vld [vmem:[#allocation5 + $0x388] sm:$0xff]
          %v2856 = vld [vmem:[#allocation5 + $0x390] sm:$0xff]
          %v2857 = vld [vmem:[#allocation5 + $0x398] sm:$0xff]
          %v2858 = vld [vmem:[#allocation5 + $0x3a0] sm:$0xff]
          %v2859 = vld [vmem:[#allocation5 + $0x3a8] sm:$0xff]
          %v2860 = vld [vmem:[#allocation5 + $0x3b0] sm:$0xff]
          %v2861 = vld [vmem:[#allocation5 + $0x3b8] sm:$0xff]
          %v2862 = vld [vmem:[#allocation5 + $0x3c0] sm:$0xff]
          %v2863 = vld [vmem:[#allocation5 + $0x3c8] sm:$0xff]
          %v2864 = vld [vmem:[#allocation5 + $0x3d0] sm:$0xff]
          %v2865 = vld [vmem:[#allocation5 + $0x3d8] sm:$0xff]
          %v2866 = vld [vmem:[#allocation5 + $0x3e0] sm:$0xff]
          %v2867 = vld [vmem:[#allocation5 + $0x3e8] sm:$0xff]
          %v2868 = vld [vmem:[#allocation5 + $0x3f0] sm:$0xff]
          %v2869 = vld [vmem:[#allocation5 + $0x3f8] sm:$0xff]
          %v2870 = vld [vmem:[#allocation5 + $0x400] sm:$0xff]
          %v2871 = vld [vmem:[#allocation5 + $0x408] sm:$0xff]
          %v2872 = vld [vmem:[#allocation5 + $0x410] sm:$0xff]
          %v2873 = vld [vmem:[#allocation5 + $0x418] sm:$0xff]
          %v2874 = vld [vmem:[#allocation5 + $0x420] sm:$0xff]
          %v2875 = vld [vmem:[#allocation5 + $0x428] sm:$0xff]
          %v2876 = vld [vmem:[#allocation5 + $0x430] sm:$0xff]
          %v2877 = vld [vmem:[#allocation5 + $0x438] sm:$0xff]
          %v2878 = vld [vmem:[#allocation5 + $0x440] sm:$0xff]
          %v2879 = vld [vmem:[#allocation5 + $0x448] sm:$0xff]
          %v2880 = vld [vmem:[#allocation5 + $0x450] sm:$0xff]
          %v2881 = vld [vmem:[#allocation5 + $0x458] sm:$0xff]
          %v2882 = vld [vmem:[#allocation5 + $0x460] sm:$0xff]
          %v2883 = vld [vmem:[#allocation5 + $0x468] sm:$0xff]
          %v2884 = vld [vmem:[#allocation5 + $0x470] sm:$0xff]
          %v2885 = vld [vmem:[#allocation5 + $0x478] sm:$0xff]
          %v2886 = vld [vmem:[#allocation5 + $0x480] sm:$0xff]
          %v2887 = vld [vmem:[#allocation5 + $0x488] sm:$0xff]
          %v2888 = vld [vmem:[#allocation5 + $0x490] sm:$0xff]
          %v2889 = vld [vmem:[#allocation5 + $0x498] sm:$0xff]
          %v2890 = vld [vmem:[#allocation5 + $0x4a0] sm:$0xff]
          %v2891 = vld [vmem:[#allocation5 + $0x4a8] sm:$0xff]
          %v2892 = vld [vmem:[#allocation5 + $0x4b0] sm:$0xff]
          %v2893 = vld [vmem:[#allocation5 + $0x4b8] sm:$0xff]
          %v2894 = vld [vmem:[#allocation5 + $0x4c0] sm:$0xff]
          %v2895 = vld [vmem:[#allocation5 + $0x4c8] sm:$0xff]
          %v2896 = vld [vmem:[#allocation5 + $0x4d0] sm:$0xff]
          %v2897 = vld [vmem:[#allocation5 + $0x4d8] sm:$0xff]
          %v2898 = vld [vmem:[#allocation5 + $0x4e0] sm:$0xff]
          %v2899 = vld [vmem:[#allocation5 + $0x4e8] sm:$0xff]
          %v2900 = vld [vmem:[#allocation5 + $0x4f0] sm:$0xff]
          %v2901 = vld [vmem:[#allocation5 + $0x4f8] sm:$0xff]
          %v2902 = vld [vmem:[#allocation5 + $0x500] sm:$0xff]
          %v2903 = vld [vmem:[#allocation5 + $0x508] sm:$0xff]
          %v2904 = vld [vmem:[#allocation5 + $0x510] sm:$0xff]
          %v2905 = vld [vmem:[#allocation5 + $0x518] sm:$0xff]
          %v2906 = vld [vmem:[#allocation5 + $0x520] sm:$0xff]
          %v2907 = vld [vmem:[#allocation5 + $0x528] sm:$0xff]
          %v2908 = vld [vmem:[#allocation5 + $0x530] sm:$0xff]
          %v2909 = vld [vmem:[#allocation5 + $0x538] sm:$0xff]
          %v2910 = vld [vmem:[#allocation5 + $0x540] sm:$0xff]
          %v2911 = vld [vmem:[#allocation5 + $0x548] sm:$0xff]
          %v2912 = vld [vmem:[#allocation5 + $0x550] sm:$0xff]
          %v2913 = vld [vmem:[#allocation5 + $0x558] sm:$0xff]
          %v2914 = vld [vmem:[#allocation5 + $0x560] sm:$0xff]
          %v2915 = vld [vmem:[#allocation5 + $0x568] sm:$0xff]
          %v2916 = vld [vmem:[#allocation5 + $0x570] sm:$0xff]
          %v2917 = vld [vmem:[#allocation5 + $0x578] sm:$0xff]
          %v2918 = vld [vmem:[#allocation5 + $0x580] sm:$0xff]
          %v2919 = vld [vmem:[#allocation5 + $0x588] sm:$0xff]
          %v2920 = vld [vmem:[#allocation5 + $0x590] sm:$0xff]
          %v2921 = vld [vmem:[#allocation5 + $0x598] sm:$0xff]
          %v2922 = vld [vmem:[#allocation5 + $0x5a0] sm:$0xff]
          %v2923 = vld [vmem:[#allocation5 + $0x5a8] sm:$0xff]
          %v2924 = vld [vmem:[#allocation5 + $0x5b0] sm:$0xff]
          %v2925 = vld [vmem:[#allocation5 + $0x5b8] sm:$0xff]
          %v2926 = vld [vmem:[#allocation5 + $0x5c0] sm:$0xff]
          %v2927 = vld [vmem:[#allocation5 + $0x5c8] sm:$0xff]
          %v2928 = vld [vmem:[#allocation5 + $0x5d0] sm:$0xff]
          %v2929 = vld [vmem:[#allocation5 + $0x5d8] sm:$0xff]
          %v2930 = vld [vmem:[#allocation5 + $0x5e0] sm:$0xff]
          %v2931 = vld [vmem:[#allocation5 + $0x5e8] sm:$0xff]
          %v2932 = vld [vmem:[#allocation5 + $0x5f0] sm:$0xff]
          %v2933 = vld [vmem:[#allocation5 + $0x5f8] sm:$0xff]
          %v2934 = vld [vmem:[#allocation5 + $0x600] sm:$0xff]
          %v2935 = vld [vmem:[#allocation5 + $0x608] sm:$0xff]
          %v2936 = vld [vmem:[#allocation5 + $0x610] sm:$0xff]
          %v2937 = vld [vmem:[#allocation5 + $0x618] sm:$0xff]
          %v2938 = vld [vmem:[#allocation5 + $0x620] sm:$0xff]
          %v2939 = vld [vmem:[#allocation5 + $0x628] sm:$0xff]
          %v2940 = vld [vmem:[#allocation5 + $0x630] sm:$0xff]
          %v2941 = vld [vmem:[#allocation5 + $0x638] sm:$0xff]
          %v2942 = vld [vmem:[#allocation5 + $0x640] sm:$0xff]
          %v2943 = vld [vmem:[#allocation5 + $0x648] sm:$0xff]
          %v2944 = vld [vmem:[#allocation5 + $0x650] sm:$0xff]
          %v2945 = vld [vmem:[#allocation5 + $0x658] sm:$0xff]
          %v2946 = vld [vmem:[#allocation5 + $0x660] sm:$0xff]
          %v2947 = vld [vmem:[#allocation5 + $0x668] sm:$0xff]
          %v2948 = vld [vmem:[#allocation5 + $0x670] sm:$0xff]
          %v2949 = vld [vmem:[#allocation5 + $0x678] sm:$0xff]
          %v2950 = vld [vmem:[#allocation5 + $0x680] sm:$0xff]
          %v2951 = vld [vmem:[#allocation5 + $0x688] sm:$0xff]
          %v2952 = vld [vmem:[#allocation5 + $0x690] sm:$0xff]
          %v2953 = vld [vmem:[#allocation5 + $0x698] sm:$0xff]
          %v2954 = vld [vmem:[#allocation5 + $0x6a0] sm:$0xff]
          %v2955 = vld [vmem:[#allocation5 + $0x6a8] sm:$0xff]
          %v2956 = vld [vmem:[#allocation5 + $0x6b0] sm:$0xff]
          %v2957 = vld [vmem:[#allocation5 + $0x6b8] sm:$0xff]
          %v2958 = vld [vmem:[#allocation5 + $0x6c0] sm:$0xff]
          %v2959 = vld [vmem:[#allocation5 + $0x6c8] sm:$0xff]
          %v2960 = vld [vmem:[#allocation5 + $0x6d0] sm:$0xff]
          %v2961 = vld [vmem:[#allocation5 + $0x6d8] sm:$0xff]
          %v2962 = vld [vmem:[#allocation5 + $0x6e0] sm:$0xff]
          %v2963 = vld [vmem:[#allocation5 + $0x6e8] sm:$0xff]
          %v2964 = vld [vmem:[#allocation5 + $0x6f0] sm:$0xff]
          %v2965 = vld [vmem:[#allocation5 + $0x6f8] sm:$0xff]
          %v2966 = vld [vmem:[#allocation5 + $0x700] sm:$0xff]
          %v2967 = vld [vmem:[#allocation5 + $0x708] sm:$0xff]
          %v2968 = vld [vmem:[#allocation5 + $0x710] sm:$0xff]
          %v2969 = vld [vmem:[#allocation5 + $0x718] sm:$0xff]
          %v2970 = vld [vmem:[#allocation5 + $0x720] sm:$0xff]
          %v2971 = vld [vmem:[#allocation5 + $0x728] sm:$0xff]
          %v2972 = vld [vmem:[#allocation5 + $0x730] sm:$0xff]
          %v2973 = vld [vmem:[#allocation5 + $0x738] sm:$0xff]
          %v2974 = vld [vmem:[#allocation5 + $0x740] sm:$0xff]
          %v2975 = vld [vmem:[#allocation5 + $0x748] sm:$0xff]
          %v2976 = vld [vmem:[#allocation5 + $0x750] sm:$0xff]
          %v2977 = vld [vmem:[#allocation5 + $0x758] sm:$0xff]
          %v2978 = vld [vmem:[#allocation5 + $0x760] sm:$0xff]
          %v2979 = vld [vmem:[#allocation5 + $0x768] sm:$0xff]
          %v2980 = vld [vmem:[#allocation5 + $0x770] sm:$0xff]
          %v2981 = vld [vmem:[#allocation5 + $0x778] sm:$0xff]
          %v2982 = vld [vmem:[#allocation5 + $0x780] sm:$0xff]
          %v2983 = vld [vmem:[#allocation5 + $0x788] sm:$0xff]
          %v2984 = vld [vmem:[#allocation5 + $0x790] sm:$0xff]
          %v2985 = vld [vmem:[#allocation5 + $0x798] sm:$0xff]
          %v2986 = vld [vmem:[#allocation5 + $0x7a0] sm:$0xff]
          %v2987 = vld [vmem:[#allocation5 + $0x7a8] sm:$0xff]
          %v2988 = vld [vmem:[#allocation5 + $0x7b0] sm:$0xff]
          %v2989 = vld [vmem:[#allocation5 + $0x7b8] sm:$0xff]
          %v2990 = vld [vmem:[#allocation5 + $0x7c0] sm:$0xff]
          %v2991 = vld [vmem:[#allocation5 + $0x7c8] sm:$0xff]
          %v2992 = vld [vmem:[#allocation5 + $0x7d0] sm:$0xff]
          %v2993 = vld [vmem:[#allocation5 + $0x7d8] sm:$0xff]
          %v2994 = vld [vmem:[#allocation5 + $0x7e0] sm:$0xff]
          %v2995 = vld [vmem:[#allocation5 + $0x7e8] sm:$0xff]
          %v2996 = vld [vmem:[#allocation5 + $0x7f0] sm:$0xff]
          %v2997 = vld [vmem:[#allocation5 + $0x7f8] sm:$0xff]
          %v2998 = vld [vmem:[%s8] sm:$0xf]
          %v3255 = vunpack.c.l.b16 %v2742
          %v3256 = vunpack.c.h.b16 %v2742
          %v3257 = vunpack.c.l.b16 %v2743
          %v3258 = vunpack.c.h.b16 %v2743
          %v3259 = vunpack.c.l.b16 %v2744
          %v3260 = vunpack.c.h.b16 %v2744
          %v3261 = vunpack.c.l.b16 %v2745
          %v3262 = vunpack.c.h.b16 %v2745
          %v3263 = vunpack.c.l.b16 %v2746
          %v3264 = vunpack.c.h.b16 %v2746
          %v3265 = vunpack.c.l.b16 %v2747
          %v3266 = vunpack.c.h.b16 %v2747
          %v3267 = vunpack.c.l.b16 %v2748
          %v3268 = vunpack.c.h.b16 %v2748
          %v3269 = vunpack.c.l.b16 %v2749
          %v3270 = vunpack.c.h.b16 %v2749
          %v3271 = vunpack.c.l.b16 %v2750
          %v3272 = vunpack.c.h.b16 %v2750
          %v3273 = vunpack.c.l.b16 %v2751
          %v3274 = vunpack.c.h.b16 %v2751
          %v3275 = vunpack.c.l.b16 %v2752
          %v3276 = vunpack.c.h.b16 %v2752
          %v3277 = vunpack.c.l.b16 %v2753
          %v3278 = vunpack.c.h.b16 %v2753
          %v3279 = vunpack.c.l.b16 %v2754
          %v3280 = vunpack.c.h.b16 %v2754
          %v3281 = vunpack.c.l.b16 %v2755
          %v3282 = vunpack.c.h.b16 %v2755
          %v3283 = vunpack.c.l.b16 %v2756
          %v3284 = vunpack.c.h.b16 %v2756
          %v3285 = vunpack.c.l.b16 %v2757
          %v3286 = vunpack.c.h.b16 %v2757
          %v3287 = vunpack.c.l.b16 %v2758
          %v3288 = vunpack.c.h.b16 %v2758
          %v3289 = vunpack.c.l.b16 %v2759
          %v3290 = vunpack.c.h.b16 %v2759
          %v3291 = vunpack.c.l.b16 %v2760
          %v3292 = vunpack.c.h.b16 %v2760
          %v3293 = vunpack.c.l.b16 %v2761
          %v3294 = vunpack.c.h.b16 %v2761
          %v3295 = vunpack.c.l.b16 %v2762
          %v3296 = vunpack.c.h.b16 %v2762
          %v3297 = vunpack.c.l.b16 %v2763
          %v3298 = vunpack.c.h.b16 %v2763
          %v3299 = vunpack.c.l.b16 %v2764
          %v3300 = vunpack.c.h.b16 %v2764
          %v3301 = vunpack.c.l.b16 %v2765
          %v3302 = vunpack.c.h.b16 %v2765
          %v3303 = vunpack.c.l.b16 %v2766
          %v3304 = vunpack.c.h.b16 %v2766
          %v3305 = vunpack.c.l.b16 %v2767
          %v3306 = vunpack.c.h.b16 %v2767
          %v3307 = vunpack.c.l.b16 %v2768
          %v3308 = vunpack.c.h.b16 %v2768
          %v3309 = vunpack.c.l.b16 %v2769
          %v3310 = vunpack.c.h.b16 %v2769
          %v3311 = vunpack.c.l.b16 %v2770
          %v3312 = vunpack.c.h.b16 %v2770
          %v3313 = vunpack.c.l.b16 %v2771
          %v3314 = vunpack.c.h.b16 %v2771
          %v3315 = vunpack.c.l.b16 %v2772
          %v3316 = vunpack.c.h.b16 %v2772
          %v3317 = vunpack.c.l.b16 %v2773
          %v3318 = vunpack.c.h.b16 %v2773
          %v3319 = vunpack.c.l.b16 %v2774
          %v3320 = vunpack.c.h.b16 %v2774
          %v3321 = vunpack.c.l.b16 %v2775
          %v3322 = vunpack.c.h.b16 %v2775
          %v3323 = vunpack.c.l.b16 %v2776
          %v3324 = vunpack.c.h.b16 %v2776
          %v3325 = vunpack.c.l.b16 %v2777
          %v3326 = vunpack.c.h.b16 %v2777
          %v3327 = vunpack.c.l.b16 %v2778
          %v3328 = vunpack.c.h.b16 %v2778
          %v3329 = vunpack.c.l.b16 %v2779
          %v3330 = vunpack.c.h.b16 %v2779
          %v3331 = vunpack.c.l.b16 %v2780
          %v3332 = vunpack.c.h.b16 %v2780
          %v3333 = vunpack.c.l.b16 %v2781
          %v3334 = vunpack.c.h.b16 %v2781
          %v3335 = vunpack.c.l.b16 %v2782
          %v3336 = vunpack.c.h.b16 %v2782
          %v3337 = vunpack.c.l.b16 %v2783
          %v3338 = vunpack.c.h.b16 %v2783
          %v3339 = vunpack.c.l.b16 %v2784
          %v3340 = vunpack.c.h.b16 %v2784
          %v3341 = vunpack.c.l.b16 %v2785
          %v3342 = vunpack.c.h.b16 %v2785
          %v3343 = vunpack.c.l.b16 %v2786
          %v3344 = vunpack.c.h.b16 %v2786
          %v3345 = vunpack.c.l.b16 %v2787
          %v3346 = vunpack.c.h.b16 %v2787
          %v3347 = vunpack.c.l.b16 %v2788
          %v3348 = vunpack.c.h.b16 %v2788
          %v3349 = vunpack.c.l.b16 %v2789
          %v3350 = vunpack.c.h.b16 %v2789
          %v3351 = vunpack.c.l.b16 %v2790
          %v3352 = vunpack.c.h.b16 %v2790
          %v3353 = vunpack.c.l.b16 %v2791
          %v3354 = vunpack.c.h.b16 %v2791
          %v3355 = vunpack.c.l.b16 %v2792
          %v3356 = vunpack.c.h.b16 %v2792
          %v3357 = vunpack.c.l.b16 %v2793
          %v3358 = vunpack.c.h.b16 %v2793
          %v3359 = vunpack.c.l.b16 %v2794
          %v3360 = vunpack.c.h.b16 %v2794
          %v3361 = vunpack.c.l.b16 %v2795
          %v3362 = vunpack.c.h.b16 %v2795
          %v3363 = vunpack.c.l.b16 %v2796
          %v3364 = vunpack.c.h.b16 %v2796
          %v3365 = vunpack.c.l.b16 %v2797
          %v3366 = vunpack.c.h.b16 %v2797
          %v3367 = vunpack.c.l.b16 %v2798
          %v3368 = vunpack.c.h.b16 %v2798
          %v3369 = vunpack.c.l.b16 %v2799
          %v3370 = vunpack.c.h.b16 %v2799
          %v3371 = vunpack.c.l.b16 %v2800
          %v3372 = vunpack.c.h.b16 %v2800
          %v3373 = vunpack.c.l.b16 %v2801
          %v3374 = vunpack.c.h.b16 %v2801
          %v3375 = vunpack.c.l.b16 %v2802
          %v3376 = vunpack.c.h.b16 %v2802
          %v3377 = vunpack.c.l.b16 %v2803
          %v3378 = vunpack.c.h.b16 %v2803
          %v3379 = vunpack.c.l.b16 %v2804
          %v3380 = vunpack.c.h.b16 %v2804
          %v3381 = vunpack.c.l.b16 %v2805
          %v3382 = vunpack.c.h.b16 %v2805
          %v3383 = vunpack.c.l.b16 %v2806
          %v3384 = vunpack.c.h.b16 %v2806
          %v3385 = vunpack.c.l.b16 %v2807
          %v3386 = vunpack.c.h.b16 %v2807
          %v3387 = vunpack.c.l.b16 %v2808
          %v3388 = vunpack.c.h.b16 %v2808
          %v3389 = vunpack.c.l.b16 %v2809
          %v3390 = vunpack.c.h.b16 %v2809
          %v3391 = vunpack.c.l.b16 %v2810
          %v3392 = vunpack.c.h.b16 %v2810
          %v3393 = vunpack.c.l.b16 %v2811
          %v3394 = vunpack.c.h.b16 %v2811
          %v3395 = vunpack.c.l.b16 %v2812
          %v3396 = vunpack.c.h.b16 %v2812
          %v3397 = vunpack.c.l.b16 %v2813
          %v3398 = vunpack.c.h.b16 %v2813
          %v3399 = vunpack.c.l.b16 %v2814
          %v3400 = vunpack.c.h.b16 %v2814
          %v3401 = vunpack.c.l.b16 %v2815
          %v3402 = vunpack.c.h.b16 %v2815
          %v3403 = vunpack.c.l.b16 %v2816
          %v3404 = vunpack.c.h.b16 %v2816
          %v3405 = vunpack.c.l.b16 %v2817
          %v3406 = vunpack.c.h.b16 %v2817
          %v3407 = vunpack.c.l.b16 %v2818
          %v3408 = vunpack.c.h.b16 %v2818
          %v3409 = vunpack.c.l.b16 %v2819
          %v3410 = vunpack.c.h.b16 %v2819
          %v3411 = vunpack.c.l.b16 %v2820
          %v3412 = vunpack.c.h.b16 %v2820
          %v3413 = vunpack.c.l.b16 %v2821
          %v3414 = vunpack.c.h.b16 %v2821
          %v3415 = vunpack.c.l.b16 %v2822
          %v3416 = vunpack.c.h.b16 %v2822
          %v3417 = vunpack.c.l.b16 %v2823
          %v3418 = vunpack.c.h.b16 %v2823
          %v3419 = vunpack.c.l.b16 %v2824
          %v3420 = vunpack.c.h.b16 %v2824
          %v3421 = vunpack.c.l.b16 %v2825
          %v3422 = vunpack.c.h.b16 %v2825
          %v3423 = vunpack.c.l.b16 %v2826
          %v3424 = vunpack.c.h.b16 %v2826
          %v3425 = vunpack.c.l.b16 %v2827
          %v3426 = vunpack.c.h.b16 %v2827
          %v3427 = vunpack.c.l.b16 %v2828
          %v3428 = vunpack.c.h.b16 %v2828
          %v3429 = vunpack.c.l.b16 %v2829
          %v3430 = vunpack.c.h.b16 %v2829
          %v3431 = vunpack.c.l.b16 %v2830
          %v3432 = vunpack.c.h.b16 %v2830
          %v3433 = vunpack.c.l.b16 %v2831
          %v3434 = vunpack.c.h.b16 %v2831
          %v3435 = vunpack.c.l.b16 %v2832
          %v3436 = vunpack.c.h.b16 %v2832
          %v3437 = vunpack.c.l.b16 %v2833
          %v3438 = vunpack.c.h.b16 %v2833
          %v3439 = vunpack.c.l.b16 %v2834
          %v3440 = vunpack.c.h.b16 %v2834
          %v3441 = vunpack.c.l.b16 %v2835
          %v3442 = vunpack.c.h.b16 %v2835
          %v3443 = vunpack.c.l.b16 %v2836
          %v3444 = vunpack.c.h.b16 %v2836
          %v3445 = vunpack.c.l.b16 %v2837
          %v3446 = vunpack.c.h.b16 %v2837
          %v3447 = vunpack.c.l.b16 %v2838
          %v3448 = vunpack.c.h.b16 %v2838
          %v3449 = vunpack.c.l.b16 %v2839
          %v3450 = vunpack.c.h.b16 %v2839
          %v3451 = vunpack.c.l.b16 %v2840
          %v3452 = vunpack.c.h.b16 %v2840
          %v3453 = vunpack.c.l.b16 %v2841
          %v3454 = vunpack.c.h.b16 %v2841
          %v3455 = vunpack.c.l.b16 %v2842
          %v3456 = vunpack.c.h.b16 %v2842
          %v3457 = vunpack.c.l.b16 %v2843
          %v3458 = vunpack.c.h.b16 %v2843
          %v3459 = vunpack.c.l.b16 %v2844
          %v3460 = vunpack.c.h.b16 %v2844
          %v3461 = vunpack.c.l.b16 %v2845
          %v3462 = vunpack.c.h.b16 %v2845
          %v3463 = vunpack.c.l.b16 %v2846
          %v3464 = vunpack.c.h.b16 %v2846
          %v3465 = vunpack.c.l.b16 %v2847
          %v3466 = vunpack.c.h.b16 %v2847
          %v3467 = vunpack.c.l.b16 %v2848
          %v3468 = vunpack.c.h.b16 %v2848
          %v3469 = vunpack.c.l.b16 %v2849
          %v3470 = vunpack.c.h.b16 %v2849
          %v3471 = vunpack.c.l.b16 %v2850
          %v3472 = vunpack.c.h.b16 %v2850
          %v3473 = vunpack.c.l.b16 %v2851
          %v3474 = vunpack.c.h.b16 %v2851
          %v3475 = vunpack.c.l.b16 %v2852
          %v3476 = vunpack.c.h.b16 %v2852
          %v3477 = vunpack.c.l.b16 %v2853
          %v3478 = vunpack.c.h.b16 %v2853
          %v3479 = vunpack.c.l.b16 %v2854
          %v3480 = vunpack.c.h.b16 %v2854
          %v3481 = vunpack.c.l.b16 %v2855
          %v3482 = vunpack.c.h.b16 %v2855
          %v3483 = vunpack.c.l.b16 %v2856
          %v3484 = vunpack.c.h.b16 %v2856
          %v3485 = vunpack.c.l.b16 %v2857
          %v3486 = vunpack.c.h.b16 %v2857
          %v3487 = vunpack.c.l.b16 %v2858
          %v3488 = vunpack.c.h.b16 %v2858
          %v3489 = vunpack.c.l.b16 %v2859
          %v3490 = vunpack.c.h.b16 %v2859
          %v3491 = vunpack.c.l.b16 %v2860
          %v3492 = vunpack.c.h.b16 %v2860
          %v3493 = vunpack.c.l.b16 %v2861
          %v3494 = vunpack.c.h.b16 %v2861
          %v3495 = vunpack.c.l.b16 %v2862
          %v3496 = vunpack.c.h.b16 %v2862
          %v3497 = vunpack.c.l.b16 %v2863
          %v3498 = vunpack.c.h.b16 %v2863
          %v3499 = vunpack.c.l.b16 %v2864
          %v3500 = vunpack.c.h.b16 %v2864
          %v3501 = vunpack.c.l.b16 %v2865
          %v3502 = vunpack.c.h.b16 %v2865
          %v3503 = vunpack.c.l.b16 %v2866
          %v3504 = vunpack.c.h.b16 %v2866
          %v3505 = vunpack.c.l.b16 %v2867
          %v3506 = vunpack.c.h.b16 %v2867
          %v3507 = vunpack.c.l.b16 %v2868
          %v3508 = vunpack.c.h.b16 %v2868
          %v3509 = vunpack.c.l.b16 %v2869
          %v3510 = vunpack.c.h.b16 %v2869
          %v3511 = vunpack.c.l.b16 %v2870
          %v3512 = vunpack.c.h.b16 %v2870
          %v3513 = vunpack.c.l.b16 %v2871
          %v3514 = vunpack.c.h.b16 %v2871
          %v3515 = vunpack.c.l.b16 %v2872
          %v3516 = vunpack.c.h.b16 %v2872
          %v3517 = vunpack.c.l.b16 %v2873
          %v3518 = vunpack.c.h.b16 %v2873
          %v3519 = vunpack.c.l.b16 %v2874
          %v3520 = vunpack.c.h.b16 %v2874
          %v3521 = vunpack.c.l.b16 %v2875
          %v3522 = vunpack.c.h.b16 %v2875
          %v3523 = vunpack.c.l.b16 %v2876
          %v3524 = vunpack.c.h.b16 %v2876
          %v3525 = vunpack.c.l.b16 %v2877
          %v3526 = vunpack.c.h.b16 %v2877
          %v3527 = vunpack.c.l.b16 %v2878
          %v3528 = vunpack.c.h.b16 %v2878
          %v3529 = vunpack.c.l.b16 %v2879
          %v3530 = vunpack.c.h.b16 %v2879
          %v3531 = vunpack.c.l.b16 %v2880
          %v3532 = vunpack.c.h.b16 %v2880
          %v3533 = vunpack.c.l.b16 %v2881
          %v3534 = vunpack.c.h.b16 %v2881
          %v3535 = vunpack.c.l.b16 %v2882
          %v3536 = vunpack.c.h.b16 %v2882
          %v3537 = vunpack.c.l.b16 %v2883
          %v3538 = vunpack.c.h.b16 %v2883
          %v3539 = vunpack.c.l.b16 %v2884
          %v3540 = vunpack.c.h.b16 %v2884
          %v3541 = vunpack.c.l.b16 %v2885
          %v3542 = vunpack.c.h.b16 %v2885
          %v3543 = vunpack.c.l.b16 %v2886
          %v3544 = vunpack.c.h.b16 %v2886
          %v3545 = vunpack.c.l.b16 %v2887
          %v3546 = vunpack.c.h.b16 %v2887
          %v3547 = vunpack.c.l.b16 %v2888
          %v3548 = vunpack.c.h.b16 %v2888
          %v3549 = vunpack.c.l.b16 %v2889
          %v3550 = vunpack.c.h.b16 %v2889
          %v3551 = vunpack.c.l.b16 %v2890
          %v3552 = vunpack.c.h.b16 %v2890
          %v3553 = vunpack.c.l.b16 %v2891
          %v3554 = vunpack.c.h.b16 %v2891
          %v3555 = vunpack.c.l.b16 %v2892
          %v3556 = vunpack.c.h.b16 %v2892
          %v3557 = vunpack.c.l.b16 %v2893
          %v3558 = vunpack.c.h.b16 %v2893
          %v3559 = vunpack.c.l.b16 %v2894
          %v3560 = vunpack.c.h.b16 %v2894
          %v3561 = vunpack.c.l.b16 %v2895
          %v3562 = vunpack.c.h.b16 %v2895
          %v3563 = vunpack.c.l.b16 %v2896
          %v3564 = vunpack.c.h.b16 %v2896
          %v3565 = vunpack.c.l.b16 %v2897
          %v3566 = vunpack.c.h.b16 %v2897
          %v3567 = vunpack.c.l.b16 %v2898
          %v3568 = vunpack.c.h.b16 %v2898
          %v3569 = vunpack.c.l.b16 %v2899
          %v3570 = vunpack.c.h.b16 %v2899
          %v3571 = vunpack.c.l.b16 %v2900
          %v3572 = vunpack.c.h.b16 %v2900
          %v3573 = vunpack.c.l.b16 %v2901
          %v3574 = vunpack.c.h.b16 %v2901
          %v3575 = vunpack.c.l.b16 %v2902
          %v3576 = vunpack.c.h.b16 %v2902
          %v3577 = vunpack.c.l.b16 %v2903
          %v3578 = vunpack.c.h.b16 %v2903
          %v3579 = vunpack.c.l.b16 %v2904
          %v3580 = vunpack.c.h.b16 %v2904
          %v3581 = vunpack.c.l.b16 %v2905
          %v3582 = vunpack.c.h.b16 %v2905
          %v3583 = vunpack.c.l.b16 %v2906
          %v3584 = vunpack.c.h.b16 %v2906
          %v3585 = vunpack.c.l.b16 %v2907
          %v3586 = vunpack.c.h.b16 %v2907
          %v3587 = vunpack.c.l.b16 %v2908
          %v3588 = vunpack.c.h.b16 %v2908
          %v3589 = vunpack.c.l.b16 %v2909
          %v3590 = vunpack.c.h.b16 %v2909
          %v3591 = vunpack.c.l.b16 %v2910
          %v3592 = vunpack.c.h.b16 %v2910
          %v3593 = vunpack.c.l.b16 %v2911
          %v3594 = vunpack.c.h.b16 %v2911
          %v3595 = vunpack.c.l.b16 %v2912
          %v3596 = vunpack.c.h.b16 %v2912
          %v3597 = vunpack.c.l.b16 %v2913
          %v3598 = vunpack.c.h.b16 %v2913
          %v3599 = vunpack.c.l.b16 %v2914
          %v3600 = vunpack.c.h.b16 %v2914
          %v3601 = vunpack.c.l.b16 %v2915
          %v3602 = vunpack.c.h.b16 %v2915
          %v3603 = vunpack.c.l.b16 %v2916
          %v3604 = vunpack.c.h.b16 %v2916
          %v3605 = vunpack.c.l.b16 %v2917
          %v3606 = vunpack.c.h.b16 %v2917
          %v3607 = vunpack.c.l.b16 %v2918
          %v3608 = vunpack.c.h.b16 %v2918
          %v3609 = vunpack.c.l.b16 %v2919
          %v3610 = vunpack.c.h.b16 %v2919
          %v3611 = vunpack.c.l.b16 %v2920
          %v3612 = vunpack.c.h.b16 %v2920
          %v3613 = vunpack.c.l.b16 %v2921
          %v3614 = vunpack.c.h.b16 %v2921
          %v3615 = vunpack.c.l.b16 %v2922
          %v3616 = vunpack.c.h.b16 %v2922
          %v3617 = vunpack.c.l.b16 %v2923
          %v3618 = vunpack.c.h.b16 %v2923
          %v3619 = vunpack.c.l.b16 %v2924
          %v3620 = vunpack.c.h.b16 %v2924
          %v3621 = vunpack.c.l.b16 %v2925
          %v3622 = vunpack.c.h.b16 %v2925
          %v3623 = vunpack.c.l.b16 %v2926
          %v3624 = vunpack.c.h.b16 %v2926
          %v3625 = vunpack.c.l.b16 %v2927
          %v3626 = vunpack.c.h.b16 %v2927
          %v3627 = vunpack.c.l.b16 %v2928
          %v3628 = vunpack.c.h.b16 %v2928
          %v3629 = vunpack.c.l.b16 %v2929
          %v3630 = vunpack.c.h.b16 %v2929
          %v3631 = vunpack.c.l.b16 %v2930
          %v3632 = vunpack.c.h.b16 %v2930
          %v3633 = vunpack.c.l.b16 %v2931
          %v3634 = vunpack.c.h.b16 %v2931
          %v3635 = vunpack.c.l.b16 %v2932
          %v3636 = vunpack.c.h.b16 %v2932
          %v3637 = vunpack.c.l.b16 %v2933
          %v3638 = vunpack.c.h.b16 %v2933
          %v3639 = vunpack.c.l.b16 %v2934
          %v3640 = vunpack.c.h.b16 %v2934
          %v3641 = vunpack.c.l.b16 %v2935
          %v3642 = vunpack.c.h.b16 %v2935
          %v3643 = vunpack.c.l.b16 %v2936
          %v3644 = vunpack.c.h.b16 %v2936
          %v3645 = vunpack.c.l.b16 %v2937
          %v3646 = vunpack.c.h.b16 %v2937
          %v3647 = vunpack.c.l.b16 %v2938
          %v3648 = vunpack.c.h.b16 %v2938
          %v3649 = vunpack.c.l.b16 %v2939
          %v3650 = vunpack.c.h.b16 %v2939
          %v3651 = vunpack.c.l.b16 %v2940
          %v3652 = vunpack.c.h.b16 %v2940
          %v3653 = vunpack.c.l.b16 %v2941
          %v3654 = vunpack.c.h.b16 %v2941
          %v3655 = vunpack.c.l.b16 %v2942
          %v3656 = vunpack.c.h.b16 %v2942
          %v3657 = vunpack.c.l.b16 %v2943
          %v3658 = vunpack.c.h.b16 %v2943
          %v3659 = vunpack.c.l.b16 %v2944
          %v3660 = vunpack.c.h.b16 %v2944
          %v3661 = vunpack.c.l.b16 %v2945
          %v3662 = vunpack.c.h.b16 %v2945
          %v3663 = vunpack.c.l.b16 %v2946
          %v3664 = vunpack.c.h.b16 %v2946
          %v3665 = vunpack.c.l.b16 %v2947
          %v3666 = vunpack.c.h.b16 %v2947
          %v3667 = vunpack.c.l.b16 %v2948
          %v3668 = vunpack.c.h.b16 %v2948
          %v3669 = vunpack.c.l.b16 %v2949
          %v3670 = vunpack.c.h.b16 %v2949
          %v3671 = vunpack.c.l.b16 %v2950
          %v3672 = vunpack.c.h.b16 %v2950
          %v3673 = vunpack.c.l.b16 %v2951
          %v3674 = vunpack.c.h.b16 %v2951
          %v3675 = vunpack.c.l.b16 %v2952
          %v3676 = vunpack.c.h.b16 %v2952
          %v3677 = vunpack.c.l.b16 %v2953
          %v3678 = vunpack.c.h.b16 %v2953
          %v3679 = vunpack.c.l.b16 %v2954
          %v3680 = vunpack.c.h.b16 %v2954
          %v3681 = vunpack.c.l.b16 %v2955
          %v3682 = vunpack.c.h.b16 %v2955
          %v3683 = vunpack.c.l.b16 %v2956
          %v3684 = vunpack.c.h.b16 %v2956
          %v3685 = vunpack.c.l.b16 %v2957
          %v3686 = vunpack.c.h.b16 %v2957
          %v3687 = vunpack.c.l.b16 %v2958
          %v3688 = vunpack.c.h.b16 %v2958
          %v3689 = vunpack.c.l.b16 %v2959
          %v3690 = vunpack.c.h.b16 %v2959
          %v3691 = vunpack.c.l.b16 %v2960
          %v3692 = vunpack.c.h.b16 %v2960
          %v3693 = vunpack.c.l.b16 %v2961
          %v3694 = vunpack.c.h.b16 %v2961
          %v3695 = vunpack.c.l.b16 %v2962
          %v3696 = vunpack.c.h.b16 %v2962
          %v3697 = vunpack.c.l.b16 %v2963
          %v3698 = vunpack.c.h.b16 %v2963
          %v3699 = vunpack.c.l.b16 %v2964
          %v3700 = vunpack.c.h.b16 %v2964
          %v3701 = vunpack.c.l.b16 %v2965
          %v3702 = vunpack.c.h.b16 %v2965
          %v3703 = vunpack.c.l.b16 %v2966
          %v3704 = vunpack.c.h.b16 %v2966
          %v3705 = vunpack.c.l.b16 %v2967
          %v3706 = vunpack.c.h.b16 %v2967
          %v3707 = vunpack.c.l.b16 %v2968
          %v3708 = vunpack.c.h.b16 %v2968
          %v3709 = vunpack.c.l.b16 %v2969
          %v3710 = vunpack.c.h.b16 %v2969
          %v3711 = vunpack.c.l.b16 %v2970
          %v3712 = vunpack.c.h.b16 %v2970
          %v3713 = vunpack.c.l.b16 %v2971
          %v3714 = vunpack.c.h.b16 %v2971
          %v3715 = vunpack.c.l.b16 %v2972
          %v3716 = vunpack.c.h.b16 %v2972
          %v3717 = vunpack.c.l.b16 %v2973
          %v3718 = vunpack.c.h.b16 %v2973
          %v3719 = vunpack.c.l.b16 %v2974
          %v3720 = vunpack.c.h.b16 %v2974
          %v3721 = vunpack.c.l.b16 %v2975
          %v3722 = vunpack.c.h.b16 %v2975
          %v3723 = vunpack.c.l.b16 %v2976
          %v3724 = vunpack.c.h.b16 %v2976
          %v3725 = vunpack.c.l.b16 %v2977
          %v3726 = vunpack.c.h.b16 %v2977
          %v3727 = vunpack.c.l.b16 %v2978
          %v3728 = vunpack.c.h.b16 %v2978
          %v3729 = vunpack.c.l.b16 %v2979
          %v3730 = vunpack.c.h.b16 %v2979
          %v3731 = vunpack.c.l.b16 %v2980
          %v3732 = vunpack.c.h.b16 %v2980
          %v3733 = vunpack.c.l.b16 %v2981
          %v3734 = vunpack.c.h.b16 %v2981
          %v3735 = vunpack.c.l.b16 %v2982
          %v3736 = vunpack.c.h.b16 %v2982
          %v3737 = vunpack.c.l.b16 %v2983
          %v3738 = vunpack.c.h.b16 %v2983
          %v3739 = vunpack.c.l.b16 %v2984
          %v3740 = vunpack.c.h.b16 %v2984
          %v3741 = vunpack.c.l.b16 %v2985
          %v3742 = vunpack.c.h.b16 %v2985
          %v3743 = vunpack.c.l.b16 %v2986
          %v3744 = vunpack.c.h.b16 %v2986
          %v3745 = vunpack.c.l.b16 %v2987
          %v3746 = vunpack.c.h.b16 %v2987
          %v3747 = vunpack.c.l.b16 %v2988
          %v3748 = vunpack.c.h.b16 %v2988
          %v3749 = vunpack.c.l.b16 %v2989
          %v3750 = vunpack.c.h.b16 %v2989
          %v3751 = vunpack.c.l.b16 %v2990
          %v3752 = vunpack.c.h.b16 %v2990
          %v3753 = vunpack.c.l.b16 %v2991
          %v3754 = vunpack.c.h.b16 %v2991
          %v3755 = vunpack.c.l.b16 %v2992
          %v3756 = vunpack.c.h.b16 %v2992
          %v3757 = vunpack.c.l.b16 %v2993
          %v3758 = vunpack.c.h.b16 %v2993
          %v3759 = vunpack.c.l.b16 %v2994
          %v3760 = vunpack.c.h.b16 %v2994
          %v3761 = vunpack.c.l.b16 %v2995
          %v3762 = vunpack.c.h.b16 %v2995
          %v3763 = vunpack.c.l.b16 %v2996
          %v3764 = vunpack.c.h.b16 %v2996
          %v3765 = vunpack.c.l.b16 %v2997
          %v3766 = vunpack.c.h.b16 %v2997
          %v3767 = vpack.c.b16 %v3259, %v3255
          %v3768 = vpack.c.b16 %v3260, %v3256
          %v3769 = vpack.c.b16 %v3261, %v3257
          %v3770 = vpack.c.b16 %v3262, %v3258
          %v3771 = vpack.c.b16 %v3267, %v3263
          %v3772 = vpack.c.b16 %v3268, %v3264
          %v3773 = vpack.c.b16 %v3269, %v3265
          %v3774 = vpack.c.b16 %v3270, %v3266
          %v3775 = vpack.c.b16 %v3275, %v3271
          %v3776 = vpack.c.b16 %v3276, %v3272
          %v3777 = vpack.c.b16 %v3277, %v3273
          %v3778 = vpack.c.b16 %v3278, %v3274
          %v3779 = vpack.c.b16 %v3283, %v3279
          %v3780 = vpack.c.b16 %v3284, %v3280
          %v3781 = vpack.c.b16 %v3285, %v3281
          %v3782 = vpack.c.b16 %v3286, %v3282
          %v3783 = vpack.c.b16 %v3291, %v3287
          %v3784 = vpack.c.b16 %v3292, %v3288
          %v3785 = vpack.c.b16 %v3293, %v3289
          %v3786 = vpack.c.b16 %v3294, %v3290
          %v3787 = vpack.c.b16 %v3299, %v3295
          %v3788 = vpack.c.b16 %v3300, %v3296
          %v3789 = vpack.c.b16 %v3301, %v3297
          %v3790 = vpack.c.b16 %v3302, %v3298
          %v3791 = vpack.c.b16 %v3307, %v3303
          %v3792 = vpack.c.b16 %v3308, %v3304
          %v3793 = vpack.c.b16 %v3309, %v3305
          %v3794 = vpack.c.b16 %v3310, %v3306
          %v3795 = vpack.c.b16 %v3315, %v3311
          %v3796 = vpack.c.b16 %v3316, %v3312
          %v3797 = vpack.c.b16 %v3317, %v3313
          %v3798 = vpack.c.b16 %v3318, %v3314
          %v3799 = vpack.c.b16 %v3323, %v3319
          %v3800 = vpack.c.b16 %v3324, %v3320
          %v3801 = vpack.c.b16 %v3325, %v3321
          %v3802 = vpack.c.b16 %v3326, %v3322
          %v3803 = vpack.c.b16 %v3331, %v3327
          %v3804 = vpack.c.b16 %v3332, %v3328
          %v3805 = vpack.c.b16 %v3333, %v3329
          %v3806 = vpack.c.b16 %v3334, %v3330
          %v3807 = vpack.c.b16 %v3339, %v3335
          %v3808 = vpack.c.b16 %v3340, %v3336
          %v3809 = vpack.c.b16 %v3341, %v3337
          %v3810 = vpack.c.b16 %v3342, %v3338
          %v3811 = vpack.c.b16 %v3347, %v3343
          %v3812 = vpack.c.b16 %v3348, %v3344
          %v3813 = vpack.c.b16 %v3349, %v3345
          %v3814 = vpack.c.b16 %v3350, %v3346
          %v3815 = vpack.c.b16 %v3355, %v3351
          %v3816 = vpack.c.b16 %v3356, %v3352
          %v3817 = vpack.c.b16 %v3357, %v3353
          %v3818 = vpack.c.b16 %v3358, %v3354
          %v3819 = vpack.c.b16 %v3363, %v3359
          %v3820 = vpack.c.b16 %v3364, %v3360
          %v3821 = vpack.c.b16 %v3365, %v3361
          %v3822 = vpack.c.b16 %v3366, %v3362
          %v3823 = vpack.c.b16 %v3371, %v3367
          %v3824 = vpack.c.b16 %v3372, %v3368
          %v3825 = vpack.c.b16 %v3373, %v3369
          %v3826 = vpack.c.b16 %v3374, %v3370
          %v3827 = vpack.c.b16 %v3379, %v3375
          %v3828 = vpack.c.b16 %v3380, %v3376
          %v3829 = vpack.c.b16 %v3381, %v3377
          %v3830 = vpack.c.b16 %v3382, %v3378
          %v3831 = vpack.c.b16 %v3387, %v3383
          %v3832 = vpack.c.b16 %v3388, %v3384
          %v3833 = vpack.c.b16 %v3389, %v3385
          %v3834 = vpack.c.b16 %v3390, %v3386
          %v3835 = vpack.c.b16 %v3395, %v3391
          %v3836 = vpack.c.b16 %v3396, %v3392
          %v3837 = vpack.c.b16 %v3397, %v3393
          %v3838 = vpack.c.b16 %v3398, %v3394
          %v3839 = vpack.c.b16 %v3403, %v3399
          %v3840 = vpack.c.b16 %v3404, %v3400
          %v3841 = vpack.c.b16 %v3405, %v3401
          %v3842 = vpack.c.b16 %v3406, %v3402
          %v3843 = vpack.c.b16 %v3411, %v3407
          %v3844 = vpack.c.b16 %v3412, %v3408
          %v3845 = vpack.c.b16 %v3413, %v3409
          %v3846 = vpack.c.b16 %v3414, %v3410
          %v3847 = vpack.c.b16 %v3419, %v3415
          %v3848 = vpack.c.b16 %v3420, %v3416
          %v3849 = vpack.c.b16 %v3421, %v3417
          %v3850 = vpack.c.b16 %v3422, %v3418
          %v3851 = vpack.c.b16 %v3427, %v3423
          %v3852 = vpack.c.b16 %v3428, %v3424
          %v3853 = vpack.c.b16 %v3429, %v3425
          %v3854 = vpack.c.b16 %v3430, %v3426
          %v3855 = vpack.c.b16 %v3435, %v3431
          %v3856 = vpack.c.b16 %v3436, %v3432
          %v3857 = vpack.c.b16 %v3437, %v3433
          %v3858 = vpack.c.b16 %v3438, %v3434
          %v3859 = vpack.c.b16 %v3443, %v3439
          %v3860 = vpack.c.b16 %v3444, %v3440
          %v3861 = vpack.c.b16 %v3445, %v3441
          %v3862 = vpack.c.b16 %v3446, %v3442
          %v3863 = vpack.c.b16 %v3451, %v3447
          %v3864 = vpack.c.b16 %v3452, %v3448
          %v3865 = vpack.c.b16 %v3453, %v3449
          %v3866 = vpack.c.b16 %v3454, %v3450
          %v3867 = vpack.c.b16 %v3459, %v3455
          %v3868 = vpack.c.b16 %v3460, %v3456
          %v3869 = vpack.c.b16 %v3461, %v3457
          %v3870 = vpack.c.b16 %v3462, %v3458
          %v3871 = vpack.c.b16 %v3467, %v3463
          %v3872 = vpack.c.b16 %v3468, %v3464
          %v3873 = vpack.c.b16 %v3469, %v3465
          %v3874 = vpack.c.b16 %v3470, %v3466
          %v3875 = vpack.c.b16 %v3475, %v3471
          %v3876 = vpack.c.b16 %v3476, %v3472
          %v3877 = vpack.c.b16 %v3477, %v3473
          %v3878 = vpack.c.b16 %v3478, %v3474
          %v3879 = vpack.c.b16 %v3483, %v3479
          %v3880 = vpack.c.b16 %v3484, %v3480
          %v3881 = vpack.c.b16 %v3485, %v3481
          %v3882 = vpack.c.b16 %v3486, %v3482
          %v3883 = vpack.c.b16 %v3491, %v3487
          %v3884 = vpack.c.b16 %v3492, %v3488
          %v3885 = vpack.c.b16 %v3493, %v3489
          %v3886 = vpack.c.b16 %v3494, %v3490
          %v3887 = vpack.c.b16 %v3499, %v3495
          %v3888 = vpack.c.b16 %v3500, %v3496
          %v3889 = vpack.c.b16 %v3501, %v3497
          %v3890 = vpack.c.b16 %v3502, %v3498
          %v3891 = vpack.c.b16 %v3507, %v3503
          %v3892 = vpack.c.b16 %v3508, %v3504
          %v3893 = vpack.c.b16 %v3509, %v3505
          %v3894 = vpack.c.b16 %v3510, %v3506
          %v3895 = vpack.c.b16 %v3515, %v3511
          %v3896 = vpack.c.b16 %v3516, %v3512
          %v3897 = vpack.c.b16 %v3517, %v3513
          %v3898 = vpack.c.b16 %v3518, %v3514
          %v3899 = vpack.c.b16 %v3523, %v3519
          %v3900 = vpack.c.b16 %v3524, %v3520
          %v3901 = vpack.c.b16 %v3525, %v3521
          %v3902 = vpack.c.b16 %v3526, %v3522
          %v3903 = vpack.c.b16 %v3531, %v3527
          %v3904 = vpack.c.b16 %v3532, %v3528
          %v3905 = vpack.c.b16 %v3533, %v3529
          %v3906 = vpack.c.b16 %v3534, %v3530
          %v3907 = vpack.c.b16 %v3539, %v3535
          %v3908 = vpack.c.b16 %v3540, %v3536
          %v3909 = vpack.c.b16 %v3541, %v3537
          %v3910 = vpack.c.b16 %v3542, %v3538
          %v3911 = vpack.c.b16 %v3547, %v3543
          %v3912 = vpack.c.b16 %v3548, %v3544
          %v3913 = vpack.c.b16 %v3549, %v3545
          %v3914 = vpack.c.b16 %v3550, %v3546
          %v3915 = vpack.c.b16 %v3555, %v3551
          %v3916 = vpack.c.b16 %v3556, %v3552
          %v3917 = vpack.c.b16 %v3557, %v3553
          %v3918 = vpack.c.b16 %v3558, %v3554
          %v3919 = vpack.c.b16 %v3563, %v3559
          %v3920 = vpack.c.b16 %v3564, %v3560
          %v3921 = vpack.c.b16 %v3565, %v3561
          %v3922 = vpack.c.b16 %v3566, %v3562
          %v3923 = vpack.c.b16 %v3571, %v3567
          %v3924 = vpack.c.b16 %v3572, %v3568
          %v3925 = vpack.c.b16 %v3573, %v3569
          %v3926 = vpack.c.b16 %v3574, %v3570
          %v3927 = vpack.c.b16 %v3579, %v3575
          %v3928 = vpack.c.b16 %v3580, %v3576
          %v3929 = vpack.c.b16 %v3581, %v3577
          %v3930 = vpack.c.b16 %v3582, %v3578
          %v3931 = vpack.c.b16 %v3587, %v3583
          %v3932 = vpack.c.b16 %v3588, %v3584
          %v3933 = vpack.c.b16 %v3589, %v3585
          %v3934 = vpack.c.b16 %v3590, %v3586
          %v3935 = vpack.c.b16 %v3595, %v3591
          %v3936 = vpack.c.b16 %v3596, %v3592
          %v3937 = vpack.c.b16 %v3597, %v3593
          %v3938 = vpack.c.b16 %v3598, %v3594
          %v3939 = vpack.c.b16 %v3603, %v3599
          %v3940 = vpack.c.b16 %v3604, %v3600
          %v3941 = vpack.c.b16 %v3605, %v3601
          %v3942 = vpack.c.b16 %v3606, %v3602
          %v3943 = vpack.c.b16 %v3611, %v3607
          %v3944 = vpack.c.b16 %v3612, %v3608
          %v3945 = vpack.c.b16 %v3613, %v3609
          %v3946 = vpack.c.b16 %v3614, %v3610
          %v3947 = vpack.c.b16 %v3619, %v3615
          %v3948 = vpack.c.b16 %v3620, %v3616
          %v3949 = vpack.c.b16 %v3621, %v3617
          %v3950 = vpack.c.b16 %v3622, %v3618
          %v3951 = vpack.c.b16 %v3627, %v3623
          %v3952 = vpack.c.b16 %v3628, %v3624
          %v3953 = vpack.c.b16 %v3629, %v3625
          %v3954 = vpack.c.b16 %v3630, %v3626
          %v3955 = vpack.c.b16 %v3635, %v3631
          %v3956 = vpack.c.b16 %v3636, %v3632
          %v3957 = vpack.c.b16 %v3637, %v3633
          %v3958 = vpack.c.b16 %v3638, %v3634
          %v3959 = vpack.c.b16 %v3643, %v3639
          %v3960 = vpack.c.b16 %v3644, %v3640
          %v3961 = vpack.c.b16 %v3645, %v3641
          %v3962 = vpack.c.b16 %v3646, %v3642
          %v3963 = vpack.c.b16 %v3651, %v3647
          %v3964 = vpack.c.b16 %v3652, %v3648
          %v3965 = vpack.c.b16 %v3653, %v3649
          %v3966 = vpack.c.b16 %v3654, %v3650
          %v3967 = vpack.c.b16 %v3659, %v3655
          %v3968 = vpack.c.b16 %v3660, %v3656
          %v3969 = vpack.c.b16 %v3661, %v3657
          %v3970 = vpack.c.b16 %v3662, %v3658
          %v3971 = vpack.c.b16 %v3667, %v3663
          %v3972 = vpack.c.b16 %v3668, %v3664
          %v3973 = vpack.c.b16 %v3669, %v3665
          %v3974 = vpack.c.b16 %v3670, %v3666
          %v3975 = vpack.c.b16 %v3675, %v3671
          %v3976 = vpack.c.b16 %v3676, %v3672
          %v3977 = vpack.c.b16 %v3677, %v3673
          %v3978 = vpack.c.b16 %v3678, %v3674
          %v3979 = vpack.c.b16 %v3683, %v3679
          %v3980 = vpack.c.b16 %v3684, %v3680
          %v3981 = vpack.c.b16 %v3685, %v3681
          %v3982 = vpack.c.b16 %v3686, %v3682
          %v3983 = vpack.c.b16 %v3691, %v3687
          %v3984 = vpack.c.b16 %v3692, %v3688
          %v3985 = vpack.c.b16 %v3693, %v3689
          %v3986 = vpack.c.b16 %v3694, %v3690
          %v3987 = vpack.c.b16 %v3699, %v3695
          %v3988 = vpack.c.b16 %v3700, %v3696
          %v3989 = vpack.c.b16 %v3701, %v3697
          %v3990 = vpack.c.b16 %v3702, %v3698
          %v3991 = vpack.c.b16 %v3707, %v3703
          %v3992 = vpack.c.b16 %v3708, %v3704
          %v3993 = vpack.c.b16 %v3709, %v3705
          %v3994 = vpack.c.b16 %v3710, %v3706
          %v3995 = vpack.c.b16 %v3715, %v3711
          %v3996 = vpack.c.b16 %v3716, %v3712
          %v3997 = vpack.c.b16 %v3717, %v3713
          %v3998 = vpack.c.b16 %v3718, %v3714
          %v3999 = vpack.c.b16 %v3723, %v3719
          %v4000 = vpack.c.b16 %v3724, %v3720
          %v4001 = vpack.c.b16 %v3725, %v3721
          %v4002 = vpack.c.b16 %v3726, %v3722
          %v4003 = vpack.c.b16 %v3731, %v3727
          %v4004 = vpack.c.b16 %v3732, %v3728
          %v4005 = vpack.c.b16 %v3733, %v3729
          %v4006 = vpack.c.b16 %v3734, %v3730
          %v4007 = vpack.c.b16 %v3739, %v3735
          %v4008 = vpack.c.b16 %v3740, %v3736
          %v4009 = vpack.c.b16 %v3741, %v3737
          %v4010 = vpack.c.b16 %v3742, %v3738
          %v4011 = vpack.c.b16 %v3747, %v3743
          %v4012 = vpack.c.b16 %v3748, %v3744
          %v4013 = vpack.c.b16 %v3749, %v3745
          %v4014 = vpack.c.b16 %v3750, %v3746
          %v4015 = vpack.c.b16 %v3755, %v3751
          %v4016 = vpack.c.b16 %v3756, %v3752
          %v4017 = vpack.c.b16 %v3757, %v3753
          %v4018 = vpack.c.b16 %v3758, %v3754
          %v4019 = vpack.c.b16 %v3763, %v3759
          %v4020 = vpack.c.b16 %v3764, %v3760
          %v4021 = vpack.c.b16 %v3765, %v3761
          %v4022 = vpack.c.b16 %v3766, %v3762
          %v4280 = vlaneseq
          %v4281 = vshrl.u32 %v4280, 7
          %v4282 = vsub.s32 0, %v4281
          %v4283 = vrot.slane %v2998, %v4282
          %v4284 = vlaneseq
          %v4285 = vshrl.u32 %v4284, 7
          %v4286 = vsub.s32 1, %v4285
          %v4287 = vrot.slane %v2998, %v4286
          %v4288 = vlaneseq
          %v4289 = vshrl.u32 %v4288, 7
          %v4290 = vsub.s32 2, %v4289
          %v4291 = vrot.slane %v2998, %v4290
          %v4292 = vlaneseq
          %v4293 = vshrl.u32 %v4292, 7
          %v4294 = vsub.s32 3, %v4293
          %v4295 = vrot.slane %v2998, %v4294
          %4300 = vmatprep.subr.bf16.mxu0 %v3796
          %4301 = vmatpush1.bf16.msra.mxu0 %v3795
          %4302 = vmatprep.subr.bf16.mxu0 %v3792
          %4303 = vmatpush1.bf16.msra.mxu0 %v3791
          %4304 = vmatprep.subr.bf16.mxu0 %v3788
          %4305 = vmatpush1.bf16.msra.mxu0 %v3787
          %4306 = vmatprep.subr.bf16.mxu0 %v3784
          %4307 = vmatpush1.bf16.msra.mxu0 %v3783
          %4308 = vmatprep.subr.bf16.mxu0 %v3780
          %4309 = vmatpush1.bf16.msra.mxu0 %v3779
          %4310 = vmatprep.subr.bf16.mxu0 %v3776
          %4311 = vmatpush1.bf16.msra.mxu0 %v3775
          %4312 = vmatprep.subr.bf16.mxu0 %v3772
          %4313 = vmatpush1.bf16.msra.mxu0 %v3771
          %4314 = vmatprep.subr.bf16.mxu0 %v3768
          %4315 = vmatpush1.bf16.msra.mxu0 %v3767
          %4316 = vmatprep.subr.bf16.mxu0 %v3828
          %4317 = vmatpush2.bf16.msra.mxu0 %v3827
          %4318 = vmatprep.subr.bf16.mxu0 %v3824
          %4319 = vmatpush2.bf16.msra.mxu0 %v3823
          %4320 = vmatprep.subr.bf16.mxu0 %v3820
          %4321 = vmatpush2.bf16.msra.mxu0 %v3819
          %4322 = vmatprep.subr.bf16.mxu0 %v3816
          %4323 = vmatpush2.bf16.msra.mxu0 %v3815
          %4324 = vmatprep.subr.bf16.mxu0 %v3812
          %4325 = vmatpush2.bf16.msra.mxu0 %v3811
          %4326 = vmatprep.subr.bf16.mxu0 %v3808
          %4327 = vmatpush2.bf16.msra.mxu0 %v3807
          %4328 = vmatprep.subr.bf16.mxu0 %v3804
          %4329 = vmatpush2.bf16.msra.mxu0 %v3803
          %4330 = vmatprep.subr.bf16.mxu0 %v3800
          %4331 = vmatpush2.bf16.msra.mxu0 %v3799
          %4332 = vmatprep.mubr.bf16.mxu0 %v2735
          %4333 = vmatmul.mubr.bf16.gmra.mxu0 %v2734
          %v4334 = vpop.f32.mrf.mxu0
          %v4335 = vadd.f32 %v4283, %v4334
          %v4336 = vpop.f32.mrf.mxu0
          %v4337 = vadd.f32 %v4287, %v4336
          %v4338 = vpop.f32.mrf.mxu0
          %v4339 = vpop.f32.mrf.mxu0
          %4340 = vdwg.mxu0
          %4341 = vmatprep.subr.bf16.mxu0 %v3860
          %4342 = vmatpush1.bf16.msra.mxu0 %v3859
          %4343 = vmatprep.subr.bf16.mxu0 %v3856
          %4344 = vmatpush1.bf16.msra.mxu0 %v3855
          %4345 = vmatprep.subr.bf16.mxu0 %v3852
          %4346 = vmatpush1.bf16.msra.mxu0 %v3851
          %4347 = vmatprep.subr.bf16.mxu0 %v3848
          %4348 = vmatpush1.bf16.msra.mxu0 %v3847
          %4349 = vmatprep.subr.bf16.mxu0 %v3844
          %4350 = vmatpush1.bf16.msra.mxu0 %v3843
          %4351 = vmatprep.subr.bf16.mxu0 %v3840
          %4352 = vmatpush1.bf16.msra.mxu0 %v3839
          %4353 = vmatprep.subr.bf16.mxu0 %v3836
          %4354 = vmatpush1.bf16.msra.mxu0 %v3835
          %4355 = vmatprep.subr.bf16.mxu0 %v3832
          %4356 = vmatpush1.bf16.msra.mxu0 %v3831
          %4357 = vmatprep.subr.bf16.mxu0 %v3892
          %4358 = vmatpush2.bf16.msra.mxu0 %v3891
          %4359 = vmatprep.subr.bf16.mxu0 %v3888
          %4360 = vmatpush2.bf16.msra.mxu0 %v3887
          %4361 = vmatprep.subr.bf16.mxu0 %v3884
          %4362 = vmatpush2.bf16.msra.mxu0 %v3883
          %4363 = vmatprep.subr.bf16.mxu0 %v3880
          %4364 = vmatpush2.bf16.msra.mxu0 %v3879
          %4365 = vmatprep.subr.bf16.mxu0 %v3876
          %4366 = vmatpush2.bf16.msra.mxu0 %v3875
          %4367 = vmatprep.subr.bf16.mxu0 %v3872
          %4368 = vmatpush2.bf16.msra.mxu0 %v3871
          %4369 = vmatprep.subr.bf16.mxu0 %v3868
          %4370 = vmatpush2.bf16.msra.mxu0 %v3867
          %4371 = vmatprep.subr.bf16.mxu0 %v3864
          %4372 = vmatpush2.bf16.msra.mxu0 %v3863
          %4373 = vmatprep.mubr.bf16.mxu0 %v2737
          %4374 = vmatmul.mubr.bf16.gmra.mxu0 %v2736
          %v4375 = vpop.f32.mrf.mxu0
          %v4376 = vadd.f32 %v4335, %v4375
          %v4377 = vpop.f32.mrf.mxu0
          %v4378 = vadd.f32 %v4337, %v4377
          %v4379 = vpop.f32.mrf.mxu0
          %v4380 = vpop.f32.mrf.mxu0
          %4381 = vdwg.mxu0
          %4382 = vmatprep.subr.bf16.mxu0 %v3924
          %4383 = vmatpush1.bf16.msra.mxu0 %v3923
          %4384 = vmatprep.subr.bf16.mxu0 %v3920
          %4385 = vmatpush1.bf16.msra.mxu0 %v3919
          %4386 = vmatprep.subr.bf16.mxu0 %v3916
          %4387 = vmatpush1.bf16.msra.mxu0 %v3915
          %4388 = vmatprep.subr.bf16.mxu0 %v3912
          %4389 = vmatpush1.bf16.msra.mxu0 %v3911
          %4390 = vmatprep.subr.bf16.mxu0 %v3908
          %4391 = vmatpush1.bf16.msra.mxu0 %v3907
          %4392 = vmatprep.subr.bf16.mxu0 %v3904
          %4393 = vmatpush1.bf16.msra.mxu0 %v3903
          %4394 = vmatprep.subr.bf16.mxu0 %v3900
          %4395 = vmatpush1.bf16.msra.mxu0 %v3899
          %4396 = vmatprep.subr.bf16.mxu0 %v3896
          %4397 = vmatpush1.bf16.msra.mxu0 %v3895
          %4398 = vmatprep.subr.bf16.mxu0 %v3956
          %4399 = vmatpush2.bf16.msra.mxu0 %v3955
          %4400 = vmatprep.subr.bf16.mxu0 %v3952
          %4401 = vmatpush2.bf16.msra.mxu0 %v3951
          %4402 = vmatprep.subr.bf16.mxu0 %v3948
          %4403 = vmatpush2.bf16.msra.mxu0 %v3947
          %4404 = vmatprep.subr.bf16.mxu0 %v3944
          %4405 = vmatpush2.bf16.msra.mxu0 %v3943
          %4406 = vmatprep.subr.bf16.mxu0 %v3940
          %4407 = vmatpush2.bf16.msra.mxu0 %v3939
          %4408 = vmatprep.subr.bf16.mxu0 %v3936
          %4409 = vmatpush2.bf16.msra.mxu0 %v3935
          %4410 = vmatprep.subr.bf16.mxu0 %v3932
          %4411 = vmatpush2.bf16.msra.mxu0 %v3931
          %4412 = vmatprep.subr.bf16.mxu0 %v3928
          %4413 = vmatpush2.bf16.msra.mxu0 %v3927
          %4414 = vmatprep.mubr.bf16.mxu0 %v2739
          %4415 = vmatmul.mubr.bf16.gmra.mxu0 %v2738
          %v4416 = vpop.f32.mrf.mxu0
          %v4417 = vadd.f32 %v4376, %v4416
          %v4418 = vpop.f32.mrf.mxu0
          %v4419 = vadd.f32 %v4378, %v4418
          %v4420 = vpop.f32.mrf.mxu0
          %v4421 = vpop.f32.mrf.mxu0
          %4422 = vdwg.mxu0
          %4423 = vmatprep.subr.bf16.mxu0 %v3988
          %4424 = vmatpush1.bf16.msra.mxu0 %v3987
          %4425 = vmatprep.subr.bf16.mxu0 %v3984
          %4426 = vmatpush1.bf16.msra.mxu0 %v3983
          %4427 = vmatprep.subr.bf16.mxu0 %v3980
          %4428 = vmatpush1.bf16.msra.mxu0 %v3979
          %4429 = vmatprep.subr.bf16.mxu0 %v3976
          %4430 = vmatpush1.bf16.msra.mxu0 %v3975
          %4431 = vmatprep.subr.bf16.mxu0 %v3972
          %4432 = vmatpush1.bf16.msra.mxu0 %v3971
          %4433 = vmatprep.subr.bf16.mxu0 %v3968
          %4434 = vmatpush1.bf16.msra.mxu0 %v3967
          %4435 = vmatprep.subr.bf16.mxu0 %v3964
          %4436 = vmatpush1.bf16.msra.mxu0 %v3963
          %4437 = vmatprep.subr.bf16.mxu0 %v3960
          %4438 = vmatpush1.bf16.msra.mxu0 %v3959
          %4439 = vmatprep.subr.bf16.mxu0 %v4020
          %4440 = vmatpush2.bf16.msra.mxu0 %v4019
          %4441 = vmatprep.subr.bf16.mxu0 %v4016
          %4442 = vmatpush2.bf16.msra.mxu0 %v4015
          %4443 = vmatprep.subr.bf16.mxu0 %v4012
          %4444 = vmatpush2.bf16.msra.mxu0 %v4011
          %4445 = vmatprep.subr.bf16.mxu0 %v4008
          %4446 = vmatpush2.bf16.msra.mxu0 %v4007
          %4447 = vmatprep.subr.bf16.mxu0 %v4004
          %4448 = vmatpush2.bf16.msra.mxu0 %v4003
          %4449 = vmatprep.subr.bf16.mxu0 %v4000
          %4450 = vmatpush2.bf16.msra.mxu0 %v3999
          %4451 = vmatprep.subr.bf16.mxu0 %v3996
          %4452 = vmatpush2.bf16.msra.mxu0 %v3995
          %4453 = vmatprep.subr.bf16.mxu0 %v3992
          %4454 = vmatpush2.bf16.msra.mxu0 %v3991
          %4455 = vmatprep.mubr.bf16.mxu0 %v2741
          %4456 = vmatmul.mubr.bf16.gmra.mxu0 %v2740
          %v4457 = vpop.f32.mrf.mxu0
          %v4458 = vadd.f32 %v4417, %v4457
          %v4459 = vpop.f32.mrf.mxu0
          %v4460 = vadd.f32 %v4419, %v4459
          %v4461 = vpop.f32.mrf.mxu0
          %v4462 = vpop.f32.mrf.mxu0
          %4463 = vdwg.mxu0
          %4464 = vmatprep.subr.bf16.mxu0 %v3798
          %4465 = vmatpush1.bf16.msra.mxu0 %v3797
          %4466 = vmatprep.subr.bf16.mxu0 %v3794
          %4467 = vmatpush1.bf16.msra.mxu0 %v3793
          %4468 = vmatprep.subr.bf16.mxu0 %v3790
          %4469 = vmatpush1.bf16.msra.mxu0 %v3789
          %4470 = vmatprep.subr.bf16.mxu0 %v3786
          %4471 = vmatpush1.bf16.msra.mxu0 %v3785
          %4472 = vmatprep.subr.bf16.mxu0 %v3782
          %4473 = vmatpush1.bf16.msra.mxu0 %v3781
          %4474 = vmatprep.subr.bf16.mxu0 %v3778
          %4475 = vmatpush1.bf16.msra.mxu0 %v3777
          %4476 = vmatprep.subr.bf16.mxu0 %v3774
          %4477 = vmatpush1.bf16.msra.mxu0 %v3773
          %4478 = vmatprep.subr.bf16.mxu0 %v3770
          %4479 = vmatpush1.bf16.msra.mxu0 %v3769
          %4480 = vmatprep.subr.bf16.mxu0 %v3830
          %4481 = vmatpush2.bf16.msra.mxu0 %v3829
          %4482 = vmatprep.subr.bf16.mxu0 %v3826
          %4483 = vmatpush2.bf16.msra.mxu0 %v3825
          %4484 = vmatprep.subr.bf16.mxu0 %v3822
          %4485 = vmatpush2.bf16.msra.mxu0 %v3821
          %4486 = vmatprep.subr.bf16.mxu0 %v3818
          %4487 = vmatpush2.bf16.msra.mxu0 %v3817
          %4488 = vmatprep.subr.bf16.mxu0 %v3814
          %4489 = vmatpush2.bf16.msra.mxu0 %v3813
          %4490 = vmatprep.subr.bf16.mxu0 %v3810
          %4491 = vmatpush2.bf16.msra.mxu0 %v3809
          %4492 = vmatprep.subr.bf16.mxu0 %v3806
          %4493 = vmatpush2.bf16.msra.mxu0 %v3805
          %4494 = vmatprep.subr.bf16.mxu0 %v3802
          %4495 = vmatpush2.bf16.msra.mxu0 %v3801
          %4496 = vmatprep.mubr.bf16.mxu0 %v2735
          %4497 = vmatmul.mubr.bf16.gmra.mxu0 %v2734
          %v4498 = vpop.f32.mrf.mxu0
          %v4499 = vadd.f32 %v4291, %v4498
          %v4500 = vpop.f32.mrf.mxu0
          %v4501 = vadd.f32 %v4295, %v4500
          %v4502 = vpop.f32.mrf.mxu0
          %v4503 = vpop.f32.mrf.mxu0
          %4504 = vdwg.mxu0
          %4505 = vmatprep.subr.bf16.mxu0 %v3862
          %4506 = vmatpush1.bf16.msra.mxu0 %v3861
          %4507 = vmatprep.subr.bf16.mxu0 %v3858
          %4508 = vmatpush1.bf16.msra.mxu0 %v3857
          %4509 = vmatprep.subr.bf16.mxu0 %v3854
          %4510 = vmatpush1.bf16.msra.mxu0 %v3853
          %4511 = vmatprep.subr.bf16.mxu0 %v3850
          %4512 = vmatpush1.bf16.msra.mxu0 %v3849
          %4513 = vmatprep.subr.bf16.mxu0 %v3846
          %4514 = vmatpush1.bf16.msra.mxu0 %v3845
          %4515 = vmatprep.subr.bf16.mxu0 %v3842
          %4516 = vmatpush1.bf16.msra.mxu0 %v3841
          %4517 = vmatprep.subr.bf16.mxu0 %v3838
          %4518 = vmatpush1.bf16.msra.mxu0 %v3837
          %4519 = vmatprep.subr.bf16.mxu0 %v3834
          %4520 = vmatpush1.bf16.msra.mxu0 %v3833
          %4521 = vmatprep.subr.bf16.mxu0 %v3894
          %4522 = vmatpush2.bf16.msra.mxu0 %v3893
          %4523 = vmatprep.subr.bf16.mxu0 %v3890
          %4524 = vmatpush2.bf16.msra.mxu0 %v3889
          %4525 = vmatprep.subr.bf16.mxu0 %v3886
          %4526 = vmatpush2.bf16.msra.mxu0 %v3885
          %4527 = vmatprep.subr.bf16.mxu0 %v3882
          %4528 = vmatpush2.bf16.msra.mxu0 %v3881
          %4529 = vmatprep.subr.bf16.mxu0 %v3878
          %4530 = vmatpush2.bf16.msra.mxu0 %v3877
          %4531 = vmatprep.subr.bf16.mxu0 %v3874
          %4532 = vmatpush2.bf16.msra.mxu0 %v3873
          %4533 = vmatprep.subr.bf16.mxu0 %v3870
          %4534 = vmatpush2.bf16.msra.mxu0 %v3869
          %4535 = vmatprep.subr.bf16.mxu0 %v3866
          %4536 = vmatpush2.bf16.msra.mxu0 %v3865
          %4537 = vmatprep.mubr.bf16.mxu0 %v2737
          %4538 = vmatmul.mubr.bf16.gmra.mxu0 %v2736
          %v4539 = vpop.f32.mrf.mxu0
          %v4540 = vadd.f32 %v4499, %v4539
          %v4541 = vpop.f32.mrf.mxu0
          %v4542 = vadd.f32 %v4501, %v4541
          %v4543 = vpop.f32.mrf.mxu0
          %v4544 = vpop.f32.mrf.mxu0
          %4545 = vdwg.mxu0
          %4546 = vmatprep.subr.bf16.mxu0 %v3926
          %4547 = vmatpush1.bf16.msra.mxu0 %v3925
          %4548 = vmatprep.subr.bf16.mxu0 %v3922
          %4549 = vmatpush1.bf16.msra.mxu0 %v3921
          %4550 = vmatprep.subr.bf16.mxu0 %v3918
          %4551 = vmatpush1.bf16.msra.mxu0 %v3917
          %4552 = vmatprep.subr.bf16.mxu0 %v3914
          %4553 = vmatpush1.bf16.msra.mxu0 %v3913
          %4554 = vmatprep.subr.bf16.mxu0 %v3910
          %4555 = vmatpush1.bf16.msra.mxu0 %v3909
          %4556 = vmatprep.subr.bf16.mxu0 %v3906
          %4557 = vmatpush1.bf16.msra.mxu0 %v3905
          %4558 = vmatprep.subr.bf16.mxu0 %v3902
          %4559 = vmatpush1.bf16.msra.mxu0 %v3901
          %4560 = vmatprep.subr.bf16.mxu0 %v3898
          %4561 = vmatpush1.bf16.msra.mxu0 %v3897
          %4562 = vmatprep.subr.bf16.mxu0 %v3958
          %4563 = vmatpush2.bf16.msra.mxu0 %v3957
          %4564 = vmatprep.subr.bf16.mxu0 %v3954
          %4565 = vmatpush2.bf16.msra.mxu0 %v3953
          %4566 = vmatprep.subr.bf16.mxu0 %v3950
          %4567 = vmatpush2.bf16.msra.mxu0 %v3949
          %4568 = vmatprep.subr.bf16.mxu0 %v3946
          %4569 = vmatpush2.bf16.msra.mxu0 %v3945
          %4570 = vmatprep.subr.bf16.mxu0 %v3942
          %4571 = vmatpush2.bf16.msra.mxu0 %v3941
          %4572 = vmatprep.subr.bf16.mxu0 %v3938
          %4573 = vmatpush2.bf16.msra.mxu0 %v3937
          %4574 = vmatprep.subr.bf16.mxu0 %v3934
          %4575 = vmatpush2.bf16.msra.mxu0 %v3933
          %4576 = vmatprep.subr.bf16.mxu0 %v3930
          %4577 = vmatpush2.bf16.msra.mxu0 %v3929
          %4578 = vmatprep.mubr.bf16.mxu0 %v2739
          %4579 = vmatmul.mubr.bf16.gmra.mxu0 %v2738
          %v4580 = vpop.f32.mrf.mxu0
          %v4581 = vadd.f32 %v4540, %v4580
          %v4582 = vpop.f32.mrf.mxu0
          %v4583 = vadd.f32 %v4542, %v4582
          %v4584 = vpop.f32.mrf.mxu0
          %v4585 = vpop.f32.mrf.mxu0
          %4586 = vdwg.mxu0
          %4587 = vmatprep.subr.bf16.mxu0 %v3990
          %4588 = vmatpush1.bf16.msra.mxu0 %v3989
          %4589 = vmatprep.subr.bf16.mxu0 %v3986
          %4590 = vmatpush1.bf16.msra.mxu0 %v3985
          %4591 = vmatprep.subr.bf16.mxu0 %v3982
          %4592 = vmatpush1.bf16.msra.mxu0 %v3981
          %4593 = vmatprep.subr.bf16.mxu0 %v3978
          %4594 = vmatpush1.bf16.msra.mxu0 %v3977
          %4595 = vmatprep.subr.bf16.mxu0 %v3974
          %4596 = vmatpush1.bf16.msra.mxu0 %v3973
          %4597 = vmatprep.subr.bf16.mxu0 %v3970
          %4598 = vmatpush1.bf16.msra.mxu0 %v3969
          %4599 = vmatprep.subr.bf16.mxu0 %v3966
          %4600 = vmatpush1.bf16.msra.mxu0 %v3965
          %4601 = vmatprep.subr.bf16.mxu0 %v3962
          %4602 = vmatpush1.bf16.msra.mxu0 %v3961
          %4603 = vmatprep.subr.bf16.mxu0 %v4022
          %4604 = vmatpush2.bf16.msra.mxu0 %v4021
          %4605 = vmatprep.subr.bf16.mxu0 %v4018
          %4606 = vmatpush2.bf16.msra.mxu0 %v4017
          %4607 = vmatprep.subr.bf16.mxu0 %v4014
          %4608 = vmatpush2.bf16.msra.mxu0 %v4013
          %4609 = vmatprep.subr.bf16.mxu0 %v4010
          %4610 = vmatpush2.bf16.msra.mxu0 %v4009
          %4611 = vmatprep.subr.bf16.mxu0 %v4006
          %4612 = vmatpush2.bf16.msra.mxu0 %v4005
          %4613 = vmatprep.subr.bf16.mxu0 %v4002
          %4614 = vmatpush2.bf16.msra.mxu0 %v4001
          %4615 = vmatprep.subr.bf16.mxu0 %v3998
          %4616 = vmatpush2.bf16.msra.mxu0 %v3997
          %4617 = vmatprep.subr.bf16.mxu0 %v3994
          %4618 = vmatpush2.bf16.msra.mxu0 %v3993
          %4619 = vmatprep.mubr.bf16.mxu0 %v2741
          %4620 = vmatmul.mubr.bf16.gmra.mxu0 %v2740
          %v4621 = vpop.f32.mrf.mxu0
          %v4622 = vadd.f32 %v4581, %v4621
          %v4623 = vpop.f32.mrf.mxu0
          %v4624 = vadd.f32 %v4583, %v4623
          %v4625 = vpop.f32.mrf.mxu0
          %v4626 = vpop.f32.mrf.mxu0
          %4627 = vdwg.mxu0
          %v4628 = vmax.f32 %v4458, 0.0
          %v4629 = vmax.f32 %v4460, 0.0
          %v4630 = vmax.f32 %v4622, 0.0
          %v4631 = vmax.f32 %v4624, 0.0
          %v4632 = vpack.c.bf16 %v4628, %v4628
          %v4633 = vpack.c.bf16 %v4629, %v4629
          %v4634 = vpack.c.bf16 %v4630, %v4630
          %v4635 = vpack.c.bf16 %v4631, %v4631
          %v4636 = vld [vmem:[%s9] sm:$0xff]
          %v4637 = vld [vmem:[%s9 + $0x8] sm:$0xff]
          %v4638 = vld [vmem:[%s9 + $0x10] sm:$0xff]
          %v4639 = vld [vmem:[%s9 + $0x18] sm:$0xff]
          %v4640 = vld [vmem:[%s9 + $0x20] sm:$0xff]
          %v4641 = vld [vmem:[%s9 + $0x28] sm:$0xff]
          %v4642 = vld [vmem:[%s9 + $0x30] sm:$0xff]
          %v4643 = vld [vmem:[%s9 + $0x38] sm:$0xff]
          %v4644 = vld [vmem:[%s9 + $0x40] sm:$0xff]
          %v4645 = vld [vmem:[%s9 + $0x48] sm:$0xff]
          %v4646 = vld [vmem:[%s9 + $0x50] sm:$0xff]
          %v4647 = vld [vmem:[%s9 + $0x58] sm:$0xff]
          %v4648 = vld [vmem:[%s9 + $0x60] sm:$0xff]
          %v4649 = vld [vmem:[%s9 + $0x68] sm:$0xff]
          %v4650 = vld [vmem:[%s9 + $0x70] sm:$0xff]
          %v4651 = vld [vmem:[%s9 + $0x78] sm:$0xff]
          %v4652 = vld [vmem:[%s9 + $0x80] sm:$0xff]
          %v4653 = vld [vmem:[%s9 + $0x88] sm:$0xff]
          %v4654 = vld [vmem:[%s9 + $0x90] sm:$0xff]
          %v4655 = vld [vmem:[%s9 + $0x98] sm:$0xff]
          %v4656 = vld [vmem:[%s9 + $0xa0] sm:$0xff]
          %v4657 = vld [vmem:[%s9 + $0xa8] sm:$0xff]
          %v4658 = vld [vmem:[%s9 + $0xb0] sm:$0xff]
          %v4659 = vld [vmem:[%s9 + $0xb8] sm:$0xff]
          %v4660 = vld [vmem:[%s9 + $0xc0] sm:$0xff]
          %v4661 = vld [vmem:[%s9 + $0xc8] sm:$0xff]
          %v4662 = vld [vmem:[%s9 + $0xd0] sm:$0xff]
          %v4663 = vld [vmem:[%s9 + $0xd8] sm:$0xff]
          %v4664 = vld [vmem:[%s9 + $0xe0] sm:$0xff]
          %v4665 = vld [vmem:[%s9 + $0xe8] sm:$0xff]
          %v4666 = vld [vmem:[%s9 + $0xf0] sm:$0xff]
          %v4667 = vld [vmem:[%s9 + $0xf8] sm:$0xff]
          %v4668 = vld [vmem:[%s9 + $0x100] sm:$0xff]
          %v4669 = vld [vmem:[%s9 + $0x108] sm:$0xff]
          %v4670 = vld [vmem:[%s9 + $0x110] sm:$0xff]
          %v4671 = vld [vmem:[%s9 + $0x118] sm:$0xff]
          %v4672 = vld [vmem:[%s9 + $0x120] sm:$0xff]
          %v4673 = vld [vmem:[%s9 + $0x128] sm:$0xff]
          %v4674 = vld [vmem:[%s9 + $0x130] sm:$0xff]
          %v4675 = vld [vmem:[%s9 + $0x138] sm:$0xff]
          %v4676 = vld [vmem:[%s9 + $0x140] sm:$0xff]
          %v4677 = vld [vmem:[%s9 + $0x148] sm:$0xff]
          %v4678 = vld [vmem:[%s9 + $0x150] sm:$0xff]
          %v4679 = vld [vmem:[%s9 + $0x158] sm:$0xff]
          %v4680 = vld [vmem:[%s9 + $0x160] sm:$0xff]
          %v4681 = vld [vmem:[%s9 + $0x168] sm:$0xff]
          %v4682 = vld [vmem:[%s9 + $0x170] sm:$0xff]
          %v4683 = vld [vmem:[%s9 + $0x178] sm:$0xff]
          %v4684 = vld [vmem:[%s9 + $0x180] sm:$0xff]
          %v4685 = vld [vmem:[%s9 + $0x188] sm:$0xff]
          %v4686 = vld [vmem:[%s9 + $0x190] sm:$0xff]
          %v4687 = vld [vmem:[%s9 + $0x198] sm:$0xff]
          %v4688 = vld [vmem:[%s9 + $0x1a0] sm:$0xff]
          %v4689 = vld [vmem:[%s9 + $0x1a8] sm:$0xff]
          %v4690 = vld [vmem:[%s9 + $0x1b0] sm:$0xff]
          %v4691 = vld [vmem:[%s9 + $0x1b8] sm:$0xff]
          %v4692 = vld [vmem:[%s9 + $0x1c0] sm:$0xff]
          %v4693 = vld [vmem:[%s9 + $0x1c8] sm:$0xff]
          %v4694 = vld [vmem:[%s9 + $0x1d0] sm:$0xff]
          %v4695 = vld [vmem:[%s9 + $0x1d8] sm:$0xff]
          %v4696 = vld [vmem:[%s9 + $0x1e0] sm:$0xff]
          %v4697 = vld [vmem:[%s9 + $0x1e8] sm:$0xff]
          %v4698 = vld [vmem:[%s9 + $0x1f0] sm:$0xff]
          %v4699 = vld [vmem:[%s9 + $0x1f8] sm:$0xff]
          %v4700 = vld [vmem:[%s10] sm:$0x3]
          %v4765 = vunpack.c.l.b16 %v4636
          %v4766 = vunpack.c.h.b16 %v4636
          %v4767 = vunpack.c.l.b16 %v4637
          %v4768 = vunpack.c.h.b16 %v4637
          %v4769 = vunpack.c.l.b16 %v4638
          %v4770 = vunpack.c.h.b16 %v4638
          %v4771 = vunpack.c.l.b16 %v4639
          %v4772 = vunpack.c.h.b16 %v4639
          %v4773 = vunpack.c.l.b16 %v4640
          %v4774 = vunpack.c.h.b16 %v4640
          %v4775 = vunpack.c.l.b16 %v4641
          %v4776 = vunpack.c.h.b16 %v4641
          %v4777 = vunpack.c.l.b16 %v4642
          %v4778 = vunpack.c.h.b16 %v4642
          %v4779 = vunpack.c.l.b16 %v4643
          %v4780 = vunpack.c.h.b16 %v4643
          %v4781 = vunpack.c.l.b16 %v4644
          %v4782 = vunpack.c.h.b16 %v4644
          %v4783 = vunpack.c.l.b16 %v4645
          %v4784 = vunpack.c.h.b16 %v4645
          %v4785 = vunpack.c.l.b16 %v4646
          %v4786 = vunpack.c.h.b16 %v4646
          %v4787 = vunpack.c.l.b16 %v4647
          %v4788 = vunpack.c.h.b16 %v4647
          %v4789 = vunpack.c.l.b16 %v4648
          %v4790 = vunpack.c.h.b16 %v4648
          %v4791 = vunpack.c.l.b16 %v4649
          %v4792 = vunpack.c.h.b16 %v4649
          %v4793 = vunpack.c.l.b16 %v4650
          %v4794 = vunpack.c.h.b16 %v4650
          %v4795 = vunpack.c.l.b16 %v4651
          %v4796 = vunpack.c.h.b16 %v4651
          %v4797 = vunpack.c.l.b16 %v4652
          %v4798 = vunpack.c.h.b16 %v4652
          %v4799 = vunpack.c.l.b16 %v4653
          %v4800 = vunpack.c.h.b16 %v4653
          %v4801 = vunpack.c.l.b16 %v4654
          %v4802 = vunpack.c.h.b16 %v4654
          %v4803 = vunpack.c.l.b16 %v4655
          %v4804 = vunpack.c.h.b16 %v4655
          %v4805 = vunpack.c.l.b16 %v4656
          %v4806 = vunpack.c.h.b16 %v4656
          %v4807 = vunpack.c.l.b16 %v4657
          %v4808 = vunpack.c.h.b16 %v4657
          %v4809 = vunpack.c.l.b16 %v4658
          %v4810 = vunpack.c.h.b16 %v4658
          %v4811 = vunpack.c.l.b16 %v4659
          %v4812 = vunpack.c.h.b16 %v4659
          %v4813 = vunpack.c.l.b16 %v4660
          %v4814 = vunpack.c.h.b16 %v4660
          %v4815 = vunpack.c.l.b16 %v4661
          %v4816 = vunpack.c.h.b16 %v4661
          %v4817 = vunpack.c.l.b16 %v4662
          %v4818 = vunpack.c.h.b16 %v4662
          %v4819 = vunpack.c.l.b16 %v4663
          %v4820 = vunpack.c.h.b16 %v4663
          %v4821 = vunpack.c.l.b16 %v4664
          %v4822 = vunpack.c.h.b16 %v4664
          %v4823 = vunpack.c.l.b16 %v4665
          %v4824 = vunpack.c.h.b16 %v4665
          %v4825 = vunpack.c.l.b16 %v4666
          %v4826 = vunpack.c.h.b16 %v4666
          %v4827 = vunpack.c.l.b16 %v4667
          %v4828 = vunpack.c.h.b16 %v4667
          %v4829 = vunpack.c.l.b16 %v4668
          %v4830 = vunpack.c.h.b16 %v4668
          %v4831 = vunpack.c.l.b16 %v4669
          %v4832 = vunpack.c.h.b16 %v4669
          %v4833 = vunpack.c.l.b16 %v4670
          %v4834 = vunpack.c.h.b16 %v4670
          %v4835 = vunpack.c.l.b16 %v4671
          %v4836 = vunpack.c.h.b16 %v4671
          %v4837 = vunpack.c.l.b16 %v4672
          %v4838 = vunpack.c.h.b16 %v4672
          %v4839 = vunpack.c.l.b16 %v4673
          %v4840 = vunpack.c.h.b16 %v4673
          %v4841 = vunpack.c.l.b16 %v4674
          %v4842 = vunpack.c.h.b16 %v4674
          %v4843 = vunpack.c.l.b16 %v4675
          %v4844 = vunpack.c.h.b16 %v4675
          %v4845 = vunpack.c.l.b16 %v4676
          %v4846 = vunpack.c.h.b16 %v4676
          %v4847 = vunpack.c.l.b16 %v4677
          %v4848 = vunpack.c.h.b16 %v4677
          %v4849 = vunpack.c.l.b16 %v4678
          %v4850 = vunpack.c.h.b16 %v4678
          %v4851 = vunpack.c.l.b16 %v4679
          %v4852 = vunpack.c.h.b16 %v4679
          %v4853 = vunpack.c.l.b16 %v4680
          %v4854 = vunpack.c.h.b16 %v4680
          %v4855 = vunpack.c.l.b16 %v4681
          %v4856 = vunpack.c.h.b16 %v4681
          %v4857 = vunpack.c.l.b16 %v4682
          %v4858 = vunpack.c.h.b16 %v4682
          %v4859 = vunpack.c.l.b16 %v4683
          %v4860 = vunpack.c.h.b16 %v4683
          %v4861 = vunpack.c.l.b16 %v4684
          %v4862 = vunpack.c.h.b16 %v4684
          %v4863 = vunpack.c.l.b16 %v4685
          %v4864 = vunpack.c.h.b16 %v4685
          %v4865 = vunpack.c.l.b16 %v4686
          %v4866 = vunpack.c.h.b16 %v4686
          %v4867 = vunpack.c.l.b16 %v4687
          %v4868 = vunpack.c.h.b16 %v4687
          %v4869 = vunpack.c.l.b16 %v4688
          %v4870 = vunpack.c.h.b16 %v4688
          %v4871 = vunpack.c.l.b16 %v4689
          %v4872 = vunpack.c.h.b16 %v4689
          %v4873 = vunpack.c.l.b16 %v4690
          %v4874 = vunpack.c.h.b16 %v4690
          %v4875 = vunpack.c.l.b16 %v4691
          %v4876 = vunpack.c.h.b16 %v4691
          %v4877 = vunpack.c.l.b16 %v4692
          %v4878 = vunpack.c.h.b16 %v4692
          %v4879 = vunpack.c.l.b16 %v4693
          %v4880 = vunpack.c.h.b16 %v4693
          %v4881 = vunpack.c.l.b16 %v4694
          %v4882 = vunpack.c.h.b16 %v4694
          %v4883 = vunpack.c.l.b16 %v4695
          %v4884 = vunpack.c.h.b16 %v4695
          %v4885 = vunpack.c.l.b16 %v4696
          %v4886 = vunpack.c.h.b16 %v4696
          %v4887 = vunpack.c.l.b16 %v4697
          %v4888 = vunpack.c.h.b16 %v4697
          %v4889 = vunpack.c.l.b16 %v4698
          %v4890 = vunpack.c.h.b16 %v4698
          %v4891 = vunpack.c.l.b16 %v4699
          %v4892 = vunpack.c.h.b16 %v4699
          %v4893 = vpack.c.b16 %v4767, %v4765
          %v4894 = vpack.c.b16 %v4768, %v4766
          %v4895 = vpack.c.b16 %v4771, %v4769
          %v4896 = vpack.c.b16 %v4772, %v4770
          %v4897 = vpack.c.b16 %v4775, %v4773
          %v4898 = vpack.c.b16 %v4776, %v4774
          %v4899 = vpack.c.b16 %v4779, %v4777
          %v4900 = vpack.c.b16 %v4780, %v4778
          %v4901 = vpack.c.b16 %v4783, %v4781
          %v4902 = vpack.c.b16 %v4784, %v4782
          %v4903 = vpack.c.b16 %v4787, %v4785
          %v4904 = vpack.c.b16 %v4788, %v4786
          %v4905 = vpack.c.b16 %v4791, %v4789
          %v4906 = vpack.c.b16 %v4792, %v4790
          %v4907 = vpack.c.b16 %v4795, %v4793
          %v4908 = vpack.c.b16 %v4796, %v4794
          %v4909 = vpack.c.b16 %v4799, %v4797
          %v4910 = vpack.c.b16 %v4800, %v4798
          %v4911 = vpack.c.b16 %v4803, %v4801
          %v4912 = vpack.c.b16 %v4804, %v4802
          %v4913 = vpack.c.b16 %v4807, %v4805
          %v4914 = vpack.c.b16 %v4808, %v4806
          %v4915 = vpack.c.b16 %v4811, %v4809
          %v4916 = vpack.c.b16 %v4812, %v4810
          %v4917 = vpack.c.b16 %v4815, %v4813
          %v4918 = vpack.c.b16 %v4816, %v4814
          %v4919 = vpack.c.b16 %v4819, %v4817
          %v4920 = vpack.c.b16 %v4820, %v4818
          %v4921 = vpack.c.b16 %v4823, %v4821
          %v4922 = vpack.c.b16 %v4824, %v4822
          %v4923 = vpack.c.b16 %v4827, %v4825
          %v4924 = vpack.c.b16 %v4828, %v4826
          %v4925 = vpack.c.b16 %v4831, %v4829
          %v4926 = vpack.c.b16 %v4832, %v4830
          %v4927 = vpack.c.b16 %v4835, %v4833
          %v4928 = vpack.c.b16 %v4836, %v4834
          %v4929 = vpack.c.b16 %v4839, %v4837
          %v4930 = vpack.c.b16 %v4840, %v4838
          %v4931 = vpack.c.b16 %v4843, %v4841
          %v4932 = vpack.c.b16 %v4844, %v4842
          %v4933 = vpack.c.b16 %v4847, %v4845
          %v4934 = vpack.c.b16 %v4848, %v4846
          %v4935 = vpack.c.b16 %v4851, %v4849
          %v4936 = vpack.c.b16 %v4852, %v4850
          %v4937 = vpack.c.b16 %v4855, %v4853
          %v4938 = vpack.c.b16 %v4856, %v4854
          %v4939 = vpack.c.b16 %v4859, %v4857
          %v4940 = vpack.c.b16 %v4860, %v4858
          %v4941 = vpack.c.b16 %v4863, %v4861
          %v4942 = vpack.c.b16 %v4864, %v4862
          %v4943 = vpack.c.b16 %v4867, %v4865
          %v4944 = vpack.c.b16 %v4868, %v4866
          %v4945 = vpack.c.b16 %v4871, %v4869
          %v4946 = vpack.c.b16 %v4872, %v4870
          %v4947 = vpack.c.b16 %v4875, %v4873
          %v4948 = vpack.c.b16 %v4876, %v4874
          %v4949 = vpack.c.b16 %v4879, %v4877
          %v4950 = vpack.c.b16 %v4880, %v4878
          %v4951 = vpack.c.b16 %v4883, %v4881
          %v4952 = vpack.c.b16 %v4884, %v4882
          %v4953 = vpack.c.b16 %v4887, %v4885
          %v4954 = vpack.c.b16 %v4888, %v4886
          %v4955 = vpack.c.b16 %v4891, %v4889
          %v4956 = vpack.c.b16 %v4892, %v4890
          %v5022 = vlaneseq
          %v5023 = vshrl.u32 %v5022, 7
          %v5024 = vsub.s32 0, %v5023
          %v5025 = vrot.slane %v4700, %v5024
          %v5026 = vlaneseq
          %v5027 = vshrl.u32 %v5026, 7
          %v5028 = vsub.s32 1, %v5027
          %v5029 = vrot.slane %v4700, %v5028
          %5032 = vmatprep.subr.bf16.mxu0 %v4908
          %5033 = vmatpush1.bf16.msra.mxu0 %v4907
          %5034 = vmatprep.subr.bf16.mxu0 %v4906
          %5035 = vmatpush1.bf16.msra.mxu0 %v4905
          %5036 = vmatprep.subr.bf16.mxu0 %v4904
          %5037 = vmatpush1.bf16.msra.mxu0 %v4903
          %5038 = vmatprep.subr.bf16.mxu0 %v4902
          %5039 = vmatpush1.bf16.msra.mxu0 %v4901
          %5040 = vmatprep.subr.bf16.mxu0 %v4900
          %5041 = vmatpush1.bf16.msra.mxu0 %v4899
          %5042 = vmatprep.subr.bf16.mxu0 %v4898
          %5043 = vmatpush1.bf16.msra.mxu0 %v4897
          %5044 = vmatprep.subr.bf16.mxu0 %v4896
          %5045 = vmatpush1.bf16.msra.mxu0 %v4895
          %5046 = vmatprep.subr.bf16.mxu0 %v4894
          %5047 = vmatpush1.bf16.msra.mxu0 %v4893
          %5048 = vmatprep.subr.bf16.mxu0 %v4924
          %5049 = vmatpush2.bf16.msra.mxu0 %v4923
          %5050 = vmatprep.subr.bf16.mxu0 %v4922
          %5051 = vmatpush2.bf16.msra.mxu0 %v4921
          %5052 = vmatprep.subr.bf16.mxu0 %v4920
          %5053 = vmatpush2.bf16.msra.mxu0 %v4919
          %5054 = vmatprep.subr.bf16.mxu0 %v4918
          %5055 = vmatpush2.bf16.msra.mxu0 %v4917
          %5056 = vmatprep.subr.bf16.mxu0 %v4916
          %5057 = vmatpush2.bf16.msra.mxu0 %v4915
          %5058 = vmatprep.subr.bf16.mxu0 %v4914
          %5059 = vmatpush2.bf16.msra.mxu0 %v4913
          %5060 = vmatprep.subr.bf16.mxu0 %v4912
          %5061 = vmatpush2.bf16.msra.mxu0 %v4911
          %5062 = vmatprep.subr.bf16.mxu0 %v4910
          %5063 = vmatpush2.bf16.msra.mxu0 %v4909
          %5064 = vmatprep.mubr.bf16.mxu0 %v4633
          %5065 = vmatmul.mubr.bf16.gmra.mxu0 %v4632
          %v5066 = vpop.f32.mrf.mxu0
          %v5067 = vadd.f32 %v5025, %v5066
          %v5068 = vpop.f32.mrf.mxu0
          %v5069 = vadd.f32 %v5029, %v5068
          %v5070 = vpop.f32.mrf.mxu0
          %v5071 = vpop.f32.mrf.mxu0
          %5072 = vdwg.mxu0
          %5073 = vmatprep.subr.bf16.mxu0 %v4940
          %5074 = vmatpush1.bf16.msra.mxu0 %v4939
          %5075 = vmatprep.subr.bf16.mxu0 %v4938
          %5076 = vmatpush1.bf16.msra.mxu0 %v4937
          %5077 = vmatprep.subr.bf16.mxu0 %v4936
          %5078 = vmatpush1.bf16.msra.mxu0 %v4935
          %5079 = vmatprep.subr.bf16.mxu0 %v4934
          %5080 = vmatpush1.bf16.msra.mxu0 %v4933
          %5081 = vmatprep.subr.bf16.mxu0 %v4932
          %5082 = vmatpush1.bf16.msra.mxu0 %v4931
          %5083 = vmatprep.subr.bf16.mxu0 %v4930
          %5084 = vmatpush1.bf16.msra.mxu0 %v4929
          %5085 = vmatprep.subr.bf16.mxu0 %v4928
          %5086 = vmatpush1.bf16.msra.mxu0 %v4927
          %5087 = vmatprep.subr.bf16.mxu0 %v4926
          %5088 = vmatpush1.bf16.msra.mxu0 %v4925
          %5089 = vmatprep.subr.bf16.mxu0 %v4956
          %5090 = vmatpush2.bf16.msra.mxu0 %v4955
          %5091 = vmatprep.subr.bf16.mxu0 %v4954
          %5092 = vmatpush2.bf16.msra.mxu0 %v4953
          %5093 = vmatprep.subr.bf16.mxu0 %v4952
          %5094 = vmatpush2.bf16.msra.mxu0 %v4951
          %5095 = vmatprep.subr.bf16.mxu0 %v4950
          %5096 = vmatpush2.bf16.msra.mxu0 %v4949
          %5097 = vmatprep.subr.bf16.mxu0 %v4948
          %5098 = vmatpush2.bf16.msra.mxu0 %v4947
          %5099 = vmatprep.subr.bf16.mxu0 %v4946
          %5100 = vmatpush2.bf16.msra.mxu0 %v4945
          %5101 = vmatprep.subr.bf16.mxu0 %v4944
          %5102 = vmatpush2.bf16.msra.mxu0 %v4943
          %5103 = vmatprep.subr.bf16.mxu0 %v4942
          %5104 = vmatpush2.bf16.msra.mxu0 %v4941
          %5105 = vmatprep.mubr.bf16.mxu0 %v4635
          %5106 = vmatmul.mubr.bf16.gmra.mxu0 %v4634
          %v5107 = vpop.f32.mrf.mxu0
          %v5108 = vadd.f32 %v5067, %v5107
          %v5109 = vpop.f32.mrf.mxu0
          %v5110 = vadd.f32 %v5069, %v5109
          %v5111 = vpop.f32.mrf.mxu0
          %v5112 = vpop.f32.mrf.mxu0
          %5113 = vdwg.mxu0
          %v5114 = vmax.f32 %v5108, 0.0
          %v5115 = vmax.f32 %v5110, 0.0
          %v5116 = vpack.c.bf16 %v5114, %v5114
          %v5117 = vpack.c.bf16 %v5115, %v5115
          %v5118 = vld [vmem:[#allocation7] sm:$0xf]
          %v5119 = vld [vmem:[#allocation7 + $0x4] sm:$0xf]
          %v5120 = vld [vmem:[#allocation7 + $0x8] sm:$0xf]
          %v5121 = vld [vmem:[#allocation7 + $0xc] sm:$0xf]
          %v5122 = vld [vmem:[#allocation7 + $0x10] sm:$0xf]
          %v5123 = vld [vmem:[#allocation7 + $0x14] sm:$0xf]
          %v5124 = vld [vmem:[#allocation7 + $0x18] sm:$0xf]
          %v5125 = vld [vmem:[#allocation7 + $0x1c] sm:$0xf]
          %v5126 = vld [vmem:[#allocation7 + $0x20] sm:$0xf]
          %v5127 = vld [vmem:[#allocation7 + $0x24] sm:$0xf]
          %v5128 = vld [vmem:[#allocation7 + $0x28] sm:$0xf]
          %v5129 = vld [vmem:[#allocation7 + $0x2c] sm:$0xf]
          %v5130 = vld [vmem:[#allocation7 + $0x30] sm:$0xf]
          %v5131 = vld [vmem:[#allocation7 + $0x34] sm:$0xf]
          %v5132 = vld [vmem:[#allocation7 + $0x38] sm:$0xf]
          %v5133 = vld [vmem:[#allocation7 + $0x3c] sm:$0xf]
          %v5134 = vld [vmem:[#allocation7 + $0x40] sm:$0xf]
          %v5135 = vld [vmem:[#allocation7 + $0x44] sm:$0xf]
          %v5136 = vld [vmem:[#allocation7 + $0x48] sm:$0xf]
          %v5137 = vld [vmem:[#allocation7 + $0x4c] sm:$0xf]
          %v5138 = vld [vmem:[#allocation7 + $0x50] sm:$0xf]
          %v5139 = vld [vmem:[#allocation7 + $0x54] sm:$0xf]
          %v5140 = vld [vmem:[#allocation7 + $0x58] sm:$0xf]
          %v5141 = vld [vmem:[#allocation7 + $0x5c] sm:$0xf]
          %v5142 = vld [vmem:[#allocation7 + $0x60] sm:$0xf]
          %v5143 = vld [vmem:[#allocation7 + $0x64] sm:$0xf]
          %v5144 = vld [vmem:[#allocation7 + $0x68] sm:$0xf]
          %v5145 = vld [vmem:[#allocation7 + $0x6c] sm:$0xf]
          %v5146 = vld [vmem:[#allocation7 + $0x70] sm:$0xf]
          %v5147 = vld [vmem:[#allocation7 + $0x74] sm:$0xf]
          %v5148 = vld [vmem:[#allocation7 + $0x78] sm:$0xf]
          %v5149 = vld [vmem:[#allocation7 + $0x7c] sm:$0xf]
          %v5150 = vld [vmem:[%s12] sm:$0x1]
          %v5183 = vunpack.c.l.b16 %v5118
          %v5184 = vunpack.c.l.b16 %v5119
          %v5185 = vunpack.c.l.b16 %v5120
          %v5186 = vunpack.c.l.b16 %v5121
          %v5187 = vunpack.c.l.b16 %v5122
          %v5188 = vunpack.c.l.b16 %v5123
          %v5189 = vunpack.c.l.b16 %v5124
          %v5190 = vunpack.c.l.b16 %v5125
          %v5191 = vunpack.c.l.b16 %v5126
          %v5192 = vunpack.c.l.b16 %v5127
          %v5193 = vunpack.c.l.b16 %v5128
          %v5194 = vunpack.c.l.b16 %v5129
          %v5195 = vunpack.c.l.b16 %v5130
          %v5196 = vunpack.c.l.b16 %v5131
          %v5197 = vunpack.c.l.b16 %v5132
          %v5198 = vunpack.c.l.b16 %v5133
          %v5199 = vunpack.c.l.b16 %v5134
          %v5200 = vunpack.c.l.b16 %v5135
          %v5201 = vunpack.c.l.b16 %v5136
          %v5202 = vunpack.c.l.b16 %v5137
          %v5203 = vunpack.c.l.b16 %v5138
          %v5204 = vunpack.c.l.b16 %v5139
          %v5205 = vunpack.c.l.b16 %v5140
          %v5206 = vunpack.c.l.b16 %v5141
          %v5207 = vunpack.c.l.b16 %v5142
          %v5208 = vunpack.c.l.b16 %v5143
          %v5209 = vunpack.c.l.b16 %v5144
          %v5210 = vunpack.c.l.b16 %v5145
          %v5211 = vunpack.c.l.b16 %v5146
          %v5212 = vunpack.c.l.b16 %v5147
          %v5213 = vunpack.c.l.b16 %v5148
          %v5214 = vunpack.c.l.b16 %v5149
          %v5215 = vpack.c.b16 %v5184, %v5183
          %v5216 = vpack.c.b16 %v5186, %v5185
          %v5217 = vpack.c.b16 %v5188, %v5187
          %v5218 = vpack.c.b16 %v5190, %v5189
          %v5219 = vpack.c.b16 %v5192, %v5191
          %v5220 = vpack.c.b16 %v5194, %v5193
          %v5221 = vpack.c.b16 %v5196, %v5195
          %v5222 = vpack.c.b16 %v5198, %v5197
          %v5223 = vpack.c.b16 %v5200, %v5199
          %v5224 = vpack.c.b16 %v5202, %v5201
          %v5225 = vpack.c.b16 %v5204, %v5203
          %v5226 = vpack.c.b16 %v5206, %v5205
          %v5227 = vpack.c.b16 %v5208, %v5207
          %v5228 = vpack.c.b16 %v5210, %v5209
          %v5229 = vpack.c.b16 %v5212, %v5211
          %v5230 = vpack.c.b16 %v5214, %v5213
          %5247 = vmatprep.subr.bf16.mxu0 0
          %5248 = vmatpush1.bf16.msra.mxu0 %v5222
          %5249 = vmatprep.subr.bf16.mxu0 0
          %5250 = vmatpush1.bf16.msra.mxu0 %v5221
          %5251 = vmatprep.subr.bf16.mxu0 0
          %5252 = vmatpush1.bf16.msra.mxu0 %v5220
          %5253 = vmatprep.subr.bf16.mxu0 0
          %5254 = vmatpush1.bf16.msra.mxu0 %v5219
          %5255 = vmatprep.subr.bf16.mxu0 0
          %5256 = vmatpush1.bf16.msra.mxu0 %v5218
          %5257 = vmatprep.subr.bf16.mxu0 0
          %5258 = vmatpush1.bf16.msra.mxu0 %v5217
          %5259 = vmatprep.subr.bf16.mxu0 0
          %5260 = vmatpush1.bf16.msra.mxu0 %v5216
          %5261 = vmatprep.subr.bf16.mxu0 0
          %5262 = vmatpush1.bf16.msra.mxu0 %v5215
          %5263 = vmatprep.subr.bf16.mxu0 0
          %5264 = vmatpush2.bf16.msra.mxu0 %v5230
          %5265 = vmatprep.subr.bf16.mxu0 0
          %5266 = vmatpush2.bf16.msra.mxu0 %v5229
          %5267 = vmatprep.subr.bf16.mxu0 0
          %5268 = vmatpush2.bf16.msra.mxu0 %v5228
          %5269 = vmatprep.subr.bf16.mxu0 0
          %5270 = vmatpush2.bf16.msra.mxu0 %v5227
          %5271 = vmatprep.subr.bf16.mxu0 0
          %5272 = vmatpush2.bf16.msra.mxu0 %v5226
          %5273 = vmatprep.subr.bf16.mxu0 0
          %5274 = vmatpush2.bf16.msra.mxu0 %v5225
          %5275 = vmatprep.subr.bf16.mxu0 0
          %5276 = vmatpush2.bf16.msra.mxu0 %v5224
          %5277 = vmatprep.subr.bf16.mxu0 0
          %5278 = vmatpush2.bf16.msra.mxu0 %v5223
          %5279 = vmatprep.mubr.bf16.mxu0 %v5117
          %5280 = vmatmul.mubr.bf16.gmra.mxu0 %v5116
          %v5281 = vpop.f32.mrf.mxu0
          %v5282 = vadd.f32 %v5150, %v5281
          %v5283 = vpop.f32.mrf.mxu0
          %v5284 = vpop.f32.mrf.mxu0
          %v5285 = vpop.f32.mrf.mxu0
          %5286 = vdwg.mxu0
          %v5287 = vlaneseq
          %v5288 = vshrl.u32 %v5287, 7
          %v5289 = vsub.s32 0, %v5288
          %v5290 = vrot.slane %v5282, %v5289
          %5291 = vst [vmem:[%s508] sm:$0xff] %v5290
        $region92: #{classification_layer_forward.2} parent=71 // pred_fallthru
          _
        %p5292 = scmp.lt.s32.totalorder %s30, 1
        %s5293 = scalar_select %p5292, %s30, 1
        %s5294 = smul.addr %s5293, 8
        %s5295 = scalar_lea.vmem %s13, %s5294
        // Predicated region
        $region93: #{classification_layer_forward.2} parent=71 // pred_check
          %p5296 = pneg %p336
        $region94: #{classification_layer_forward.2} parent=71 // pred_check_branch
          %5298 = sbr.rel (%p5296) target = $region96
        $region95: #{classification_layer_forward.2} parent=71 // pred_region
          _
        $region96: #{classification_layer_forward.2} parent=71 // pred_fallthru
          _
      $region72: #{classification_layer_forward.2} parent=5 // pred_fallthru
        _
      %p5299 = scmp.le.s32.totalorder 2, %s21
      // Predicated region
      $region97: #{classification_layer_forward.2} parent=5 // pred_check
        %p5300 = pneg %p5299
      $region98: #{classification_layer_forward.2} parent=5 // pred_check_branch
        %5302 = sbr.rel (%p5300) target = $region100
      $region99: #{classification_layer_forward.2} parent=5 // pred_region
        %s5303 = ssub.s32 %s21, 2
        // Predicated region
        $region101: #{classification_layer_forward.2} parent=99 // pred_check
          %p5304 = pneg %p342
        $region102: #{classification_layer_forward.2} parent=99 // pred_check_branch
          %5306 = sbr.rel (%p5304) target = $region104
        $region103: #{classification_layer_forward.2} parent=99 // pred_region
          %p5307 = scmp.lt.s32.totalorder %s32, 1
          %s5308 = scalar_select %p5307, %s32, 1
          %s5309 = smul.addr %s5308, 8
          %s5310 = scalar_lea.vmem %s13, %s5309
        $region104: #{classification_layer_forward.2} parent=99 // pred_fallthru
          _
      $region100: #{classification_layer_forward.2} parent=5 // pred_fallthru
        _
    $region6: #{classification_layer_forward.2} parent=1 // loop_footer
      %s25 = sadd.s32 1, %s21
    $region7: #{classification_layer_forward.2} parent=1 // loop_footer_branch
      %20 = sbr.rel target = $region3
    $region8: #{classification_layer_forward.2} parent=1 // loop_exit
      _
    %5311 = vsyncpa [#allocation4], 1
    %s5312 = scalar_lea.sflag [#allocation4], 1
    %5313 = vsyncpa %s5312, 1
    %5314 = vsyncpa [#allocation6], 1

// kernel: classification_layer_forward.3
$region0: #{classification_layer_forward.3}
  #allocation0 [shape = 'u32[]', space=smem, size = 0x4, offset = 0x4, fixed_abs, tag = 'smem constant byte address 0x4 - core index']
  #allocation1 [shape = 'u32[144,128]{1,0:T(1,128)}', space=vmem, size = 0x12000, scoped, tag = 'internal scratch']
  #allocation2 [shape = 'f32[1,1024]{1,0:T(1,128)}', space=vmem, size = 0x1000, scoped, tag = 'scratch operand']
  %s0 = inlined_call_operand.vmem [shape: f32[2,512,3], index: 0, kind: input, shape index: {}]
  %s1 = inlined_call_operand.vmem [shape: bf16[2,3,64], index: 1, kind: input, shape index: {}]
  %s2 = inlined_call_operand.vmem [shape: f32[1,64], index: 2, kind: input, shape index: {}]
  %s3 = inlined_call_operand.vmem [shape: bf16[64,128], index: 3, kind: input, shape index: {}]
  %s4 = inlined_call_operand.vmem [shape: f32[1,128], index: 4, kind: input, shape index: {}]
  %s5 = inlined_call_operand.vmem [shape: bf16[128,1024], index: 5, kind: input, shape index: {}]
  %s6 = inlined_call_operand.vmem [shape: f32[1,1024], index: 6, kind: input, shape index: {}]
  %s7 = inlined_call_operand.vmem [shape: bf16[1024,512], index: 7, kind: input, shape index: {}]
  %s8 = inlined_call_operand.vmem [shape: f32[1,512], index: 8, kind: input, shape index: {}]
  %s9 = inlined_call_operand.vmem [shape: bf16[512,256], index: 9, kind: input, shape index: {}]
  %s10 = inlined_call_operand.vmem [shape: f32[1,256], index: 10, kind: input, shape index: {}]
  %s11 = inlined_call_operand.vmem [shape: bf16[256,128], index: 11, kind: input, shape index: {}]
  %s12 = inlined_call_operand.vmem [shape: f32[1,128], index: 12, kind: input, shape index: {}]
  %s13 = inlined_call_operand.vmem [shape: f32[2,8,128], index: 13, kind: output, shape index: {}]
  %s14 = sld [smem:[#allocation0]]
  $region93: #{classification_layer_forward.3} parent=0
    _
  %s16 = ssub.s32 1, %s14
  %s17 = scalar_select 0, %s16, %s14
  loop: start=0, step=1, limit=6
  $region2: #{classification_layer_forward.3} parent=0 // loop_pre_header
    _
  $region3: #{classification_layer_forward.3} parent=0 // loop_header
    %s19 = sphi 0, %s23
    %p20 = scmp.ge.s32.totalorder %s19, 6
    %s26 = sphi 0, %s38
    %s27 = sphi 0, %s34
    %s28 = sphi 0, %s26
    %s29 = sphi 0, %s27
    %s30 = sphi 0, %s28
    %s31 = sphi 0, %s29
    %s43 = sphi 0, %s45
    %s46 = sphi 0, %s43
    %s47 = sphi 0, %s46
    %s63 = sphi 0, %s47
    %s69 = sphi 0, %s71
    %s72 = sphi 0, %s69
    %s73 = sphi 0, %s72
    %s89 = sphi 0, %s73
    %s93 = sphi 0, %s93
    %s95 = sphi 0, %s93
    %s96 = sphi 0, %s95
    %s110 = sphi 0, %s96
    %s114 = sphi 0, %s114
    %s116 = sphi 0, %s114
    %s117 = sphi 0, %s116
    %s131 = sphi 0, %s117
    %s135 = sphi 0, %s135
    %s137 = sphi 0, %s135
    %s138 = sphi 0, %s137
    %s152 = sphi 0, %s138
    %s156 = sphi 0, %s156
    %s158 = sphi 0, %s156
    %s159 = sphi 0, %s158
    %s173 = sphi 0, %s159
    %s177 = sphi 0, %s177
    %s179 = sphi 0, %s177
    %s180 = sphi 0, %s179
    %s194 = sphi 0, %s180
    %s198 = sphi 0, %s198
    %s200 = sphi 0, %s198
    %s201 = sphi 0, %s200
    %s215 = sphi 0, %s201
    %s219 = sphi 0, %s219
    %s221 = sphi 0, %s219
    %s222 = sphi 0, %s221
    %s236 = sphi 0, %s222
    %s240 = sphi 0, %s240
    %s242 = sphi 0, %s240
    %s243 = sphi 0, %s242
    %s257 = sphi 0, %s243
    %s261 = sphi 0, %s261
    %s263 = sphi 0, %s261
    %s264 = sphi 0, %s263
    %s278 = sphi 0, %s264
    %s282 = sphi 0, %s282
    %s284 = sphi 0, %s282
    %s285 = sphi 0, %s284
    %s299 = sphi 0, %s285
    %s303 = sphi 0, %s303
    %s305 = sphi 0, %s303
    %s306 = sphi 0, %s305
    %s320 = sphi 0, %s306
    %s326 = sphi 0, %s328
    %s329 = sphi 0, %s326
    %s330 = sphi 0, %s329
    %s346 = sphi 0, %s330
  $region4: #{classification_layer_forward.3} parent=0 // loop_header_branch
    %22 = sbr.rel (%p20) target = $region8
  $region5: #{classification_layer_forward.3} parent=0 // loop_body
    %s24 = ssub.s32 %s19, 1
    %s25 = ssub.s32 %s19, 2
    %s32 = sadd.s32 1, %s27
    %p33 = scmp.ge.s32.totalorder %s32, 2
    %s34 = scalar_select %p33, 0, %s32
    %s35 = sadd.s32 1, %s26
    %s36 = scalar_select %p33, %s35, %s26
    %p37 = scmp.ge.s32.totalorder %s36, 2
    %s38 = scalar_select %p37, 0, %s36
    %s39 = ssub.s32 %s26, %s38
    %s40 = ssub.s32 %s27, %s34
    %s41 = sor.u32 %s39, %s40
    %p42 = scmp.eq.s32.totalorder %s41, 0
    %s44 = sadd.s32 %s43, 1
    %s45 = scalar_select %p42, %s43, %s44
    %p48 = pneg %p42
    %p49 = scmp.eq.s32.totalorder %s19, 3
    %p50 = por %p48, %p49
    %p51 = scmp.ne.s32.totalorder %s43, %s46
    %p52 = scmp.eq.s32.totalorder %s19, 0
    %p53 = por %p51, %p52
    %p54 = scmp.ne.s32.totalorder %s43, %s46
    %p55 = scmp.eq.s32.totalorder %s24, 3
    %p56 = por %p54, %p55
    %p57 = scmp.ne.s32.totalorder %s46, %s47
    %p58 = scmp.eq.s32.totalorder %s24, 0
    %p59 = por %p57, %p58
    %p60 = scmp.ne.s32.totalorder %s46, %s47
    %p61 = scmp.eq.s32.totalorder %s25, 3
    %p62 = por %p60, %p61
    %p64 = scmp.ne.s32.totalorder %s47, %s63
    %p65 = scmp.eq.s32.totalorder %s25, 0
    %p66 = por %p64, %p65
    %s67 = ssub.s32 %s26, %s38
    %p68 = scmp.eq.s32.totalorder %s67, 0
    %s70 = sadd.s32 %s69, 1
    %s71 = scalar_select %p68, %s69, %s70
    %p74 = pneg %p68
    %p75 = scmp.eq.s32.totalorder %s19, 3
    %p76 = por %p74, %p75
    %p77 = scmp.ne.s32.totalorder %s69, %s72
    %p78 = scmp.eq.s32.totalorder %s19, 0
    %p79 = por %p77, %p78
    %p80 = scmp.ne.s32.totalorder %s69, %s72
    %p81 = scmp.eq.s32.totalorder %s24, 3
    %p82 = por %p80, %p81
    %p83 = scmp.ne.s32.totalorder %s72, %s73
    %p84 = scmp.eq.s32.totalorder %s24, 0
    %p85 = por %p83, %p84
    %p86 = scmp.ne.s32.totalorder %s72, %s73
    %p87 = scmp.eq.s32.totalorder %s25, 3
    %p88 = por %p86, %p87
    %p90 = scmp.ne.s32.totalorder %s73, %s89
    %p91 = scmp.eq.s32.totalorder %s25, 0
    %p92 = por %p90, %p91
    %s94 = sadd.s32 %s93, 1
    %p97 = scmp.eq.s32.totalorder %s19, 3
    %p98 = scmp.ne.s32.totalorder %s93, %s95
    %p99 = scmp.eq.s32.totalorder %s19, 0
    %p100 = por %p98, %p99
    %p101 = scmp.ne.s32.totalorder %s93, %s95
    %p102 = scmp.eq.s32.totalorder %s24, 3
    %p103 = por %p101, %p102
    %p104 = scmp.ne.s32.totalorder %s95, %s96
    %p105 = scmp.eq.s32.totalorder %s24, 0
    %p106 = por %p104, %p105
    %p107 = scmp.ne.s32.totalorder %s95, %s96
    %p108 = scmp.eq.s32.totalorder %s25, 3
    %p109 = por %p107, %p108
    %p111 = scmp.ne.s32.totalorder %s96, %s110
    %p112 = scmp.eq.s32.totalorder %s25, 0
    %p113 = por %p111, %p112
    %s115 = sadd.s32 %s114, 1
    %p118 = scmp.eq.s32.totalorder %s19, 3
    %p119 = scmp.ne.s32.totalorder %s114, %s116
    %p120 = scmp.eq.s32.totalorder %s19, 0
    %p121 = por %p119, %p120
    %p122 = scmp.ne.s32.totalorder %s114, %s116
    %p123 = scmp.eq.s32.totalorder %s24, 3
    %p124 = por %p122, %p123
    %p125 = scmp.ne.s32.totalorder %s116, %s117
    %p126 = scmp.eq.s32.totalorder %s24, 0
    %p127 = por %p125, %p126
    %p128 = scmp.ne.s32.totalorder %s116, %s117
    %p129 = scmp.eq.s32.totalorder %s25, 3
    %p130 = por %p128, %p129
    %p132 = scmp.ne.s32.totalorder %s117, %s131
    %p133 = scmp.eq.s32.totalorder %s25, 0
    %p134 = por %p132, %p133
    %s136 = sadd.s32 %s135, 1
    %p139 = scmp.eq.s32.totalorder %s19, 3
    %p140 = scmp.ne.s32.totalorder %s135, %s137
    %p141 = scmp.eq.s32.totalorder %s19, 0
    %p142 = por %p140, %p141
    %p143 = scmp.ne.s32.totalorder %s135, %s137
    %p144 = scmp.eq.s32.totalorder %s24, 3
    %p145 = por %p143, %p144
    %p146 = scmp.ne.s32.totalorder %s137, %s138
    %p147 = scmp.eq.s32.totalorder %s24, 0
    %p148 = por %p146, %p147
    %p149 = scmp.ne.s32.totalorder %s137, %s138
    %p150 = scmp.eq.s32.totalorder %s25, 3
    %p151 = por %p149, %p150
    %p153 = scmp.ne.s32.totalorder %s138, %s152
    %p154 = scmp.eq.s32.totalorder %s25, 0
    %p155 = por %p153, %p154
    %s157 = sadd.s32 %s156, 1
    %p160 = scmp.eq.s32.totalorder %s19, 3
    %p161 = scmp.ne.s32.totalorder %s156, %s158
    %p162 = scmp.eq.s32.totalorder %s19, 0
    %p163 = por %p161, %p162
    %p164 = scmp.ne.s32.totalorder %s156, %s158
    %p165 = scmp.eq.s32.totalorder %s24, 3
    %p166 = por %p164, %p165
    %p167 = scmp.ne.s32.totalorder %s158, %s159
    %p168 = scmp.eq.s32.totalorder %s24, 0
    %p169 = por %p167, %p168
    %p170 = scmp.ne.s32.totalorder %s158, %s159
    %p171 = scmp.eq.s32.totalorder %s25, 3
    %p172 = por %p170, %p171
    %p174 = scmp.ne.s32.totalorder %s159, %s173
    %p175 = scmp.eq.s32.totalorder %s25, 0
    %p176 = por %p174, %p175
    %s178 = sadd.s32 %s177, 1
    %p181 = scmp.eq.s32.totalorder %s19, 3
    %p182 = scmp.ne.s32.totalorder %s177, %s179
    %p183 = scmp.eq.s32.totalorder %s19, 0
    %p184 = por %p182, %p183
    %p185 = scmp.ne.s32.totalorder %s177, %s179
    %p186 = scmp.eq.s32.totalorder %s24, 3
    %p187 = por %p185, %p186
    %p188 = scmp.ne.s32.totalorder %s179, %s180
    %p189 = scmp.eq.s32.totalorder %s24, 0
    %p190 = por %p188, %p189
    %p191 = scmp.ne.s32.totalorder %s179, %s180
    %p192 = scmp.eq.s32.totalorder %s25, 3
    %p193 = por %p191, %p192
    %p195 = scmp.ne.s32.totalorder %s180, %s194
    %p196 = scmp.eq.s32.totalorder %s25, 0
    %p197 = por %p195, %p196
    %s199 = sadd.s32 %s198, 1
    %p202 = scmp.eq.s32.totalorder %s19, 3
    %p203 = scmp.ne.s32.totalorder %s198, %s200
    %p204 = scmp.eq.s32.totalorder %s19, 0
    %p205 = por %p203, %p204
    %p206 = scmp.ne.s32.totalorder %s198, %s200
    %p207 = scmp.eq.s32.totalorder %s24, 3
    %p208 = por %p206, %p207
    %p209 = scmp.ne.s32.totalorder %s200, %s201
    %p210 = scmp.eq.s32.totalorder %s24, 0
    %p211 = por %p209, %p210
    %p212 = scmp.ne.s32.totalorder %s200, %s201
    %p213 = scmp.eq.s32.totalorder %s25, 3
    %p214 = por %p212, %p213
    %p216 = scmp.ne.s32.totalorder %s201, %s215
    %p217 = scmp.eq.s32.totalorder %s25, 0
    %p218 = por %p216, %p217
    %s220 = sadd.s32 %s219, 1
    %p223 = scmp.eq.s32.totalorder %s19, 3
    %p224 = scmp.ne.s32.totalorder %s219, %s221
    %p225 = scmp.eq.s32.totalorder %s19, 0
    %p226 = por %p224, %p225
    %p227 = scmp.ne.s32.totalorder %s219, %s221
    %p228 = scmp.eq.s32.totalorder %s24, 3
    %p229 = por %p227, %p228
    %p230 = scmp.ne.s32.totalorder %s221, %s222
    %p231 = scmp.eq.s32.totalorder %s24, 0
    %p232 = por %p230, %p231
    %p233 = scmp.ne.s32.totalorder %s221, %s222
    %p234 = scmp.eq.s32.totalorder %s25, 3
    %p235 = por %p233, %p234
    %p237 = scmp.ne.s32.totalorder %s222, %s236
    %p238 = scmp.eq.s32.totalorder %s25, 0
    %p239 = por %p237, %p238
    %s241 = sadd.s32 %s240, 1
    %p244 = scmp.eq.s32.totalorder %s19, 3
    %p245 = scmp.ne.s32.totalorder %s240, %s242
    %p246 = scmp.eq.s32.totalorder %s19, 0
    %p247 = por %p245, %p246
    %p248 = scmp.ne.s32.totalorder %s240, %s242
    %p249 = scmp.eq.s32.totalorder %s24, 3
    %p250 = por %p248, %p249
    %p251 = scmp.ne.s32.totalorder %s242, %s243
    %p252 = scmp.eq.s32.totalorder %s24, 0
    %p253 = por %p251, %p252
    %p254 = scmp.ne.s32.totalorder %s242, %s243
    %p255 = scmp.eq.s32.totalorder %s25, 3
    %p256 = por %p254, %p255
    %p258 = scmp.ne.s32.totalorder %s243, %s257
    %p259 = scmp.eq.s32.totalorder %s25, 0
    %p260 = por %p258, %p259
    %s262 = sadd.s32 %s261, 1
    %p265 = scmp.eq.s32.totalorder %s19, 3
    %p266 = scmp.ne.s32.totalorder %s261, %s263
    %p267 = scmp.eq.s32.totalorder %s19, 0
    %p268 = por %p266, %p267
    %p269 = scmp.ne.s32.totalorder %s261, %s263
    %p270 = scmp.eq.s32.totalorder %s24, 3
    %p271 = por %p269, %p270
    %p272 = scmp.ne.s32.totalorder %s263, %s264
    %p273 = scmp.eq.s32.totalorder %s24, 0
    %p274 = por %p272, %p273
    %p275 = scmp.ne.s32.totalorder %s263, %s264
    %p276 = scmp.eq.s32.totalorder %s25, 3
    %p277 = por %p275, %p276
    %p279 = scmp.ne.s32.totalorder %s264, %s278
    %p280 = scmp.eq.s32.totalorder %s25, 0
    %p281 = por %p279, %p280
    %s283 = sadd.s32 %s282, 1
    %p286 = scmp.eq.s32.totalorder %s19, 3
    %p287 = scmp.ne.s32.totalorder %s282, %s284
    %p288 = scmp.eq.s32.totalorder %s19, 0
    %p289 = por %p287, %p288
    %p290 = scmp.ne.s32.totalorder %s282, %s284
    %p291 = scmp.eq.s32.totalorder %s24, 3
    %p292 = por %p290, %p291
    %p293 = scmp.ne.s32.totalorder %s284, %s285
    %p294 = scmp.eq.s32.totalorder %s24, 0
    %p295 = por %p293, %p294
    %p296 = scmp.ne.s32.totalorder %s284, %s285
    %p297 = scmp.eq.s32.totalorder %s25, 3
    %p298 = por %p296, %p297
    %p300 = scmp.ne.s32.totalorder %s285, %s299
    %p301 = scmp.eq.s32.totalorder %s25, 0
    %p302 = por %p300, %p301
    %s304 = sadd.s32 %s303, 1
    %p307 = scmp.eq.s32.totalorder %s19, 3
    %p308 = scmp.ne.s32.totalorder %s303, %s305
    %p309 = scmp.eq.s32.totalorder %s19, 0
    %p310 = por %p308, %p309
    %p311 = scmp.ne.s32.totalorder %s303, %s305
    %p312 = scmp.eq.s32.totalorder %s24, 3
    %p313 = por %p311, %p312
    %p314 = scmp.ne.s32.totalorder %s305, %s306
    %p315 = scmp.eq.s32.totalorder %s24, 0
    %p316 = por %p314, %p315
    %p317 = scmp.ne.s32.totalorder %s305, %s306
    %p318 = scmp.eq.s32.totalorder %s25, 3
    %p319 = por %p317, %p318
    %p321 = scmp.ne.s32.totalorder %s306, %s320
    %p322 = scmp.eq.s32.totalorder %s25, 0
    %p323 = por %p321, %p322
    %s324 = ssub.s32 %s26, %s38
    %p325 = scmp.eq.s32.totalorder %s324, 0
    %s327 = sadd.s32 %s326, 1
    %s328 = scalar_select %p325, %s326, %s327
    %p331 = pneg %p325
    %p332 = scmp.eq.s32.totalorder %s19, 3
    %p333 = por %p331, %p332
    %p334 = scmp.ne.s32.totalorder %s326, %s329
    %p335 = scmp.eq.s32.totalorder %s19, 0
    %p336 = por %p334, %p335
    %p337 = scmp.ne.s32.totalorder %s326, %s329
    %p338 = scmp.eq.s32.totalorder %s24, 3
    %p339 = por %p337, %p338
    %p340 = scmp.ne.s32.totalorder %s329, %s330
    %p341 = scmp.eq.s32.totalorder %s24, 0
    %p342 = por %p340, %p341
    %p343 = scmp.ne.s32.totalorder %s329, %s330
    %p344 = scmp.eq.s32.totalorder %s25, 3
    %p345 = por %p343, %p344
    %p347 = scmp.ne.s32.totalorder %s330, %s346
    %p348 = scmp.eq.s32.totalorder %s25, 0
    %p349 = por %p347, %p348
    %p350 = scmp.le.s32.totalorder 1, %s19
    %p351 = scmp.lt.s32.totalorder %s19, 5
    %p352 = pnand %p350, %p351
    %p353 = pneg %p352
    // Predicated region
    $region9: #{classification_layer_forward.3} parent=5 // pred_check
      _
    $region10: #{classification_layer_forward.3} parent=5 // pred_check_branch
      %355 = sbr.rel (%p352) target = $region12
    $region11: #{classification_layer_forward.3} parent=5 // pred_region
      %s356 = ssub.s32 %s19, 1
      // Predicated region
      $region13: #{classification_layer_forward.3} parent=11 // pred_check
        %p357 = pneg %p106
      $region14: #{classification_layer_forward.3} parent=11 // pred_check_branch
        %359 = sbr.rel (%p357) target = $region16
      $region15: #{classification_layer_forward.3} parent=11 // pred_region
        _
      $region16: #{classification_layer_forward.3} parent=11 // pred_fallthru
        _
      // Predicated region
      $region17: #{classification_layer_forward.3} parent=11 // pred_check
        %p360 = pneg %p127
      $region18: #{classification_layer_forward.3} parent=11 // pred_check_branch
        %362 = sbr.rel (%p360) target = $region20
      $region19: #{classification_layer_forward.3} parent=11 // pred_region
        _
      $region20: #{classification_layer_forward.3} parent=11 // pred_fallthru
        _
      // Predicated region
      $region21: #{classification_layer_forward.3} parent=11 // pred_check
        %p363 = pneg %p148
      $region22: #{classification_layer_forward.3} parent=11 // pred_check_branch
        %365 = sbr.rel (%p363) target = $region24
      $region23: #{classification_layer_forward.3} parent=11 // pred_region
        _
      $region24: #{classification_layer_forward.3} parent=11 // pred_fallthru
        _
      // Predicated region
      $region25: #{classification_layer_forward.3} parent=11 // pred_check
        %p366 = pneg %p169
      $region26: #{classification_layer_forward.3} parent=11 // pred_check_branch
        %368 = sbr.rel (%p366) target = $region28
      $region27: #{classification_layer_forward.3} parent=11 // pred_region
        _
      $region28: #{classification_layer_forward.3} parent=11 // pred_fallthru
        _
      // Predicated region
      $region29: #{classification_layer_forward.3} parent=11 // pred_check
        %p369 = pneg %p190
      $region30: #{classification_layer_forward.3} parent=11 // pred_check_branch
        %371 = sbr.rel (%p369) target = $region32
      $region31: #{classification_layer_forward.3} parent=11 // pred_region
        _
      $region32: #{classification_layer_forward.3} parent=11 // pred_fallthru
        _
      // Predicated region
      $region33: #{classification_layer_forward.3} parent=11 // pred_check
        %p372 = pneg %p211
      $region34: #{classification_layer_forward.3} parent=11 // pred_check_branch
        %374 = sbr.rel (%p372) target = $region36
      $region35: #{classification_layer_forward.3} parent=11 // pred_region
        _
      $region36: #{classification_layer_forward.3} parent=11 // pred_fallthru
        _
      // Predicated region
      $region37: #{classification_layer_forward.3} parent=11 // pred_check
        %p375 = pneg %p232
      $region38: #{classification_layer_forward.3} parent=11 // pred_check_branch
        %377 = sbr.rel (%p375) target = $region40
      $region39: #{classification_layer_forward.3} parent=11 // pred_region
        _
      $region40: #{classification_layer_forward.3} parent=11 // pred_fallthru
        _
      // Predicated region
      $region41: #{classification_layer_forward.3} parent=11 // pred_check
        %p378 = pneg %p253
      $region42: #{classification_layer_forward.3} parent=11 // pred_check_branch
        %380 = sbr.rel (%p378) target = $region44
      $region43: #{classification_layer_forward.3} parent=11 // pred_region
        _
      $region44: #{classification_layer_forward.3} parent=11 // pred_fallthru
        _
      // Predicated region
      $region45: #{classification_layer_forward.3} parent=11 // pred_check
        %p381 = pneg %p274
      $region46: #{classification_layer_forward.3} parent=11 // pred_check_branch
        %383 = sbr.rel (%p381) target = $region48
      $region47: #{classification_layer_forward.3} parent=11 // pred_region
        _
      $region48: #{classification_layer_forward.3} parent=11 // pred_fallthru
        _
      // Predicated region
      $region49: #{classification_layer_forward.3} parent=11 // pred_check
        %p384 = pneg %p295
      $region50: #{classification_layer_forward.3} parent=11 // pred_check_branch
        %386 = sbr.rel (%p384) target = $region52
      $region51: #{classification_layer_forward.3} parent=11 // pred_region
        _
      $region52: #{classification_layer_forward.3} parent=11 // pred_fallthru
        _
      // Predicated region
      $region53: #{classification_layer_forward.3} parent=11 // pred_check
        %p387 = pneg %p316
      $region54: #{classification_layer_forward.3} parent=11 // pred_check_branch
        %389 = sbr.rel (%p387) target = $region56
      $region55: #{classification_layer_forward.3} parent=11 // pred_region
        _
      $region56: #{classification_layer_forward.3} parent=11 // pred_fallthru
        _
    $region12: #{classification_layer_forward.3} parent=5 // pred_fallthru
      _
    %p390 = scmp.lt.s32.totalorder %s19, 4
    // Predicated region
    $region57: #{classification_layer_forward.3} parent=5 // pred_check
      %p391 = pneg %p390
    $region58: #{classification_layer_forward.3} parent=5 // pred_check_branch
      %393 = sbr.rel (%p391) target = $region60
    $region59: #{classification_layer_forward.3} parent=5 // pred_region
      // Predicated region
      $region61: #{classification_layer_forward.3} parent=59 // pred_check
        %p394 = pneg %p53
      $region62: #{classification_layer_forward.3} parent=59 // pred_check_branch
        %396 = sbr.rel (%p394) target = $region64
      $region63: #{classification_layer_forward.3} parent=59 // pred_region
        %s397 = smul.u32 32, %s27
        %p398 = scmp.lt.s32.totalorder %s26, 1
        %s399 = scalar_select %p398, %s26, 1
        %p400 = scmp.lt.s32.totalorder %s397, 63
        %s401 = scalar_select %p400, %s397, 63
        %s402 = smul.addr %s399, 64
        %s403 = sadd.s32 %s401, %s402
        %s404 = smul.addr %s403, 8
        %s405 = scalar_lea.vmem %s0, %s404
        %s406 = smul.u32 32, %s27
      $region64: #{classification_layer_forward.3} parent=59 // pred_fallthru
        _
      // Predicated region
      $region65: #{classification_layer_forward.3} parent=59 // pred_check
        %p407 = pneg %p79
      $region66: #{classification_layer_forward.3} parent=59 // pred_check_branch
        %409 = sbr.rel (%p407) target = $region68
      $region67: #{classification_layer_forward.3} parent=59 // pred_region
        %p410 = scmp.lt.s32.totalorder %s26, 1
        %s411 = scalar_select %p410, %s26, 1
        %s412 = smul.addr %s411, 2
        %s413 = scalar_lea.vmem %s1, %s412
      $region68: #{classification_layer_forward.3} parent=59 // pred_fallthru
        _
    $region60: #{classification_layer_forward.3} parent=5 // pred_fallthru
      _
    %p414 = scmp.le.s32.totalorder 1, %s19
    %p415 = scmp.lt.s32.totalorder %s19, 5
    %p416 = pnand %p414, %p415
    %p417 = pneg %p416
    // Predicated region
    $region69: #{classification_layer_forward.3} parent=5 // pred_check
      _
    $region70: #{classification_layer_forward.3} parent=5 // pred_check_branch
      %419 = sbr.rel (%p416) target = $region72
    $region71: #{classification_layer_forward.3} parent=5 // pred_region
      %s420 = ssub.s32 %s19, 1
      %s421 = smul.u32 32, %s29
      %p422 = scmp.lt.s32.totalorder %s28, 1
      %s423 = scalar_select %p422, %s28, 1
      %p424 = scmp.lt.s32.totalorder %s421, 63
      %s425 = scalar_select %p424, %s421, 63
      %s426 = smul.addr %s423, 64
      %s427 = sadd.s32 %s425, %s426
      %s428 = smul.addr %s427, 8
      %s429 = scalar_lea.vmem %s0, %s428
      %p430 = pneg %p59
      %p431 = pneg %p56
      %p432 = scmp.lt.s32.totalorder %s28, 1
      %s433 = scalar_select %p432, %s28, 1
      %s434 = smul.addr %s433, 2
      %s435 = scalar_lea.vmem %s1, %s434
      %p436 = pneg %p85
      %p437 = pneg %p82
      %p438 = pneg %p106
      %p439 = pneg %p103
      %p440 = pneg %p127
      %p441 = pneg %p124
      %p442 = pneg %p148
      %p443 = pneg %p145
      %p444 = pneg %p169
      %p445 = pneg %p166
      %p446 = pneg %p190
      %p447 = pneg %p187
      %p448 = pneg %p211
      %p449 = pneg %p208
      %p450 = pneg %p232
      %p451 = pneg %p229
      %p452 = pneg %p253
      %p453 = pneg %p250
      %p454 = pneg %p274
      %p455 = pneg %p271
      %p456 = pneg %p295
      %p457 = pneg %p292
      %p458 = pneg %p316
      %p459 = pneg %p313
      %p460 = pneg %p342
      %p461 = pneg %p339
      %p462 = scmp.lt.s32.totalorder %s28, 1
      %s463 = scalar_select %p462, %s28, 1
      %s464 = smul.addr %s463, 8
      %s465 = scalar_lea.vmem %s13, %s464
      %s466 = smul.u32 32, %s29
      %p467 = scmp.lt.s32.totalorder %s28, 1
      %s468 = scalar_select %p467, %s28, 1
      %p469 = scmp.lt.s32.totalorder %s466, 63
      %s470 = scalar_select %p469, %s466, 63
      %s471 = smul.addr %s468, 64
      %s472 = sadd.s32 %s470, %s471
      %s473 = smul.addr %s472, 8
      %s474 = scalar_lea.vmem %s0, %s473
      %s475 = smul.u32 32, %s29
      %p476 = scmp.lt.s32.totalorder %s28, 1
      %s477 = scalar_select %p476, %s28, 1
      %s478 = smul.addr %s477, 2
      %s479 = scalar_lea.vmem %s1, %s478
      %p480 = scmp.lt.s32.totalorder %s28, 1
      %s481 = scalar_select %p480, %s28, 1
      %s482 = smul.addr %s481, 8
      %s483 = scalar_lea.vmem %s13, %s482
      %p485 = scmp.eq.s32.totalorder %s29, 0
      // Predicated region
      $region73: #{classification_layer_forward.3} parent=71 // pred_check
        %p486 = pneg %p485
      $region74: #{classification_layer_forward.3} parent=71 // pred_check_branch
        %488 = sbr.rel (%p486) target = $region76
      $region75: #{classification_layer_forward.3} parent=71 // pred_region
        %489 = vst [vmem:[#allocation2] sm:$0xff] -inf
      $region76: #{classification_layer_forward.3} parent=71 // pred_fallthru
        _
      %v490 = vld [vmem:[%s474] sm:$0xff]
      %v491 = vld [vmem:[%s474 + $0x8] sm:$0xff]
      %v492 = vld [vmem:[%s474 + $0x10] sm:$0xff]
      %v493 = vld [vmem:[%s474 + $0x18] sm:$0xff]
      %v494 = vld [vmem:[%s474 + $0x20] sm:$0xff]
      %v495 = vld [vmem:[%s474 + $0x28] sm:$0xff]
      %v496 = vld [vmem:[%s474 + $0x30] sm:$0xff]
      %v497 = vld [vmem:[%s474 + $0x38] sm:$0xff]
      %v498 = vld [vmem:[%s474 + $0x40] sm:$0xff]
      %v499 = vld [vmem:[%s474 + $0x48] sm:$0xff]
      %v500 = vld [vmem:[%s474 + $0x50] sm:$0xff]
      %v501 = vld [vmem:[%s474 + $0x58] sm:$0xff]
      %v502 = vld [vmem:[%s474 + $0x60] sm:$0xff]
      %v503 = vld [vmem:[%s474 + $0x68] sm:$0xff]
      %v504 = vld [vmem:[%s474 + $0x70] sm:$0xff]
      %v505 = vld [vmem:[%s474 + $0x78] sm:$0xff]
      %v506 = vld [vmem:[%s474 + $0x80] sm:$0xff]
      %v507 = vld [vmem:[%s474 + $0x88] sm:$0xff]
      %v508 = vld [vmem:[%s474 + $0x90] sm:$0xff]
      %v509 = vld [vmem:[%s474 + $0x98] sm:$0xff]
      %v510 = vld [vmem:[%s474 + $0xa0] sm:$0xff]
      %v511 = vld [vmem:[%s474 + $0xa8] sm:$0xff]
      %v512 = vld [vmem:[%s474 + $0xb0] sm:$0xff]
      %v513 = vld [vmem:[%s474 + $0xb8] sm:$0xff]
      %v514 = vld [vmem:[%s474 + $0xc0] sm:$0xff]
      %v515 = vld [vmem:[%s474 + $0xc8] sm:$0xff]
      %v516 = vld [vmem:[%s474 + $0xd0] sm:$0xff]
      %v517 = vld [vmem:[%s474 + $0xd8] sm:$0xff]
      %v518 = vld [vmem:[%s474 + $0xe0] sm:$0xff]
      %v519 = vld [vmem:[%s474 + $0xe8] sm:$0xff]
      %v520 = vld [vmem:[%s474 + $0xf0] sm:$0xff]
      %v521 = vld [vmem:[%s474 + $0xf8] sm:$0xff]
      %v522 = vpack.c.bf16 %v491, %v490
      %v523 = vpack.c.bf16 %v493, %v492
      %v524 = vpack.c.bf16 %v495, %v494
      %v525 = vpack.c.bf16 %v497, %v496
      %v526 = vpack.c.bf16 %v499, %v498
      %v527 = vpack.c.bf16 %v501, %v500
      %v528 = vpack.c.bf16 %v503, %v502
      %v529 = vpack.c.bf16 %v505, %v504
      %v530 = vpack.c.bf16 %v507, %v506
      %v531 = vpack.c.bf16 %v509, %v508
      %v532 = vpack.c.bf16 %v511, %v510
      %v533 = vpack.c.bf16 %v513, %v512
      %v534 = vpack.c.bf16 %v515, %v514
      %v535 = vpack.c.bf16 %v517, %v516
      %v536 = vpack.c.bf16 %v519, %v518
      %v537 = vpack.c.bf16 %v521, %v520
      %v538 = vld [vmem:[%s479] sm:$0x3]
      %v539 = vld [vmem:[%s2] sm:$0x1]
      %v541 = vlaneseq
      %v542 = vshrl.u32 %v541, 7
      %v543 = vsub.s32 0, %v542
      %v544 = vrot.slane %v539, %v543
      %vm546 = vcmask 23552
      %v548 = vsel %vm546, %v522, 0
      %v551 = vsel %vm546, %v523, 0
      %v554 = vsel %vm546, %v524, 0
      %v557 = vsel %vm546, %v525, 0
      %v560 = vsel %vm546, %v526, 0
      %v563 = vsel %vm546, %v527, 0
      %v566 = vsel %vm546, %v528, 0
      %v569 = vsel %vm546, %v529, 0
      %v572 = vsel %vm546, %v530, 0
      %v575 = vsel %vm546, %v531, 0
      %v578 = vsel %vm546, %v532, 0
      %v581 = vsel %vm546, %v533, 0
      %v584 = vsel %vm546, %v534, 0
      %v587 = vsel %vm546, %v535, 0
      %v590 = vsel %vm546, %v536, 0
      %v593 = vsel %vm546, %v537, 0
      %vm595 = vcmask 1040384
      %vm596 = vcmask 1041408
      %v597 = vsel %vm595, 4294967295, 65535
      %v598 = vsel %vm596, %v597, 0
      %v600 = vand.u32 %v538, %v598
      %602 = vmatprep.subr.bf16.mxu0 0
      %603 = vmatpush1.bf16.msra.mxu0 0
      %604 = vmatprep.subr.bf16.mxu0 0
      %605 = vmatpush1.bf16.msra.mxu0 0
      %606 = vmatprep.subr.bf16.mxu0 0
      %607 = vmatpush1.bf16.msra.mxu0 0
      %608 = vmatprep.subr.bf16.mxu0 0
      %609 = vmatpush1.bf16.msra.mxu0 0
      %610 = vmatprep.subr.bf16.mxu0 0
      %611 = vmatpush1.bf16.msra.mxu0 0
      %612 = vmatprep.subr.bf16.mxu0 0
      %613 = vmatpush1.bf16.msra.mxu0 0
      %614 = vmatprep.subr.bf16.mxu0 0
      %615 = vmatpush1.bf16.msra.mxu0 0
      %616 = vmatprep.subr.bf16.mxu0 0
      %617 = vmatpush1.bf16.msra.mxu0 %v600
      %618 = vmatprep.subr.bf16.mxu0 0
      %619 = vmatpush2.bf16.msra.mxu0 0
      %620 = vmatprep.subr.bf16.mxu0 0
      %621 = vmatpush2.bf16.msra.mxu0 0
      %622 = vmatprep.subr.bf16.mxu0 0
      %623 = vmatpush2.bf16.msra.mxu0 0
      %624 = vmatprep.subr.bf16.mxu0 0
      %625 = vmatpush2.bf16.msra.mxu0 0
      %626 = vmatprep.subr.bf16.mxu0 0
      %627 = vmatpush2.bf16.msra.mxu0 0
      %628 = vmatprep.subr.bf16.mxu0 0
      %629 = vmatpush2.bf16.msra.mxu0 0
      %630 = vmatprep.subr.bf16.mxu0 0
      %631 = vmatpush2.bf16.msra.mxu0 0
      %632 = vmatprep.subr.bf16.mxu0 0
      %633 = vmatpush2.bf16.msra.mxu0 0
      %634 = vmatprep.mubr.bf16.mxu0 0
      %635 = vmatmul.mubr.bf16.gmra.mxu0 %v548
      %v636 = vpop.f32.mrf.mxu0
      %v637 = vadd.f32 %v544, %v636
      %v638 = vpop.f32.mrf.mxu0
      %v639 = vpop.f32.mrf.mxu0
      %v640 = vadd.f32 %v544, %v639
      %v641 = vpop.f32.mrf.mxu0
      %642 = vmatprep.mubr.bf16.mxu0 0
      %643 = vmatmul.mubr.bf16.gmra.mxu0 %v551
      %v644 = vpop.f32.mrf.mxu0
      %v645 = vadd.f32 %v544, %v644
      %v646 = vpop.f32.mrf.mxu0
      %v647 = vpop.f32.mrf.mxu0
      %v648 = vadd.f32 %v544, %v647
      %v649 = vpop.f32.mrf.mxu0
      %650 = vmatprep.mubr.bf16.mxu0 0
      %651 = vmatmul.mubr.bf16.gmra.mxu0 %v554
      %v652 = vpop.f32.mrf.mxu0
      %v653 = vadd.f32 %v544, %v652
      %v654 = vpop.f32.mrf.mxu0
      %v655 = vpop.f32.mrf.mxu0
      %v656 = vadd.f32 %v544, %v655
      %v657 = vpop.f32.mrf.mxu0
      %658 = vmatprep.mubr.bf16.mxu0 0
      %659 = vmatmul.mubr.bf16.gmra.mxu0 %v557
      %v660 = vpop.f32.mrf.mxu0
      %v661 = vadd.f32 %v544, %v660
      %v662 = vpop.f32.mrf.mxu0
      %v663 = vpop.f32.mrf.mxu0
      %v664 = vadd.f32 %v544, %v663
      %v665 = vpop.f32.mrf.mxu0
      %666 = vmatprep.mubr.bf16.mxu0 0
      %667 = vmatmul.mubr.bf16.gmra.mxu0 %v560
      %v668 = vpop.f32.mrf.mxu0
      %v669 = vadd.f32 %v544, %v668
      %v670 = vpop.f32.mrf.mxu0
      %v671 = vpop.f32.mrf.mxu0
      %v672 = vadd.f32 %v544, %v671
      %v673 = vpop.f32.mrf.mxu0
      %674 = vmatprep.mubr.bf16.mxu0 0
      %675 = vmatmul.mubr.bf16.gmra.mxu0 %v563
      %v676 = vpop.f32.mrf.mxu0
      %v677 = vadd.f32 %v544, %v676
      %v678 = vpop.f32.mrf.mxu0
      %v679 = vpop.f32.mrf.mxu0
      %v680 = vadd.f32 %v544, %v679
      %v681 = vpop.f32.mrf.mxu0
      %682 = vmatprep.mubr.bf16.mxu0 0
      %683 = vmatmul.mubr.bf16.gmra.mxu0 %v566
      %v684 = vpop.f32.mrf.mxu0
      %v685 = vadd.f32 %v544, %v684
      %v686 = vpop.f32.mrf.mxu0
      %v687 = vpop.f32.mrf.mxu0
      %v688 = vadd.f32 %v544, %v687
      %v689 = vpop.f32.mrf.mxu0
      %690 = vmatprep.mubr.bf16.mxu0 0
      %691 = vmatmul.mubr.bf16.gmra.mxu0 %v569
      %v692 = vpop.f32.mrf.mxu0
      %v693 = vadd.f32 %v544, %v692
      %v694 = vpop.f32.mrf.mxu0
      %v695 = vpop.f32.mrf.mxu0
      %v696 = vadd.f32 %v544, %v695
      %v697 = vpop.f32.mrf.mxu0
      %698 = vmatprep.mubr.bf16.mxu0 0
      %699 = vmatmul.mubr.bf16.gmra.mxu0 %v572
      %v700 = vpop.f32.mrf.mxu0
      %v701 = vadd.f32 %v544, %v700
      %v702 = vpop.f32.mrf.mxu0
      %v703 = vpop.f32.mrf.mxu0
      %v704 = vadd.f32 %v544, %v703
      %v705 = vpop.f32.mrf.mxu0
      %706 = vmatprep.mubr.bf16.mxu0 0
      %707 = vmatmul.mubr.bf16.gmra.mxu0 %v575
      %v708 = vpop.f32.mrf.mxu0
      %v709 = vadd.f32 %v544, %v708
      %v710 = vpop.f32.mrf.mxu0
      %v711 = vpop.f32.mrf.mxu0
      %v712 = vadd.f32 %v544, %v711
      %v713 = vpop.f32.mrf.mxu0
      %714 = vmatprep.mubr.bf16.mxu0 0
      %715 = vmatmul.mubr.bf16.gmra.mxu0 %v578
      %v716 = vpop.f32.mrf.mxu0
      %v717 = vadd.f32 %v544, %v716
      %v718 = vpop.f32.mrf.mxu0
      %v719 = vpop.f32.mrf.mxu0
      %v720 = vadd.f32 %v544, %v719
      %v721 = vpop.f32.mrf.mxu0
      %722 = vmatprep.mubr.bf16.mxu0 0
      %723 = vmatmul.mubr.bf16.gmra.mxu0 %v581
      %v724 = vpop.f32.mrf.mxu0
      %v725 = vadd.f32 %v544, %v724
      %v726 = vpop.f32.mrf.mxu0
      %v727 = vpop.f32.mrf.mxu0
      %v728 = vadd.f32 %v544, %v727
      %v729 = vpop.f32.mrf.mxu0
      %730 = vmatprep.mubr.bf16.mxu0 0
      %731 = vmatmul.mubr.bf16.gmra.mxu0 %v584
      %v732 = vpop.f32.mrf.mxu0
      %v733 = vadd.f32 %v544, %v732
      %v734 = vpop.f32.mrf.mxu0
      %v735 = vpop.f32.mrf.mxu0
      %v736 = vadd.f32 %v544, %v735
      %v737 = vpop.f32.mrf.mxu0
      %738 = vmatprep.mubr.bf16.mxu0 0
      %739 = vmatmul.mubr.bf16.gmra.mxu0 %v587
      %v740 = vpop.f32.mrf.mxu0
      %v741 = vadd.f32 %v544, %v740
      %v742 = vpop.f32.mrf.mxu0
      %v743 = vpop.f32.mrf.mxu0
      %v744 = vadd.f32 %v544, %v743
      %v745 = vpop.f32.mrf.mxu0
      %746 = vmatprep.mubr.bf16.mxu0 0
      %747 = vmatmul.mubr.bf16.gmra.mxu0 %v590
      %v748 = vpop.f32.mrf.mxu0
      %v749 = vadd.f32 %v544, %v748
      %v750 = vpop.f32.mrf.mxu0
      %v751 = vpop.f32.mrf.mxu0
      %v752 = vadd.f32 %v544, %v751
      %v753 = vpop.f32.mrf.mxu0
      %754 = vmatprep.mubr.bf16.mxu0 0
      %755 = vmatmul.mubr.bf16.gmra.mxu0 %v593
      %v756 = vpop.f32.mrf.mxu0
      %v757 = vadd.f32 %v544, %v756
      %v758 = vpop.f32.mrf.mxu0
      %v759 = vpop.f32.mrf.mxu0
      %v760 = vadd.f32 %v544, %v759
      %v761 = vpop.f32.mrf.mxu0
      %762 = vdwg.mxu0
      %v763 = vmax.f32 %v637, 0.0
      %v764 = vmax.f32 %v640, 0.0
      %v765 = vmax.f32 %v645, 0.0
      %v766 = vmax.f32 %v648, 0.0
      %v767 = vmax.f32 %v653, 0.0
      %v768 = vmax.f32 %v656, 0.0
      %v769 = vmax.f32 %v661, 0.0
      %v770 = vmax.f32 %v664, 0.0
      %v771 = vmax.f32 %v669, 0.0
      %v772 = vmax.f32 %v672, 0.0
      %v773 = vmax.f32 %v677, 0.0
      %v774 = vmax.f32 %v680, 0.0
      %v775 = vmax.f32 %v685, 0.0
      %v776 = vmax.f32 %v688, 0.0
      %v777 = vmax.f32 %v693, 0.0
      %v778 = vmax.f32 %v696, 0.0
      %v779 = vmax.f32 %v701, 0.0
      %v780 = vmax.f32 %v704, 0.0
      %v781 = vmax.f32 %v709, 0.0
      %v782 = vmax.f32 %v712, 0.0
      %v783 = vmax.f32 %v717, 0.0
      %v784 = vmax.f32 %v720, 0.0
      %v785 = vmax.f32 %v725, 0.0
      %v786 = vmax.f32 %v728, 0.0
      %v787 = vmax.f32 %v733, 0.0
      %v788 = vmax.f32 %v736, 0.0
      %v789 = vmax.f32 %v741, 0.0
      %v790 = vmax.f32 %v744, 0.0
      %v791 = vmax.f32 %v749, 0.0
      %v792 = vmax.f32 %v752, 0.0
      %v793 = vmax.f32 %v757, 0.0
      %v794 = vmax.f32 %v760, 0.0
      %v795 = vpack.c.bf16 %v764, %v763
      %v796 = vpack.c.bf16 %v766, %v765
      %v797 = vpack.c.bf16 %v768, %v767
      %v798 = vpack.c.bf16 %v770, %v769
      %v799 = vpack.c.bf16 %v772, %v771
      %v800 = vpack.c.bf16 %v774, %v773
      %v801 = vpack.c.bf16 %v776, %v775
      %v802 = vpack.c.bf16 %v778, %v777
      %v803 = vpack.c.bf16 %v780, %v779
      %v804 = vpack.c.bf16 %v782, %v781
      %v805 = vpack.c.bf16 %v784, %v783
      %v806 = vpack.c.bf16 %v786, %v785
      %v807 = vpack.c.bf16 %v788, %v787
      %v808 = vpack.c.bf16 %v790, %v789
      %v809 = vpack.c.bf16 %v792, %v791
      %v810 = vpack.c.bf16 %v794, %v793
      %v811 = vld [vmem:[%s3] sm:$0xf]
      %v812 = vld [vmem:[%s3 + $0x4] sm:$0xf]
      %v813 = vld [vmem:[%s3 + $0x8] sm:$0xf]
      %v814 = vld [vmem:[%s3 + $0xc] sm:$0xf]
      %v815 = vld [vmem:[%s3 + $0x10] sm:$0xf]
      %v816 = vld [vmem:[%s3 + $0x14] sm:$0xf]
      %v817 = vld [vmem:[%s3 + $0x18] sm:$0xf]
      %v818 = vld [vmem:[%s3 + $0x1c] sm:$0xf]
      %v819 = vld [vmem:[%s4] sm:$0x1]
      %v821 = vlaneseq
      %v822 = vshrl.u32 %v821, 7
      %v823 = vsub.s32 0, %v822
      %v824 = vrot.slane %v819, %v823
      %v834 = vunpack.c.l.b16 %v811
      %v835 = vunpack.c.l.b16 %v812
      %v836 = vunpack.c.l.b16 %v813
      %v837 = vunpack.c.l.b16 %v814
      %v838 = vunpack.c.l.b16 %v815
      %v839 = vunpack.c.l.b16 %v816
      %v840 = vunpack.c.l.b16 %v817
      %v841 = vunpack.c.l.b16 %v818
      %v842 = vpack.c.b16 %v835, %v834
      %v843 = vpack.c.b16 %v837, %v836
      %v844 = vpack.c.b16 %v839, %v838
      %v845 = vpack.c.b16 %v841, %v840
      %vm850 = vcmask 523264
      %v852 = vsel %vm850, %v795, 0
      %v855 = vsel %vm850, %v796, 0
      %v858 = vsel %vm850, %v797, 0
      %v861 = vsel %vm850, %v798, 0
      %v864 = vsel %vm850, %v799, 0
      %v867 = vsel %vm850, %v800, 0
      %v870 = vsel %vm850, %v801, 0
      %v873 = vsel %vm850, %v802, 0
      %v876 = vsel %vm850, %v803, 0
      %v879 = vsel %vm850, %v804, 0
      %v882 = vsel %vm850, %v805, 0
      %v885 = vsel %vm850, %v806, 0
      %v888 = vsel %vm850, %v807, 0
      %v891 = vsel %vm850, %v808, 0
      %v894 = vsel %vm850, %v809, 0
      %v897 = vsel %vm850, %v810, 0
      %899 = vmatprep.subr.bf16.mxu0 0
      %900 = vmatpush1.bf16.msra.mxu0 0
      %901 = vmatprep.subr.bf16.mxu0 0
      %902 = vmatpush1.bf16.msra.mxu0 0
      %903 = vmatprep.subr.bf16.mxu0 0
      %904 = vmatpush1.bf16.msra.mxu0 0
      %905 = vmatprep.subr.bf16.mxu0 0
      %906 = vmatpush1.bf16.msra.mxu0 0
      %907 = vmatprep.subr.bf16.mxu0 0
      %908 = vmatpush1.bf16.msra.mxu0 %v845
      %909 = vmatprep.subr.bf16.mxu0 0
      %910 = vmatpush1.bf16.msra.mxu0 %v844
      %911 = vmatprep.subr.bf16.mxu0 0
      %912 = vmatpush1.bf16.msra.mxu0 %v843
      %913 = vmatprep.subr.bf16.mxu0 0
      %914 = vmatpush1.bf16.msra.mxu0 %v842
      %915 = vmatprep.subr.bf16.mxu0 0
      %916 = vmatpush2.bf16.msra.mxu0 0
      %917 = vmatprep.subr.bf16.mxu0 0
      %918 = vmatpush2.bf16.msra.mxu0 0
      %919 = vmatprep.subr.bf16.mxu0 0
      %920 = vmatpush2.bf16.msra.mxu0 0
      %921 = vmatprep.subr.bf16.mxu0 0
      %922 = vmatpush2.bf16.msra.mxu0 0
      %923 = vmatprep.subr.bf16.mxu0 0
      %924 = vmatpush2.bf16.msra.mxu0 0
      %925 = vmatprep.subr.bf16.mxu0 0
      %926 = vmatpush2.bf16.msra.mxu0 0
      %927 = vmatprep.subr.bf16.mxu0 0
      %928 = vmatpush2.bf16.msra.mxu0 0
      %929 = vmatprep.subr.bf16.mxu0 0
      %930 = vmatpush2.bf16.msra.mxu0 0
      %931 = vmatprep.mubr.bf16.mxu0 0
      %932 = vmatmul.mubr.bf16.gmra.mxu0 %v852
      %v933 = vpop.f32.mrf.mxu0
      %v934 = vadd.f32 %v824, %v933
      %v935 = vpop.f32.mrf.mxu0
      %v936 = vpop.f32.mrf.mxu0
      %v937 = vadd.f32 %v824, %v936
      %v938 = vpop.f32.mrf.mxu0
      %939 = vmatprep.mubr.bf16.mxu0 0
      %940 = vmatmul.mubr.bf16.gmra.mxu0 %v855
      %v941 = vpop.f32.mrf.mxu0
      %v942 = vadd.f32 %v824, %v941
      %v943 = vpop.f32.mrf.mxu0
      %v944 = vpop.f32.mrf.mxu0
      %v945 = vadd.f32 %v824, %v944
      %v946 = vpop.f32.mrf.mxu0
      %947 = vmatprep.mubr.bf16.mxu0 0
      %948 = vmatmul.mubr.bf16.gmra.mxu0 %v858
      %v949 = vpop.f32.mrf.mxu0
      %v950 = vadd.f32 %v824, %v949
      %v951 = vpop.f32.mrf.mxu0
      %v952 = vpop.f32.mrf.mxu0
      %v953 = vadd.f32 %v824, %v952
      %v954 = vpop.f32.mrf.mxu0
      %955 = vmatprep.mubr.bf16.mxu0 0
      %956 = vmatmul.mubr.bf16.gmra.mxu0 %v861
      %v957 = vpop.f32.mrf.mxu0
      %v958 = vadd.f32 %v824, %v957
      %v959 = vpop.f32.mrf.mxu0
      %v960 = vpop.f32.mrf.mxu0
      %v961 = vadd.f32 %v824, %v960
      %v962 = vpop.f32.mrf.mxu0
      %963 = vmatprep.mubr.bf16.mxu0 0
      %964 = vmatmul.mubr.bf16.gmra.mxu0 %v864
      %v965 = vpop.f32.mrf.mxu0
      %v966 = vadd.f32 %v824, %v965
      %v967 = vpop.f32.mrf.mxu0
      %v968 = vpop.f32.mrf.mxu0
      %v969 = vadd.f32 %v824, %v968
      %v970 = vpop.f32.mrf.mxu0
      %971 = vmatprep.mubr.bf16.mxu0 0
      %972 = vmatmul.mubr.bf16.gmra.mxu0 %v867
      %v973 = vpop.f32.mrf.mxu0
      %v974 = vadd.f32 %v824, %v973
      %v975 = vpop.f32.mrf.mxu0
      %v976 = vpop.f32.mrf.mxu0
      %v977 = vadd.f32 %v824, %v976
      %v978 = vpop.f32.mrf.mxu0
      %979 = vmatprep.mubr.bf16.mxu0 0
      %980 = vmatmul.mubr.bf16.gmra.mxu0 %v870
      %v981 = vpop.f32.mrf.mxu0
      %v982 = vadd.f32 %v824, %v981
      %v983 = vpop.f32.mrf.mxu0
      %v984 = vpop.f32.mrf.mxu0
      %v985 = vadd.f32 %v824, %v984
      %v986 = vpop.f32.mrf.mxu0
      %987 = vmatprep.mubr.bf16.mxu0 0
      %988 = vmatmul.mubr.bf16.gmra.mxu0 %v873
      %v989 = vpop.f32.mrf.mxu0
      %v990 = vadd.f32 %v824, %v989
      %v991 = vpop.f32.mrf.mxu0
      %v992 = vpop.f32.mrf.mxu0
      %v993 = vadd.f32 %v824, %v992
      %v994 = vpop.f32.mrf.mxu0
      %995 = vmatprep.mubr.bf16.mxu0 0
      %996 = vmatmul.mubr.bf16.gmra.mxu0 %v876
      %v997 = vpop.f32.mrf.mxu0
      %v998 = vadd.f32 %v824, %v997
      %v999 = vpop.f32.mrf.mxu0
      %v1000 = vpop.f32.mrf.mxu0
      %v1001 = vadd.f32 %v824, %v1000
      %v1002 = vpop.f32.mrf.mxu0
      %1003 = vmatprep.mubr.bf16.mxu0 0
      %1004 = vmatmul.mubr.bf16.gmra.mxu0 %v879
      %v1005 = vpop.f32.mrf.mxu0
      %v1006 = vadd.f32 %v824, %v1005
      %v1007 = vpop.f32.mrf.mxu0
      %v1008 = vpop.f32.mrf.mxu0
      %v1009 = vadd.f32 %v824, %v1008
      %v1010 = vpop.f32.mrf.mxu0
      %1011 = vmatprep.mubr.bf16.mxu0 0
      %1012 = vmatmul.mubr.bf16.gmra.mxu0 %v882
      %v1013 = vpop.f32.mrf.mxu0
      %v1014 = vadd.f32 %v824, %v1013
      %v1015 = vpop.f32.mrf.mxu0
      %v1016 = vpop.f32.mrf.mxu0
      %v1017 = vadd.f32 %v824, %v1016
      %v1018 = vpop.f32.mrf.mxu0
      %1019 = vmatprep.mubr.bf16.mxu0 0
      %1020 = vmatmul.mubr.bf16.gmra.mxu0 %v885
      %v1021 = vpop.f32.mrf.mxu0
      %v1022 = vadd.f32 %v824, %v1021
      %v1023 = vpop.f32.mrf.mxu0
      %v1024 = vpop.f32.mrf.mxu0
      %v1025 = vadd.f32 %v824, %v1024
      %v1026 = vpop.f32.mrf.mxu0
      %1027 = vmatprep.mubr.bf16.mxu0 0
      %1028 = vmatmul.mubr.bf16.gmra.mxu0 %v888
      %v1029 = vpop.f32.mrf.mxu0
      %v1030 = vadd.f32 %v824, %v1029
      %v1031 = vpop.f32.mrf.mxu0
      %v1032 = vpop.f32.mrf.mxu0
      %v1033 = vadd.f32 %v824, %v1032
      %v1034 = vpop.f32.mrf.mxu0
      %1035 = vmatprep.mubr.bf16.mxu0 0
      %1036 = vmatmul.mubr.bf16.gmra.mxu0 %v891
      %v1037 = vpop.f32.mrf.mxu0
      %v1038 = vadd.f32 %v824, %v1037
      %v1039 = vpop.f32.mrf.mxu0
      %v1040 = vpop.f32.mrf.mxu0
      %v1041 = vadd.f32 %v824, %v1040
      %v1042 = vpop.f32.mrf.mxu0
      %1043 = vmatprep.mubr.bf16.mxu0 0
      %1044 = vmatmul.mubr.bf16.gmra.mxu0 %v894
      %v1045 = vpop.f32.mrf.mxu0
      %v1046 = vadd.f32 %v824, %v1045
      %v1047 = vpop.f32.mrf.mxu0
      %v1048 = vpop.f32.mrf.mxu0
      %v1049 = vadd.f32 %v824, %v1048
      %v1050 = vpop.f32.mrf.mxu0
      %1051 = vmatprep.mubr.bf16.mxu0 0
      %1052 = vmatmul.mubr.bf16.gmra.mxu0 %v897
      %v1053 = vpop.f32.mrf.mxu0
      %v1054 = vadd.f32 %v824, %v1053
      %v1055 = vpop.f32.mrf.mxu0
      %v1056 = vpop.f32.mrf.mxu0
      %v1057 = vadd.f32 %v824, %v1056
      %v1058 = vpop.f32.mrf.mxu0
      %1059 = vdwg.mxu0
      %v1060 = vmax.f32 %v934, 0.0
      %v1061 = vmax.f32 %v937, 0.0
      %v1062 = vmax.f32 %v942, 0.0
      %v1063 = vmax.f32 %v945, 0.0
      %v1064 = vmax.f32 %v950, 0.0
      %v1065 = vmax.f32 %v953, 0.0
      %v1066 = vmax.f32 %v958, 0.0
      %v1067 = vmax.f32 %v961, 0.0
      %v1068 = vmax.f32 %v966, 0.0
      %v1069 = vmax.f32 %v969, 0.0
      %v1070 = vmax.f32 %v974, 0.0
      %v1071 = vmax.f32 %v977, 0.0
      %v1072 = vmax.f32 %v982, 0.0
      %v1073 = vmax.f32 %v985, 0.0
      %v1074 = vmax.f32 %v990, 0.0
      %v1075 = vmax.f32 %v993, 0.0
      %v1076 = vmax.f32 %v998, 0.0
      %v1077 = vmax.f32 %v1001, 0.0
      %v1078 = vmax.f32 %v1006, 0.0
      %v1079 = vmax.f32 %v1009, 0.0
      %v1080 = vmax.f32 %v1014, 0.0
      %v1081 = vmax.f32 %v1017, 0.0
      %v1082 = vmax.f32 %v1022, 0.0
      %v1083 = vmax.f32 %v1025, 0.0
      %v1084 = vmax.f32 %v1030, 0.0
      %v1085 = vmax.f32 %v1033, 0.0
      %v1086 = vmax.f32 %v1038, 0.0
      %v1087 = vmax.f32 %v1041, 0.0
      %v1088 = vmax.f32 %v1046, 0.0
      %v1089 = vmax.f32 %v1049, 0.0
      %v1090 = vmax.f32 %v1054, 0.0
      %v1091 = vmax.f32 %v1057, 0.0
      %v1092 = vpack.c.bf16 %v1061, %v1060
      %v1093 = vpack.c.bf16 %v1063, %v1062
      %v1094 = vpack.c.bf16 %v1065, %v1064
      %v1095 = vpack.c.bf16 %v1067, %v1066
      %v1096 = vpack.c.bf16 %v1069, %v1068
      %v1097 = vpack.c.bf16 %v1071, %v1070
      %v1098 = vpack.c.bf16 %v1073, %v1072
      %v1099 = vpack.c.bf16 %v1075, %v1074
      %v1100 = vpack.c.bf16 %v1077, %v1076
      %v1101 = vpack.c.bf16 %v1079, %v1078
      %v1102 = vpack.c.bf16 %v1081, %v1080
      %v1103 = vpack.c.bf16 %v1083, %v1082
      %v1104 = vpack.c.bf16 %v1085, %v1084
      %v1105 = vpack.c.bf16 %v1087, %v1086
      %v1106 = vpack.c.bf16 %v1089, %v1088
      %v1107 = vpack.c.bf16 %v1091, %v1090
      %v1108 = vld [vmem:[%s5] sm:$0xff]
      %v1109 = vld [vmem:[%s5 + $0x8] sm:$0xff]
      %v1110 = vld [vmem:[%s5 + $0x10] sm:$0xff]
      %v1111 = vld [vmem:[%s5 + $0x18] sm:$0xff]
      %v1112 = vld [vmem:[%s5 + $0x20] sm:$0xff]
      %v1113 = vld [vmem:[%s5 + $0x28] sm:$0xff]
      %v1114 = vld [vmem:[%s5 + $0x30] sm:$0xff]
      %v1115 = vld [vmem:[%s5 + $0x38] sm:$0xff]
      %v1116 = vld [vmem:[%s5 + $0x40] sm:$0xff]
      %v1117 = vld [vmem:[%s5 + $0x48] sm:$0xff]
      %v1118 = vld [vmem:[%s5 + $0x50] sm:$0xff]
      %v1119 = vld [vmem:[%s5 + $0x58] sm:$0xff]
      %v1120 = vld [vmem:[%s5 + $0x60] sm:$0xff]
      %v1121 = vld [vmem:[%s5 + $0x68] sm:$0xff]
      %v1122 = vld [vmem:[%s5 + $0x70] sm:$0xff]
      %v1123 = vld [vmem:[%s5 + $0x78] sm:$0xff]
      %v1124 = vld [vmem:[%s5 + $0x80] sm:$0xff]
      %v1125 = vld [vmem:[%s5 + $0x88] sm:$0xff]
      %v1126 = vld [vmem:[%s5 + $0x90] sm:$0xff]
      %v1127 = vld [vmem:[%s5 + $0x98] sm:$0xff]
      %v1128 = vld [vmem:[%s5 + $0xa0] sm:$0xff]
      %v1129 = vld [vmem:[%s5 + $0xa8] sm:$0xff]
      %v1130 = vld [vmem:[%s5 + $0xb0] sm:$0xff]
      %v1131 = vld [vmem:[%s5 + $0xb8] sm:$0xff]
      %v1132 = vld [vmem:[%s5 + $0xc0] sm:$0xff]
      %v1133 = vld [vmem:[%s5 + $0xc8] sm:$0xff]
      %v1134 = vld [vmem:[%s5 + $0xd0] sm:$0xff]
      %v1135 = vld [vmem:[%s5 + $0xd8] sm:$0xff]
      %v1136 = vld [vmem:[%s5 + $0xe0] sm:$0xff]
      %v1137 = vld [vmem:[%s5 + $0xe8] sm:$0xff]
      %v1138 = vld [vmem:[%s5 + $0xf0] sm:$0xff]
      %v1139 = vld [vmem:[%s5 + $0xf8] sm:$0xff]
      %v1140 = vld [vmem:[%s5 + $0x100] sm:$0xff]
      %v1141 = vld [vmem:[%s5 + $0x108] sm:$0xff]
      %v1142 = vld [vmem:[%s5 + $0x110] sm:$0xff]
      %v1143 = vld [vmem:[%s5 + $0x118] sm:$0xff]
      %v1144 = vld [vmem:[%s5 + $0x120] sm:$0xff]
      %v1145 = vld [vmem:[%s5 + $0x128] sm:$0xff]
      %v1146 = vld [vmem:[%s5 + $0x130] sm:$0xff]
      %v1147 = vld [vmem:[%s5 + $0x138] sm:$0xff]
      %v1148 = vld [vmem:[%s5 + $0x140] sm:$0xff]
      %v1149 = vld [vmem:[%s5 + $0x148] sm:$0xff]
      %v1150 = vld [vmem:[%s5 + $0x150] sm:$0xff]
      %v1151 = vld [vmem:[%s5 + $0x158] sm:$0xff]
      %v1152 = vld [vmem:[%s5 + $0x160] sm:$0xff]
      %v1153 = vld [vmem:[%s5 + $0x168] sm:$0xff]
      %v1154 = vld [vmem:[%s5 + $0x170] sm:$0xff]
      %v1155 = vld [vmem:[%s5 + $0x178] sm:$0xff]
      %v1156 = vld [vmem:[%s5 + $0x180] sm:$0xff]
      %v1157 = vld [vmem:[%s5 + $0x188] sm:$0xff]
      %v1158 = vld [vmem:[%s5 + $0x190] sm:$0xff]
      %v1159 = vld [vmem:[%s5 + $0x198] sm:$0xff]
      %v1160 = vld [vmem:[%s5 + $0x1a0] sm:$0xff]
      %v1161 = vld [vmem:[%s5 + $0x1a8] sm:$0xff]
      %v1162 = vld [vmem:[%s5 + $0x1b0] sm:$0xff]
      %v1163 = vld [vmem:[%s5 + $0x1b8] sm:$0xff]
      %v1164 = vld [vmem:[%s5 + $0x1c0] sm:$0xff]
      %v1165 = vld [vmem:[%s5 + $0x1c8] sm:$0xff]
      %v1166 = vld [vmem:[%s5 + $0x1d0] sm:$0xff]
      %v1167 = vld [vmem:[%s5 + $0x1d8] sm:$0xff]
      %v1168 = vld [vmem:[%s5 + $0x1e0] sm:$0xff]
      %v1169 = vld [vmem:[%s5 + $0x1e8] sm:$0xff]
      %v1170 = vld [vmem:[%s5 + $0x1f0] sm:$0xff]
      %v1171 = vld [vmem:[%s5 + $0x1f8] sm:$0xff]
      %v1172 = vld [vmem:[%s6] sm:$0xff]
      %v1174 = vlaneseq
      %v1175 = vshrl.u32 %v1174, 7
      %v1176 = vsub.s32 0, %v1175
      %v1177 = vrot.slane %v1172, %v1176
      %v1178 = vlaneseq
      %v1179 = vshrl.u32 %v1178, 7
      %v1180 = vsub.s32 1, %v1179
      %v1181 = vrot.slane %v1172, %v1180
      %v1182 = vlaneseq
      %v1183 = vshrl.u32 %v1182, 7
      %v1184 = vsub.s32 2, %v1183
      %v1185 = vrot.slane %v1172, %v1184
      %v1186 = vlaneseq
      %v1187 = vshrl.u32 %v1186, 7
      %v1188 = vsub.s32 3, %v1187
      %v1189 = vrot.slane %v1172, %v1188
      %v1190 = vlaneseq
      %v1191 = vshrl.u32 %v1190, 7
      %v1192 = vsub.s32 4, %v1191
      %v1193 = vrot.slane %v1172, %v1192
      %v1194 = vlaneseq
      %v1195 = vshrl.u32 %v1194, 7
      %v1196 = vsub.s32 5, %v1195
      %v1197 = vrot.slane %v1172, %v1196
      %v1198 = vlaneseq
      %v1199 = vshrl.u32 %v1198, 7
      %v1200 = vsub.s32 6, %v1199
      %v1201 = vrot.slane %v1172, %v1200
      %v1202 = vlaneseq
      %v1203 = vshrl.u32 %v1202, 7
      %v1204 = vsub.s32 7, %v1203
      %v1205 = vrot.slane %v1172, %v1204
      %v1278 = vunpack.c.l.b16 %v1108
      %v1279 = vunpack.c.h.b16 %v1108
      %v1280 = vunpack.c.l.b16 %v1109
      %v1281 = vunpack.c.h.b16 %v1109
      %v1282 = vunpack.c.l.b16 %v1110
      %v1283 = vunpack.c.h.b16 %v1110
      %v1284 = vunpack.c.l.b16 %v1111
      %v1285 = vunpack.c.h.b16 %v1111
      %v1286 = vunpack.c.l.b16 %v1112
      %v1287 = vunpack.c.h.b16 %v1112
      %v1288 = vunpack.c.l.b16 %v1113
      %v1289 = vunpack.c.h.b16 %v1113
      %v1290 = vunpack.c.l.b16 %v1114
      %v1291 = vunpack.c.h.b16 %v1114
      %v1292 = vunpack.c.l.b16 %v1115
      %v1293 = vunpack.c.h.b16 %v1115
      %v1294 = vunpack.c.l.b16 %v1116
      %v1295 = vunpack.c.h.b16 %v1116
      %v1296 = vunpack.c.l.b16 %v1117
      %v1297 = vunpack.c.h.b16 %v1117
      %v1298 = vunpack.c.l.b16 %v1118
      %v1299 = vunpack.c.h.b16 %v1118
      %v1300 = vunpack.c.l.b16 %v1119
      %v1301 = vunpack.c.h.b16 %v1119
      %v1302 = vunpack.c.l.b16 %v1120
      %v1303 = vunpack.c.h.b16 %v1120
      %v1304 = vunpack.c.l.b16 %v1121
      %v1305 = vunpack.c.h.b16 %v1121
      %v1306 = vunpack.c.l.b16 %v1122
      %v1307 = vunpack.c.h.b16 %v1122
      %v1308 = vunpack.c.l.b16 %v1123
      %v1309 = vunpack.c.h.b16 %v1123
      %v1310 = vunpack.c.l.b16 %v1124
      %v1311 = vunpack.c.h.b16 %v1124
      %v1312 = vunpack.c.l.b16 %v1125
      %v1313 = vunpack.c.h.b16 %v1125
      %v1314 = vunpack.c.l.b16 %v1126
      %v1315 = vunpack.c.h.b16 %v1126
      %v1316 = vunpack.c.l.b16 %v1127
      %v1317 = vunpack.c.h.b16 %v1127
      %v1318 = vunpack.c.l.b16 %v1128
      %v1319 = vunpack.c.h.b16 %v1128
      %v1320 = vunpack.c.l.b16 %v1129
      %v1321 = vunpack.c.h.b16 %v1129
      %v1322 = vunpack.c.l.b16 %v1130
      %v1323 = vunpack.c.h.b16 %v1130
      %v1324 = vunpack.c.l.b16 %v1131
      %v1325 = vunpack.c.h.b16 %v1131
      %v1326 = vunpack.c.l.b16 %v1132
      %v1327 = vunpack.c.h.b16 %v1132
      %v1328 = vunpack.c.l.b16 %v1133
      %v1329 = vunpack.c.h.b16 %v1133
      %v1330 = vunpack.c.l.b16 %v1134
      %v1331 = vunpack.c.h.b16 %v1134
      %v1332 = vunpack.c.l.b16 %v1135
      %v1333 = vunpack.c.h.b16 %v1135
      %v1334 = vunpack.c.l.b16 %v1136
      %v1335 = vunpack.c.h.b16 %v1136
      %v1336 = vunpack.c.l.b16 %v1137
      %v1337 = vunpack.c.h.b16 %v1137
      %v1338 = vunpack.c.l.b16 %v1138
      %v1339 = vunpack.c.h.b16 %v1138
      %v1340 = vunpack.c.l.b16 %v1139
      %v1341 = vunpack.c.h.b16 %v1139
      %v1342 = vunpack.c.l.b16 %v1140
      %v1343 = vunpack.c.h.b16 %v1140
      %v1344 = vunpack.c.l.b16 %v1141
      %v1345 = vunpack.c.h.b16 %v1141
      %v1346 = vunpack.c.l.b16 %v1142
      %v1347 = vunpack.c.h.b16 %v1142
      %v1348 = vunpack.c.l.b16 %v1143
      %v1349 = vunpack.c.h.b16 %v1143
      %v1350 = vunpack.c.l.b16 %v1144
      %v1351 = vunpack.c.h.b16 %v1144
      %v1352 = vunpack.c.l.b16 %v1145
      %v1353 = vunpack.c.h.b16 %v1145
      %v1354 = vunpack.c.l.b16 %v1146
      %v1355 = vunpack.c.h.b16 %v1146
      %v1356 = vunpack.c.l.b16 %v1147
      %v1357 = vunpack.c.h.b16 %v1147
      %v1358 = vunpack.c.l.b16 %v1148
      %v1359 = vunpack.c.h.b16 %v1148
      %v1360 = vunpack.c.l.b16 %v1149
      %v1361 = vunpack.c.h.b16 %v1149
      %v1362 = vunpack.c.l.b16 %v1150
      %v1363 = vunpack.c.h.b16 %v1150
      %v1364 = vunpack.c.l.b16 %v1151
      %v1365 = vunpack.c.h.b16 %v1151
      %v1366 = vunpack.c.l.b16 %v1152
      %v1367 = vunpack.c.h.b16 %v1152
      %v1368 = vunpack.c.l.b16 %v1153
      %v1369 = vunpack.c.h.b16 %v1153
      %v1370 = vunpack.c.l.b16 %v1154
      %v1371 = vunpack.c.h.b16 %v1154
      %v1372 = vunpack.c.l.b16 %v1155
      %v1373 = vunpack.c.h.b16 %v1155
      %v1374 = vunpack.c.l.b16 %v1156
      %v1375 = vunpack.c.h.b16 %v1156
      %v1376 = vunpack.c.l.b16 %v1157
      %v1377 = vunpack.c.h.b16 %v1157
      %v1378 = vunpack.c.l.b16 %v1158
      %v1379 = vunpack.c.h.b16 %v1158
      %v1380 = vunpack.c.l.b16 %v1159
      %v1381 = vunpack.c.h.b16 %v1159
      %v1382 = vunpack.c.l.b16 %v1160
      %v1383 = vunpack.c.h.b16 %v1160
      %v1384 = vunpack.c.l.b16 %v1161
      %v1385 = vunpack.c.h.b16 %v1161
      %v1386 = vunpack.c.l.b16 %v1162
      %v1387 = vunpack.c.h.b16 %v1162
      %v1388 = vunpack.c.l.b16 %v1163
      %v1389 = vunpack.c.h.b16 %v1163
      %v1390 = vunpack.c.l.b16 %v1164
      %v1391 = vunpack.c.h.b16 %v1164
      %v1392 = vunpack.c.l.b16 %v1165
      %v1393 = vunpack.c.h.b16 %v1165
      %v1394 = vunpack.c.l.b16 %v1166
      %v1395 = vunpack.c.h.b16 %v1166
      %v1396 = vunpack.c.l.b16 %v1167
      %v1397 = vunpack.c.h.b16 %v1167
      %v1398 = vunpack.c.l.b16 %v1168
      %v1399 = vunpack.c.h.b16 %v1168
      %v1400 = vunpack.c.l.b16 %v1169
      %v1401 = vunpack.c.h.b16 %v1169
      %v1402 = vunpack.c.l.b16 %v1170
      %v1403 = vunpack.c.h.b16 %v1170
      %v1404 = vunpack.c.l.b16 %v1171
      %v1405 = vunpack.c.h.b16 %v1171
      %v1406 = vpack.c.b16 %v1286, %v1278
      %v1407 = vpack.c.b16 %v1287, %v1279
      %v1408 = vpack.c.b16 %v1288, %v1280
      %v1409 = vpack.c.b16 %v1289, %v1281
      %v1410 = vpack.c.b16 %v1290, %v1282
      %v1411 = vpack.c.b16 %v1291, %v1283
      %v1412 = vpack.c.b16 %v1292, %v1284
      %v1413 = vpack.c.b16 %v1293, %v1285
      %v1414 = vpack.c.b16 %v1302, %v1294
      %v1415 = vpack.c.b16 %v1303, %v1295
      %v1416 = vpack.c.b16 %v1304, %v1296
      %v1417 = vpack.c.b16 %v1305, %v1297
      %v1418 = vpack.c.b16 %v1306, %v1298
      %v1419 = vpack.c.b16 %v1307, %v1299
      %v1420 = vpack.c.b16 %v1308, %v1300
      %v1421 = vpack.c.b16 %v1309, %v1301
      %v1422 = vpack.c.b16 %v1318, %v1310
      %v1423 = vpack.c.b16 %v1319, %v1311
      %v1424 = vpack.c.b16 %v1320, %v1312
      %v1425 = vpack.c.b16 %v1321, %v1313
      %v1426 = vpack.c.b16 %v1322, %v1314
      %v1427 = vpack.c.b16 %v1323, %v1315
      %v1428 = vpack.c.b16 %v1324, %v1316
      %v1429 = vpack.c.b16 %v1325, %v1317
      %v1430 = vpack.c.b16 %v1334, %v1326
      %v1431 = vpack.c.b16 %v1335, %v1327
      %v1432 = vpack.c.b16 %v1336, %v1328
      %v1433 = vpack.c.b16 %v1337, %v1329
      %v1434 = vpack.c.b16 %v1338, %v1330
      %v1435 = vpack.c.b16 %v1339, %v1331
      %v1436 = vpack.c.b16 %v1340, %v1332
      %v1437 = vpack.c.b16 %v1341, %v1333
      %v1438 = vpack.c.b16 %v1350, %v1342
      %v1439 = vpack.c.b16 %v1351, %v1343
      %v1440 = vpack.c.b16 %v1352, %v1344
      %v1441 = vpack.c.b16 %v1353, %v1345
      %v1442 = vpack.c.b16 %v1354, %v1346
      %v1443 = vpack.c.b16 %v1355, %v1347
      %v1444 = vpack.c.b16 %v1356, %v1348
      %v1445 = vpack.c.b16 %v1357, %v1349
      %v1446 = vpack.c.b16 %v1366, %v1358
      %v1447 = vpack.c.b16 %v1367, %v1359
      %v1448 = vpack.c.b16 %v1368, %v1360
      %v1449 = vpack.c.b16 %v1369, %v1361
      %v1450 = vpack.c.b16 %v1370, %v1362
      %v1451 = vpack.c.b16 %v1371, %v1363
      %v1452 = vpack.c.b16 %v1372, %v1364
      %v1453 = vpack.c.b16 %v1373, %v1365
      %v1454 = vpack.c.b16 %v1382, %v1374
      %v1455 = vpack.c.b16 %v1383, %v1375
      %v1456 = vpack.c.b16 %v1384, %v1376
      %v1457 = vpack.c.b16 %v1385, %v1377
      %v1458 = vpack.c.b16 %v1386, %v1378
      %v1459 = vpack.c.b16 %v1387, %v1379
      %v1460 = vpack.c.b16 %v1388, %v1380
      %v1461 = vpack.c.b16 %v1389, %v1381
      %v1462 = vpack.c.b16 %v1398, %v1390
      %v1463 = vpack.c.b16 %v1399, %v1391
      %v1464 = vpack.c.b16 %v1400, %v1392
      %v1465 = vpack.c.b16 %v1401, %v1393
      %v1466 = vpack.c.b16 %v1402, %v1394
      %v1467 = vpack.c.b16 %v1403, %v1395
      %v1468 = vpack.c.b16 %v1404, %v1396
      %v1469 = vpack.c.b16 %v1405, %v1397
      %1534 = vmatprep.subr.bf16.mxu0 %v1463
      %1535 = vmatpush1.bf16.msra.mxu0 %v1462
      %1536 = vmatprep.subr.bf16.mxu0 %v1455
      %1537 = vmatpush1.bf16.msra.mxu0 %v1454
      %1538 = vmatprep.subr.bf16.mxu0 %v1447
      %1539 = vmatpush1.bf16.msra.mxu0 %v1446
      %1540 = vmatprep.subr.bf16.mxu0 %v1439
      %1541 = vmatpush1.bf16.msra.mxu0 %v1438
      %1542 = vmatprep.subr.bf16.mxu0 %v1431
      %1543 = vmatpush1.bf16.msra.mxu0 %v1430
      %1544 = vmatprep.subr.bf16.mxu0 %v1423
      %1545 = vmatpush1.bf16.msra.mxu0 %v1422
      %1546 = vmatprep.subr.bf16.mxu0 %v1415
      %1547 = vmatpush1.bf16.msra.mxu0 %v1414
      %1548 = vmatprep.subr.bf16.mxu0 %v1407
      %1549 = vmatpush1.bf16.msra.mxu0 %v1406
      %1550 = vmatprep.subr.bf16.mxu0 0
      %1551 = vmatpush2.bf16.msra.mxu0 0
      %1552 = vmatprep.subr.bf16.mxu0 0
      %1553 = vmatpush2.bf16.msra.mxu0 0
      %1554 = vmatprep.subr.bf16.mxu0 0
      %1555 = vmatpush2.bf16.msra.mxu0 0
      %1556 = vmatprep.subr.bf16.mxu0 0
      %1557 = vmatpush2.bf16.msra.mxu0 0
      %1558 = vmatprep.subr.bf16.mxu0 0
      %1559 = vmatpush2.bf16.msra.mxu0 0
      %1560 = vmatprep.subr.bf16.mxu0 0
      %1561 = vmatpush2.bf16.msra.mxu0 0
      %1562 = vmatprep.subr.bf16.mxu0 0
      %1563 = vmatpush2.bf16.msra.mxu0 0
      %1564 = vmatprep.subr.bf16.mxu0 0
      %1565 = vmatpush2.bf16.msra.mxu0 0
      %1566 = vmatprep.mubr.bf16.mxu0 0
      %1567 = vmatmul.mubr.bf16.gmra.mxu0 %v1092
      %v1568 = vpop.f32.mrf.mxu0
      %v1569 = vadd.f32 %v1177, %v1568
      %v1570 = vpop.f32.mrf.mxu0
      %v1571 = vadd.f32 %v1181, %v1570
      %v1572 = vpop.f32.mrf.mxu0
      %v1573 = vadd.f32 %v1177, %v1572
      %v1574 = vpop.f32.mrf.mxu0
      %v1575 = vadd.f32 %v1181, %v1574
      %1576 = vmatprep.mubr.bf16.mxu0 0
      %1577 = vmatmul.mubr.bf16.gmra.mxu0 %v1093
      %v1578 = vpop.f32.mrf.mxu0
      %v1579 = vadd.f32 %v1177, %v1578
      %v1580 = vpop.f32.mrf.mxu0
      %v1581 = vadd.f32 %v1181, %v1580
      %v1582 = vpop.f32.mrf.mxu0
      %v1583 = vadd.f32 %v1177, %v1582
      %v1584 = vpop.f32.mrf.mxu0
      %v1585 = vadd.f32 %v1181, %v1584
      %1586 = vmatprep.mubr.bf16.mxu0 0
      %1587 = vmatmul.mubr.bf16.gmra.mxu0 %v1094
      %v1588 = vpop.f32.mrf.mxu0
      %v1589 = vadd.f32 %v1177, %v1588
      %v1590 = vpop.f32.mrf.mxu0
      %v1591 = vadd.f32 %v1181, %v1590
      %v1592 = vpop.f32.mrf.mxu0
      %v1593 = vadd.f32 %v1177, %v1592
      %v1594 = vpop.f32.mrf.mxu0
      %v1595 = vadd.f32 %v1181, %v1594
      %1596 = vmatprep.mubr.bf16.mxu0 0
      %1597 = vmatmul.mubr.bf16.gmra.mxu0 %v1095
      %v1598 = vpop.f32.mrf.mxu0
      %v1599 = vadd.f32 %v1177, %v1598
      %v1600 = vpop.f32.mrf.mxu0
      %v1601 = vadd.f32 %v1181, %v1600
      %v1602 = vpop.f32.mrf.mxu0
      %v1603 = vadd.f32 %v1177, %v1602
      %v1604 = vpop.f32.mrf.mxu0
      %v1605 = vadd.f32 %v1181, %v1604
      %1606 = vmatprep.mubr.bf16.mxu0 0
      %1607 = vmatmul.mubr.bf16.gmra.mxu0 %v1096
      %v1608 = vpop.f32.mrf.mxu0
      %v1609 = vadd.f32 %v1177, %v1608
      %v1610 = vpop.f32.mrf.mxu0
      %v1611 = vadd.f32 %v1181, %v1610
      %v1612 = vpop.f32.mrf.mxu0
      %v1613 = vadd.f32 %v1177, %v1612
      %v1614 = vpop.f32.mrf.mxu0
      %v1615 = vadd.f32 %v1181, %v1614
      %1616 = vmatprep.mubr.bf16.mxu0 0
      %1617 = vmatmul.mubr.bf16.gmra.mxu0 %v1097
      %v1618 = vpop.f32.mrf.mxu0
      %v1619 = vadd.f32 %v1177, %v1618
      %v1620 = vpop.f32.mrf.mxu0
      %v1621 = vadd.f32 %v1181, %v1620
      %v1622 = vpop.f32.mrf.mxu0
      %v1623 = vadd.f32 %v1177, %v1622
      %v1624 = vpop.f32.mrf.mxu0
      %v1625 = vadd.f32 %v1181, %v1624
      %1626 = vmatprep.mubr.bf16.mxu0 0
      %1627 = vmatmul.mubr.bf16.gmra.mxu0 %v1098
      %v1628 = vpop.f32.mrf.mxu0
      %v1629 = vadd.f32 %v1177, %v1628
      %v1630 = vpop.f32.mrf.mxu0
      %v1631 = vadd.f32 %v1181, %v1630
      %v1632 = vpop.f32.mrf.mxu0
      %v1633 = vadd.f32 %v1177, %v1632
      %v1634 = vpop.f32.mrf.mxu0
      %v1635 = vadd.f32 %v1181, %v1634
      %1636 = vmatprep.mubr.bf16.mxu0 0
      %1637 = vmatmul.mubr.bf16.gmra.mxu0 %v1099
      %v1638 = vpop.f32.mrf.mxu0
      %v1639 = vadd.f32 %v1177, %v1638
      %v1640 = vpop.f32.mrf.mxu0
      %v1641 = vadd.f32 %v1181, %v1640
      %v1642 = vpop.f32.mrf.mxu0
      %v1643 = vadd.f32 %v1177, %v1642
      %v1644 = vpop.f32.mrf.mxu0
      %v1645 = vadd.f32 %v1181, %v1644
      %1646 = vmatprep.mubr.bf16.mxu0 0
      %1647 = vmatmul.mubr.bf16.gmra.mxu0 %v1100
      %v1648 = vpop.f32.mrf.mxu0
      %v1649 = vadd.f32 %v1177, %v1648
      %v1650 = vpop.f32.mrf.mxu0
      %v1651 = vadd.f32 %v1181, %v1650
      %v1652 = vpop.f32.mrf.mxu0
      %v1653 = vadd.f32 %v1177, %v1652
      %v1654 = vpop.f32.mrf.mxu0
      %v1655 = vadd.f32 %v1181, %v1654
      %1656 = vmatprep.mubr.bf16.mxu0 0
      %1657 = vmatmul.mubr.bf16.gmra.mxu0 %v1101
      %v1658 = vpop.f32.mrf.mxu0
      %v1659 = vadd.f32 %v1177, %v1658
      %v1660 = vpop.f32.mrf.mxu0
      %v1661 = vadd.f32 %v1181, %v1660
      %v1662 = vpop.f32.mrf.mxu0
      %v1663 = vadd.f32 %v1177, %v1662
      %v1664 = vpop.f32.mrf.mxu0
      %v1665 = vadd.f32 %v1181, %v1664
      %1666 = vmatprep.mubr.bf16.mxu0 0
      %1667 = vmatmul.mubr.bf16.gmra.mxu0 %v1102
      %v1668 = vpop.f32.mrf.mxu0
      %v1669 = vadd.f32 %v1177, %v1668
      %v1670 = vpop.f32.mrf.mxu0
      %v1671 = vadd.f32 %v1181, %v1670
      %v1672 = vpop.f32.mrf.mxu0
      %v1673 = vadd.f32 %v1177, %v1672
      %v1674 = vpop.f32.mrf.mxu0
      %v1675 = vadd.f32 %v1181, %v1674
      %1676 = vmatprep.mubr.bf16.mxu0 0
      %1677 = vmatmul.mubr.bf16.gmra.mxu0 %v1103
      %v1678 = vpop.f32.mrf.mxu0
      %v1679 = vadd.f32 %v1177, %v1678
      %v1680 = vpop.f32.mrf.mxu0
      %v1681 = vadd.f32 %v1181, %v1680
      %v1682 = vpop.f32.mrf.mxu0
      %v1683 = vadd.f32 %v1177, %v1682
      %v1684 = vpop.f32.mrf.mxu0
      %v1685 = vadd.f32 %v1181, %v1684
      %1686 = vmatprep.mubr.bf16.mxu0 0
      %1687 = vmatmul.mubr.bf16.gmra.mxu0 %v1104
      %v1688 = vpop.f32.mrf.mxu0
      %v1689 = vadd.f32 %v1177, %v1688
      %v1690 = vpop.f32.mrf.mxu0
      %v1691 = vadd.f32 %v1181, %v1690
      %v1692 = vpop.f32.mrf.mxu0
      %v1693 = vadd.f32 %v1177, %v1692
      %v1694 = vpop.f32.mrf.mxu0
      %v1695 = vadd.f32 %v1181, %v1694
      %1696 = vmatprep.mubr.bf16.mxu0 0
      %1697 = vmatmul.mubr.bf16.gmra.mxu0 %v1105
      %v1698 = vpop.f32.mrf.mxu0
      %v1699 = vadd.f32 %v1177, %v1698
      %v1700 = vpop.f32.mrf.mxu0
      %v1701 = vadd.f32 %v1181, %v1700
      %v1702 = vpop.f32.mrf.mxu0
      %v1703 = vadd.f32 %v1177, %v1702
      %v1704 = vpop.f32.mrf.mxu0
      %v1705 = vadd.f32 %v1181, %v1704
      %1706 = vmatprep.mubr.bf16.mxu0 0
      %1707 = vmatmul.mubr.bf16.gmra.mxu0 %v1106
      %v1708 = vpop.f32.mrf.mxu0
      %v1709 = vadd.f32 %v1177, %v1708
      %v1710 = vpop.f32.mrf.mxu0
      %v1711 = vadd.f32 %v1181, %v1710
      %v1712 = vpop.f32.mrf.mxu0
      %v1713 = vadd.f32 %v1177, %v1712
      %v1714 = vpop.f32.mrf.mxu0
      %v1715 = vadd.f32 %v1181, %v1714
      %1716 = vmatprep.mubr.bf16.mxu0 0
      %1717 = vmatmul.mubr.bf16.gmra.mxu0 %v1107
      %v1718 = vpop.f32.mrf.mxu0
      %v1719 = vadd.f32 %v1177, %v1718
      %v1720 = vpop.f32.mrf.mxu0
      %v1721 = vadd.f32 %v1181, %v1720
      %v1722 = vpop.f32.mrf.mxu0
      %v1723 = vadd.f32 %v1177, %v1722
      %v1724 = vpop.f32.mrf.mxu0
      %v1725 = vadd.f32 %v1181, %v1724
      %1726 = vdwg.mxu0
      %1727 = vmatprep.subr.bf16.mxu0 %v1465
      %1728 = vmatpush1.bf16.msra.mxu0 %v1464
      %1729 = vmatprep.subr.bf16.mxu0 %v1457
      %1730 = vmatpush1.bf16.msra.mxu0 %v1456
      %1731 = vmatprep.subr.bf16.mxu0 %v1449
      %1732 = vmatpush1.bf16.msra.mxu0 %v1448
      %1733 = vmatprep.subr.bf16.mxu0 %v1441
      %1734 = vmatpush1.bf16.msra.mxu0 %v1440
      %1735 = vmatprep.subr.bf16.mxu0 %v1433
      %1736 = vmatpush1.bf16.msra.mxu0 %v1432
      %1737 = vmatprep.subr.bf16.mxu0 %v1425
      %1738 = vmatpush1.bf16.msra.mxu0 %v1424
      %1739 = vmatprep.subr.bf16.mxu0 %v1417
      %1740 = vmatpush1.bf16.msra.mxu0 %v1416
      %1741 = vmatprep.subr.bf16.mxu0 %v1409
      %1742 = vmatpush1.bf16.msra.mxu0 %v1408
      %1743 = vmatprep.subr.bf16.mxu0 0
      %1744 = vmatpush2.bf16.msra.mxu0 0
      %1745 = vmatprep.subr.bf16.mxu0 0
      %1746 = vmatpush2.bf16.msra.mxu0 0
      %1747 = vmatprep.subr.bf16.mxu0 0
      %1748 = vmatpush2.bf16.msra.mxu0 0
      %1749 = vmatprep.subr.bf16.mxu0 0
      %1750 = vmatpush2.bf16.msra.mxu0 0
      %1751 = vmatprep.subr.bf16.mxu0 0
      %1752 = vmatpush2.bf16.msra.mxu0 0
      %1753 = vmatprep.subr.bf16.mxu0 0
      %1754 = vmatpush2.bf16.msra.mxu0 0
      %1755 = vmatprep.subr.bf16.mxu0 0
      %1756 = vmatpush2.bf16.msra.mxu0 0
      %1757 = vmatprep.subr.bf16.mxu0 0
      %1758 = vmatpush2.bf16.msra.mxu0 0
      %1759 = vmatprep.mubr.bf16.mxu0 0
      %1760 = vmatmul.mubr.bf16.gmra.mxu0 %v1092
      %v1761 = vpop.f32.mrf.mxu0
      %v1762 = vadd.f32 %v1185, %v1761
      %v1763 = vpop.f32.mrf.mxu0
      %v1764 = vadd.f32 %v1189, %v1763
      %v1765 = vpop.f32.mrf.mxu0
      %v1766 = vadd.f32 %v1185, %v1765
      %v1767 = vpop.f32.mrf.mxu0
      %v1768 = vadd.f32 %v1189, %v1767
      %1769 = vmatprep.mubr.bf16.mxu0 0
      %1770 = vmatmul.mubr.bf16.gmra.mxu0 %v1093
      %v1771 = vpop.f32.mrf.mxu0
      %v1772 = vadd.f32 %v1185, %v1771
      %v1773 = vpop.f32.mrf.mxu0
      %v1774 = vadd.f32 %v1189, %v1773
      %v1775 = vpop.f32.mrf.mxu0
      %v1776 = vadd.f32 %v1185, %v1775
      %v1777 = vpop.f32.mrf.mxu0
      %v1778 = vadd.f32 %v1189, %v1777
      %1779 = vmatprep.mubr.bf16.mxu0 0
      %1780 = vmatmul.mubr.bf16.gmra.mxu0 %v1094
      %v1781 = vpop.f32.mrf.mxu0
      %v1782 = vadd.f32 %v1185, %v1781
      %v1783 = vpop.f32.mrf.mxu0
      %v1784 = vadd.f32 %v1189, %v1783
      %v1785 = vpop.f32.mrf.mxu0
      %v1786 = vadd.f32 %v1185, %v1785
      %v1787 = vpop.f32.mrf.mxu0
      %v1788 = vadd.f32 %v1189, %v1787
      %1789 = vmatprep.mubr.bf16.mxu0 0
      %1790 = vmatmul.mubr.bf16.gmra.mxu0 %v1095
      %v1791 = vpop.f32.mrf.mxu0
      %v1792 = vadd.f32 %v1185, %v1791
      %v1793 = vpop.f32.mrf.mxu0
      %v1794 = vadd.f32 %v1189, %v1793
      %v1795 = vpop.f32.mrf.mxu0
      %v1796 = vadd.f32 %v1185, %v1795
      %v1797 = vpop.f32.mrf.mxu0
      %v1798 = vadd.f32 %v1189, %v1797
      %1799 = vmatprep.mubr.bf16.mxu0 0
      %1800 = vmatmul.mubr.bf16.gmra.mxu0 %v1096
      %v1801 = vpop.f32.mrf.mxu0
      %v1802 = vadd.f32 %v1185, %v1801
      %v1803 = vpop.f32.mrf.mxu0
      %v1804 = vadd.f32 %v1189, %v1803
      %v1805 = vpop.f32.mrf.mxu0
      %v1806 = vadd.f32 %v1185, %v1805
      %v1807 = vpop.f32.mrf.mxu0
      %v1808 = vadd.f32 %v1189, %v1807
      %1809 = vmatprep.mubr.bf16.mxu0 0
      %1810 = vmatmul.mubr.bf16.gmra.mxu0 %v1097
      %v1811 = vpop.f32.mrf.mxu0
      %v1812 = vadd.f32 %v1185, %v1811
      %v1813 = vpop.f32.mrf.mxu0
      %v1814 = vadd.f32 %v1189, %v1813
      %v1815 = vpop.f32.mrf.mxu0
      %v1816 = vadd.f32 %v1185, %v1815
      %v1817 = vpop.f32.mrf.mxu0
      %v1818 = vadd.f32 %v1189, %v1817
      %1819 = vmatprep.mubr.bf16.mxu0 0
      %1820 = vmatmul.mubr.bf16.gmra.mxu0 %v1098
      %v1821 = vpop.f32.mrf.mxu0
      %v1822 = vadd.f32 %v1185, %v1821
      %v1823 = vpop.f32.mrf.mxu0
      %v1824 = vadd.f32 %v1189, %v1823
      %v1825 = vpop.f32.mrf.mxu0
      %v1826 = vadd.f32 %v1185, %v1825
      %v1827 = vpop.f32.mrf.mxu0
      %v1828 = vadd.f32 %v1189, %v1827
      %1829 = vmatprep.mubr.bf16.mxu0 0
      %1830 = vmatmul.mubr.bf16.gmra.mxu0 %v1099
      %v1831 = vpop.f32.mrf.mxu0
      %v1832 = vadd.f32 %v1185, %v1831
      %v1833 = vpop.f32.mrf.mxu0
      %v1834 = vadd.f32 %v1189, %v1833
      %v1835 = vpop.f32.mrf.mxu0
      %v1836 = vadd.f32 %v1185, %v1835
      %v1837 = vpop.f32.mrf.mxu0
      %v1838 = vadd.f32 %v1189, %v1837
      %1839 = vmatprep.mubr.bf16.mxu0 0
      %1840 = vmatmul.mubr.bf16.gmra.mxu0 %v1100
      %v1841 = vpop.f32.mrf.mxu0
      %v1842 = vadd.f32 %v1185, %v1841
      %v1843 = vpop.f32.mrf.mxu0
      %v1844 = vadd.f32 %v1189, %v1843
      %v1845 = vpop.f32.mrf.mxu0
      %v1846 = vadd.f32 %v1185, %v1845
      %v1847 = vpop.f32.mrf.mxu0
      %v1848 = vadd.f32 %v1189, %v1847
      %1849 = vmatprep.mubr.bf16.mxu0 0
      %1850 = vmatmul.mubr.bf16.gmra.mxu0 %v1101
      %v1851 = vpop.f32.mrf.mxu0
      %v1852 = vadd.f32 %v1185, %v1851
      %v1853 = vpop.f32.mrf.mxu0
      %v1854 = vadd.f32 %v1189, %v1853
      %v1855 = vpop.f32.mrf.mxu0
      %v1856 = vadd.f32 %v1185, %v1855
      %v1857 = vpop.f32.mrf.mxu0
      %v1858 = vadd.f32 %v1189, %v1857
      %1859 = vmatprep.mubr.bf16.mxu0 0
      %1860 = vmatmul.mubr.bf16.gmra.mxu0 %v1102
      %v1861 = vpop.f32.mrf.mxu0
      %v1862 = vadd.f32 %v1185, %v1861
      %v1863 = vpop.f32.mrf.mxu0
      %v1864 = vadd.f32 %v1189, %v1863
      %v1865 = vpop.f32.mrf.mxu0
      %v1866 = vadd.f32 %v1185, %v1865
      %v1867 = vpop.f32.mrf.mxu0
      %v1868 = vadd.f32 %v1189, %v1867
      %1869 = vmatprep.mubr.bf16.mxu0 0
      %1870 = vmatmul.mubr.bf16.gmra.mxu0 %v1103
      %v1871 = vpop.f32.mrf.mxu0
      %v1872 = vadd.f32 %v1185, %v1871
      %v1873 = vpop.f32.mrf.mxu0
      %v1874 = vadd.f32 %v1189, %v1873
      %v1875 = vpop.f32.mrf.mxu0
      %v1876 = vadd.f32 %v1185, %v1875
      %v1877 = vpop.f32.mrf.mxu0
      %v1878 = vadd.f32 %v1189, %v1877
      %1879 = vmatprep.mubr.bf16.mxu0 0
      %1880 = vmatmul.mubr.bf16.gmra.mxu0 %v1104
      %v1881 = vpop.f32.mrf.mxu0
      %v1882 = vadd.f32 %v1185, %v1881
      %v1883 = vpop.f32.mrf.mxu0
      %v1884 = vadd.f32 %v1189, %v1883
      %v1885 = vpop.f32.mrf.mxu0
      %v1886 = vadd.f32 %v1185, %v1885
      %v1887 = vpop.f32.mrf.mxu0
      %v1888 = vadd.f32 %v1189, %v1887
      %1889 = vmatprep.mubr.bf16.mxu0 0
      %1890 = vmatmul.mubr.bf16.gmra.mxu0 %v1105
      %v1891 = vpop.f32.mrf.mxu0
      %v1892 = vadd.f32 %v1185, %v1891
      %v1893 = vpop.f32.mrf.mxu0
      %v1894 = vadd.f32 %v1189, %v1893
      %v1895 = vpop.f32.mrf.mxu0
      %v1896 = vadd.f32 %v1185, %v1895
      %v1897 = vpop.f32.mrf.mxu0
      %v1898 = vadd.f32 %v1189, %v1897
      %1899 = vmatprep.mubr.bf16.mxu0 0
      %1900 = vmatmul.mubr.bf16.gmra.mxu0 %v1106
      %v1901 = vpop.f32.mrf.mxu0
      %v1902 = vadd.f32 %v1185, %v1901
      %v1903 = vpop.f32.mrf.mxu0
      %v1904 = vadd.f32 %v1189, %v1903
      %v1905 = vpop.f32.mrf.mxu0
      %v1906 = vadd.f32 %v1185, %v1905
      %v1907 = vpop.f32.mrf.mxu0
      %v1908 = vadd.f32 %v1189, %v1907
      %1909 = vmatprep.mubr.bf16.mxu0 0
      %1910 = vmatmul.mubr.bf16.gmra.mxu0 %v1107
      %v1911 = vpop.f32.mrf.mxu0
      %v1912 = vadd.f32 %v1185, %v1911
      %v1913 = vpop.f32.mrf.mxu0
      %v1914 = vadd.f32 %v1189, %v1913
      %v1915 = vpop.f32.mrf.mxu0
      %v1916 = vadd.f32 %v1185, %v1915
      %v1917 = vpop.f32.mrf.mxu0
      %v1918 = vadd.f32 %v1189, %v1917
      %1919 = vdwg.mxu0
      %1920 = vmatprep.subr.bf16.mxu0 %v1467
      %1921 = vmatpush1.bf16.msra.mxu0 %v1466
      %1922 = vmatprep.subr.bf16.mxu0 %v1459
      %1923 = vmatpush1.bf16.msra.mxu0 %v1458
      %1924 = vmatprep.subr.bf16.mxu0 %v1451
      %1925 = vmatpush1.bf16.msra.mxu0 %v1450
      %1926 = vmatprep.subr.bf16.mxu0 %v1443
      %1927 = vmatpush1.bf16.msra.mxu0 %v1442
      %1928 = vmatprep.subr.bf16.mxu0 %v1435
      %1929 = vmatpush1.bf16.msra.mxu0 %v1434
      %1930 = vmatprep.subr.bf16.mxu0 %v1427
      %1931 = vmatpush1.bf16.msra.mxu0 %v1426
      %1932 = vmatprep.subr.bf16.mxu0 %v1419
      %1933 = vmatpush1.bf16.msra.mxu0 %v1418
      %1934 = vmatprep.subr.bf16.mxu0 %v1411
      %1935 = vmatpush1.bf16.msra.mxu0 %v1410
      %1936 = vmatprep.subr.bf16.mxu0 0
      %1937 = vmatpush2.bf16.msra.mxu0 0
      %1938 = vmatprep.subr.bf16.mxu0 0
      %1939 = vmatpush2.bf16.msra.mxu0 0
      %1940 = vmatprep.subr.bf16.mxu0 0
      %1941 = vmatpush2.bf16.msra.mxu0 0
      %1942 = vmatprep.subr.bf16.mxu0 0
      %1943 = vmatpush2.bf16.msra.mxu0 0
      %1944 = vmatprep.subr.bf16.mxu0 0
      %1945 = vmatpush2.bf16.msra.mxu0 0
      %1946 = vmatprep.subr.bf16.mxu0 0
      %1947 = vmatpush2.bf16.msra.mxu0 0
      %1948 = vmatprep.subr.bf16.mxu0 0
      %1949 = vmatpush2.bf16.msra.mxu0 0
      %1950 = vmatprep.subr.bf16.mxu0 0
      %1951 = vmatpush2.bf16.msra.mxu0 0
      %1952 = vmatprep.mubr.bf16.mxu0 0
      %1953 = vmatmul.mubr.bf16.gmra.mxu0 %v1092
      %v1954 = vpop.f32.mrf.mxu0
      %v1955 = vadd.f32 %v1193, %v1954
      %v1956 = vpop.f32.mrf.mxu0
      %v1957 = vadd.f32 %v1197, %v1956
      %v1958 = vpop.f32.mrf.mxu0
      %v1959 = vadd.f32 %v1193, %v1958
      %v1960 = vpop.f32.mrf.mxu0
      %v1961 = vadd.f32 %v1197, %v1960
      %1962 = vmatprep.mubr.bf16.mxu0 0
      %1963 = vmatmul.mubr.bf16.gmra.mxu0 %v1093
      %v1964 = vpop.f32.mrf.mxu0
      %v1965 = vadd.f32 %v1193, %v1964
      %v1966 = vpop.f32.mrf.mxu0
      %v1967 = vadd.f32 %v1197, %v1966
      %v1968 = vpop.f32.mrf.mxu0
      %v1969 = vadd.f32 %v1193, %v1968
      %v1970 = vpop.f32.mrf.mxu0
      %v1971 = vadd.f32 %v1197, %v1970
      %1972 = vmatprep.mubr.bf16.mxu0 0
      %1973 = vmatmul.mubr.bf16.gmra.mxu0 %v1094
      %v1974 = vpop.f32.mrf.mxu0
      %v1975 = vadd.f32 %v1193, %v1974
      %v1976 = vpop.f32.mrf.mxu0
      %v1977 = vadd.f32 %v1197, %v1976
      %v1978 = vpop.f32.mrf.mxu0
      %v1979 = vadd.f32 %v1193, %v1978
      %v1980 = vpop.f32.mrf.mxu0
      %v1981 = vadd.f32 %v1197, %v1980
      %1982 = vmatprep.mubr.bf16.mxu0 0
      %1983 = vmatmul.mubr.bf16.gmra.mxu0 %v1095
      %v1984 = vpop.f32.mrf.mxu0
      %v1985 = vadd.f32 %v1193, %v1984
      %v1986 = vpop.f32.mrf.mxu0
      %v1987 = vadd.f32 %v1197, %v1986
      %v1988 = vpop.f32.mrf.mxu0
      %v1989 = vadd.f32 %v1193, %v1988
      %v1990 = vpop.f32.mrf.mxu0
      %v1991 = vadd.f32 %v1197, %v1990
      %1992 = vmatprep.mubr.bf16.mxu0 0
      %1993 = vmatmul.mubr.bf16.gmra.mxu0 %v1096
      %v1994 = vpop.f32.mrf.mxu0
      %v1995 = vadd.f32 %v1193, %v1994
      %v1996 = vpop.f32.mrf.mxu0
      %v1997 = vadd.f32 %v1197, %v1996
      %v1998 = vpop.f32.mrf.mxu0
      %v1999 = vadd.f32 %v1193, %v1998
      %v2000 = vpop.f32.mrf.mxu0
      %v2001 = vadd.f32 %v1197, %v2000
      %2002 = vmatprep.mubr.bf16.mxu0 0
      %2003 = vmatmul.mubr.bf16.gmra.mxu0 %v1097
      %v2004 = vpop.f32.mrf.mxu0
      %v2005 = vadd.f32 %v1193, %v2004
      %v2006 = vpop.f32.mrf.mxu0
      %v2007 = vadd.f32 %v1197, %v2006
      %v2008 = vpop.f32.mrf.mxu0
      %v2009 = vadd.f32 %v1193, %v2008
      %v2010 = vpop.f32.mrf.mxu0
      %v2011 = vadd.f32 %v1197, %v2010
      %2012 = vmatprep.mubr.bf16.mxu0 0
      %2013 = vmatmul.mubr.bf16.gmra.mxu0 %v1098
      %v2014 = vpop.f32.mrf.mxu0
      %v2015 = vadd.f32 %v1193, %v2014
      %v2016 = vpop.f32.mrf.mxu0
      %v2017 = vadd.f32 %v1197, %v2016
      %v2018 = vpop.f32.mrf.mxu0
      %v2019 = vadd.f32 %v1193, %v2018
      %v2020 = vpop.f32.mrf.mxu0
      %v2021 = vadd.f32 %v1197, %v2020
      %2022 = vmatprep.mubr.bf16.mxu0 0
      %2023 = vmatmul.mubr.bf16.gmra.mxu0 %v1099
      %v2024 = vpop.f32.mrf.mxu0
      %v2025 = vadd.f32 %v1193, %v2024
      %v2026 = vpop.f32.mrf.mxu0
      %v2027 = vadd.f32 %v1197, %v2026
      %v2028 = vpop.f32.mrf.mxu0
      %v2029 = vadd.f32 %v1193, %v2028
      %v2030 = vpop.f32.mrf.mxu0
      %v2031 = vadd.f32 %v1197, %v2030
      %2032 = vmatprep.mubr.bf16.mxu0 0
      %2033 = vmatmul.mubr.bf16.gmra.mxu0 %v1100
      %v2034 = vpop.f32.mrf.mxu0
      %v2035 = vadd.f32 %v1193, %v2034
      %v2036 = vpop.f32.mrf.mxu0
      %v2037 = vadd.f32 %v1197, %v2036
      %v2038 = vpop.f32.mrf.mxu0
      %v2039 = vadd.f32 %v1193, %v2038
      %v2040 = vpop.f32.mrf.mxu0
      %v2041 = vadd.f32 %v1197, %v2040
      %2042 = vmatprep.mubr.bf16.mxu0 0
      %2043 = vmatmul.mubr.bf16.gmra.mxu0 %v1101
      %v2044 = vpop.f32.mrf.mxu0
      %v2045 = vadd.f32 %v1193, %v2044
      %v2046 = vpop.f32.mrf.mxu0
      %v2047 = vadd.f32 %v1197, %v2046
      %v2048 = vpop.f32.mrf.mxu0
      %v2049 = vadd.f32 %v1193, %v2048
      %v2050 = vpop.f32.mrf.mxu0
      %v2051 = vadd.f32 %v1197, %v2050
      %2052 = vmatprep.mubr.bf16.mxu0 0
      %2053 = vmatmul.mubr.bf16.gmra.mxu0 %v1102
      %v2054 = vpop.f32.mrf.mxu0
      %v2055 = vadd.f32 %v1193, %v2054
      %v2056 = vpop.f32.mrf.mxu0
      %v2057 = vadd.f32 %v1197, %v2056
      %v2058 = vpop.f32.mrf.mxu0
      %v2059 = vadd.f32 %v1193, %v2058
      %v2060 = vpop.f32.mrf.mxu0
      %v2061 = vadd.f32 %v1197, %v2060
      %2062 = vmatprep.mubr.bf16.mxu0 0
      %2063 = vmatmul.mubr.bf16.gmra.mxu0 %v1103
      %v2064 = vpop.f32.mrf.mxu0
      %v2065 = vadd.f32 %v1193, %v2064
      %v2066 = vpop.f32.mrf.mxu0
      %v2067 = vadd.f32 %v1197, %v2066
      %v2068 = vpop.f32.mrf.mxu0
      %v2069 = vadd.f32 %v1193, %v2068
      %v2070 = vpop.f32.mrf.mxu0
      %v2071 = vadd.f32 %v1197, %v2070
      %2072 = vmatprep.mubr.bf16.mxu0 0
      %2073 = vmatmul.mubr.bf16.gmra.mxu0 %v1104
      %v2074 = vpop.f32.mrf.mxu0
      %v2075 = vadd.f32 %v1193, %v2074
      %v2076 = vpop.f32.mrf.mxu0
      %v2077 = vadd.f32 %v1197, %v2076
      %v2078 = vpop.f32.mrf.mxu0
      %v2079 = vadd.f32 %v1193, %v2078
      %v2080 = vpop.f32.mrf.mxu0
      %v2081 = vadd.f32 %v1197, %v2080
      %2082 = vmatprep.mubr.bf16.mxu0 0
      %2083 = vmatmul.mubr.bf16.gmra.mxu0 %v1105
      %v2084 = vpop.f32.mrf.mxu0
      %v2085 = vadd.f32 %v1193, %v2084
      %v2086 = vpop.f32.mrf.mxu0
      %v2087 = vadd.f32 %v1197, %v2086
      %v2088 = vpop.f32.mrf.mxu0
      %v2089 = vadd.f32 %v1193, %v2088
      %v2090 = vpop.f32.mrf.mxu0
      %v2091 = vadd.f32 %v1197, %v2090
      %2092 = vmatprep.mubr.bf16.mxu0 0
      %2093 = vmatmul.mubr.bf16.gmra.mxu0 %v1106
      %v2094 = vpop.f32.mrf.mxu0
      %v2095 = vadd.f32 %v1193, %v2094
      %v2096 = vpop.f32.mrf.mxu0
      %v2097 = vadd.f32 %v1197, %v2096
      %v2098 = vpop.f32.mrf.mxu0
      %v2099 = vadd.f32 %v1193, %v2098
      %v2100 = vpop.f32.mrf.mxu0
      %v2101 = vadd.f32 %v1197, %v2100
      %2102 = vmatprep.mubr.bf16.mxu0 0
      %2103 = vmatmul.mubr.bf16.gmra.mxu0 %v1107
      %v2104 = vpop.f32.mrf.mxu0
      %v2105 = vadd.f32 %v1193, %v2104
      %v2106 = vpop.f32.mrf.mxu0
      %v2107 = vadd.f32 %v1197, %v2106
      %v2108 = vpop.f32.mrf.mxu0
      %v2109 = vadd.f32 %v1193, %v2108
      %v2110 = vpop.f32.mrf.mxu0
      %v2111 = vadd.f32 %v1197, %v2110
      %2112 = vdwg.mxu0
      %2113 = vmatprep.subr.bf16.mxu0 %v1469
      %2114 = vmatpush1.bf16.msra.mxu0 %v1468
      %2115 = vmatprep.subr.bf16.mxu0 %v1461
      %2116 = vmatpush1.bf16.msra.mxu0 %v1460
      %2117 = vmatprep.subr.bf16.mxu0 %v1453
      %2118 = vmatpush1.bf16.msra.mxu0 %v1452
      %2119 = vmatprep.subr.bf16.mxu0 %v1445
      %2120 = vmatpush1.bf16.msra.mxu0 %v1444
      %2121 = vmatprep.subr.bf16.mxu0 %v1437
      %2122 = vmatpush1.bf16.msra.mxu0 %v1436
      %2123 = vmatprep.subr.bf16.mxu0 %v1429
      %2124 = vmatpush1.bf16.msra.mxu0 %v1428
      %2125 = vmatprep.subr.bf16.mxu0 %v1421
      %2126 = vmatpush1.bf16.msra.mxu0 %v1420
      %2127 = vmatprep.subr.bf16.mxu0 %v1413
      %2128 = vmatpush1.bf16.msra.mxu0 %v1412
      %2129 = vmatprep.subr.bf16.mxu0 0
      %2130 = vmatpush2.bf16.msra.mxu0 0
      %2131 = vmatprep.subr.bf16.mxu0 0
      %2132 = vmatpush2.bf16.msra.mxu0 0
      %2133 = vmatprep.subr.bf16.mxu0 0
      %2134 = vmatpush2.bf16.msra.mxu0 0
      %2135 = vmatprep.subr.bf16.mxu0 0
      %2136 = vmatpush2.bf16.msra.mxu0 0
      %2137 = vmatprep.subr.bf16.mxu0 0
      %2138 = vmatpush2.bf16.msra.mxu0 0
      %2139 = vmatprep.subr.bf16.mxu0 0
      %2140 = vmatpush2.bf16.msra.mxu0 0
      %2141 = vmatprep.subr.bf16.mxu0 0
      %2142 = vmatpush2.bf16.msra.mxu0 0
      %2143 = vmatprep.subr.bf16.mxu0 0
      %2144 = vmatpush2.bf16.msra.mxu0 0
      %2145 = vmatprep.mubr.bf16.mxu0 0
      %2146 = vmatmul.mubr.bf16.gmra.mxu0 %v1092
      %v2147 = vpop.f32.mrf.mxu0
      %v2148 = vadd.f32 %v1201, %v2147
      %v2149 = vpop.f32.mrf.mxu0
      %v2150 = vadd.f32 %v1205, %v2149
      %v2151 = vpop.f32.mrf.mxu0
      %v2152 = vadd.f32 %v1201, %v2151
      %v2153 = vpop.f32.mrf.mxu0
      %v2154 = vadd.f32 %v1205, %v2153
      %2155 = vmatprep.mubr.bf16.mxu0 0
      %2156 = vmatmul.mubr.bf16.gmra.mxu0 %v1093
      %v2157 = vpop.f32.mrf.mxu0
      %v2158 = vadd.f32 %v1201, %v2157
      %v2159 = vpop.f32.mrf.mxu0
      %v2160 = vadd.f32 %v1205, %v2159
      %v2161 = vpop.f32.mrf.mxu0
      %v2162 = vadd.f32 %v1201, %v2161
      %v2163 = vpop.f32.mrf.mxu0
      %v2164 = vadd.f32 %v1205, %v2163
      %2165 = vmatprep.mubr.bf16.mxu0 0
      %2166 = vmatmul.mubr.bf16.gmra.mxu0 %v1094
      %v2167 = vpop.f32.mrf.mxu0
      %v2168 = vadd.f32 %v1201, %v2167
      %v2169 = vpop.f32.mrf.mxu0
      %v2170 = vadd.f32 %v1205, %v2169
      %v2171 = vpop.f32.mrf.mxu0
      %v2172 = vadd.f32 %v1201, %v2171
      %v2173 = vpop.f32.mrf.mxu0
      %v2174 = vadd.f32 %v1205, %v2173
      %2175 = vmatprep.mubr.bf16.mxu0 0
      %2176 = vmatmul.mubr.bf16.gmra.mxu0 %v1095
      %v2177 = vpop.f32.mrf.mxu0
      %v2178 = vadd.f32 %v1201, %v2177
      %v2179 = vpop.f32.mrf.mxu0
      %v2180 = vadd.f32 %v1205, %v2179
      %v2181 = vpop.f32.mrf.mxu0
      %v2182 = vadd.f32 %v1201, %v2181
      %v2183 = vpop.f32.mrf.mxu0
      %v2184 = vadd.f32 %v1205, %v2183
      %2185 = vmatprep.mubr.bf16.mxu0 0
      %2186 = vmatmul.mubr.bf16.gmra.mxu0 %v1096
      %v2187 = vpop.f32.mrf.mxu0
      %v2188 = vadd.f32 %v1201, %v2187
      %v2189 = vpop.f32.mrf.mxu0
      %v2190 = vadd.f32 %v1205, %v2189
      %v2191 = vpop.f32.mrf.mxu0
      %v2192 = vadd.f32 %v1201, %v2191
      %v2193 = vpop.f32.mrf.mxu0
      %v2194 = vadd.f32 %v1205, %v2193
      %2195 = vmatprep.mubr.bf16.mxu0 0
      %2196 = vmatmul.mubr.bf16.gmra.mxu0 %v1097
      %v2197 = vpop.f32.mrf.mxu0
      %v2198 = vadd.f32 %v1201, %v2197
      %v2199 = vpop.f32.mrf.mxu0
      %v2200 = vadd.f32 %v1205, %v2199
      %v2201 = vpop.f32.mrf.mxu0
      %v2202 = vadd.f32 %v1201, %v2201
      %v2203 = vpop.f32.mrf.mxu0
      %v2204 = vadd.f32 %v1205, %v2203
      %2205 = vmatprep.mubr.bf16.mxu0 0
      %2206 = vmatmul.mubr.bf16.gmra.mxu0 %v1098
      %v2207 = vpop.f32.mrf.mxu0
      %v2208 = vadd.f32 %v1201, %v2207
      %v2209 = vpop.f32.mrf.mxu0
      %v2210 = vadd.f32 %v1205, %v2209
      %v2211 = vpop.f32.mrf.mxu0
      %v2212 = vadd.f32 %v1201, %v2211
      %v2213 = vpop.f32.mrf.mxu0
      %v2214 = vadd.f32 %v1205, %v2213
      %2215 = vmatprep.mubr.bf16.mxu0 0
      %2216 = vmatmul.mubr.bf16.gmra.mxu0 %v1099
      %v2217 = vpop.f32.mrf.mxu0
      %v2218 = vadd.f32 %v1201, %v2217
      %v2219 = vpop.f32.mrf.mxu0
      %v2220 = vadd.f32 %v1205, %v2219
      %v2221 = vpop.f32.mrf.mxu0
      %v2222 = vadd.f32 %v1201, %v2221
      %v2223 = vpop.f32.mrf.mxu0
      %v2224 = vadd.f32 %v1205, %v2223
      %2225 = vmatprep.mubr.bf16.mxu0 0
      %2226 = vmatmul.mubr.bf16.gmra.mxu0 %v1100
      %v2227 = vpop.f32.mrf.mxu0
      %v2228 = vadd.f32 %v1201, %v2227
      %v2229 = vpop.f32.mrf.mxu0
      %v2230 = vadd.f32 %v1205, %v2229
      %v2231 = vpop.f32.mrf.mxu0
      %v2232 = vadd.f32 %v1201, %v2231
      %v2233 = vpop.f32.mrf.mxu0
      %v2234 = vadd.f32 %v1205, %v2233
      %2235 = vmatprep.mubr.bf16.mxu0 0
      %2236 = vmatmul.mubr.bf16.gmra.mxu0 %v1101
      %v2237 = vpop.f32.mrf.mxu0
      %v2238 = vadd.f32 %v1201, %v2237
      %v2239 = vpop.f32.mrf.mxu0
      %v2240 = vadd.f32 %v1205, %v2239
      %v2241 = vpop.f32.mrf.mxu0
      %v2242 = vadd.f32 %v1201, %v2241
      %v2243 = vpop.f32.mrf.mxu0
      %v2244 = vadd.f32 %v1205, %v2243
      %2245 = vmatprep.mubr.bf16.mxu0 0
      %2246 = vmatmul.mubr.bf16.gmra.mxu0 %v1102
      %v2247 = vpop.f32.mrf.mxu0
      %v2248 = vadd.f32 %v1201, %v2247
      %v2249 = vpop.f32.mrf.mxu0
      %v2250 = vadd.f32 %v1205, %v2249
      %v2251 = vpop.f32.mrf.mxu0
      %v2252 = vadd.f32 %v1201, %v2251
      %v2253 = vpop.f32.mrf.mxu0
      %v2254 = vadd.f32 %v1205, %v2253
      %2255 = vmatprep.mubr.bf16.mxu0 0
      %2256 = vmatmul.mubr.bf16.gmra.mxu0 %v1103
      %v2257 = vpop.f32.mrf.mxu0
      %v2258 = vadd.f32 %v1201, %v2257
      %v2259 = vpop.f32.mrf.mxu0
      %v2260 = vadd.f32 %v1205, %v2259
      %v2261 = vpop.f32.mrf.mxu0
      %v2262 = vadd.f32 %v1201, %v2261
      %v2263 = vpop.f32.mrf.mxu0
      %v2264 = vadd.f32 %v1205, %v2263
      %2265 = vmatprep.mubr.bf16.mxu0 0
      %2266 = vmatmul.mubr.bf16.gmra.mxu0 %v1104
      %v2267 = vpop.f32.mrf.mxu0
      %v2268 = vadd.f32 %v1201, %v2267
      %v2269 = vpop.f32.mrf.mxu0
      %v2270 = vadd.f32 %v1205, %v2269
      %v2271 = vpop.f32.mrf.mxu0
      %v2272 = vadd.f32 %v1201, %v2271
      %v2273 = vpop.f32.mrf.mxu0
      %v2274 = vadd.f32 %v1205, %v2273
      %2275 = vmatprep.mubr.bf16.mxu0 0
      %2276 = vmatmul.mubr.bf16.gmra.mxu0 %v1105
      %v2277 = vpop.f32.mrf.mxu0
      %v2278 = vadd.f32 %v1201, %v2277
      %v2279 = vpop.f32.mrf.mxu0
      %v2280 = vadd.f32 %v1205, %v2279
      %v2281 = vpop.f32.mrf.mxu0
      %v2282 = vadd.f32 %v1201, %v2281
      %v2283 = vpop.f32.mrf.mxu0
      %v2284 = vadd.f32 %v1205, %v2283
      %2285 = vmatprep.mubr.bf16.mxu0 0
      %2286 = vmatmul.mubr.bf16.gmra.mxu0 %v1106
      %v2287 = vpop.f32.mrf.mxu0
      %v2288 = vadd.f32 %v1201, %v2287
      %v2289 = vpop.f32.mrf.mxu0
      %v2290 = vadd.f32 %v1205, %v2289
      %v2291 = vpop.f32.mrf.mxu0
      %v2292 = vadd.f32 %v1201, %v2291
      %v2293 = vpop.f32.mrf.mxu0
      %v2294 = vadd.f32 %v1205, %v2293
      %2295 = vmatprep.mubr.bf16.mxu0 0
      %2296 = vmatmul.mubr.bf16.gmra.mxu0 %v1107
      %v2297 = vpop.f32.mrf.mxu0
      %v2298 = vadd.f32 %v1201, %v2297
      %v2299 = vpop.f32.mrf.mxu0
      %v2300 = vadd.f32 %v1205, %v2299
      %v2301 = vpop.f32.mrf.mxu0
      %v2302 = vadd.f32 %v1201, %v2301
      %v2303 = vpop.f32.mrf.mxu0
      %v2304 = vadd.f32 %v1205, %v2303
      %2305 = vdwg.mxu0
      %v2306 = vld [vmem:[#allocation2] sm:$0xff]
      %v2307 = vmax.f32 %v1569, %v1573
      %v2308 = vmax.f32 %v2307, %v1579
      %v2309 = vmax.f32 %v2308, %v1583
      %v2310 = vmax.f32 %v2309, %v1589
      %v2311 = vmax.f32 %v2310, %v1593
      %v2312 = vmax.f32 %v2311, %v1599
      %v2313 = vmax.f32 %v2312, %v1603
      %v2314 = vmax.f32 %v2313, %v1609
      %v2315 = vmax.f32 %v2314, %v1613
      %v2316 = vmax.f32 %v2315, %v1619
      %v2317 = vmax.f32 %v2316, %v1623
      %v2318 = vmax.f32 %v2317, %v1629
      %v2319 = vmax.f32 %v2318, %v1633
      %v2320 = vmax.f32 %v2319, %v1639
      %v2321 = vmax.f32 %v2320, %v1643
      %v2322 = vmax.f32 %v2321, %v1649
      %v2323 = vmax.f32 %v2322, %v1653
      %v2324 = vmax.f32 %v2323, %v1659
      %v2325 = vmax.f32 %v2324, %v1663
      %v2326 = vmax.f32 %v2325, %v1669
      %v2327 = vmax.f32 %v2326, %v1673
      %v2328 = vmax.f32 %v2327, %v1679
      %v2329 = vmax.f32 %v2328, %v1683
      %v2330 = vmax.f32 %v2329, %v1689
      %v2331 = vmax.f32 %v2330, %v1693
      %v2332 = vmax.f32 %v2331, %v1699
      %v2333 = vmax.f32 %v2332, %v1703
      %v2334 = vmax.f32 %v2333, %v1709
      %v2335 = vmax.f32 %v2334, %v1713
      %v2336 = vmax.f32 %v2335, %v1719
      %v2337 = vmax.f32 %v2336, %v1723
      %v2338 = vrot.slane %v2337, 4
      %v2339 = vmax.f32 %v2337, %v2338
      %v2340 = vrot.slane %v2339, 2
      %v2341 = vmax.f32 %v2339, %v2340
      %v2342 = vrot.slane %v2341, 1
      %v2343 = vmax.f32 %v2341, %v2342
      %v2344 = vmax.f32 %v1571, %v1575
      %v2345 = vmax.f32 %v2344, %v1581
      %v2346 = vmax.f32 %v2345, %v1585
      %v2347 = vmax.f32 %v2346, %v1591
      %v2348 = vmax.f32 %v2347, %v1595
      %v2349 = vmax.f32 %v2348, %v1601
      %v2350 = vmax.f32 %v2349, %v1605
      %v2351 = vmax.f32 %v2350, %v1611
      %v2352 = vmax.f32 %v2351, %v1615
      %v2353 = vmax.f32 %v2352, %v1621
      %v2354 = vmax.f32 %v2353, %v1625
      %v2355 = vmax.f32 %v2354, %v1631
      %v2356 = vmax.f32 %v2355, %v1635
      %v2357 = vmax.f32 %v2356, %v1641
      %v2358 = vmax.f32 %v2357, %v1645
      %v2359 = vmax.f32 %v2358, %v1651
      %v2360 = vmax.f32 %v2359, %v1655
      %v2361 = vmax.f32 %v2360, %v1661
      %v2362 = vmax.f32 %v2361, %v1665
      %v2363 = vmax.f32 %v2362, %v1671
      %v2364 = vmax.f32 %v2363, %v1675
      %v2365 = vmax.f32 %v2364, %v1681
      %v2366 = vmax.f32 %v2365, %v1685
      %v2367 = vmax.f32 %v2366, %v1691
      %v2368 = vmax.f32 %v2367, %v1695
      %v2369 = vmax.f32 %v2368, %v1701
      %v2370 = vmax.f32 %v2369, %v1705
      %v2371 = vmax.f32 %v2370, %v1711
      %v2372 = vmax.f32 %v2371, %v1715
      %v2373 = vmax.f32 %v2372, %v1721
      %v2374 = vmax.f32 %v2373, %v1725
      %v2375 = vrot.slane %v2374, 4
      %v2376 = vmax.f32 %v2374, %v2375
      %v2377 = vrot.slane %v2376, 2
      %v2378 = vmax.f32 %v2376, %v2377
      %v2379 = vrot.slane %v2378, 1
      %v2380 = vmax.f32 %v2378, %v2379
      %v2381 = vmax.f32 %v1762, %v1766
      %v2382 = vmax.f32 %v2381, %v1772
      %v2383 = vmax.f32 %v2382, %v1776
      %v2384 = vmax.f32 %v2383, %v1782
      %v2385 = vmax.f32 %v2384, %v1786
      %v2386 = vmax.f32 %v2385, %v1792
      %v2387 = vmax.f32 %v2386, %v1796
      %v2388 = vmax.f32 %v2387, %v1802
      %v2389 = vmax.f32 %v2388, %v1806
      %v2390 = vmax.f32 %v2389, %v1812
      %v2391 = vmax.f32 %v2390, %v1816
      %v2392 = vmax.f32 %v2391, %v1822
      %v2393 = vmax.f32 %v2392, %v1826
      %v2394 = vmax.f32 %v2393, %v1832
      %v2395 = vmax.f32 %v2394, %v1836
      %v2396 = vmax.f32 %v2395, %v1842
      %v2397 = vmax.f32 %v2396, %v1846
      %v2398 = vmax.f32 %v2397, %v1852
      %v2399 = vmax.f32 %v2398, %v1856
      %v2400 = vmax.f32 %v2399, %v1862
      %v2401 = vmax.f32 %v2400, %v1866
      %v2402 = vmax.f32 %v2401, %v1872
      %v2403 = vmax.f32 %v2402, %v1876
      %v2404 = vmax.f32 %v2403, %v1882
      %v2405 = vmax.f32 %v2404, %v1886
      %v2406 = vmax.f32 %v2405, %v1892
      %v2407 = vmax.f32 %v2406, %v1896
      %v2408 = vmax.f32 %v2407, %v1902
      %v2409 = vmax.f32 %v2408, %v1906
      %v2410 = vmax.f32 %v2409, %v1912
      %v2411 = vmax.f32 %v2410, %v1916
      %v2412 = vrot.slane %v2411, 4
      %v2413 = vmax.f32 %v2411, %v2412
      %v2414 = vrot.slane %v2413, 2
      %v2415 = vmax.f32 %v2413, %v2414
      %v2416 = vrot.slane %v2415, 1
      %v2417 = vmax.f32 %v2415, %v2416
      %v2418 = vmax.f32 %v1764, %v1768
      %v2419 = vmax.f32 %v2418, %v1774
      %v2420 = vmax.f32 %v2419, %v1778
      %v2421 = vmax.f32 %v2420, %v1784
      %v2422 = vmax.f32 %v2421, %v1788
      %v2423 = vmax.f32 %v2422, %v1794
      %v2424 = vmax.f32 %v2423, %v1798
      %v2425 = vmax.f32 %v2424, %v1804
      %v2426 = vmax.f32 %v2425, %v1808
      %v2427 = vmax.f32 %v2426, %v1814
      %v2428 = vmax.f32 %v2427, %v1818
      %v2429 = vmax.f32 %v2428, %v1824
      %v2430 = vmax.f32 %v2429, %v1828
      %v2431 = vmax.f32 %v2430, %v1834
      %v2432 = vmax.f32 %v2431, %v1838
      %v2433 = vmax.f32 %v2432, %v1844
      %v2434 = vmax.f32 %v2433, %v1848
      %v2435 = vmax.f32 %v2434, %v1854
      %v2436 = vmax.f32 %v2435, %v1858
      %v2437 = vmax.f32 %v2436, %v1864
      %v2438 = vmax.f32 %v2437, %v1868
      %v2439 = vmax.f32 %v2438, %v1874
      %v2440 = vmax.f32 %v2439, %v1878
      %v2441 = vmax.f32 %v2440, %v1884
      %v2442 = vmax.f32 %v2441, %v1888
      %v2443 = vmax.f32 %v2442, %v1894
      %v2444 = vmax.f32 %v2443, %v1898
      %v2445 = vmax.f32 %v2444, %v1904
      %v2446 = vmax.f32 %v2445, %v1908
      %v2447 = vmax.f32 %v2446, %v1914
      %v2448 = vmax.f32 %v2447, %v1918
      %v2449 = vrot.slane %v2448, 4
      %v2450 = vmax.f32 %v2448, %v2449
      %v2451 = vrot.slane %v2450, 2
      %v2452 = vmax.f32 %v2450, %v2451
      %v2453 = vrot.slane %v2452, 1
      %v2454 = vmax.f32 %v2452, %v2453
      %v2455 = vmax.f32 %v1955, %v1959
      %v2456 = vmax.f32 %v2455, %v1965
      %v2457 = vmax.f32 %v2456, %v1969
      %v2458 = vmax.f32 %v2457, %v1975
      %v2459 = vmax.f32 %v2458, %v1979
      %v2460 = vmax.f32 %v2459, %v1985
      %v2461 = vmax.f32 %v2460, %v1989
      %v2462 = vmax.f32 %v2461, %v1995
      %v2463 = vmax.f32 %v2462, %v1999
      %v2464 = vmax.f32 %v2463, %v2005
      %v2465 = vmax.f32 %v2464, %v2009
      %v2466 = vmax.f32 %v2465, %v2015
      %v2467 = vmax.f32 %v2466, %v2019
      %v2468 = vmax.f32 %v2467, %v2025
      %v2469 = vmax.f32 %v2468, %v2029
      %v2470 = vmax.f32 %v2469, %v2035
      %v2471 = vmax.f32 %v2470, %v2039
      %v2472 = vmax.f32 %v2471, %v2045
      %v2473 = vmax.f32 %v2472, %v2049
      %v2474 = vmax.f32 %v2473, %v2055
      %v2475 = vmax.f32 %v2474, %v2059
      %v2476 = vmax.f32 %v2475, %v2065
      %v2477 = vmax.f32 %v2476, %v2069
      %v2478 = vmax.f32 %v2477, %v2075
      %v2479 = vmax.f32 %v2478, %v2079
      %v2480 = vmax.f32 %v2479, %v2085
      %v2481 = vmax.f32 %v2480, %v2089
      %v2482 = vmax.f32 %v2481, %v2095
      %v2483 = vmax.f32 %v2482, %v2099
      %v2484 = vmax.f32 %v2483, %v2105
      %v2485 = vmax.f32 %v2484, %v2109
      %v2486 = vrot.slane %v2485, 4
      %v2487 = vmax.f32 %v2485, %v2486
      %v2488 = vrot.slane %v2487, 2
      %v2489 = vmax.f32 %v2487, %v2488
      %v2490 = vrot.slane %v2489, 1
      %v2491 = vmax.f32 %v2489, %v2490
      %v2492 = vmax.f32 %v1957, %v1961
      %v2493 = vmax.f32 %v2492, %v1967
      %v2494 = vmax.f32 %v2493, %v1971
      %v2495 = vmax.f32 %v2494, %v1977
      %v2496 = vmax.f32 %v2495, %v1981
      %v2497 = vmax.f32 %v2496, %v1987
      %v2498 = vmax.f32 %v2497, %v1991
      %v2499 = vmax.f32 %v2498, %v1997
      %v2500 = vmax.f32 %v2499, %v2001
      %v2501 = vmax.f32 %v2500, %v2007
      %v2502 = vmax.f32 %v2501, %v2011
      %v2503 = vmax.f32 %v2502, %v2017
      %v2504 = vmax.f32 %v2503, %v2021
      %v2505 = vmax.f32 %v2504, %v2027
      %v2506 = vmax.f32 %v2505, %v2031
      %v2507 = vmax.f32 %v2506, %v2037
      %v2508 = vmax.f32 %v2507, %v2041
      %v2509 = vmax.f32 %v2508, %v2047
      %v2510 = vmax.f32 %v2509, %v2051
      %v2511 = vmax.f32 %v2510, %v2057
      %v2512 = vmax.f32 %v2511, %v2061
      %v2513 = vmax.f32 %v2512, %v2067
      %v2514 = vmax.f32 %v2513, %v2071
      %v2515 = vmax.f32 %v2514, %v2077
      %v2516 = vmax.f32 %v2515, %v2081
      %v2517 = vmax.f32 %v2516, %v2087
      %v2518 = vmax.f32 %v2517, %v2091
      %v2519 = vmax.f32 %v2518, %v2097
      %v2520 = vmax.f32 %v2519, %v2101
      %v2521 = vmax.f32 %v2520, %v2107
      %v2522 = vmax.f32 %v2521, %v2111
      %v2523 = vrot.slane %v2522, 4
      %v2524 = vmax.f32 %v2522, %v2523
      %v2525 = vrot.slane %v2524, 2
      %v2526 = vmax.f32 %v2524, %v2525
      %v2527 = vrot.slane %v2526, 1
      %v2528 = vmax.f32 %v2526, %v2527
      %v2529 = vmax.f32 %v2148, %v2152
      %v2530 = vmax.f32 %v2529, %v2158
      %v2531 = vmax.f32 %v2530, %v2162
      %v2532 = vmax.f32 %v2531, %v2168
      %v2533 = vmax.f32 %v2532, %v2172
      %v2534 = vmax.f32 %v2533, %v2178
      %v2535 = vmax.f32 %v2534, %v2182
      %v2536 = vmax.f32 %v2535, %v2188
      %v2537 = vmax.f32 %v2536, %v2192
      %v2538 = vmax.f32 %v2537, %v2198
      %v2539 = vmax.f32 %v2538, %v2202
      %v2540 = vmax.f32 %v2539, %v2208
      %v2541 = vmax.f32 %v2540, %v2212
      %v2542 = vmax.f32 %v2541, %v2218
      %v2543 = vmax.f32 %v2542, %v2222
      %v2544 = vmax.f32 %v2543, %v2228
      %v2545 = vmax.f32 %v2544, %v2232
      %v2546 = vmax.f32 %v2545, %v2238
      %v2547 = vmax.f32 %v2546, %v2242
      %v2548 = vmax.f32 %v2547, %v2248
      %v2549 = vmax.f32 %v2548, %v2252
      %v2550 = vmax.f32 %v2549, %v2258
      %v2551 = vmax.f32 %v2550, %v2262
      %v2552 = vmax.f32 %v2551, %v2268
      %v2553 = vmax.f32 %v2552, %v2272
      %v2554 = vmax.f32 %v2553, %v2278
      %v2555 = vmax.f32 %v2554, %v2282
      %v2556 = vmax.f32 %v2555, %v2288
      %v2557 = vmax.f32 %v2556, %v2292
      %v2558 = vmax.f32 %v2557, %v2298
      %v2559 = vmax.f32 %v2558, %v2302
      %v2560 = vrot.slane %v2559, 4
      %v2561 = vmax.f32 %v2559, %v2560
      %v2562 = vrot.slane %v2561, 2
      %v2563 = vmax.f32 %v2561, %v2562
      %v2564 = vrot.slane %v2563, 1
      %v2565 = vmax.f32 %v2563, %v2564
      %v2566 = vmax.f32 %v2150, %v2154
      %v2567 = vmax.f32 %v2566, %v2160
      %v2568 = vmax.f32 %v2567, %v2164
      %v2569 = vmax.f32 %v2568, %v2170
      %v2570 = vmax.f32 %v2569, %v2174
      %v2571 = vmax.f32 %v2570, %v2180
      %v2572 = vmax.f32 %v2571, %v2184
      %v2573 = vmax.f32 %v2572, %v2190
      %v2574 = vmax.f32 %v2573, %v2194
      %v2575 = vmax.f32 %v2574, %v2200
      %v2576 = vmax.f32 %v2575, %v2204
      %v2577 = vmax.f32 %v2576, %v2210
      %v2578 = vmax.f32 %v2577, %v2214
      %v2579 = vmax.f32 %v2578, %v2220
      %v2580 = vmax.f32 %v2579, %v2224
      %v2581 = vmax.f32 %v2580, %v2230
      %v2582 = vmax.f32 %v2581, %v2234
      %v2583 = vmax.f32 %v2582, %v2240
      %v2584 = vmax.f32 %v2583, %v2244
      %v2585 = vmax.f32 %v2584, %v2250
      %v2586 = vmax.f32 %v2585, %v2254
      %v2587 = vmax.f32 %v2586, %v2260
      %v2588 = vmax.f32 %v2587, %v2264
      %v2589 = vmax.f32 %v2588, %v2270
      %v2590 = vmax.f32 %v2589, %v2274
      %v2591 = vmax.f32 %v2590, %v2280
      %v2592 = vmax.f32 %v2591, %v2284
      %v2593 = vmax.f32 %v2592, %v2290
      %v2594 = vmax.f32 %v2593, %v2294
      %v2595 = vmax.f32 %v2594, %v2300
      %v2596 = vmax.f32 %v2595, %v2304
      %v2597 = vrot.slane %v2596, 4
      %v2598 = vmax.f32 %v2596, %v2597
      %v2599 = vrot.slane %v2598, 2
      %v2600 = vmax.f32 %v2598, %v2599
      %v2601 = vrot.slane %v2600, 1
      %v2602 = vmax.f32 %v2600, %v2601
      %v2611 = vcombine.low %v2343, %v2380
      %v2612 = vcombine.low %v2417, %v2454
      %v2613 = vcombine.low %v2491, %v2528
      %v2614 = vcombine.low %v2565, %v2602
      %v2616 = vunpack.c.l.s4 1966171168
      %v2617 = vunpack.c.0.s8 %v2616
      %v2618 = vlaneseq
      %v2619 = vshrl.u32 %v2618, 7
      %v2620 = vsub.s32 %v2617, %v2619
      %v2621 = vrot.slane %v2611, %v2620
      %v2623 = vunpack.c.l.s4 1966171168
      %v2624 = vunpack.c.0.s8 %v2623
      %v2625 = vlaneseq
      %v2626 = vshrl.u32 %v2625, 7
      %v2627 = vsub.s32 %v2624, %v2626
      %v2628 = vrot.slane %v2612, %v2627
      %v2630 = vunpack.c.l.s4 1966171168
      %v2631 = vunpack.c.0.s8 %v2630
      %v2632 = vlaneseq
      %v2633 = vshrl.u32 %v2632, 7
      %v2634 = vsub.s32 %v2631, %v2633
      %v2635 = vrot.slane %v2613, %v2634
      %v2637 = vunpack.c.l.s4 1966171168
      %v2638 = vunpack.c.0.s8 %v2637
      %v2639 = vlaneseq
      %v2640 = vshrl.u32 %v2639, 7
      %v2641 = vsub.s32 %v2638, %v2640
      %v2642 = vrot.slane %v2614, %v2641
      %v2643 = vcombine.low %v2621, %v2628
      %v2644 = vcombine.low %v2635, %v2642
      %v2646 = vunpack.c.l.s4 1966171168
      %v2647 = vunpack.c.0.s8 %v2646
      %v2648 = vlaneseq
      %v2649 = vshrl.u32 %v2648, 7
      %v2650 = vsub.s32 %v2647, %v2649
      %v2651 = vrot.slane %v2643, %v2650
      %v2653 = vunpack.c.l.s4 1966171168
      %v2654 = vunpack.c.0.s8 %v2653
      %v2655 = vlaneseq
      %v2656 = vshrl.u32 %v2655, 7
      %v2657 = vsub.s32 %v2654, %v2656
      %v2658 = vrot.slane %v2644, %v2657
      %v2659 = vcombine.low %v2651, %v2658
      %v2661 = vmax.f32 %v2306, %v2659
      %2662 = vst [vmem:[#allocation2] sm:$0xff] %v2661
      %p2663 = scmp.eq.s32.totalorder %s29, 1
      // Predicated region
      $region77: #{classification_layer_forward.3} parent=71 // pred_check
        %p2664 = pneg %p2663
      $region78: #{classification_layer_forward.3} parent=71 // pred_check_branch
        %2666 = sbr.rel (%p2664) target = $region80
      $region79: #{classification_layer_forward.3} parent=71 // pred_region
        %v2667 = vld [vmem:[#allocation2] sm:$0xff]
        %v2669 = vlaneseq
        %v2670 = vshrl.u32 %v2669, 7
        %v2671 = vsub.s32 0, %v2670
        %v2672 = vrot.slane %v2667, %v2671
        %v2673 = vlaneseq
        %v2674 = vshrl.u32 %v2673, 7
        %v2675 = vsub.s32 1, %v2674
        %v2676 = vrot.slane %v2667, %v2675
        %v2677 = vlaneseq
        %v2678 = vshrl.u32 %v2677, 7
        %v2679 = vsub.s32 2, %v2678
        %v2680 = vrot.slane %v2667, %v2679
        %v2681 = vlaneseq
        %v2682 = vshrl.u32 %v2681, 7
        %v2683 = vsub.s32 3, %v2682
        %v2684 = vrot.slane %v2667, %v2683
        %v2685 = vlaneseq
        %v2686 = vshrl.u32 %v2685, 7
        %v2687 = vsub.s32 4, %v2686
        %v2688 = vrot.slane %v2667, %v2687
        %v2689 = vlaneseq
        %v2690 = vshrl.u32 %v2689, 7
        %v2691 = vsub.s32 5, %v2690
        %v2692 = vrot.slane %v2667, %v2691
        %v2693 = vlaneseq
        %v2694 = vshrl.u32 %v2693, 7
        %v2695 = vsub.s32 6, %v2694
        %v2696 = vrot.slane %v2667, %v2695
        %v2697 = vlaneseq
        %v2698 = vshrl.u32 %v2697, 7
        %v2699 = vsub.s32 7, %v2698
        %v2700 = vrot.slane %v2667, %v2699
        %v2709 = vpack.c.bf16 %v2672, %v2672
        %v2710 = vpack.c.bf16 %v2676, %v2676
        %v2711 = vpack.c.bf16 %v2680, %v2680
        %v2712 = vpack.c.bf16 %v2684, %v2684
        %v2713 = vpack.c.bf16 %v2688, %v2688
        %v2714 = vpack.c.bf16 %v2692, %v2692
        %v2715 = vpack.c.bf16 %v2696, %v2696
        %v2716 = vpack.c.bf16 %v2700, %v2700
        %v2717 = vld [vmem:[%s7] sm:$0xff]
        %v2718 = vld [vmem:[%s7 + $0x8] sm:$0xff]
        %v2719 = vld [vmem:[%s7 + $0x10] sm:$0xff]
        %v2720 = vld [vmem:[%s7 + $0x18] sm:$0xff]
        %v2721 = vld [vmem:[%s7 + $0x20] sm:$0xff]
        %v2722 = vld [vmem:[%s7 + $0x28] sm:$0xff]
        %v2723 = vld [vmem:[%s7 + $0x30] sm:$0xff]
        %v2724 = vld [vmem:[%s7 + $0x38] sm:$0xff]
        %v2725 = vld [vmem:[%s7 + $0x40] sm:$0xff]
        %v2726 = vld [vmem:[%s7 + $0x48] sm:$0xff]
        %v2727 = vld [vmem:[%s7 + $0x50] sm:$0xff]
        %v2728 = vld [vmem:[%s7 + $0x58] sm:$0xff]
        %v2729 = vld [vmem:[%s7 + $0x60] sm:$0xff]
        %v2730 = vld [vmem:[%s7 + $0x68] sm:$0xff]
        %v2731 = vld [vmem:[%s7 + $0x70] sm:$0xff]
        %v2732 = vld [vmem:[%s7 + $0x78] sm:$0xff]
        %v2733 = vld [vmem:[%s7 + $0x80] sm:$0xff]
        %v2734 = vld [vmem:[%s7 + $0x88] sm:$0xff]
        %v2735 = vld [vmem:[%s7 + $0x90] sm:$0xff]
        %v2736 = vld [vmem:[%s7 + $0x98] sm:$0xff]
        %v2737 = vld [vmem:[%s7 + $0xa0] sm:$0xff]
        %v2738 = vld [vmem:[%s7 + $0xa8] sm:$0xff]
        %v2739 = vld [vmem:[%s7 + $0xb0] sm:$0xff]
        %v2740 = vld [vmem:[%s7 + $0xb8] sm:$0xff]
        %v2741 = vld [vmem:[%s7 + $0xc0] sm:$0xff]
        %v2742 = vld [vmem:[%s7 + $0xc8] sm:$0xff]
        %v2743 = vld [vmem:[%s7 + $0xd0] sm:$0xff]
        %v2744 = vld [vmem:[%s7 + $0xd8] sm:$0xff]
        %v2745 = vld [vmem:[%s7 + $0xe0] sm:$0xff]
        %v2746 = vld [vmem:[%s7 + $0xe8] sm:$0xff]
        %v2747 = vld [vmem:[%s7 + $0xf0] sm:$0xff]
        %v2748 = vld [vmem:[%s7 + $0xf8] sm:$0xff]
        %v2749 = vld [vmem:[%s7 + $0x100] sm:$0xff]
        %v2750 = vld [vmem:[%s7 + $0x108] sm:$0xff]
        %v2751 = vld [vmem:[%s7 + $0x110] sm:$0xff]
        %v2752 = vld [vmem:[%s7 + $0x118] sm:$0xff]
        %v2753 = vld [vmem:[%s7 + $0x120] sm:$0xff]
        %v2754 = vld [vmem:[%s7 + $0x128] sm:$0xff]
        %v2755 = vld [vmem:[%s7 + $0x130] sm:$0xff]
        %v2756 = vld [vmem:[%s7 + $0x138] sm:$0xff]
        %v2757 = vld [vmem:[%s7 + $0x140] sm:$0xff]
        %v2758 = vld [vmem:[%s7 + $0x148] sm:$0xff]
        %v2759 = vld [vmem:[%s7 + $0x150] sm:$0xff]
        %v2760 = vld [vmem:[%s7 + $0x158] sm:$0xff]
        %v2761 = vld [vmem:[%s7 + $0x160] sm:$0xff]
        %v2762 = vld [vmem:[%s7 + $0x168] sm:$0xff]
        %v2763 = vld [vmem:[%s7 + $0x170] sm:$0xff]
        %v2764 = vld [vmem:[%s7 + $0x178] sm:$0xff]
        %v2765 = vld [vmem:[%s7 + $0x180] sm:$0xff]
        %v2766 = vld [vmem:[%s7 + $0x188] sm:$0xff]
        %v2767 = vld [vmem:[%s7 + $0x190] sm:$0xff]
        %v2768 = vld [vmem:[%s7 + $0x198] sm:$0xff]
        %v2769 = vld [vmem:[%s7 + $0x1a0] sm:$0xff]
        %v2770 = vld [vmem:[%s7 + $0x1a8] sm:$0xff]
        %v2771 = vld [vmem:[%s7 + $0x1b0] sm:$0xff]
        %v2772 = vld [vmem:[%s7 + $0x1b8] sm:$0xff]
        %v2773 = vld [vmem:[%s7 + $0x1c0] sm:$0xff]
        %v2774 = vld [vmem:[%s7 + $0x1c8] sm:$0xff]
        %v2775 = vld [vmem:[%s7 + $0x1d0] sm:$0xff]
        %v2776 = vld [vmem:[%s7 + $0x1d8] sm:$0xff]
        %v2777 = vld [vmem:[%s7 + $0x1e0] sm:$0xff]
        %v2778 = vld [vmem:[%s7 + $0x1e8] sm:$0xff]
        %v2779 = vld [vmem:[%s7 + $0x1f0] sm:$0xff]
        %v2780 = vld [vmem:[%s7 + $0x1f8] sm:$0xff]
        %v2781 = vld [vmem:[%s7 + $0x200] sm:$0xff]
        %v2782 = vld [vmem:[%s7 + $0x208] sm:$0xff]
        %v2783 = vld [vmem:[%s7 + $0x210] sm:$0xff]
        %v2784 = vld [vmem:[%s7 + $0x218] sm:$0xff]
        %v2785 = vld [vmem:[%s7 + $0x220] sm:$0xff]
        %v2786 = vld [vmem:[%s7 + $0x228] sm:$0xff]
        %v2787 = vld [vmem:[%s7 + $0x230] sm:$0xff]
        %v2788 = vld [vmem:[%s7 + $0x238] sm:$0xff]
        %v2789 = vld [vmem:[%s7 + $0x240] sm:$0xff]
        %v2790 = vld [vmem:[%s7 + $0x248] sm:$0xff]
        %v2791 = vld [vmem:[%s7 + $0x250] sm:$0xff]
        %v2792 = vld [vmem:[%s7 + $0x258] sm:$0xff]
        %v2793 = vld [vmem:[%s7 + $0x260] sm:$0xff]
        %v2794 = vld [vmem:[%s7 + $0x268] sm:$0xff]
        %v2795 = vld [vmem:[%s7 + $0x270] sm:$0xff]
        %v2796 = vld [vmem:[%s7 + $0x278] sm:$0xff]
        %v2797 = vld [vmem:[%s7 + $0x280] sm:$0xff]
        %v2798 = vld [vmem:[%s7 + $0x288] sm:$0xff]
        %v2799 = vld [vmem:[%s7 + $0x290] sm:$0xff]
        %v2800 = vld [vmem:[%s7 + $0x298] sm:$0xff]
        %v2801 = vld [vmem:[%s7 + $0x2a0] sm:$0xff]
        %v2802 = vld [vmem:[%s7 + $0x2a8] sm:$0xff]
        %v2803 = vld [vmem:[%s7 + $0x2b0] sm:$0xff]
        %v2804 = vld [vmem:[%s7 + $0x2b8] sm:$0xff]
        %v2805 = vld [vmem:[%s7 + $0x2c0] sm:$0xff]
        %v2806 = vld [vmem:[%s7 + $0x2c8] sm:$0xff]
        %v2807 = vld [vmem:[%s7 + $0x2d0] sm:$0xff]
        %v2808 = vld [vmem:[%s7 + $0x2d8] sm:$0xff]
        %v2809 = vld [vmem:[%s7 + $0x2e0] sm:$0xff]
        %v2810 = vld [vmem:[%s7 + $0x2e8] sm:$0xff]
        %v2811 = vld [vmem:[%s7 + $0x2f0] sm:$0xff]
        %v2812 = vld [vmem:[%s7 + $0x2f8] sm:$0xff]
        %v2813 = vld [vmem:[%s7 + $0x300] sm:$0xff]
        %v2814 = vld [vmem:[%s7 + $0x308] sm:$0xff]
        %v2815 = vld [vmem:[%s7 + $0x310] sm:$0xff]
        %v2816 = vld [vmem:[%s7 + $0x318] sm:$0xff]
        %v2817 = vld [vmem:[%s7 + $0x320] sm:$0xff]
        %v2818 = vld [vmem:[%s7 + $0x328] sm:$0xff]
        %v2819 = vld [vmem:[%s7 + $0x330] sm:$0xff]
        %v2820 = vld [vmem:[%s7 + $0x338] sm:$0xff]
        %v2821 = vld [vmem:[%s7 + $0x340] sm:$0xff]
        %v2822 = vld [vmem:[%s7 + $0x348] sm:$0xff]
        %v2823 = vld [vmem:[%s7 + $0x350] sm:$0xff]
        %v2824 = vld [vmem:[%s7 + $0x358] sm:$0xff]
        %v2825 = vld [vmem:[%s7 + $0x360] sm:$0xff]
        %v2826 = vld [vmem:[%s7 + $0x368] sm:$0xff]
        %v2827 = vld [vmem:[%s7 + $0x370] sm:$0xff]
        %v2828 = vld [vmem:[%s7 + $0x378] sm:$0xff]
        %v2829 = vld [vmem:[%s7 + $0x380] sm:$0xff]
        %v2830 = vld [vmem:[%s7 + $0x388] sm:$0xff]
        %v2831 = vld [vmem:[%s7 + $0x390] sm:$0xff]
        %v2832 = vld [vmem:[%s7 + $0x398] sm:$0xff]
        %v2833 = vld [vmem:[%s7 + $0x3a0] sm:$0xff]
        %v2834 = vld [vmem:[%s7 + $0x3a8] sm:$0xff]
        %v2835 = vld [vmem:[%s7 + $0x3b0] sm:$0xff]
        %v2836 = vld [vmem:[%s7 + $0x3b8] sm:$0xff]
        %v2837 = vld [vmem:[%s7 + $0x3c0] sm:$0xff]
        %v2838 = vld [vmem:[%s7 + $0x3c8] sm:$0xff]
        %v2839 = vld [vmem:[%s7 + $0x3d0] sm:$0xff]
        %v2840 = vld [vmem:[%s7 + $0x3d8] sm:$0xff]
        %v2841 = vld [vmem:[%s7 + $0x3e0] sm:$0xff]
        %v2842 = vld [vmem:[%s7 + $0x3e8] sm:$0xff]
        %v2843 = vld [vmem:[%s7 + $0x3f0] sm:$0xff]
        %v2844 = vld [vmem:[%s7 + $0x3f8] sm:$0xff]
        %v2845 = vld [vmem:[%s7 + $0x400] sm:$0xff]
        %v2846 = vld [vmem:[%s7 + $0x408] sm:$0xff]
        %v2847 = vld [vmem:[%s7 + $0x410] sm:$0xff]
        %v2848 = vld [vmem:[%s7 + $0x418] sm:$0xff]
        %v2849 = vld [vmem:[%s7 + $0x420] sm:$0xff]
        %v2850 = vld [vmem:[%s7 + $0x428] sm:$0xff]
        %v2851 = vld [vmem:[%s7 + $0x430] sm:$0xff]
        %v2852 = vld [vmem:[%s7 + $0x438] sm:$0xff]
        %v2853 = vld [vmem:[%s7 + $0x440] sm:$0xff]
        %v2854 = vld [vmem:[%s7 + $0x448] sm:$0xff]
        %v2855 = vld [vmem:[%s7 + $0x450] sm:$0xff]
        %v2856 = vld [vmem:[%s7 + $0x458] sm:$0xff]
        %v2857 = vld [vmem:[%s7 + $0x460] sm:$0xff]
        %v2858 = vld [vmem:[%s7 + $0x468] sm:$0xff]
        %v2859 = vld [vmem:[%s7 + $0x470] sm:$0xff]
        %v2860 = vld [vmem:[%s7 + $0x478] sm:$0xff]
        %v2861 = vld [vmem:[%s7 + $0x480] sm:$0xff]
        %v2862 = vld [vmem:[%s7 + $0x488] sm:$0xff]
        %v2863 = vld [vmem:[%s7 + $0x490] sm:$0xff]
        %v2864 = vld [vmem:[%s7 + $0x498] sm:$0xff]
        %v2865 = vld [vmem:[%s7 + $0x4a0] sm:$0xff]
        %v2866 = vld [vmem:[%s7 + $0x4a8] sm:$0xff]
        %v2867 = vld [vmem:[%s7 + $0x4b0] sm:$0xff]
        %v2868 = vld [vmem:[%s7 + $0x4b8] sm:$0xff]
        %v2869 = vld [vmem:[%s7 + $0x4c0] sm:$0xff]
        %v2870 = vld [vmem:[%s7 + $0x4c8] sm:$0xff]
        %v2871 = vld [vmem:[%s7 + $0x4d0] sm:$0xff]
        %v2872 = vld [vmem:[%s7 + $0x4d8] sm:$0xff]
        %v2873 = vld [vmem:[%s7 + $0x4e0] sm:$0xff]
        %v2874 = vld [vmem:[%s7 + $0x4e8] sm:$0xff]
        %v2875 = vld [vmem:[%s7 + $0x4f0] sm:$0xff]
        %v2876 = vld [vmem:[%s7 + $0x4f8] sm:$0xff]
        %v2877 = vld [vmem:[%s7 + $0x500] sm:$0xff]
        %v2878 = vld [vmem:[%s7 + $0x508] sm:$0xff]
        %v2879 = vld [vmem:[%s7 + $0x510] sm:$0xff]
        %v2880 = vld [vmem:[%s7 + $0x518] sm:$0xff]
        %v2881 = vld [vmem:[%s7 + $0x520] sm:$0xff]
        %v2882 = vld [vmem:[%s7 + $0x528] sm:$0xff]
        %v2883 = vld [vmem:[%s7 + $0x530] sm:$0xff]
        %v2884 = vld [vmem:[%s7 + $0x538] sm:$0xff]
        %v2885 = vld [vmem:[%s7 + $0x540] sm:$0xff]
        %v2886 = vld [vmem:[%s7 + $0x548] sm:$0xff]
        %v2887 = vld [vmem:[%s7 + $0x550] sm:$0xff]
        %v2888 = vld [vmem:[%s7 + $0x558] sm:$0xff]
        %v2889 = vld [vmem:[%s7 + $0x560] sm:$0xff]
        %v2890 = vld [vmem:[%s7 + $0x568] sm:$0xff]
        %v2891 = vld [vmem:[%s7 + $0x570] sm:$0xff]
        %v2892 = vld [vmem:[%s7 + $0x578] sm:$0xff]
        %v2893 = vld [vmem:[%s7 + $0x580] sm:$0xff]
        %v2894 = vld [vmem:[%s7 + $0x588] sm:$0xff]
        %v2895 = vld [vmem:[%s7 + $0x590] sm:$0xff]
        %v2896 = vld [vmem:[%s7 + $0x598] sm:$0xff]
        %v2897 = vld [vmem:[%s7 + $0x5a0] sm:$0xff]
        %v2898 = vld [vmem:[%s7 + $0x5a8] sm:$0xff]
        %v2899 = vld [vmem:[%s7 + $0x5b0] sm:$0xff]
        %v2900 = vld [vmem:[%s7 + $0x5b8] sm:$0xff]
        %v2901 = vld [vmem:[%s7 + $0x5c0] sm:$0xff]
        %v2902 = vld [vmem:[%s7 + $0x5c8] sm:$0xff]
        %v2903 = vld [vmem:[%s7 + $0x5d0] sm:$0xff]
        %v2904 = vld [vmem:[%s7 + $0x5d8] sm:$0xff]
        %v2905 = vld [vmem:[%s7 + $0x5e0] sm:$0xff]
        %v2906 = vld [vmem:[%s7 + $0x5e8] sm:$0xff]
        %v2907 = vld [vmem:[%s7 + $0x5f0] sm:$0xff]
        %v2908 = vld [vmem:[%s7 + $0x5f8] sm:$0xff]
        %v2909 = vld [vmem:[%s7 + $0x600] sm:$0xff]
        %v2910 = vld [vmem:[%s7 + $0x608] sm:$0xff]
        %v2911 = vld [vmem:[%s7 + $0x610] sm:$0xff]
        %v2912 = vld [vmem:[%s7 + $0x618] sm:$0xff]
        %v2913 = vld [vmem:[%s7 + $0x620] sm:$0xff]
        %v2914 = vld [vmem:[%s7 + $0x628] sm:$0xff]
        %v2915 = vld [vmem:[%s7 + $0x630] sm:$0xff]
        %v2916 = vld [vmem:[%s7 + $0x638] sm:$0xff]
        %v2917 = vld [vmem:[%s7 + $0x640] sm:$0xff]
        %v2918 = vld [vmem:[%s7 + $0x648] sm:$0xff]
        %v2919 = vld [vmem:[%s7 + $0x650] sm:$0xff]
        %v2920 = vld [vmem:[%s7 + $0x658] sm:$0xff]
        %v2921 = vld [vmem:[%s7 + $0x660] sm:$0xff]
        %v2922 = vld [vmem:[%s7 + $0x668] sm:$0xff]
        %v2923 = vld [vmem:[%s7 + $0x670] sm:$0xff]
        %v2924 = vld [vmem:[%s7 + $0x678] sm:$0xff]
        %v2925 = vld [vmem:[%s7 + $0x680] sm:$0xff]
        %v2926 = vld [vmem:[%s7 + $0x688] sm:$0xff]
        %v2927 = vld [vmem:[%s7 + $0x690] sm:$0xff]
        %v2928 = vld [vmem:[%s7 + $0x698] sm:$0xff]
        %v2929 = vld [vmem:[%s7 + $0x6a0] sm:$0xff]
        %v2930 = vld [vmem:[%s7 + $0x6a8] sm:$0xff]
        %v2931 = vld [vmem:[%s7 + $0x6b0] sm:$0xff]
        %v2932 = vld [vmem:[%s7 + $0x6b8] sm:$0xff]
        %v2933 = vld [vmem:[%s7 + $0x6c0] sm:$0xff]
        %v2934 = vld [vmem:[%s7 + $0x6c8] sm:$0xff]
        %v2935 = vld [vmem:[%s7 + $0x6d0] sm:$0xff]
        %v2936 = vld [vmem:[%s7 + $0x6d8] sm:$0xff]
        %v2937 = vld [vmem:[%s7 + $0x6e0] sm:$0xff]
        %v2938 = vld [vmem:[%s7 + $0x6e8] sm:$0xff]
        %v2939 = vld [vmem:[%s7 + $0x6f0] sm:$0xff]
        %v2940 = vld [vmem:[%s7 + $0x6f8] sm:$0xff]
        %v2941 = vld [vmem:[%s7 + $0x700] sm:$0xff]
        %v2942 = vld [vmem:[%s7 + $0x708] sm:$0xff]
        %v2943 = vld [vmem:[%s7 + $0x710] sm:$0xff]
        %v2944 = vld [vmem:[%s7 + $0x718] sm:$0xff]
        %v2945 = vld [vmem:[%s7 + $0x720] sm:$0xff]
        %v2946 = vld [vmem:[%s7 + $0x728] sm:$0xff]
        %v2947 = vld [vmem:[%s7 + $0x730] sm:$0xff]
        %v2948 = vld [vmem:[%s7 + $0x738] sm:$0xff]
        %v2949 = vld [vmem:[%s7 + $0x740] sm:$0xff]
        %v2950 = vld [vmem:[%s7 + $0x748] sm:$0xff]
        %v2951 = vld [vmem:[%s7 + $0x750] sm:$0xff]
        %v2952 = vld [vmem:[%s7 + $0x758] sm:$0xff]
        %v2953 = vld [vmem:[%s7 + $0x760] sm:$0xff]
        %v2954 = vld [vmem:[%s7 + $0x768] sm:$0xff]
        %v2955 = vld [vmem:[%s7 + $0x770] sm:$0xff]
        %v2956 = vld [vmem:[%s7 + $0x778] sm:$0xff]
        %v2957 = vld [vmem:[%s7 + $0x780] sm:$0xff]
        %v2958 = vld [vmem:[%s7 + $0x788] sm:$0xff]
        %v2959 = vld [vmem:[%s7 + $0x790] sm:$0xff]
        %v2960 = vld [vmem:[%s7 + $0x798] sm:$0xff]
        %v2961 = vld [vmem:[%s7 + $0x7a0] sm:$0xff]
        %v2962 = vld [vmem:[%s7 + $0x7a8] sm:$0xff]
        %v2963 = vld [vmem:[%s7 + $0x7b0] sm:$0xff]
        %v2964 = vld [vmem:[%s7 + $0x7b8] sm:$0xff]
        %v2965 = vld [vmem:[%s7 + $0x7c0] sm:$0xff]
        %v2966 = vld [vmem:[%s7 + $0x7c8] sm:$0xff]
        %v2967 = vld [vmem:[%s7 + $0x7d0] sm:$0xff]
        %v2968 = vld [vmem:[%s7 + $0x7d8] sm:$0xff]
        %v2969 = vld [vmem:[%s7 + $0x7e0] sm:$0xff]
        %v2970 = vld [vmem:[%s7 + $0x7e8] sm:$0xff]
        %v2971 = vld [vmem:[%s7 + $0x7f0] sm:$0xff]
        %v2972 = vld [vmem:[%s7 + $0x7f8] sm:$0xff]
        %v2973 = vld [vmem:[%s8] sm:$0xf]
        %v3230 = vunpack.c.l.b16 %v2717
        %v3231 = vunpack.c.h.b16 %v2717
        %v3232 = vunpack.c.l.b16 %v2718
        %v3233 = vunpack.c.h.b16 %v2718
        %v3234 = vunpack.c.l.b16 %v2719
        %v3235 = vunpack.c.h.b16 %v2719
        %v3236 = vunpack.c.l.b16 %v2720
        %v3237 = vunpack.c.h.b16 %v2720
        %v3238 = vunpack.c.l.b16 %v2721
        %v3239 = vunpack.c.h.b16 %v2721
        %v3240 = vunpack.c.l.b16 %v2722
        %v3241 = vunpack.c.h.b16 %v2722
        %v3242 = vunpack.c.l.b16 %v2723
        %v3243 = vunpack.c.h.b16 %v2723
        %v3244 = vunpack.c.l.b16 %v2724
        %v3245 = vunpack.c.h.b16 %v2724
        %v3246 = vunpack.c.l.b16 %v2725
        %v3247 = vunpack.c.h.b16 %v2725
        %v3248 = vunpack.c.l.b16 %v2726
        %v3249 = vunpack.c.h.b16 %v2726
        %v3250 = vunpack.c.l.b16 %v2727
        %v3251 = vunpack.c.h.b16 %v2727
        %v3252 = vunpack.c.l.b16 %v2728
        %v3253 = vunpack.c.h.b16 %v2728
        %v3254 = vunpack.c.l.b16 %v2729
        %v3255 = vunpack.c.h.b16 %v2729
        %v3256 = vunpack.c.l.b16 %v2730
        %v3257 = vunpack.c.h.b16 %v2730
        %v3258 = vunpack.c.l.b16 %v2731
        %v3259 = vunpack.c.h.b16 %v2731
        %v3260 = vunpack.c.l.b16 %v2732
        %v3261 = vunpack.c.h.b16 %v2732
        %v3262 = vunpack.c.l.b16 %v2733
        %v3263 = vunpack.c.h.b16 %v2733
        %v3264 = vunpack.c.l.b16 %v2734
        %v3265 = vunpack.c.h.b16 %v2734
        %v3266 = vunpack.c.l.b16 %v2735
        %v3267 = vunpack.c.h.b16 %v2735
        %v3268 = vunpack.c.l.b16 %v2736
        %v3269 = vunpack.c.h.b16 %v2736
        %v3270 = vunpack.c.l.b16 %v2737
        %v3271 = vunpack.c.h.b16 %v2737
        %v3272 = vunpack.c.l.b16 %v2738
        %v3273 = vunpack.c.h.b16 %v2738
        %v3274 = vunpack.c.l.b16 %v2739
        %v3275 = vunpack.c.h.b16 %v2739
        %v3276 = vunpack.c.l.b16 %v2740
        %v3277 = vunpack.c.h.b16 %v2740
        %v3278 = vunpack.c.l.b16 %v2741
        %v3279 = vunpack.c.h.b16 %v2741
        %v3280 = vunpack.c.l.b16 %v2742
        %v3281 = vunpack.c.h.b16 %v2742
        %v3282 = vunpack.c.l.b16 %v2743
        %v3283 = vunpack.c.h.b16 %v2743
        %v3284 = vunpack.c.l.b16 %v2744
        %v3285 = vunpack.c.h.b16 %v2744
        %v3286 = vunpack.c.l.b16 %v2745
        %v3287 = vunpack.c.h.b16 %v2745
        %v3288 = vunpack.c.l.b16 %v2746
        %v3289 = vunpack.c.h.b16 %v2746
        %v3290 = vunpack.c.l.b16 %v2747
        %v3291 = vunpack.c.h.b16 %v2747
        %v3292 = vunpack.c.l.b16 %v2748
        %v3293 = vunpack.c.h.b16 %v2748
        %v3294 = vunpack.c.l.b16 %v2749
        %v3295 = vunpack.c.h.b16 %v2749
        %v3296 = vunpack.c.l.b16 %v2750
        %v3297 = vunpack.c.h.b16 %v2750
        %v3298 = vunpack.c.l.b16 %v2751
        %v3299 = vunpack.c.h.b16 %v2751
        %v3300 = vunpack.c.l.b16 %v2752
        %v3301 = vunpack.c.h.b16 %v2752
        %v3302 = vunpack.c.l.b16 %v2753
        %v3303 = vunpack.c.h.b16 %v2753
        %v3304 = vunpack.c.l.b16 %v2754
        %v3305 = vunpack.c.h.b16 %v2754
        %v3306 = vunpack.c.l.b16 %v2755
        %v3307 = vunpack.c.h.b16 %v2755
        %v3308 = vunpack.c.l.b16 %v2756
        %v3309 = vunpack.c.h.b16 %v2756
        %v3310 = vunpack.c.l.b16 %v2757
        %v3311 = vunpack.c.h.b16 %v2757
        %v3312 = vunpack.c.l.b16 %v2758
        %v3313 = vunpack.c.h.b16 %v2758
        %v3314 = vunpack.c.l.b16 %v2759
        %v3315 = vunpack.c.h.b16 %v2759
        %v3316 = vunpack.c.l.b16 %v2760
        %v3317 = vunpack.c.h.b16 %v2760
        %v3318 = vunpack.c.l.b16 %v2761
        %v3319 = vunpack.c.h.b16 %v2761
        %v3320 = vunpack.c.l.b16 %v2762
        %v3321 = vunpack.c.h.b16 %v2762
        %v3322 = vunpack.c.l.b16 %v2763
        %v3323 = vunpack.c.h.b16 %v2763
        %v3324 = vunpack.c.l.b16 %v2764
        %v3325 = vunpack.c.h.b16 %v2764
        %v3326 = vunpack.c.l.b16 %v2765
        %v3327 = vunpack.c.h.b16 %v2765
        %v3328 = vunpack.c.l.b16 %v2766
        %v3329 = vunpack.c.h.b16 %v2766
        %v3330 = vunpack.c.l.b16 %v2767
        %v3331 = vunpack.c.h.b16 %v2767
        %v3332 = vunpack.c.l.b16 %v2768
        %v3333 = vunpack.c.h.b16 %v2768
        %v3334 = vunpack.c.l.b16 %v2769
        %v3335 = vunpack.c.h.b16 %v2769
        %v3336 = vunpack.c.l.b16 %v2770
        %v3337 = vunpack.c.h.b16 %v2770
        %v3338 = vunpack.c.l.b16 %v2771
        %v3339 = vunpack.c.h.b16 %v2771
        %v3340 = vunpack.c.l.b16 %v2772
        %v3341 = vunpack.c.h.b16 %v2772
        %v3342 = vunpack.c.l.b16 %v2773
        %v3343 = vunpack.c.h.b16 %v2773
        %v3344 = vunpack.c.l.b16 %v2774
        %v3345 = vunpack.c.h.b16 %v2774
        %v3346 = vunpack.c.l.b16 %v2775
        %v3347 = vunpack.c.h.b16 %v2775
        %v3348 = vunpack.c.l.b16 %v2776
        %v3349 = vunpack.c.h.b16 %v2776
        %v3350 = vunpack.c.l.b16 %v2777
        %v3351 = vunpack.c.h.b16 %v2777
        %v3352 = vunpack.c.l.b16 %v2778
        %v3353 = vunpack.c.h.b16 %v2778
        %v3354 = vunpack.c.l.b16 %v2779
        %v3355 = vunpack.c.h.b16 %v2779
        %v3356 = vunpack.c.l.b16 %v2780
        %v3357 = vunpack.c.h.b16 %v2780
        %v3358 = vunpack.c.l.b16 %v2781
        %v3359 = vunpack.c.h.b16 %v2781
        %v3360 = vunpack.c.l.b16 %v2782
        %v3361 = vunpack.c.h.b16 %v2782
        %v3362 = vunpack.c.l.b16 %v2783
        %v3363 = vunpack.c.h.b16 %v2783
        %v3364 = vunpack.c.l.b16 %v2784
        %v3365 = vunpack.c.h.b16 %v2784
        %v3366 = vunpack.c.l.b16 %v2785
        %v3367 = vunpack.c.h.b16 %v2785
        %v3368 = vunpack.c.l.b16 %v2786
        %v3369 = vunpack.c.h.b16 %v2786
        %v3370 = vunpack.c.l.b16 %v2787
        %v3371 = vunpack.c.h.b16 %v2787
        %v3372 = vunpack.c.l.b16 %v2788
        %v3373 = vunpack.c.h.b16 %v2788
        %v3374 = vunpack.c.l.b16 %v2789
        %v3375 = vunpack.c.h.b16 %v2789
        %v3376 = vunpack.c.l.b16 %v2790
        %v3377 = vunpack.c.h.b16 %v2790
        %v3378 = vunpack.c.l.b16 %v2791
        %v3379 = vunpack.c.h.b16 %v2791
        %v3380 = vunpack.c.l.b16 %v2792
        %v3381 = vunpack.c.h.b16 %v2792
        %v3382 = vunpack.c.l.b16 %v2793
        %v3383 = vunpack.c.h.b16 %v2793
        %v3384 = vunpack.c.l.b16 %v2794
        %v3385 = vunpack.c.h.b16 %v2794
        %v3386 = vunpack.c.l.b16 %v2795
        %v3387 = vunpack.c.h.b16 %v2795
        %v3388 = vunpack.c.l.b16 %v2796
        %v3389 = vunpack.c.h.b16 %v2796
        %v3390 = vunpack.c.l.b16 %v2797
        %v3391 = vunpack.c.h.b16 %v2797
        %v3392 = vunpack.c.l.b16 %v2798
        %v3393 = vunpack.c.h.b16 %v2798
        %v3394 = vunpack.c.l.b16 %v2799
        %v3395 = vunpack.c.h.b16 %v2799
        %v3396 = vunpack.c.l.b16 %v2800
        %v3397 = vunpack.c.h.b16 %v2800
        %v3398 = vunpack.c.l.b16 %v2801
        %v3399 = vunpack.c.h.b16 %v2801
        %v3400 = vunpack.c.l.b16 %v2802
        %v3401 = vunpack.c.h.b16 %v2802
        %v3402 = vunpack.c.l.b16 %v2803
        %v3403 = vunpack.c.h.b16 %v2803
        %v3404 = vunpack.c.l.b16 %v2804
        %v3405 = vunpack.c.h.b16 %v2804
        %v3406 = vunpack.c.l.b16 %v2805
        %v3407 = vunpack.c.h.b16 %v2805
        %v3408 = vunpack.c.l.b16 %v2806
        %v3409 = vunpack.c.h.b16 %v2806
        %v3410 = vunpack.c.l.b16 %v2807
        %v3411 = vunpack.c.h.b16 %v2807
        %v3412 = vunpack.c.l.b16 %v2808
        %v3413 = vunpack.c.h.b16 %v2808
        %v3414 = vunpack.c.l.b16 %v2809
        %v3415 = vunpack.c.h.b16 %v2809
        %v3416 = vunpack.c.l.b16 %v2810
        %v3417 = vunpack.c.h.b16 %v2810
        %v3418 = vunpack.c.l.b16 %v2811
        %v3419 = vunpack.c.h.b16 %v2811
        %v3420 = vunpack.c.l.b16 %v2812
        %v3421 = vunpack.c.h.b16 %v2812
        %v3422 = vunpack.c.l.b16 %v2813
        %v3423 = vunpack.c.h.b16 %v2813
        %v3424 = vunpack.c.l.b16 %v2814
        %v3425 = vunpack.c.h.b16 %v2814
        %v3426 = vunpack.c.l.b16 %v2815
        %v3427 = vunpack.c.h.b16 %v2815
        %v3428 = vunpack.c.l.b16 %v2816
        %v3429 = vunpack.c.h.b16 %v2816
        %v3430 = vunpack.c.l.b16 %v2817
        %v3431 = vunpack.c.h.b16 %v2817
        %v3432 = vunpack.c.l.b16 %v2818
        %v3433 = vunpack.c.h.b16 %v2818
        %v3434 = vunpack.c.l.b16 %v2819
        %v3435 = vunpack.c.h.b16 %v2819
        %v3436 = vunpack.c.l.b16 %v2820
        %v3437 = vunpack.c.h.b16 %v2820
        %v3438 = vunpack.c.l.b16 %v2821
        %v3439 = vunpack.c.h.b16 %v2821
        %v3440 = vunpack.c.l.b16 %v2822
        %v3441 = vunpack.c.h.b16 %v2822
        %v3442 = vunpack.c.l.b16 %v2823
        %v3443 = vunpack.c.h.b16 %v2823
        %v3444 = vunpack.c.l.b16 %v2824
        %v3445 = vunpack.c.h.b16 %v2824
        %v3446 = vunpack.c.l.b16 %v2825
        %v3447 = vunpack.c.h.b16 %v2825
        %v3448 = vunpack.c.l.b16 %v2826
        %v3449 = vunpack.c.h.b16 %v2826
        %v3450 = vunpack.c.l.b16 %v2827
        %v3451 = vunpack.c.h.b16 %v2827
        %v3452 = vunpack.c.l.b16 %v2828
        %v3453 = vunpack.c.h.b16 %v2828
        %v3454 = vunpack.c.l.b16 %v2829
        %v3455 = vunpack.c.h.b16 %v2829
        %v3456 = vunpack.c.l.b16 %v2830
        %v3457 = vunpack.c.h.b16 %v2830
        %v3458 = vunpack.c.l.b16 %v2831
        %v3459 = vunpack.c.h.b16 %v2831
        %v3460 = vunpack.c.l.b16 %v2832
        %v3461 = vunpack.c.h.b16 %v2832
        %v3462 = vunpack.c.l.b16 %v2833
        %v3463 = vunpack.c.h.b16 %v2833
        %v3464 = vunpack.c.l.b16 %v2834
        %v3465 = vunpack.c.h.b16 %v2834
        %v3466 = vunpack.c.l.b16 %v2835
        %v3467 = vunpack.c.h.b16 %v2835
        %v3468 = vunpack.c.l.b16 %v2836
        %v3469 = vunpack.c.h.b16 %v2836
        %v3470 = vunpack.c.l.b16 %v2837
        %v3471 = vunpack.c.h.b16 %v2837
        %v3472 = vunpack.c.l.b16 %v2838
        %v3473 = vunpack.c.h.b16 %v2838
        %v3474 = vunpack.c.l.b16 %v2839
        %v3475 = vunpack.c.h.b16 %v2839
        %v3476 = vunpack.c.l.b16 %v2840
        %v3477 = vunpack.c.h.b16 %v2840
        %v3478 = vunpack.c.l.b16 %v2841
        %v3479 = vunpack.c.h.b16 %v2841
        %v3480 = vunpack.c.l.b16 %v2842
        %v3481 = vunpack.c.h.b16 %v2842
        %v3482 = vunpack.c.l.b16 %v2843
        %v3483 = vunpack.c.h.b16 %v2843
        %v3484 = vunpack.c.l.b16 %v2844
        %v3485 = vunpack.c.h.b16 %v2844
        %v3486 = vunpack.c.l.b16 %v2845
        %v3487 = vunpack.c.h.b16 %v2845
        %v3488 = vunpack.c.l.b16 %v2846
        %v3489 = vunpack.c.h.b16 %v2846
        %v3490 = vunpack.c.l.b16 %v2847
        %v3491 = vunpack.c.h.b16 %v2847
        %v3492 = vunpack.c.l.b16 %v2848
        %v3493 = vunpack.c.h.b16 %v2848
        %v3494 = vunpack.c.l.b16 %v2849
        %v3495 = vunpack.c.h.b16 %v2849
        %v3496 = vunpack.c.l.b16 %v2850
        %v3497 = vunpack.c.h.b16 %v2850
        %v3498 = vunpack.c.l.b16 %v2851
        %v3499 = vunpack.c.h.b16 %v2851
        %v3500 = vunpack.c.l.b16 %v2852
        %v3501 = vunpack.c.h.b16 %v2852
        %v3502 = vunpack.c.l.b16 %v2853
        %v3503 = vunpack.c.h.b16 %v2853
        %v3504 = vunpack.c.l.b16 %v2854
        %v3505 = vunpack.c.h.b16 %v2854
        %v3506 = vunpack.c.l.b16 %v2855
        %v3507 = vunpack.c.h.b16 %v2855
        %v3508 = vunpack.c.l.b16 %v2856
        %v3509 = vunpack.c.h.b16 %v2856
        %v3510 = vunpack.c.l.b16 %v2857
        %v3511 = vunpack.c.h.b16 %v2857
        %v3512 = vunpack.c.l.b16 %v2858
        %v3513 = vunpack.c.h.b16 %v2858
        %v3514 = vunpack.c.l.b16 %v2859
        %v3515 = vunpack.c.h.b16 %v2859
        %v3516 = vunpack.c.l.b16 %v2860
        %v3517 = vunpack.c.h.b16 %v2860
        %v3518 = vunpack.c.l.b16 %v2861
        %v3519 = vunpack.c.h.b16 %v2861
        %v3520 = vunpack.c.l.b16 %v2862
        %v3521 = vunpack.c.h.b16 %v2862
        %v3522 = vunpack.c.l.b16 %v2863
        %v3523 = vunpack.c.h.b16 %v2863
        %v3524 = vunpack.c.l.b16 %v2864
        %v3525 = vunpack.c.h.b16 %v2864
        %v3526 = vunpack.c.l.b16 %v2865
        %v3527 = vunpack.c.h.b16 %v2865
        %v3528 = vunpack.c.l.b16 %v2866
        %v3529 = vunpack.c.h.b16 %v2866
        %v3530 = vunpack.c.l.b16 %v2867
        %v3531 = vunpack.c.h.b16 %v2867
        %v3532 = vunpack.c.l.b16 %v2868
        %v3533 = vunpack.c.h.b16 %v2868
        %v3534 = vunpack.c.l.b16 %v2869
        %v3535 = vunpack.c.h.b16 %v2869
        %v3536 = vunpack.c.l.b16 %v2870
        %v3537 = vunpack.c.h.b16 %v2870
        %v3538 = vunpack.c.l.b16 %v2871
        %v3539 = vunpack.c.h.b16 %v2871
        %v3540 = vunpack.c.l.b16 %v2872
        %v3541 = vunpack.c.h.b16 %v2872
        %v3542 = vunpack.c.l.b16 %v2873
        %v3543 = vunpack.c.h.b16 %v2873
        %v3544 = vunpack.c.l.b16 %v2874
        %v3545 = vunpack.c.h.b16 %v2874
        %v3546 = vunpack.c.l.b16 %v2875
        %v3547 = vunpack.c.h.b16 %v2875
        %v3548 = vunpack.c.l.b16 %v2876
        %v3549 = vunpack.c.h.b16 %v2876
        %v3550 = vunpack.c.l.b16 %v2877
        %v3551 = vunpack.c.h.b16 %v2877
        %v3552 = vunpack.c.l.b16 %v2878
        %v3553 = vunpack.c.h.b16 %v2878
        %v3554 = vunpack.c.l.b16 %v2879
        %v3555 = vunpack.c.h.b16 %v2879
        %v3556 = vunpack.c.l.b16 %v2880
        %v3557 = vunpack.c.h.b16 %v2880
        %v3558 = vunpack.c.l.b16 %v2881
        %v3559 = vunpack.c.h.b16 %v2881
        %v3560 = vunpack.c.l.b16 %v2882
        %v3561 = vunpack.c.h.b16 %v2882
        %v3562 = vunpack.c.l.b16 %v2883
        %v3563 = vunpack.c.h.b16 %v2883
        %v3564 = vunpack.c.l.b16 %v2884
        %v3565 = vunpack.c.h.b16 %v2884
        %v3566 = vunpack.c.l.b16 %v2885
        %v3567 = vunpack.c.h.b16 %v2885
        %v3568 = vunpack.c.l.b16 %v2886
        %v3569 = vunpack.c.h.b16 %v2886
        %v3570 = vunpack.c.l.b16 %v2887
        %v3571 = vunpack.c.h.b16 %v2887
        %v3572 = vunpack.c.l.b16 %v2888
        %v3573 = vunpack.c.h.b16 %v2888
        %v3574 = vunpack.c.l.b16 %v2889
        %v3575 = vunpack.c.h.b16 %v2889
        %v3576 = vunpack.c.l.b16 %v2890
        %v3577 = vunpack.c.h.b16 %v2890
        %v3578 = vunpack.c.l.b16 %v2891
        %v3579 = vunpack.c.h.b16 %v2891
        %v3580 = vunpack.c.l.b16 %v2892
        %v3581 = vunpack.c.h.b16 %v2892
        %v3582 = vunpack.c.l.b16 %v2893
        %v3583 = vunpack.c.h.b16 %v2893
        %v3584 = vunpack.c.l.b16 %v2894
        %v3585 = vunpack.c.h.b16 %v2894
        %v3586 = vunpack.c.l.b16 %v2895
        %v3587 = vunpack.c.h.b16 %v2895
        %v3588 = vunpack.c.l.b16 %v2896
        %v3589 = vunpack.c.h.b16 %v2896
        %v3590 = vunpack.c.l.b16 %v2897
        %v3591 = vunpack.c.h.b16 %v2897
        %v3592 = vunpack.c.l.b16 %v2898
        %v3593 = vunpack.c.h.b16 %v2898
        %v3594 = vunpack.c.l.b16 %v2899
        %v3595 = vunpack.c.h.b16 %v2899
        %v3596 = vunpack.c.l.b16 %v2900
        %v3597 = vunpack.c.h.b16 %v2900
        %v3598 = vunpack.c.l.b16 %v2901
        %v3599 = vunpack.c.h.b16 %v2901
        %v3600 = vunpack.c.l.b16 %v2902
        %v3601 = vunpack.c.h.b16 %v2902
        %v3602 = vunpack.c.l.b16 %v2903
        %v3603 = vunpack.c.h.b16 %v2903
        %v3604 = vunpack.c.l.b16 %v2904
        %v3605 = vunpack.c.h.b16 %v2904
        %v3606 = vunpack.c.l.b16 %v2905
        %v3607 = vunpack.c.h.b16 %v2905
        %v3608 = vunpack.c.l.b16 %v2906
        %v3609 = vunpack.c.h.b16 %v2906
        %v3610 = vunpack.c.l.b16 %v2907
        %v3611 = vunpack.c.h.b16 %v2907
        %v3612 = vunpack.c.l.b16 %v2908
        %v3613 = vunpack.c.h.b16 %v2908
        %v3614 = vunpack.c.l.b16 %v2909
        %v3615 = vunpack.c.h.b16 %v2909
        %v3616 = vunpack.c.l.b16 %v2910
        %v3617 = vunpack.c.h.b16 %v2910
        %v3618 = vunpack.c.l.b16 %v2911
        %v3619 = vunpack.c.h.b16 %v2911
        %v3620 = vunpack.c.l.b16 %v2912
        %v3621 = vunpack.c.h.b16 %v2912
        %v3622 = vunpack.c.l.b16 %v2913
        %v3623 = vunpack.c.h.b16 %v2913
        %v3624 = vunpack.c.l.b16 %v2914
        %v3625 = vunpack.c.h.b16 %v2914
        %v3626 = vunpack.c.l.b16 %v2915
        %v3627 = vunpack.c.h.b16 %v2915
        %v3628 = vunpack.c.l.b16 %v2916
        %v3629 = vunpack.c.h.b16 %v2916
        %v3630 = vunpack.c.l.b16 %v2917
        %v3631 = vunpack.c.h.b16 %v2917
        %v3632 = vunpack.c.l.b16 %v2918
        %v3633 = vunpack.c.h.b16 %v2918
        %v3634 = vunpack.c.l.b16 %v2919
        %v3635 = vunpack.c.h.b16 %v2919
        %v3636 = vunpack.c.l.b16 %v2920
        %v3637 = vunpack.c.h.b16 %v2920
        %v3638 = vunpack.c.l.b16 %v2921
        %v3639 = vunpack.c.h.b16 %v2921
        %v3640 = vunpack.c.l.b16 %v2922
        %v3641 = vunpack.c.h.b16 %v2922
        %v3642 = vunpack.c.l.b16 %v2923
        %v3643 = vunpack.c.h.b16 %v2923
        %v3644 = vunpack.c.l.b16 %v2924
        %v3645 = vunpack.c.h.b16 %v2924
        %v3646 = vunpack.c.l.b16 %v2925
        %v3647 = vunpack.c.h.b16 %v2925
        %v3648 = vunpack.c.l.b16 %v2926
        %v3649 = vunpack.c.h.b16 %v2926
        %v3650 = vunpack.c.l.b16 %v2927
        %v3651 = vunpack.c.h.b16 %v2927
        %v3652 = vunpack.c.l.b16 %v2928
        %v3653 = vunpack.c.h.b16 %v2928
        %v3654 = vunpack.c.l.b16 %v2929
        %v3655 = vunpack.c.h.b16 %v2929
        %v3656 = vunpack.c.l.b16 %v2930
        %v3657 = vunpack.c.h.b16 %v2930
        %v3658 = vunpack.c.l.b16 %v2931
        %v3659 = vunpack.c.h.b16 %v2931
        %v3660 = vunpack.c.l.b16 %v2932
        %v3661 = vunpack.c.h.b16 %v2932
        %v3662 = vunpack.c.l.b16 %v2933
        %v3663 = vunpack.c.h.b16 %v2933
        %v3664 = vunpack.c.l.b16 %v2934
        %v3665 = vunpack.c.h.b16 %v2934
        %v3666 = vunpack.c.l.b16 %v2935
        %v3667 = vunpack.c.h.b16 %v2935
        %v3668 = vunpack.c.l.b16 %v2936
        %v3669 = vunpack.c.h.b16 %v2936
        %v3670 = vunpack.c.l.b16 %v2937
        %v3671 = vunpack.c.h.b16 %v2937
        %v3672 = vunpack.c.l.b16 %v2938
        %v3673 = vunpack.c.h.b16 %v2938
        %v3674 = vunpack.c.l.b16 %v2939
        %v3675 = vunpack.c.h.b16 %v2939
        %v3676 = vunpack.c.l.b16 %v2940
        %v3677 = vunpack.c.h.b16 %v2940
        %v3678 = vunpack.c.l.b16 %v2941
        %v3679 = vunpack.c.h.b16 %v2941
        %v3680 = vunpack.c.l.b16 %v2942
        %v3681 = vunpack.c.h.b16 %v2942
        %v3682 = vunpack.c.l.b16 %v2943
        %v3683 = vunpack.c.h.b16 %v2943
        %v3684 = vunpack.c.l.b16 %v2944
        %v3685 = vunpack.c.h.b16 %v2944
        %v3686 = vunpack.c.l.b16 %v2945
        %v3687 = vunpack.c.h.b16 %v2945
        %v3688 = vunpack.c.l.b16 %v2946
        %v3689 = vunpack.c.h.b16 %v2946
        %v3690 = vunpack.c.l.b16 %v2947
        %v3691 = vunpack.c.h.b16 %v2947
        %v3692 = vunpack.c.l.b16 %v2948
        %v3693 = vunpack.c.h.b16 %v2948
        %v3694 = vunpack.c.l.b16 %v2949
        %v3695 = vunpack.c.h.b16 %v2949
        %v3696 = vunpack.c.l.b16 %v2950
        %v3697 = vunpack.c.h.b16 %v2950
        %v3698 = vunpack.c.l.b16 %v2951
        %v3699 = vunpack.c.h.b16 %v2951
        %v3700 = vunpack.c.l.b16 %v2952
        %v3701 = vunpack.c.h.b16 %v2952
        %v3702 = vunpack.c.l.b16 %v2953
        %v3703 = vunpack.c.h.b16 %v2953
        %v3704 = vunpack.c.l.b16 %v2954
        %v3705 = vunpack.c.h.b16 %v2954
        %v3706 = vunpack.c.l.b16 %v2955
        %v3707 = vunpack.c.h.b16 %v2955
        %v3708 = vunpack.c.l.b16 %v2956
        %v3709 = vunpack.c.h.b16 %v2956
        %v3710 = vunpack.c.l.b16 %v2957
        %v3711 = vunpack.c.h.b16 %v2957
        %v3712 = vunpack.c.l.b16 %v2958
        %v3713 = vunpack.c.h.b16 %v2958
        %v3714 = vunpack.c.l.b16 %v2959
        %v3715 = vunpack.c.h.b16 %v2959
        %v3716 = vunpack.c.l.b16 %v2960
        %v3717 = vunpack.c.h.b16 %v2960
        %v3718 = vunpack.c.l.b16 %v2961
        %v3719 = vunpack.c.h.b16 %v2961
        %v3720 = vunpack.c.l.b16 %v2962
        %v3721 = vunpack.c.h.b16 %v2962
        %v3722 = vunpack.c.l.b16 %v2963
        %v3723 = vunpack.c.h.b16 %v2963
        %v3724 = vunpack.c.l.b16 %v2964
        %v3725 = vunpack.c.h.b16 %v2964
        %v3726 = vunpack.c.l.b16 %v2965
        %v3727 = vunpack.c.h.b16 %v2965
        %v3728 = vunpack.c.l.b16 %v2966
        %v3729 = vunpack.c.h.b16 %v2966
        %v3730 = vunpack.c.l.b16 %v2967
        %v3731 = vunpack.c.h.b16 %v2967
        %v3732 = vunpack.c.l.b16 %v2968
        %v3733 = vunpack.c.h.b16 %v2968
        %v3734 = vunpack.c.l.b16 %v2969
        %v3735 = vunpack.c.h.b16 %v2969
        %v3736 = vunpack.c.l.b16 %v2970
        %v3737 = vunpack.c.h.b16 %v2970
        %v3738 = vunpack.c.l.b16 %v2971
        %v3739 = vunpack.c.h.b16 %v2971
        %v3740 = vunpack.c.l.b16 %v2972
        %v3741 = vunpack.c.h.b16 %v2972
        %v3742 = vpack.c.b16 %v3234, %v3230
        %v3743 = vpack.c.b16 %v3235, %v3231
        %v3744 = vpack.c.b16 %v3236, %v3232
        %v3745 = vpack.c.b16 %v3237, %v3233
        %v3746 = vpack.c.b16 %v3242, %v3238
        %v3747 = vpack.c.b16 %v3243, %v3239
        %v3748 = vpack.c.b16 %v3244, %v3240
        %v3749 = vpack.c.b16 %v3245, %v3241
        %v3750 = vpack.c.b16 %v3250, %v3246
        %v3751 = vpack.c.b16 %v3251, %v3247
        %v3752 = vpack.c.b16 %v3252, %v3248
        %v3753 = vpack.c.b16 %v3253, %v3249
        %v3754 = vpack.c.b16 %v3258, %v3254
        %v3755 = vpack.c.b16 %v3259, %v3255
        %v3756 = vpack.c.b16 %v3260, %v3256
        %v3757 = vpack.c.b16 %v3261, %v3257
        %v3758 = vpack.c.b16 %v3266, %v3262
        %v3759 = vpack.c.b16 %v3267, %v3263
        %v3760 = vpack.c.b16 %v3268, %v3264
        %v3761 = vpack.c.b16 %v3269, %v3265
        %v3762 = vpack.c.b16 %v3274, %v3270
        %v3763 = vpack.c.b16 %v3275, %v3271
        %v3764 = vpack.c.b16 %v3276, %v3272
        %v3765 = vpack.c.b16 %v3277, %v3273
        %v3766 = vpack.c.b16 %v3282, %v3278
        %v3767 = vpack.c.b16 %v3283, %v3279
        %v3768 = vpack.c.b16 %v3284, %v3280
        %v3769 = vpack.c.b16 %v3285, %v3281
        %v3770 = vpack.c.b16 %v3290, %v3286
        %v3771 = vpack.c.b16 %v3291, %v3287
        %v3772 = vpack.c.b16 %v3292, %v3288
        %v3773 = vpack.c.b16 %v3293, %v3289
        %v3774 = vpack.c.b16 %v3298, %v3294
        %v3775 = vpack.c.b16 %v3299, %v3295
        %v3776 = vpack.c.b16 %v3300, %v3296
        %v3777 = vpack.c.b16 %v3301, %v3297
        %v3778 = vpack.c.b16 %v3306, %v3302
        %v3779 = vpack.c.b16 %v3307, %v3303
        %v3780 = vpack.c.b16 %v3308, %v3304
        %v3781 = vpack.c.b16 %v3309, %v3305
        %v3782 = vpack.c.b16 %v3314, %v3310
        %v3783 = vpack.c.b16 %v3315, %v3311
        %v3784 = vpack.c.b16 %v3316, %v3312
        %v3785 = vpack.c.b16 %v3317, %v3313
        %v3786 = vpack.c.b16 %v3322, %v3318
        %v3787 = vpack.c.b16 %v3323, %v3319
        %v3788 = vpack.c.b16 %v3324, %v3320
        %v3789 = vpack.c.b16 %v3325, %v3321
        %v3790 = vpack.c.b16 %v3330, %v3326
        %v3791 = vpack.c.b16 %v3331, %v3327
        %v3792 = vpack.c.b16 %v3332, %v3328
        %v3793 = vpack.c.b16 %v3333, %v3329
        %v3794 = vpack.c.b16 %v3338, %v3334
        %v3795 = vpack.c.b16 %v3339, %v3335
        %v3796 = vpack.c.b16 %v3340, %v3336
        %v3797 = vpack.c.b16 %v3341, %v3337
        %v3798 = vpack.c.b16 %v3346, %v3342
        %v3799 = vpack.c.b16 %v3347, %v3343
        %v3800 = vpack.c.b16 %v3348, %v3344
        %v3801 = vpack.c.b16 %v3349, %v3345
        %v3802 = vpack.c.b16 %v3354, %v3350
        %v3803 = vpack.c.b16 %v3355, %v3351
        %v3804 = vpack.c.b16 %v3356, %v3352
        %v3805 = vpack.c.b16 %v3357, %v3353
        %v3806 = vpack.c.b16 %v3362, %v3358
        %v3807 = vpack.c.b16 %v3363, %v3359
        %v3808 = vpack.c.b16 %v3364, %v3360
        %v3809 = vpack.c.b16 %v3365, %v3361
        %v3810 = vpack.c.b16 %v3370, %v3366
        %v3811 = vpack.c.b16 %v3371, %v3367
        %v3812 = vpack.c.b16 %v3372, %v3368
        %v3813 = vpack.c.b16 %v3373, %v3369
        %v3814 = vpack.c.b16 %v3378, %v3374
        %v3815 = vpack.c.b16 %v3379, %v3375
        %v3816 = vpack.c.b16 %v3380, %v3376
        %v3817 = vpack.c.b16 %v3381, %v3377
        %v3818 = vpack.c.b16 %v3386, %v3382
        %v3819 = vpack.c.b16 %v3387, %v3383
        %v3820 = vpack.c.b16 %v3388, %v3384
        %v3821 = vpack.c.b16 %v3389, %v3385
        %v3822 = vpack.c.b16 %v3394, %v3390
        %v3823 = vpack.c.b16 %v3395, %v3391
        %v3824 = vpack.c.b16 %v3396, %v3392
        %v3825 = vpack.c.b16 %v3397, %v3393
        %v3826 = vpack.c.b16 %v3402, %v3398
        %v3827 = vpack.c.b16 %v3403, %v3399
        %v3828 = vpack.c.b16 %v3404, %v3400
        %v3829 = vpack.c.b16 %v3405, %v3401
        %v3830 = vpack.c.b16 %v3410, %v3406
        %v3831 = vpack.c.b16 %v3411, %v3407
        %v3832 = vpack.c.b16 %v3412, %v3408
        %v3833 = vpack.c.b16 %v3413, %v3409
        %v3834 = vpack.c.b16 %v3418, %v3414
        %v3835 = vpack.c.b16 %v3419, %v3415
        %v3836 = vpack.c.b16 %v3420, %v3416
        %v3837 = vpack.c.b16 %v3421, %v3417
        %v3838 = vpack.c.b16 %v3426, %v3422
        %v3839 = vpack.c.b16 %v3427, %v3423
        %v3840 = vpack.c.b16 %v3428, %v3424
        %v3841 = vpack.c.b16 %v3429, %v3425
        %v3842 = vpack.c.b16 %v3434, %v3430
        %v3843 = vpack.c.b16 %v3435, %v3431
        %v3844 = vpack.c.b16 %v3436, %v3432
        %v3845 = vpack.c.b16 %v3437, %v3433
        %v3846 = vpack.c.b16 %v3442, %v3438
        %v3847 = vpack.c.b16 %v3443, %v3439
        %v3848 = vpack.c.b16 %v3444, %v3440
        %v3849 = vpack.c.b16 %v3445, %v3441
        %v3850 = vpack.c.b16 %v3450, %v3446
        %v3851 = vpack.c.b16 %v3451, %v3447
        %v3852 = vpack.c.b16 %v3452, %v3448
        %v3853 = vpack.c.b16 %v3453, %v3449
        %v3854 = vpack.c.b16 %v3458, %v3454
        %v3855 = vpack.c.b16 %v3459, %v3455
        %v3856 = vpack.c.b16 %v3460, %v3456
        %v3857 = vpack.c.b16 %v3461, %v3457
        %v3858 = vpack.c.b16 %v3466, %v3462
        %v3859 = vpack.c.b16 %v3467, %v3463
        %v3860 = vpack.c.b16 %v3468, %v3464
        %v3861 = vpack.c.b16 %v3469, %v3465
        %v3862 = vpack.c.b16 %v3474, %v3470
        %v3863 = vpack.c.b16 %v3475, %v3471
        %v3864 = vpack.c.b16 %v3476, %v3472
        %v3865 = vpack.c.b16 %v3477, %v3473
        %v3866 = vpack.c.b16 %v3482, %v3478
        %v3867 = vpack.c.b16 %v3483, %v3479
        %v3868 = vpack.c.b16 %v3484, %v3480
        %v3869 = vpack.c.b16 %v3485, %v3481
        %v3870 = vpack.c.b16 %v3490, %v3486
        %v3871 = vpack.c.b16 %v3491, %v3487
        %v3872 = vpack.c.b16 %v3492, %v3488
        %v3873 = vpack.c.b16 %v3493, %v3489
        %v3874 = vpack.c.b16 %v3498, %v3494
        %v3875 = vpack.c.b16 %v3499, %v3495
        %v3876 = vpack.c.b16 %v3500, %v3496
        %v3877 = vpack.c.b16 %v3501, %v3497
        %v3878 = vpack.c.b16 %v3506, %v3502
        %v3879 = vpack.c.b16 %v3507, %v3503
        %v3880 = vpack.c.b16 %v3508, %v3504
        %v3881 = vpack.c.b16 %v3509, %v3505
        %v3882 = vpack.c.b16 %v3514, %v3510
        %v3883 = vpack.c.b16 %v3515, %v3511
        %v3884 = vpack.c.b16 %v3516, %v3512
        %v3885 = vpack.c.b16 %v3517, %v3513
        %v3886 = vpack.c.b16 %v3522, %v3518
        %v3887 = vpack.c.b16 %v3523, %v3519
        %v3888 = vpack.c.b16 %v3524, %v3520
        %v3889 = vpack.c.b16 %v3525, %v3521
        %v3890 = vpack.c.b16 %v3530, %v3526
        %v3891 = vpack.c.b16 %v3531, %v3527
        %v3892 = vpack.c.b16 %v3532, %v3528
        %v3893 = vpack.c.b16 %v3533, %v3529
        %v3894 = vpack.c.b16 %v3538, %v3534
        %v3895 = vpack.c.b16 %v3539, %v3535
        %v3896 = vpack.c.b16 %v3540, %v3536
        %v3897 = vpack.c.b16 %v3541, %v3537
        %v3898 = vpack.c.b16 %v3546, %v3542
        %v3899 = vpack.c.b16 %v3547, %v3543
        %v3900 = vpack.c.b16 %v3548, %v3544
        %v3901 = vpack.c.b16 %v3549, %v3545
        %v3902 = vpack.c.b16 %v3554, %v3550
        %v3903 = vpack.c.b16 %v3555, %v3551
        %v3904 = vpack.c.b16 %v3556, %v3552
        %v3905 = vpack.c.b16 %v3557, %v3553
        %v3906 = vpack.c.b16 %v3562, %v3558
        %v3907 = vpack.c.b16 %v3563, %v3559
        %v3908 = vpack.c.b16 %v3564, %v3560
        %v3909 = vpack.c.b16 %v3565, %v3561
        %v3910 = vpack.c.b16 %v3570, %v3566
        %v3911 = vpack.c.b16 %v3571, %v3567
        %v3912 = vpack.c.b16 %v3572, %v3568
        %v3913 = vpack.c.b16 %v3573, %v3569
        %v3914 = vpack.c.b16 %v3578, %v3574
        %v3915 = vpack.c.b16 %v3579, %v3575
        %v3916 = vpack.c.b16 %v3580, %v3576
        %v3917 = vpack.c.b16 %v3581, %v3577
        %v3918 = vpack.c.b16 %v3586, %v3582
        %v3919 = vpack.c.b16 %v3587, %v3583
        %v3920 = vpack.c.b16 %v3588, %v3584
        %v3921 = vpack.c.b16 %v3589, %v3585
        %v3922 = vpack.c.b16 %v3594, %v3590
        %v3923 = vpack.c.b16 %v3595, %v3591
        %v3924 = vpack.c.b16 %v3596, %v3592
        %v3925 = vpack.c.b16 %v3597, %v3593
        %v3926 = vpack.c.b16 %v3602, %v3598
        %v3927 = vpack.c.b16 %v3603, %v3599
        %v3928 = vpack.c.b16 %v3604, %v3600
        %v3929 = vpack.c.b16 %v3605, %v3601
        %v3930 = vpack.c.b16 %v3610, %v3606
        %v3931 = vpack.c.b16 %v3611, %v3607
        %v3932 = vpack.c.b16 %v3612, %v3608
        %v3933 = vpack.c.b16 %v3613, %v3609
        %v3934 = vpack.c.b16 %v3618, %v3614
        %v3935 = vpack.c.b16 %v3619, %v3615
        %v3936 = vpack.c.b16 %v3620, %v3616
        %v3937 = vpack.c.b16 %v3621, %v3617
        %v3938 = vpack.c.b16 %v3626, %v3622
        %v3939 = vpack.c.b16 %v3627, %v3623
        %v3940 = vpack.c.b16 %v3628, %v3624
        %v3941 = vpack.c.b16 %v3629, %v3625
        %v3942 = vpack.c.b16 %v3634, %v3630
        %v3943 = vpack.c.b16 %v3635, %v3631
        %v3944 = vpack.c.b16 %v3636, %v3632
        %v3945 = vpack.c.b16 %v3637, %v3633
        %v3946 = vpack.c.b16 %v3642, %v3638
        %v3947 = vpack.c.b16 %v3643, %v3639
        %v3948 = vpack.c.b16 %v3644, %v3640
        %v3949 = vpack.c.b16 %v3645, %v3641
        %v3950 = vpack.c.b16 %v3650, %v3646
        %v3951 = vpack.c.b16 %v3651, %v3647
        %v3952 = vpack.c.b16 %v3652, %v3648
        %v3953 = vpack.c.b16 %v3653, %v3649
        %v3954 = vpack.c.b16 %v3658, %v3654
        %v3955 = vpack.c.b16 %v3659, %v3655
        %v3956 = vpack.c.b16 %v3660, %v3656
        %v3957 = vpack.c.b16 %v3661, %v3657
        %v3958 = vpack.c.b16 %v3666, %v3662
        %v3959 = vpack.c.b16 %v3667, %v3663
        %v3960 = vpack.c.b16 %v3668, %v3664
        %v3961 = vpack.c.b16 %v3669, %v3665
        %v3962 = vpack.c.b16 %v3674, %v3670
        %v3963 = vpack.c.b16 %v3675, %v3671
        %v3964 = vpack.c.b16 %v3676, %v3672
        %v3965 = vpack.c.b16 %v3677, %v3673
        %v3966 = vpack.c.b16 %v3682, %v3678
        %v3967 = vpack.c.b16 %v3683, %v3679
        %v3968 = vpack.c.b16 %v3684, %v3680
        %v3969 = vpack.c.b16 %v3685, %v3681
        %v3970 = vpack.c.b16 %v3690, %v3686
        %v3971 = vpack.c.b16 %v3691, %v3687
        %v3972 = vpack.c.b16 %v3692, %v3688
        %v3973 = vpack.c.b16 %v3693, %v3689
        %v3974 = vpack.c.b16 %v3698, %v3694
        %v3975 = vpack.c.b16 %v3699, %v3695
        %v3976 = vpack.c.b16 %v3700, %v3696
        %v3977 = vpack.c.b16 %v3701, %v3697
        %v3978 = vpack.c.b16 %v3706, %v3702
        %v3979 = vpack.c.b16 %v3707, %v3703
        %v3980 = vpack.c.b16 %v3708, %v3704
        %v3981 = vpack.c.b16 %v3709, %v3705
        %v3982 = vpack.c.b16 %v3714, %v3710
        %v3983 = vpack.c.b16 %v3715, %v3711
        %v3984 = vpack.c.b16 %v3716, %v3712
        %v3985 = vpack.c.b16 %v3717, %v3713
        %v3986 = vpack.c.b16 %v3722, %v3718
        %v3987 = vpack.c.b16 %v3723, %v3719
        %v3988 = vpack.c.b16 %v3724, %v3720
        %v3989 = vpack.c.b16 %v3725, %v3721
        %v3990 = vpack.c.b16 %v3730, %v3726
        %v3991 = vpack.c.b16 %v3731, %v3727
        %v3992 = vpack.c.b16 %v3732, %v3728
        %v3993 = vpack.c.b16 %v3733, %v3729
        %v3994 = vpack.c.b16 %v3738, %v3734
        %v3995 = vpack.c.b16 %v3739, %v3735
        %v3996 = vpack.c.b16 %v3740, %v3736
        %v3997 = vpack.c.b16 %v3741, %v3737
        %v4255 = vlaneseq
        %v4256 = vshrl.u32 %v4255, 7
        %v4257 = vsub.s32 0, %v4256
        %v4258 = vrot.slane %v2973, %v4257
        %v4259 = vlaneseq
        %v4260 = vshrl.u32 %v4259, 7
        %v4261 = vsub.s32 1, %v4260
        %v4262 = vrot.slane %v2973, %v4261
        %v4263 = vlaneseq
        %v4264 = vshrl.u32 %v4263, 7
        %v4265 = vsub.s32 2, %v4264
        %v4266 = vrot.slane %v2973, %v4265
        %v4267 = vlaneseq
        %v4268 = vshrl.u32 %v4267, 7
        %v4269 = vsub.s32 3, %v4268
        %v4270 = vrot.slane %v2973, %v4269
        %4275 = vmatprep.subr.bf16.mxu0 %v3771
        %4276 = vmatpush1.bf16.msra.mxu0 %v3770
        %4277 = vmatprep.subr.bf16.mxu0 %v3767
        %4278 = vmatpush1.bf16.msra.mxu0 %v3766
        %4279 = vmatprep.subr.bf16.mxu0 %v3763
        %4280 = vmatpush1.bf16.msra.mxu0 %v3762
        %4281 = vmatprep.subr.bf16.mxu0 %v3759
        %4282 = vmatpush1.bf16.msra.mxu0 %v3758
        %4283 = vmatprep.subr.bf16.mxu0 %v3755
        %4284 = vmatpush1.bf16.msra.mxu0 %v3754
        %4285 = vmatprep.subr.bf16.mxu0 %v3751
        %4286 = vmatpush1.bf16.msra.mxu0 %v3750
        %4287 = vmatprep.subr.bf16.mxu0 %v3747
        %4288 = vmatpush1.bf16.msra.mxu0 %v3746
        %4289 = vmatprep.subr.bf16.mxu0 %v3743
        %4290 = vmatpush1.bf16.msra.mxu0 %v3742
        %4291 = vmatprep.subr.bf16.mxu0 %v3803
        %4292 = vmatpush2.bf16.msra.mxu0 %v3802
        %4293 = vmatprep.subr.bf16.mxu0 %v3799
        %4294 = vmatpush2.bf16.msra.mxu0 %v3798
        %4295 = vmatprep.subr.bf16.mxu0 %v3795
        %4296 = vmatpush2.bf16.msra.mxu0 %v3794
        %4297 = vmatprep.subr.bf16.mxu0 %v3791
        %4298 = vmatpush2.bf16.msra.mxu0 %v3790
        %4299 = vmatprep.subr.bf16.mxu0 %v3787
        %4300 = vmatpush2.bf16.msra.mxu0 %v3786
        %4301 = vmatprep.subr.bf16.mxu0 %v3783
        %4302 = vmatpush2.bf16.msra.mxu0 %v3782
        %4303 = vmatprep.subr.bf16.mxu0 %v3779
        %4304 = vmatpush2.bf16.msra.mxu0 %v3778
        %4305 = vmatprep.subr.bf16.mxu0 %v3775
        %4306 = vmatpush2.bf16.msra.mxu0 %v3774
        %4307 = vmatprep.mubr.bf16.mxu0 %v2710
        %4308 = vmatmul.mubr.bf16.gmra.mxu0 %v2709
        %v4309 = vpop.f32.mrf.mxu0
        %v4310 = vadd.f32 %v4258, %v4309
        %v4311 = vpop.f32.mrf.mxu0
        %v4312 = vadd.f32 %v4262, %v4311
        %v4313 = vpop.f32.mrf.mxu0
        %v4314 = vpop.f32.mrf.mxu0
        %4315 = vdwg.mxu0
        %4316 = vmatprep.subr.bf16.mxu0 %v3835
        %4317 = vmatpush1.bf16.msra.mxu0 %v3834
        %4318 = vmatprep.subr.bf16.mxu0 %v3831
        %4319 = vmatpush1.bf16.msra.mxu0 %v3830
        %4320 = vmatprep.subr.bf16.mxu0 %v3827
        %4321 = vmatpush1.bf16.msra.mxu0 %v3826
        %4322 = vmatprep.subr.bf16.mxu0 %v3823
        %4323 = vmatpush1.bf16.msra.mxu0 %v3822
        %4324 = vmatprep.subr.bf16.mxu0 %v3819
        %4325 = vmatpush1.bf16.msra.mxu0 %v3818
        %4326 = vmatprep.subr.bf16.mxu0 %v3815
        %4327 = vmatpush1.bf16.msra.mxu0 %v3814
        %4328 = vmatprep.subr.bf16.mxu0 %v3811
        %4329 = vmatpush1.bf16.msra.mxu0 %v3810
        %4330 = vmatprep.subr.bf16.mxu0 %v3807
        %4331 = vmatpush1.bf16.msra.mxu0 %v3806
        %4332 = vmatprep.subr.bf16.mxu0 %v3867
        %4333 = vmatpush2.bf16.msra.mxu0 %v3866
        %4334 = vmatprep.subr.bf16.mxu0 %v3863
        %4335 = vmatpush2.bf16.msra.mxu0 %v3862
        %4336 = vmatprep.subr.bf16.mxu0 %v3859
        %4337 = vmatpush2.bf16.msra.mxu0 %v3858
        %4338 = vmatprep.subr.bf16.mxu0 %v3855
        %4339 = vmatpush2.bf16.msra.mxu0 %v3854
        %4340 = vmatprep.subr.bf16.mxu0 %v3851
        %4341 = vmatpush2.bf16.msra.mxu0 %v3850
        %4342 = vmatprep.subr.bf16.mxu0 %v3847
        %4343 = vmatpush2.bf16.msra.mxu0 %v3846
        %4344 = vmatprep.subr.bf16.mxu0 %v3843
        %4345 = vmatpush2.bf16.msra.mxu0 %v3842
        %4346 = vmatprep.subr.bf16.mxu0 %v3839
        %4347 = vmatpush2.bf16.msra.mxu0 %v3838
        %4348 = vmatprep.mubr.bf16.mxu0 %v2712
        %4349 = vmatmul.mubr.bf16.gmra.mxu0 %v2711
        %v4350 = vpop.f32.mrf.mxu0
        %v4351 = vadd.f32 %v4310, %v4350
        %v4352 = vpop.f32.mrf.mxu0
        %v4353 = vadd.f32 %v4312, %v4352
        %v4354 = vpop.f32.mrf.mxu0
        %v4355 = vpop.f32.mrf.mxu0
        %4356 = vdwg.mxu0
        %4357 = vmatprep.subr.bf16.mxu0 %v3899
        %4358 = vmatpush1.bf16.msra.mxu0 %v3898
        %4359 = vmatprep.subr.bf16.mxu0 %v3895
        %4360 = vmatpush1.bf16.msra.mxu0 %v3894
        %4361 = vmatprep.subr.bf16.mxu0 %v3891
        %4362 = vmatpush1.bf16.msra.mxu0 %v3890
        %4363 = vmatprep.subr.bf16.mxu0 %v3887
        %4364 = vmatpush1.bf16.msra.mxu0 %v3886
        %4365 = vmatprep.subr.bf16.mxu0 %v3883
        %4366 = vmatpush1.bf16.msra.mxu0 %v3882
        %4367 = vmatprep.subr.bf16.mxu0 %v3879
        %4368 = vmatpush1.bf16.msra.mxu0 %v3878
        %4369 = vmatprep.subr.bf16.mxu0 %v3875
        %4370 = vmatpush1.bf16.msra.mxu0 %v3874
        %4371 = vmatprep.subr.bf16.mxu0 %v3871
        %4372 = vmatpush1.bf16.msra.mxu0 %v3870
        %4373 = vmatprep.subr.bf16.mxu0 %v3931
        %4374 = vmatpush2.bf16.msra.mxu0 %v3930
        %4375 = vmatprep.subr.bf16.mxu0 %v3927
        %4376 = vmatpush2.bf16.msra.mxu0 %v3926
        %4377 = vmatprep.subr.bf16.mxu0 %v3923
        %4378 = vmatpush2.bf16.msra.mxu0 %v3922
        %4379 = vmatprep.subr.bf16.mxu0 %v3919
        %4380 = vmatpush2.bf16.msra.mxu0 %v3918
        %4381 = vmatprep.subr.bf16.mxu0 %v3915
        %4382 = vmatpush2.bf16.msra.mxu0 %v3914
        %4383 = vmatprep.subr.bf16.mxu0 %v3911
        %4384 = vmatpush2.bf16.msra.mxu0 %v3910
        %4385 = vmatprep.subr.bf16.mxu0 %v3907
        %4386 = vmatpush2.bf16.msra.mxu0 %v3906
        %4387 = vmatprep.subr.bf16.mxu0 %v3903
        %4388 = vmatpush2.bf16.msra.mxu0 %v3902
        %4389 = vmatprep.mubr.bf16.mxu0 %v2714
        %4390 = vmatmul.mubr.bf16.gmra.mxu0 %v2713
        %v4391 = vpop.f32.mrf.mxu0
        %v4392 = vadd.f32 %v4351, %v4391
        %v4393 = vpop.f32.mrf.mxu0
        %v4394 = vadd.f32 %v4353, %v4393
        %v4395 = vpop.f32.mrf.mxu0
        %v4396 = vpop.f32.mrf.mxu0
        %4397 = vdwg.mxu0
        %4398 = vmatprep.subr.bf16.mxu0 %v3963
        %4399 = vmatpush1.bf16.msra.mxu0 %v3962
        %4400 = vmatprep.subr.bf16.mxu0 %v3959
        %4401 = vmatpush1.bf16.msra.mxu0 %v3958
        %4402 = vmatprep.subr.bf16.mxu0 %v3955
        %4403 = vmatpush1.bf16.msra.mxu0 %v3954
        %4404 = vmatprep.subr.bf16.mxu0 %v3951
        %4405 = vmatpush1.bf16.msra.mxu0 %v3950
        %4406 = vmatprep.subr.bf16.mxu0 %v3947
        %4407 = vmatpush1.bf16.msra.mxu0 %v3946
        %4408 = vmatprep.subr.bf16.mxu0 %v3943
        %4409 = vmatpush1.bf16.msra.mxu0 %v3942
        %4410 = vmatprep.subr.bf16.mxu0 %v3939
        %4411 = vmatpush1.bf16.msra.mxu0 %v3938
        %4412 = vmatprep.subr.bf16.mxu0 %v3935
        %4413 = vmatpush1.bf16.msra.mxu0 %v3934
        %4414 = vmatprep.subr.bf16.mxu0 %v3995
        %4415 = vmatpush2.bf16.msra.mxu0 %v3994
        %4416 = vmatprep.subr.bf16.mxu0 %v3991
        %4417 = vmatpush2.bf16.msra.mxu0 %v3990
        %4418 = vmatprep.subr.bf16.mxu0 %v3987
        %4419 = vmatpush2.bf16.msra.mxu0 %v3986
        %4420 = vmatprep.subr.bf16.mxu0 %v3983
        %4421 = vmatpush2.bf16.msra.mxu0 %v3982
        %4422 = vmatprep.subr.bf16.mxu0 %v3979
        %4423 = vmatpush2.bf16.msra.mxu0 %v3978
        %4424 = vmatprep.subr.bf16.mxu0 %v3975
        %4425 = vmatpush2.bf16.msra.mxu0 %v3974
        %4426 = vmatprep.subr.bf16.mxu0 %v3971
        %4427 = vmatpush2.bf16.msra.mxu0 %v3970
        %4428 = vmatprep.subr.bf16.mxu0 %v3967
        %4429 = vmatpush2.bf16.msra.mxu0 %v3966
        %4430 = vmatprep.mubr.bf16.mxu0 %v2716
        %4431 = vmatmul.mubr.bf16.gmra.mxu0 %v2715
        %v4432 = vpop.f32.mrf.mxu0
        %v4433 = vadd.f32 %v4392, %v4432
        %v4434 = vpop.f32.mrf.mxu0
        %v4435 = vadd.f32 %v4394, %v4434
        %v4436 = vpop.f32.mrf.mxu0
        %v4437 = vpop.f32.mrf.mxu0
        %4438 = vdwg.mxu0
        %4439 = vmatprep.subr.bf16.mxu0 %v3773
        %4440 = vmatpush1.bf16.msra.mxu0 %v3772
        %4441 = vmatprep.subr.bf16.mxu0 %v3769
        %4442 = vmatpush1.bf16.msra.mxu0 %v3768
        %4443 = vmatprep.subr.bf16.mxu0 %v3765
        %4444 = vmatpush1.bf16.msra.mxu0 %v3764
        %4445 = vmatprep.subr.bf16.mxu0 %v3761
        %4446 = vmatpush1.bf16.msra.mxu0 %v3760
        %4447 = vmatprep.subr.bf16.mxu0 %v3757
        %4448 = vmatpush1.bf16.msra.mxu0 %v3756
        %4449 = vmatprep.subr.bf16.mxu0 %v3753
        %4450 = vmatpush1.bf16.msra.mxu0 %v3752
        %4451 = vmatprep.subr.bf16.mxu0 %v3749
        %4452 = vmatpush1.bf16.msra.mxu0 %v3748
        %4453 = vmatprep.subr.bf16.mxu0 %v3745
        %4454 = vmatpush1.bf16.msra.mxu0 %v3744
        %4455 = vmatprep.subr.bf16.mxu0 %v3805
        %4456 = vmatpush2.bf16.msra.mxu0 %v3804
        %4457 = vmatprep.subr.bf16.mxu0 %v3801
        %4458 = vmatpush2.bf16.msra.mxu0 %v3800
        %4459 = vmatprep.subr.bf16.mxu0 %v3797
        %4460 = vmatpush2.bf16.msra.mxu0 %v3796
        %4461 = vmatprep.subr.bf16.mxu0 %v3793
        %4462 = vmatpush2.bf16.msra.mxu0 %v3792
        %4463 = vmatprep.subr.bf16.mxu0 %v3789
        %4464 = vmatpush2.bf16.msra.mxu0 %v3788
        %4465 = vmatprep.subr.bf16.mxu0 %v3785
        %4466 = vmatpush2.bf16.msra.mxu0 %v3784
        %4467 = vmatprep.subr.bf16.mxu0 %v3781
        %4468 = vmatpush2.bf16.msra.mxu0 %v3780
        %4469 = vmatprep.subr.bf16.mxu0 %v3777
        %4470 = vmatpush2.bf16.msra.mxu0 %v3776
        %4471 = vmatprep.mubr.bf16.mxu0 %v2710
        %4472 = vmatmul.mubr.bf16.gmra.mxu0 %v2709
        %v4473 = vpop.f32.mrf.mxu0
        %v4474 = vadd.f32 %v4266, %v4473
        %v4475 = vpop.f32.mrf.mxu0
        %v4476 = vadd.f32 %v4270, %v4475
        %v4477 = vpop.f32.mrf.mxu0
        %v4478 = vpop.f32.mrf.mxu0
        %4479 = vdwg.mxu0
        %4480 = vmatprep.subr.bf16.mxu0 %v3837
        %4481 = vmatpush1.bf16.msra.mxu0 %v3836
        %4482 = vmatprep.subr.bf16.mxu0 %v3833
        %4483 = vmatpush1.bf16.msra.mxu0 %v3832
        %4484 = vmatprep.subr.bf16.mxu0 %v3829
        %4485 = vmatpush1.bf16.msra.mxu0 %v3828
        %4486 = vmatprep.subr.bf16.mxu0 %v3825
        %4487 = vmatpush1.bf16.msra.mxu0 %v3824
        %4488 = vmatprep.subr.bf16.mxu0 %v3821
        %4489 = vmatpush1.bf16.msra.mxu0 %v3820
        %4490 = vmatprep.subr.bf16.mxu0 %v3817
        %4491 = vmatpush1.bf16.msra.mxu0 %v3816
        %4492 = vmatprep.subr.bf16.mxu0 %v3813
        %4493 = vmatpush1.bf16.msra.mxu0 %v3812
        %4494 = vmatprep.subr.bf16.mxu0 %v3809
        %4495 = vmatpush1.bf16.msra.mxu0 %v3808
        %4496 = vmatprep.subr.bf16.mxu0 %v3869
        %4497 = vmatpush2.bf16.msra.mxu0 %v3868
        %4498 = vmatprep.subr.bf16.mxu0 %v3865
        %4499 = vmatpush2.bf16.msra.mxu0 %v3864
        %4500 = vmatprep.subr.bf16.mxu0 %v3861
        %4501 = vmatpush2.bf16.msra.mxu0 %v3860
        %4502 = vmatprep.subr.bf16.mxu0 %v3857
        %4503 = vmatpush2.bf16.msra.mxu0 %v3856
        %4504 = vmatprep.subr.bf16.mxu0 %v3853
        %4505 = vmatpush2.bf16.msra.mxu0 %v3852
        %4506 = vmatprep.subr.bf16.mxu0 %v3849
        %4507 = vmatpush2.bf16.msra.mxu0 %v3848
        %4508 = vmatprep.subr.bf16.mxu0 %v3845
        %4509 = vmatpush2.bf16.msra.mxu0 %v3844
        %4510 = vmatprep.subr.bf16.mxu0 %v3841
        %4511 = vmatpush2.bf16.msra.mxu0 %v3840
        %4512 = vmatprep.mubr.bf16.mxu0 %v2712
        %4513 = vmatmul.mubr.bf16.gmra.mxu0 %v2711
        %v4514 = vpop.f32.mrf.mxu0
        %v4515 = vadd.f32 %v4474, %v4514
        %v4516 = vpop.f32.mrf.mxu0
        %v4517 = vadd.f32 %v4476, %v4516
        %v4518 = vpop.f32.mrf.mxu0
        %v4519 = vpop.f32.mrf.mxu0
        %4520 = vdwg.mxu0
        %4521 = vmatprep.subr.bf16.mxu0 %v3901
        %4522 = vmatpush1.bf16.msra.mxu0 %v3900
        %4523 = vmatprep.subr.bf16.mxu0 %v3897
        %4524 = vmatpush1.bf16.msra.mxu0 %v3896
        %4525 = vmatprep.subr.bf16.mxu0 %v3893
        %4526 = vmatpush1.bf16.msra.mxu0 %v3892
        %4527 = vmatprep.subr.bf16.mxu0 %v3889
        %4528 = vmatpush1.bf16.msra.mxu0 %v3888
        %4529 = vmatprep.subr.bf16.mxu0 %v3885
        %4530 = vmatpush1.bf16.msra.mxu0 %v3884
        %4531 = vmatprep.subr.bf16.mxu0 %v3881
        %4532 = vmatpush1.bf16.msra.mxu0 %v3880
        %4533 = vmatprep.subr.bf16.mxu0 %v3877
        %4534 = vmatpush1.bf16.msra.mxu0 %v3876
        %4535 = vmatprep.subr.bf16.mxu0 %v3873
        %4536 = vmatpush1.bf16.msra.mxu0 %v3872
        %4537 = vmatprep.subr.bf16.mxu0 %v3933
        %4538 = vmatpush2.bf16.msra.mxu0 %v3932
        %4539 = vmatprep.subr.bf16.mxu0 %v3929
        %4540 = vmatpush2.bf16.msra.mxu0 %v3928
        %4541 = vmatprep.subr.bf16.mxu0 %v3925
        %4542 = vmatpush2.bf16.msra.mxu0 %v3924
        %4543 = vmatprep.subr.bf16.mxu0 %v3921
        %4544 = vmatpush2.bf16.msra.mxu0 %v3920
        %4545 = vmatprep.subr.bf16.mxu0 %v3917
        %4546 = vmatpush2.bf16.msra.mxu0 %v3916
        %4547 = vmatprep.subr.bf16.mxu0 %v3913
        %4548 = vmatpush2.bf16.msra.mxu0 %v3912
        %4549 = vmatprep.subr.bf16.mxu0 %v3909
        %4550 = vmatpush2.bf16.msra.mxu0 %v3908
        %4551 = vmatprep.subr.bf16.mxu0 %v3905
        %4552 = vmatpush2.bf16.msra.mxu0 %v3904
        %4553 = vmatprep.mubr.bf16.mxu0 %v2714
        %4554 = vmatmul.mubr.bf16.gmra.mxu0 %v2713
        %v4555 = vpop.f32.mrf.mxu0
        %v4556 = vadd.f32 %v4515, %v4555
        %v4557 = vpop.f32.mrf.mxu0
        %v4558 = vadd.f32 %v4517, %v4557
        %v4559 = vpop.f32.mrf.mxu0
        %v4560 = vpop.f32.mrf.mxu0
        %4561 = vdwg.mxu0
        %4562 = vmatprep.subr.bf16.mxu0 %v3965
        %4563 = vmatpush1.bf16.msra.mxu0 %v3964
        %4564 = vmatprep.subr.bf16.mxu0 %v3961
        %4565 = vmatpush1.bf16.msra.mxu0 %v3960
        %4566 = vmatprep.subr.bf16.mxu0 %v3957
        %4567 = vmatpush1.bf16.msra.mxu0 %v3956
        %4568 = vmatprep.subr.bf16.mxu0 %v3953
        %4569 = vmatpush1.bf16.msra.mxu0 %v3952
        %4570 = vmatprep.subr.bf16.mxu0 %v3949
        %4571 = vmatpush1.bf16.msra.mxu0 %v3948
        %4572 = vmatprep.subr.bf16.mxu0 %v3945
        %4573 = vmatpush1.bf16.msra.mxu0 %v3944
        %4574 = vmatprep.subr.bf16.mxu0 %v3941
        %4575 = vmatpush1.bf16.msra.mxu0 %v3940
        %4576 = vmatprep.subr.bf16.mxu0 %v3937
        %4577 = vmatpush1.bf16.msra.mxu0 %v3936
        %4578 = vmatprep.subr.bf16.mxu0 %v3997
        %4579 = vmatpush2.bf16.msra.mxu0 %v3996
        %4580 = vmatprep.subr.bf16.mxu0 %v3993
        %4581 = vmatpush2.bf16.msra.mxu0 %v3992
        %4582 = vmatprep.subr.bf16.mxu0 %v3989
        %4583 = vmatpush2.bf16.msra.mxu0 %v3988
        %4584 = vmatprep.subr.bf16.mxu0 %v3985
        %4585 = vmatpush2.bf16.msra.mxu0 %v3984
        %4586 = vmatprep.subr.bf16.mxu0 %v3981
        %4587 = vmatpush2.bf16.msra.mxu0 %v3980
        %4588 = vmatprep.subr.bf16.mxu0 %v3977
        %4589 = vmatpush2.bf16.msra.mxu0 %v3976
        %4590 = vmatprep.subr.bf16.mxu0 %v3973
        %4591 = vmatpush2.bf16.msra.mxu0 %v3972
        %4592 = vmatprep.subr.bf16.mxu0 %v3969
        %4593 = vmatpush2.bf16.msra.mxu0 %v3968
        %4594 = vmatprep.mubr.bf16.mxu0 %v2716
        %4595 = vmatmul.mubr.bf16.gmra.mxu0 %v2715
        %v4596 = vpop.f32.mrf.mxu0
        %v4597 = vadd.f32 %v4556, %v4596
        %v4598 = vpop.f32.mrf.mxu0
        %v4599 = vadd.f32 %v4558, %v4598
        %v4600 = vpop.f32.mrf.mxu0
        %v4601 = vpop.f32.mrf.mxu0
        %4602 = vdwg.mxu0
        %v4603 = vmax.f32 %v4433, 0.0
        %v4604 = vmax.f32 %v4435, 0.0
        %v4605 = vmax.f32 %v4597, 0.0
        %v4606 = vmax.f32 %v4599, 0.0
        %v4607 = vpack.c.bf16 %v4603, %v4603
        %v4608 = vpack.c.bf16 %v4604, %v4604
        %v4609 = vpack.c.bf16 %v4605, %v4605
        %v4610 = vpack.c.bf16 %v4606, %v4606
        %v4611 = vld [vmem:[%s9] sm:$0xff]
        %v4612 = vld [vmem:[%s9 + $0x8] sm:$0xff]
        %v4613 = vld [vmem:[%s9 + $0x10] sm:$0xff]
        %v4614 = vld [vmem:[%s9 + $0x18] sm:$0xff]
        %v4615 = vld [vmem:[%s9 + $0x20] sm:$0xff]
        %v4616 = vld [vmem:[%s9 + $0x28] sm:$0xff]
        %v4617 = vld [vmem:[%s9 + $0x30] sm:$0xff]
        %v4618 = vld [vmem:[%s9 + $0x38] sm:$0xff]
        %v4619 = vld [vmem:[%s9 + $0x40] sm:$0xff]
        %v4620 = vld [vmem:[%s9 + $0x48] sm:$0xff]
        %v4621 = vld [vmem:[%s9 + $0x50] sm:$0xff]
        %v4622 = vld [vmem:[%s9 + $0x58] sm:$0xff]
        %v4623 = vld [vmem:[%s9 + $0x60] sm:$0xff]
        %v4624 = vld [vmem:[%s9 + $0x68] sm:$0xff]
        %v4625 = vld [vmem:[%s9 + $0x70] sm:$0xff]
        %v4626 = vld [vmem:[%s9 + $0x78] sm:$0xff]
        %v4627 = vld [vmem:[%s9 + $0x80] sm:$0xff]
        %v4628 = vld [vmem:[%s9 + $0x88] sm:$0xff]
        %v4629 = vld [vmem:[%s9 + $0x90] sm:$0xff]
        %v4630 = vld [vmem:[%s9 + $0x98] sm:$0xff]
        %v4631 = vld [vmem:[%s9 + $0xa0] sm:$0xff]
        %v4632 = vld [vmem:[%s9 + $0xa8] sm:$0xff]
        %v4633 = vld [vmem:[%s9 + $0xb0] sm:$0xff]
        %v4634 = vld [vmem:[%s9 + $0xb8] sm:$0xff]
        %v4635 = vld [vmem:[%s9 + $0xc0] sm:$0xff]
        %v4636 = vld [vmem:[%s9 + $0xc8] sm:$0xff]
        %v4637 = vld [vmem:[%s9 + $0xd0] sm:$0xff]
        %v4638 = vld [vmem:[%s9 + $0xd8] sm:$0xff]
        %v4639 = vld [vmem:[%s9 + $0xe0] sm:$0xff]
        %v4640 = vld [vmem:[%s9 + $0xe8] sm:$0xff]
        %v4641 = vld [vmem:[%s9 + $0xf0] sm:$0xff]
        %v4642 = vld [vmem:[%s9 + $0xf8] sm:$0xff]
        %v4643 = vld [vmem:[%s9 + $0x100] sm:$0xff]
        %v4644 = vld [vmem:[%s9 + $0x108] sm:$0xff]
        %v4645 = vld [vmem:[%s9 + $0x110] sm:$0xff]
        %v4646 = vld [vmem:[%s9 + $0x118] sm:$0xff]
        %v4647 = vld [vmem:[%s9 + $0x120] sm:$0xff]
        %v4648 = vld [vmem:[%s9 + $0x128] sm:$0xff]
        %v4649 = vld [vmem:[%s9 + $0x130] sm:$0xff]
        %v4650 = vld [vmem:[%s9 + $0x138] sm:$0xff]
        %v4651 = vld [vmem:[%s9 + $0x140] sm:$0xff]
        %v4652 = vld [vmem:[%s9 + $0x148] sm:$0xff]
        %v4653 = vld [vmem:[%s9 + $0x150] sm:$0xff]
        %v4654 = vld [vmem:[%s9 + $0x158] sm:$0xff]
        %v4655 = vld [vmem:[%s9 + $0x160] sm:$0xff]
        %v4656 = vld [vmem:[%s9 + $0x168] sm:$0xff]
        %v4657 = vld [vmem:[%s9 + $0x170] sm:$0xff]
        %v4658 = vld [vmem:[%s9 + $0x178] sm:$0xff]
        %v4659 = vld [vmem:[%s9 + $0x180] sm:$0xff]
        %v4660 = vld [vmem:[%s9 + $0x188] sm:$0xff]
        %v4661 = vld [vmem:[%s9 + $0x190] sm:$0xff]
        %v4662 = vld [vmem:[%s9 + $0x198] sm:$0xff]
        %v4663 = vld [vmem:[%s9 + $0x1a0] sm:$0xff]
        %v4664 = vld [vmem:[%s9 + $0x1a8] sm:$0xff]
        %v4665 = vld [vmem:[%s9 + $0x1b0] sm:$0xff]
        %v4666 = vld [vmem:[%s9 + $0x1b8] sm:$0xff]
        %v4667 = vld [vmem:[%s9 + $0x1c0] sm:$0xff]
        %v4668 = vld [vmem:[%s9 + $0x1c8] sm:$0xff]
        %v4669 = vld [vmem:[%s9 + $0x1d0] sm:$0xff]
        %v4670 = vld [vmem:[%s9 + $0x1d8] sm:$0xff]
        %v4671 = vld [vmem:[%s9 + $0x1e0] sm:$0xff]
        %v4672 = vld [vmem:[%s9 + $0x1e8] sm:$0xff]
        %v4673 = vld [vmem:[%s9 + $0x1f0] sm:$0xff]
        %v4674 = vld [vmem:[%s9 + $0x1f8] sm:$0xff]
        %v4675 = vld [vmem:[%s10] sm:$0x3]
        %v4740 = vunpack.c.l.b16 %v4611
        %v4741 = vunpack.c.h.b16 %v4611
        %v4742 = vunpack.c.l.b16 %v4612
        %v4743 = vunpack.c.h.b16 %v4612
        %v4744 = vunpack.c.l.b16 %v4613
        %v4745 = vunpack.c.h.b16 %v4613
        %v4746 = vunpack.c.l.b16 %v4614
        %v4747 = vunpack.c.h.b16 %v4614
        %v4748 = vunpack.c.l.b16 %v4615
        %v4749 = vunpack.c.h.b16 %v4615
        %v4750 = vunpack.c.l.b16 %v4616
        %v4751 = vunpack.c.h.b16 %v4616
        %v4752 = vunpack.c.l.b16 %v4617
        %v4753 = vunpack.c.h.b16 %v4617
        %v4754 = vunpack.c.l.b16 %v4618
        %v4755 = vunpack.c.h.b16 %v4618
        %v4756 = vunpack.c.l.b16 %v4619
        %v4757 = vunpack.c.h.b16 %v4619
        %v4758 = vunpack.c.l.b16 %v4620
        %v4759 = vunpack.c.h.b16 %v4620
        %v4760 = vunpack.c.l.b16 %v4621
        %v4761 = vunpack.c.h.b16 %v4621
        %v4762 = vunpack.c.l.b16 %v4622
        %v4763 = vunpack.c.h.b16 %v4622
        %v4764 = vunpack.c.l.b16 %v4623
        %v4765 = vunpack.c.h.b16 %v4623
        %v4766 = vunpack.c.l.b16 %v4624
        %v4767 = vunpack.c.h.b16 %v4624
        %v4768 = vunpack.c.l.b16 %v4625
        %v4769 = vunpack.c.h.b16 %v4625
        %v4770 = vunpack.c.l.b16 %v4626
        %v4771 = vunpack.c.h.b16 %v4626
        %v4772 = vunpack.c.l.b16 %v4627
        %v4773 = vunpack.c.h.b16 %v4627
        %v4774 = vunpack.c.l.b16 %v4628
        %v4775 = vunpack.c.h.b16 %v4628
        %v4776 = vunpack.c.l.b16 %v4629
        %v4777 = vunpack.c.h.b16 %v4629
        %v4778 = vunpack.c.l.b16 %v4630
        %v4779 = vunpack.c.h.b16 %v4630
        %v4780 = vunpack.c.l.b16 %v4631
        %v4781 = vunpack.c.h.b16 %v4631
        %v4782 = vunpack.c.l.b16 %v4632
        %v4783 = vunpack.c.h.b16 %v4632
        %v4784 = vunpack.c.l.b16 %v4633
        %v4785 = vunpack.c.h.b16 %v4633
        %v4786 = vunpack.c.l.b16 %v4634
        %v4787 = vunpack.c.h.b16 %v4634
        %v4788 = vunpack.c.l.b16 %v4635
        %v4789 = vunpack.c.h.b16 %v4635
        %v4790 = vunpack.c.l.b16 %v4636
        %v4791 = vunpack.c.h.b16 %v4636
        %v4792 = vunpack.c.l.b16 %v4637
        %v4793 = vunpack.c.h.b16 %v4637
        %v4794 = vunpack.c.l.b16 %v4638
        %v4795 = vunpack.c.h.b16 %v4638
        %v4796 = vunpack.c.l.b16 %v4639
        %v4797 = vunpack.c.h.b16 %v4639
        %v4798 = vunpack.c.l.b16 %v4640
        %v4799 = vunpack.c.h.b16 %v4640
        %v4800 = vunpack.c.l.b16 %v4641
        %v4801 = vunpack.c.h.b16 %v4641
        %v4802 = vunpack.c.l.b16 %v4642
        %v4803 = vunpack.c.h.b16 %v4642
        %v4804 = vunpack.c.l.b16 %v4643
        %v4805 = vunpack.c.h.b16 %v4643
        %v4806 = vunpack.c.l.b16 %v4644
        %v4807 = vunpack.c.h.b16 %v4644
        %v4808 = vunpack.c.l.b16 %v4645
        %v4809 = vunpack.c.h.b16 %v4645
        %v4810 = vunpack.c.l.b16 %v4646
        %v4811 = vunpack.c.h.b16 %v4646
        %v4812 = vunpack.c.l.b16 %v4647
        %v4813 = vunpack.c.h.b16 %v4647
        %v4814 = vunpack.c.l.b16 %v4648
        %v4815 = vunpack.c.h.b16 %v4648
        %v4816 = vunpack.c.l.b16 %v4649
        %v4817 = vunpack.c.h.b16 %v4649
        %v4818 = vunpack.c.l.b16 %v4650
        %v4819 = vunpack.c.h.b16 %v4650
        %v4820 = vunpack.c.l.b16 %v4651
        %v4821 = vunpack.c.h.b16 %v4651
        %v4822 = vunpack.c.l.b16 %v4652
        %v4823 = vunpack.c.h.b16 %v4652
        %v4824 = vunpack.c.l.b16 %v4653
        %v4825 = vunpack.c.h.b16 %v4653
        %v4826 = vunpack.c.l.b16 %v4654
        %v4827 = vunpack.c.h.b16 %v4654
        %v4828 = vunpack.c.l.b16 %v4655
        %v4829 = vunpack.c.h.b16 %v4655
        %v4830 = vunpack.c.l.b16 %v4656
        %v4831 = vunpack.c.h.b16 %v4656
        %v4832 = vunpack.c.l.b16 %v4657
        %v4833 = vunpack.c.h.b16 %v4657
        %v4834 = vunpack.c.l.b16 %v4658
        %v4835 = vunpack.c.h.b16 %v4658
        %v4836 = vunpack.c.l.b16 %v4659
        %v4837 = vunpack.c.h.b16 %v4659
        %v4838 = vunpack.c.l.b16 %v4660
        %v4839 = vunpack.c.h.b16 %v4660
        %v4840 = vunpack.c.l.b16 %v4661
        %v4841 = vunpack.c.h.b16 %v4661
        %v4842 = vunpack.c.l.b16 %v4662
        %v4843 = vunpack.c.h.b16 %v4662
        %v4844 = vunpack.c.l.b16 %v4663
        %v4845 = vunpack.c.h.b16 %v4663
        %v4846 = vunpack.c.l.b16 %v4664
        %v4847 = vunpack.c.h.b16 %v4664
        %v4848 = vunpack.c.l.b16 %v4665
        %v4849 = vunpack.c.h.b16 %v4665
        %v4850 = vunpack.c.l.b16 %v4666
        %v4851 = vunpack.c.h.b16 %v4666
        %v4852 = vunpack.c.l.b16 %v4667
        %v4853 = vunpack.c.h.b16 %v4667
        %v4854 = vunpack.c.l.b16 %v4668
        %v4855 = vunpack.c.h.b16 %v4668
        %v4856 = vunpack.c.l.b16 %v4669
        %v4857 = vunpack.c.h.b16 %v4669
        %v4858 = vunpack.c.l.b16 %v4670
        %v4859 = vunpack.c.h.b16 %v4670
        %v4860 = vunpack.c.l.b16 %v4671
        %v4861 = vunpack.c.h.b16 %v4671
        %v4862 = vunpack.c.l.b16 %v4672
        %v4863 = vunpack.c.h.b16 %v4672
        %v4864 = vunpack.c.l.b16 %v4673
        %v4865 = vunpack.c.h.b16 %v4673
        %v4866 = vunpack.c.l.b16 %v4674
        %v4867 = vunpack.c.h.b16 %v4674
        %v4868 = vpack.c.b16 %v4742, %v4740
        %v4869 = vpack.c.b16 %v4743, %v4741
        %v4870 = vpack.c.b16 %v4746, %v4744
        %v4871 = vpack.c.b16 %v4747, %v4745
        %v4872 = vpack.c.b16 %v4750, %v4748
        %v4873 = vpack.c.b16 %v4751, %v4749
        %v4874 = vpack.c.b16 %v4754, %v4752
        %v4875 = vpack.c.b16 %v4755, %v4753
        %v4876 = vpack.c.b16 %v4758, %v4756
        %v4877 = vpack.c.b16 %v4759, %v4757
        %v4878 = vpack.c.b16 %v4762, %v4760
        %v4879 = vpack.c.b16 %v4763, %v4761
        %v4880 = vpack.c.b16 %v4766, %v4764
        %v4881 = vpack.c.b16 %v4767, %v4765
        %v4882 = vpack.c.b16 %v4770, %v4768
        %v4883 = vpack.c.b16 %v4771, %v4769
        %v4884 = vpack.c.b16 %v4774, %v4772
        %v4885 = vpack.c.b16 %v4775, %v4773
        %v4886 = vpack.c.b16 %v4778, %v4776
        %v4887 = vpack.c.b16 %v4779, %v4777
        %v4888 = vpack.c.b16 %v4782, %v4780
        %v4889 = vpack.c.b16 %v4783, %v4781
        %v4890 = vpack.c.b16 %v4786, %v4784
        %v4891 = vpack.c.b16 %v4787, %v4785
        %v4892 = vpack.c.b16 %v4790, %v4788
        %v4893 = vpack.c.b16 %v4791, %v4789
        %v4894 = vpack.c.b16 %v4794, %v4792
        %v4895 = vpack.c.b16 %v4795, %v4793
        %v4896 = vpack.c.b16 %v4798, %v4796
        %v4897 = vpack.c.b16 %v4799, %v4797
        %v4898 = vpack.c.b16 %v4802, %v4800
        %v4899 = vpack.c.b16 %v4803, %v4801
        %v4900 = vpack.c.b16 %v4806, %v4804
        %v4901 = vpack.c.b16 %v4807, %v4805
        %v4902 = vpack.c.b16 %v4810, %v4808
        %v4903 = vpack.c.b16 %v4811, %v4809
        %v4904 = vpack.c.b16 %v4814, %v4812
        %v4905 = vpack.c.b16 %v4815, %v4813
        %v4906 = vpack.c.b16 %v4818, %v4816
        %v4907 = vpack.c.b16 %v4819, %v4817
        %v4908 = vpack.c.b16 %v4822, %v4820
        %v4909 = vpack.c.b16 %v4823, %v4821
        %v4910 = vpack.c.b16 %v4826, %v4824
        %v4911 = vpack.c.b16 %v4827, %v4825
        %v4912 = vpack.c.b16 %v4830, %v4828
        %v4913 = vpack.c.b16 %v4831, %v4829
        %v4914 = vpack.c.b16 %v4834, %v4832
        %v4915 = vpack.c.b16 %v4835, %v4833
        %v4916 = vpack.c.b16 %v4838, %v4836
        %v4917 = vpack.c.b16 %v4839, %v4837
        %v4918 = vpack.c.b16 %v4842, %v4840
        %v4919 = vpack.c.b16 %v4843, %v4841
        %v4920 = vpack.c.b16 %v4846, %v4844
        %v4921 = vpack.c.b16 %v4847, %v4845
        %v4922 = vpack.c.b16 %v4850, %v4848
        %v4923 = vpack.c.b16 %v4851, %v4849
        %v4924 = vpack.c.b16 %v4854, %v4852
        %v4925 = vpack.c.b16 %v4855, %v4853
        %v4926 = vpack.c.b16 %v4858, %v4856
        %v4927 = vpack.c.b16 %v4859, %v4857
        %v4928 = vpack.c.b16 %v4862, %v4860
        %v4929 = vpack.c.b16 %v4863, %v4861
        %v4930 = vpack.c.b16 %v4866, %v4864
        %v4931 = vpack.c.b16 %v4867, %v4865
        %v4997 = vlaneseq
        %v4998 = vshrl.u32 %v4997, 7
        %v4999 = vsub.s32 0, %v4998
        %v5000 = vrot.slane %v4675, %v4999
        %v5001 = vlaneseq
        %v5002 = vshrl.u32 %v5001, 7
        %v5003 = vsub.s32 1, %v5002
        %v5004 = vrot.slane %v4675, %v5003
        %5007 = vmatprep.subr.bf16.mxu0 %v4883
        %5008 = vmatpush1.bf16.msra.mxu0 %v4882
        %5009 = vmatprep.subr.bf16.mxu0 %v4881
        %5010 = vmatpush1.bf16.msra.mxu0 %v4880
        %5011 = vmatprep.subr.bf16.mxu0 %v4879
        %5012 = vmatpush1.bf16.msra.mxu0 %v4878
        %5013 = vmatprep.subr.bf16.mxu0 %v4877
        %5014 = vmatpush1.bf16.msra.mxu0 %v4876
        %5015 = vmatprep.subr.bf16.mxu0 %v4875
        %5016 = vmatpush1.bf16.msra.mxu0 %v4874
        %5017 = vmatprep.subr.bf16.mxu0 %v4873
        %5018 = vmatpush1.bf16.msra.mxu0 %v4872
        %5019 = vmatprep.subr.bf16.mxu0 %v4871
        %5020 = vmatpush1.bf16.msra.mxu0 %v4870
        %5021 = vmatprep.subr.bf16.mxu0 %v4869
        %5022 = vmatpush1.bf16.msra.mxu0 %v4868
        %5023 = vmatprep.subr.bf16.mxu0 %v4899
        %5024 = vmatpush2.bf16.msra.mxu0 %v4898
        %5025 = vmatprep.subr.bf16.mxu0 %v4897
        %5026 = vmatpush2.bf16.msra.mxu0 %v4896
        %5027 = vmatprep.subr.bf16.mxu0 %v4895
        %5028 = vmatpush2.bf16.msra.mxu0 %v4894
        %5029 = vmatprep.subr.bf16.mxu0 %v4893
        %5030 = vmatpush2.bf16.msra.mxu0 %v4892
        %5031 = vmatprep.subr.bf16.mxu0 %v4891
        %5032 = vmatpush2.bf16.msra.mxu0 %v4890
        %5033 = vmatprep.subr.bf16.mxu0 %v4889
        %5034 = vmatpush2.bf16.msra.mxu0 %v4888
        %5035 = vmatprep.subr.bf16.mxu0 %v4887
        %5036 = vmatpush2.bf16.msra.mxu0 %v4886
        %5037 = vmatprep.subr.bf16.mxu0 %v4885
        %5038 = vmatpush2.bf16.msra.mxu0 %v4884
        %5039 = vmatprep.mubr.bf16.mxu0 %v4608
        %5040 = vmatmul.mubr.bf16.gmra.mxu0 %v4607
        %v5041 = vpop.f32.mrf.mxu0
        %v5042 = vadd.f32 %v5000, %v5041
        %v5043 = vpop.f32.mrf.mxu0
        %v5044 = vadd.f32 %v5004, %v5043
        %v5045 = vpop.f32.mrf.mxu0
        %v5046 = vpop.f32.mrf.mxu0
        %5047 = vdwg.mxu0
        %5048 = vmatprep.subr.bf16.mxu0 %v4915
        %5049 = vmatpush1.bf16.msra.mxu0 %v4914
        %5050 = vmatprep.subr.bf16.mxu0 %v4913
        %5051 = vmatpush1.bf16.msra.mxu0 %v4912
        %5052 = vmatprep.subr.bf16.mxu0 %v4911
        %5053 = vmatpush1.bf16.msra.mxu0 %v4910
        %5054 = vmatprep.subr.bf16.mxu0 %v4909
        %5055 = vmatpush1.bf16.msra.mxu0 %v4908
        %5056 = vmatprep.subr.bf16.mxu0 %v4907
        %5057 = vmatpush1.bf16.msra.mxu0 %v4906
        %5058 = vmatprep.subr.bf16.mxu0 %v4905
        %5059 = vmatpush1.bf16.msra.mxu0 %v4904
        %5060 = vmatprep.subr.bf16.mxu0 %v4903
        %5061 = vmatpush1.bf16.msra.mxu0 %v4902
        %5062 = vmatprep.subr.bf16.mxu0 %v4901
        %5063 = vmatpush1.bf16.msra.mxu0 %v4900
        %5064 = vmatprep.subr.bf16.mxu0 %v4931
        %5065 = vmatpush2.bf16.msra.mxu0 %v4930
        %5066 = vmatprep.subr.bf16.mxu0 %v4929
        %5067 = vmatpush2.bf16.msra.mxu0 %v4928
        %5068 = vmatprep.subr.bf16.mxu0 %v4927
        %5069 = vmatpush2.bf16.msra.mxu0 %v4926
        %5070 = vmatprep.subr.bf16.mxu0 %v4925
        %5071 = vmatpush2.bf16.msra.mxu0 %v4924
        %5072 = vmatprep.subr.bf16.mxu0 %v4923
        %5073 = vmatpush2.bf16.msra.mxu0 %v4922
        %5074 = vmatprep.subr.bf16.mxu0 %v4921
        %5075 = vmatpush2.bf16.msra.mxu0 %v4920
        %5076 = vmatprep.subr.bf16.mxu0 %v4919
        %5077 = vmatpush2.bf16.msra.mxu0 %v4918
        %5078 = vmatprep.subr.bf16.mxu0 %v4917
        %5079 = vmatpush2.bf16.msra.mxu0 %v4916
        %5080 = vmatprep.mubr.bf16.mxu0 %v4610
        %5081 = vmatmul.mubr.bf16.gmra.mxu0 %v4609
        %v5082 = vpop.f32.mrf.mxu0
        %v5083 = vadd.f32 %v5042, %v5082
        %v5084 = vpop.f32.mrf.mxu0
        %v5085 = vadd.f32 %v5044, %v5084
        %v5086 = vpop.f32.mrf.mxu0
        %v5087 = vpop.f32.mrf.mxu0
        %5088 = vdwg.mxu0
        %v5089 = vmax.f32 %v5083, 0.0
        %v5090 = vmax.f32 %v5085, 0.0
        %v5091 = vpack.c.bf16 %v5089, %v5089
        %v5092 = vpack.c.bf16 %v5090, %v5090
        %v5093 = vld [vmem:[%s11] sm:$0xf]
        %v5094 = vld [vmem:[%s11 + $0x4] sm:$0xf]
        %v5095 = vld [vmem:[%s11 + $0x8] sm:$0xf]
        %v5096 = vld [vmem:[%s11 + $0xc] sm:$0xf]
        %v5097 = vld [vmem:[%s11 + $0x10] sm:$0xf]
        %v5098 = vld [vmem:[%s11 + $0x14] sm:$0xf]
        %v5099 = vld [vmem:[%s11 + $0x18] sm:$0xf]
        %v5100 = vld [vmem:[%s11 + $0x1c] sm:$0xf]
        %v5101 = vld [vmem:[%s11 + $0x20] sm:$0xf]
        %v5102 = vld [vmem:[%s11 + $0x24] sm:$0xf]
        %v5103 = vld [vmem:[%s11 + $0x28] sm:$0xf]
        %v5104 = vld [vmem:[%s11 + $0x2c] sm:$0xf]
        %v5105 = vld [vmem:[%s11 + $0x30] sm:$0xf]
        %v5106 = vld [vmem:[%s11 + $0x34] sm:$0xf]
        %v5107 = vld [vmem:[%s11 + $0x38] sm:$0xf]
        %v5108 = vld [vmem:[%s11 + $0x3c] sm:$0xf]
        %v5109 = vld [vmem:[%s11 + $0x40] sm:$0xf]
        %v5110 = vld [vmem:[%s11 + $0x44] sm:$0xf]
        %v5111 = vld [vmem:[%s11 + $0x48] sm:$0xf]
        %v5112 = vld [vmem:[%s11 + $0x4c] sm:$0xf]
        %v5113 = vld [vmem:[%s11 + $0x50] sm:$0xf]
        %v5114 = vld [vmem:[%s11 + $0x54] sm:$0xf]
        %v5115 = vld [vmem:[%s11 + $0x58] sm:$0xf]
        %v5116 = vld [vmem:[%s11 + $0x5c] sm:$0xf]
        %v5117 = vld [vmem:[%s11 + $0x60] sm:$0xf]
        %v5118 = vld [vmem:[%s11 + $0x64] sm:$0xf]
        %v5119 = vld [vmem:[%s11 + $0x68] sm:$0xf]
        %v5120 = vld [vmem:[%s11 + $0x6c] sm:$0xf]
        %v5121 = vld [vmem:[%s11 + $0x70] sm:$0xf]
        %v5122 = vld [vmem:[%s11 + $0x74] sm:$0xf]
        %v5123 = vld [vmem:[%s11 + $0x78] sm:$0xf]
        %v5124 = vld [vmem:[%s11 + $0x7c] sm:$0xf]
        %v5125 = vld [vmem:[%s12] sm:$0x1]
        %v5158 = vunpack.c.l.b16 %v5093
        %v5159 = vunpack.c.l.b16 %v5094
        %v5160 = vunpack.c.l.b16 %v5095
        %v5161 = vunpack.c.l.b16 %v5096
        %v5162 = vunpack.c.l.b16 %v5097
        %v5163 = vunpack.c.l.b16 %v5098
        %v5164 = vunpack.c.l.b16 %v5099
        %v5165 = vunpack.c.l.b16 %v5100
        %v5166 = vunpack.c.l.b16 %v5101
        %v5167 = vunpack.c.l.b16 %v5102
        %v5168 = vunpack.c.l.b16 %v5103
        %v5169 = vunpack.c.l.b16 %v5104
        %v5170 = vunpack.c.l.b16 %v5105
        %v5171 = vunpack.c.l.b16 %v5106
        %v5172 = vunpack.c.l.b16 %v5107
        %v5173 = vunpack.c.l.b16 %v5108
        %v5174 = vunpack.c.l.b16 %v5109
        %v5175 = vunpack.c.l.b16 %v5110
        %v5176 = vunpack.c.l.b16 %v5111
        %v5177 = vunpack.c.l.b16 %v5112
        %v5178 = vunpack.c.l.b16 %v5113
        %v5179 = vunpack.c.l.b16 %v5114
        %v5180 = vunpack.c.l.b16 %v5115
        %v5181 = vunpack.c.l.b16 %v5116
        %v5182 = vunpack.c.l.b16 %v5117
        %v5183 = vunpack.c.l.b16 %v5118
        %v5184 = vunpack.c.l.b16 %v5119
        %v5185 = vunpack.c.l.b16 %v5120
        %v5186 = vunpack.c.l.b16 %v5121
        %v5187 = vunpack.c.l.b16 %v5122
        %v5188 = vunpack.c.l.b16 %v5123
        %v5189 = vunpack.c.l.b16 %v5124
        %v5190 = vpack.c.b16 %v5159, %v5158
        %v5191 = vpack.c.b16 %v5161, %v5160
        %v5192 = vpack.c.b16 %v5163, %v5162
        %v5193 = vpack.c.b16 %v5165, %v5164
        %v5194 = vpack.c.b16 %v5167, %v5166
        %v5195 = vpack.c.b16 %v5169, %v5168
        %v5196 = vpack.c.b16 %v5171, %v5170
        %v5197 = vpack.c.b16 %v5173, %v5172
        %v5198 = vpack.c.b16 %v5175, %v5174
        %v5199 = vpack.c.b16 %v5177, %v5176
        %v5200 = vpack.c.b16 %v5179, %v5178
        %v5201 = vpack.c.b16 %v5181, %v5180
        %v5202 = vpack.c.b16 %v5183, %v5182
        %v5203 = vpack.c.b16 %v5185, %v5184
        %v5204 = vpack.c.b16 %v5187, %v5186
        %v5205 = vpack.c.b16 %v5189, %v5188
        %5222 = vmatprep.subr.bf16.mxu0 0
        %5223 = vmatpush1.bf16.msra.mxu0 %v5197
        %5224 = vmatprep.subr.bf16.mxu0 0
        %5225 = vmatpush1.bf16.msra.mxu0 %v5196
        %5226 = vmatprep.subr.bf16.mxu0 0
        %5227 = vmatpush1.bf16.msra.mxu0 %v5195
        %5228 = vmatprep.subr.bf16.mxu0 0
        %5229 = vmatpush1.bf16.msra.mxu0 %v5194
        %5230 = vmatprep.subr.bf16.mxu0 0
        %5231 = vmatpush1.bf16.msra.mxu0 %v5193
        %5232 = vmatprep.subr.bf16.mxu0 0
        %5233 = vmatpush1.bf16.msra.mxu0 %v5192
        %5234 = vmatprep.subr.bf16.mxu0 0
        %5235 = vmatpush1.bf16.msra.mxu0 %v5191
        %5236 = vmatprep.subr.bf16.mxu0 0
        %5237 = vmatpush1.bf16.msra.mxu0 %v5190
        %5238 = vmatprep.subr.bf16.mxu0 0
        %5239 = vmatpush2.bf16.msra.mxu0 %v5205
        %5240 = vmatprep.subr.bf16.mxu0 0
        %5241 = vmatpush2.bf16.msra.mxu0 %v5204
        %5242 = vmatprep.subr.bf16.mxu0 0
        %5243 = vmatpush2.bf16.msra.mxu0 %v5203
        %5244 = vmatprep.subr.bf16.mxu0 0
        %5245 = vmatpush2.bf16.msra.mxu0 %v5202
        %5246 = vmatprep.subr.bf16.mxu0 0
        %5247 = vmatpush2.bf16.msra.mxu0 %v5201
        %5248 = vmatprep.subr.bf16.mxu0 0
        %5249 = vmatpush2.bf16.msra.mxu0 %v5200
        %5250 = vmatprep.subr.bf16.mxu0 0
        %5251 = vmatpush2.bf16.msra.mxu0 %v5199
        %5252 = vmatprep.subr.bf16.mxu0 0
        %5253 = vmatpush2.bf16.msra.mxu0 %v5198
        %5254 = vmatprep.mubr.bf16.mxu0 %v5092
        %5255 = vmatmul.mubr.bf16.gmra.mxu0 %v5091
        %v5256 = vpop.f32.mrf.mxu0
        %v5257 = vadd.f32 %v5125, %v5256
        %v5258 = vpop.f32.mrf.mxu0
        %v5259 = vpop.f32.mrf.mxu0
        %v5260 = vpop.f32.mrf.mxu0
        %5261 = vdwg.mxu0
        %v5262 = vlaneseq
        %v5263 = vshrl.u32 %v5262, 7
        %v5264 = vsub.s32 0, %v5263
        %v5265 = vrot.slane %v5257, %v5264
        %5266 = vst [vmem:[%s483] sm:$0xff] %v5265
      $region80: #{classification_layer_forward.3} parent=71 // pred_fallthru
        _
      %p5267 = scmp.lt.s32.totalorder %s28, 1
      %s5268 = scalar_select %p5267, %s28, 1
      %s5269 = smul.addr %s5268, 8
      %s5270 = scalar_lea.vmem %s13, %s5269
      // Predicated region
      $region81: #{classification_layer_forward.3} parent=71 // pred_check
        %p5271 = pneg %p339
      $region82: #{classification_layer_forward.3} parent=71 // pred_check_branch
        %5273 = sbr.rel (%p5271) target = $region84
      $region83: #{classification_layer_forward.3} parent=71 // pred_region
        _
      $region84: #{classification_layer_forward.3} parent=71 // pred_fallthru
        _
    $region72: #{classification_layer_forward.3} parent=5 // pred_fallthru
      _
    %p5274 = scmp.le.s32.totalorder 2, %s19
    // Predicated region
    $region85: #{classification_layer_forward.3} parent=5 // pred_check
      %p5275 = pneg %p5274
    $region86: #{classification_layer_forward.3} parent=5 // pred_check_branch
      %5277 = sbr.rel (%p5275) target = $region88
    $region87: #{classification_layer_forward.3} parent=5 // pred_region
      %s5278 = ssub.s32 %s19, 2
      // Predicated region
      $region89: #{classification_layer_forward.3} parent=87 // pred_check
        %p5279 = pneg %p345
      $region90: #{classification_layer_forward.3} parent=87 // pred_check_branch
        %5281 = sbr.rel (%p5279) target = $region92
      $region91: #{classification_layer_forward.3} parent=87 // pred_region
        %p5282 = scmp.lt.s32.totalorder %s30, 1
        %s5283 = scalar_select %p5282, %s30, 1
        %s5284 = smul.addr %s5283, 8
        %s5285 = scalar_lea.vmem %s13, %s5284
      $region92: #{classification_layer_forward.3} parent=87 // pred_fallthru
        _
    $region88: #{classification_layer_forward.3} parent=5 // pred_fallthru
      _
  $region6: #{classification_layer_forward.3} parent=0 // loop_footer
    %s23 = sadd.s32 1, %s19
  $region7: #{classification_layer_forward.3} parent=0 // loop_footer_branch
    %18 = sbr.rel target = $region3
  $region8: #{classification_layer_forward.3} parent=0 // loop_exit
    _

</llo_original>
